<compile_context>
chip_gen: v7x
topology: tpu7x:2x2x1
jax: 0.10.0
libtpu: 0.0.40
codegen_flags: <defaults>
</compile_context>

<pallas_src>
import numpy as np
import jax
import jax.numpy as jnp
from jax.experimental import pallas as pl
from jax.experimental.pallas import tpu as pltpu


def foldnet_encoder_kernel(x_ref, w1_ref, b1_ref, w2_ref, b2_ref,
                           w3a_ref, w3b_ref, b3_ref, w4_ref, b4_ref,
                           o_ref, h2_ref, g_ref, mx_ref):
    p = pl.program_id(1)          # phase: 0 = layers 1-2 + global max, 1 = layers 3-4 + final max
    n = pl.program_id(2)          # N-tile index
    nt = pl.num_programs(2)
    bblk, tn, _ = x_ref.shape

    @pl.when((p == 0) & (n == 0))
    def _init():
        g_ref[...] = jnp.full(g_ref.shape, -jnp.inf, jnp.float32)
        mx_ref[...] = jnp.full(mx_ref.shape, -jnp.inf, jnp.float32)

    @pl.when(p == 0)
    def _phase0():
        x = x_ref[...]                                            # (Bblk, TN, 3) f32
        # first_mpl: Conv1d(3->128,k=1)+BN+ReLU.  K=3 -> keep off the MXU (VPU FMAs).
        h1 = (x[:, :, 0:1] * w1_ref[0:1, :]
              + x[:, :, 1:2] * w1_ref[1:2, :]
              + x[:, :, 2:3] * w1_ref[2:3, :]
              + b1_ref[...])
        h1 = jnp.maximum(h1, 0.0)                                 # (Bblk, TN, 128) f32

        # first_mpl_last: Conv1d(128->256,k=1)+BN (no ReLU); bf16 operands, f32 acc.
        h1b = h1.astype(jnp.bfloat16).reshape(bblk * tn, 128)
        h2 = jnp.dot(h1b, w2_ref[...], preferred_element_type=jnp.float32)
        h2 = h2.reshape(bblk, tn, 256) + b2_ref[...]              # (Bblk, TN, 256) f32

        h2_ref[n] = h2                                            # stash tile for phase 1
        g_ref[...] = jnp.maximum(g_ref[...],
                                 jnp.max(h2, axis=1, keepdims=True))

    @pl.when(p == 1)
    def _phase1():
        h2 = h2_ref[n]                                            # (Bblk, TN, 256) f32
        h2b = h2.astype(jnp.bfloat16).reshape(bblk * tn, 256)
        gb = g_ref[...].astype(jnp.bfloat16).reshape(bblk, 256)

        # second_mpl: concat([h2, bcast(g)]) @ W3 == h2 @ W3[:256] + g @ W3[256:]
        h3 = jnp.dot(h2b, w3a_ref[...], preferred_element_type=jnp.float32)
        h3 = h3.reshape(bblk, tn, 512)
        gproj = jnp.dot(gb, w3b_ref[...], preferred_element_type=jnp.float32)  # (Bblk, 512)
        h3 = jnp.maximum(h3 + gproj[:, None, :] + b3_ref[...], 0.0)

        # second_mpl_last: Conv1d(512->1024,k=1)+BN
        h3b = h3.astype(jnp.bfloat16).reshape(bblk * tn, 512)
        h4 = jnp.dot(h3b, w4_ref[...], preferred_element_type=jnp.float32)
        h4 = h4.reshape(bblk, tn, 1024) + b4_ref[...]             # (Bblk, TN, 1024) f32

        mx_ref[...] = jnp.maximum(mx_ref[...], jnp.max(h4, axis=1))

    @pl.when((p == 1) & (n == nt - 1))
    def _emit():
        o_ref[0] = mx_ref[...]


def foldnet_encoder(x, params, *, bblk=None, tn=None):
    """x: (B, N, 3) float32 -> (B, 1024) float32."""
    B, N, C = x.shape
    assert C == 3
    W1, b1, W2, b2, W3a, W3b, b3, W4, b4 = params

    if bblk is None:
        bblk = 2 if B % 2 == 0 else 1
    assert B % bblk == 0
    if tn is None:
        tn = N
        for cand in (256, 128):
            if N % cand == 0:
                tn = cand
                break
    assert N % tn == 0
    nt = N // tn

    # Constant weights/biases: whole-array VMEM residents (single-buffered).
    resident_specs = [pl.BlockSpec(memory_space=pltpu.MemorySpace.VMEM)
                      for _ in range(9)]

    out = pl.pallas_call(
        foldnet_encoder_kernel,
        out_shape=jax.ShapeDtypeStruct((B // bblk, bblk, 1024), jnp.float32),
        grid_spec=pltpu.PrefetchScalarGridSpec(
            num_scalar_prefetch=0,
            grid=(B // bblk, 2, nt),                 # (batch-block, phase, N-tile)
            in_specs=[pl.BlockSpec((bblk, tn, 3), lambda b, p, n: (b, n, 0))]
                     + resident_specs,
            out_specs=pl.BlockSpec((1, bblk, 1024), lambda b, p, n: (b, 0, 0)),
            scratch_shapes=[
                pltpu.VMEM((nt, bblk, tn, 256), jnp.float32),   # h2 stash (full N)
                pltpu.VMEM((bblk, 1, 256), jnp.float32),        # running global max g
                pltpu.VMEM((bblk, 1024), jnp.float32),          # running final max
            ],
        ),
        compiler_params=pltpu.CompilerParams(
            dimension_semantics=("parallel", "arbitrary", "arbitrary"),
            vmem_limit_bytes=32 * 1024 * 1024,       # safe on v5e/v6e/v7x
        ),
    )(x, W1, b1, W2, b2, W3a, W3b, b3, W4, b4)
    return out.reshape(B, 1024)


def _conv_bn_params(key, cin, cout, eps=1e-5):
    """Deterministic Conv1d(k=1)+BatchNorm1d (eval) folded into (W_eff, b_eff)."""
    kw, kb, kg, kbeta, km, kv = jax.random.split(key, 6)
    W = jax.random.normal(kw, (cout, cin), jnp.float32) * 0.05
    b = jax.random.normal(kb, (cout,), jnp.float32) * 0.05
    gamma = 1.0 + 0.1 * jax.random.normal(kg, (cout,), jnp.float32)
    beta = 0.1 * jax.random.normal(kbeta, (cout,), jnp.float32)
    r_mean = 0.1 * jax.random.normal(km, (cout,), jnp.float32)
    r_var = 0.9 + 0.1 * jnp.abs(jax.random.normal(kv, (cout,), jnp.float32))
    scale = gamma / jnp.sqrt(r_var + eps)
    W_eff = (W * scale[:, None]).T                                # (Cin, Cout)
    b_eff = (b - r_mean) * scale + beta                           # (Cout,)
    return W_eff.astype(jnp.float32), b_eff[None, :].astype(jnp.float32)


def init_params(key):
    k1, k2, k3, k4 = jax.random.split(key, 4)
    W1, b1 = _conv_bn_params(k1, 3, 128)      # first_mpl
    W2, b2 = _conv_bn_params(k2, 128, 256)    # first_mpl_last
    W3, b3 = _conv_bn_params(k3, 512, 512)    # second_mpl
    W4, b4 = _conv_bn_params(k4, 512, 1024)   # second_mpl_last
    W3a, W3b = W3[:256], W3[256:]             # local / global halves of the concat
    # MXU weights in bf16 (kernel accumulates in f32); layer-1 weights / biases stay f32.
    return (W1, b1,
            W2.astype(jnp.bfloat16), b2,
            W3a.astype(jnp.bfloat16), W3b.astype(jnp.bfloat16), b3,
            W4.astype(jnp.bfloat16), b4)


def ref_forward(x, params):
    """Pure-JAX reference of the PyTorch forward with the same numerics as the
    kernel (eval-mode folded BN, bf16 matmul operands, f32 accumulation)."""
    W1, b1, W2, b2, W3a, W3b, b3, W4, b4 = params
    h1 = jnp.maximum(x[..., 0:1] * W1[0] + x[..., 1:2] * W1[1]
                     + x[..., 2:3] * W1[2] + b1, 0.0)
    h2 = jnp.dot(h1.astype(jnp.bfloat16), W2,
                 preferred_element_type=jnp.float32) + b2
    g = jnp.max(h2, axis=1, keepdims=True)
    h3 = (jnp.dot(h2.astype(jnp.bfloat16), W3a, preferred_element_type=jnp.float32)
          + jnp.dot(g.astype(jnp.bfloat16), W3b, preferred_element_type=jnp.float32)
          + b3)
    h3 = jnp.maximum(h3, 0.0)
    h4 = jnp.dot(h3.astype(jnp.bfloat16), W4,
                 preferred_element_type=jnp.float32) + b4
    return jnp.max(h4, axis=1)


if __name__ == "__main__":
    key = jax.random.PRNGKey(0)
    kx, kp = jax.random.split(key)

    # Small point cloud (batch, n_points, xyz).  B=4 with Bblk=2 gives two
    # parallel batch steps; N=256 with TN=128 exercises the two N-tile phases.
    B, N = 4, 256
    x = jax.random.normal(kx, (B, N, 3), jnp.float32)
    params = init_params(kp)

    out = jax.block_until_ready(foldnet_encoder(x, params))
    ref = jax.block_until_ready(ref_forward(x, params))
    np.testing.assert_allclose(np.asarray(out), np.asarray(ref), rtol=2e-2, atol=2e-2)
    assert out.shape == (B, 1024)

    print("KERNEL_OK")
</pallas_src>

<mosaic_0001>
module attributes {stable_mosaic.version = 11 : i64} {
  func.func @foldnet_encoder_kernel(%arg0: i32, %arg1: i32, %arg2: i32, %arg3: memref<2x256x3xf32, #tpu.memory_space<vmem>>, %arg4: memref<3x128xf32, #tpu.memory_space<vmem>>, %arg5: memref<1x128xf32, #tpu.memory_space<vmem>>, %arg6: memref<128x256xbf16, #tpu.memory_space<vmem>>, %arg7: memref<1x256xf32, #tpu.memory_space<vmem>>, %arg8: memref<256x512xbf16, #tpu.memory_space<vmem>>, %arg9: memref<256x512xbf16, #tpu.memory_space<vmem>>, %arg10: memref<1x512xf32, #tpu.memory_space<vmem>>, %arg11: memref<512x1024xbf16, #tpu.memory_space<vmem>>, %arg12: memref<1x1024xf32, #tpu.memory_space<vmem>>, %arg13: memref<1x2x1024xf32, #tpu.memory_space<vmem>>, %arg14: memref<1x2x256x256xf32, #tpu.memory_space<vmem>>, %arg15: memref<2x1x256xf32, #tpu.memory_space<vmem>>, %arg16: memref<2x1024xf32, #tpu.memory_space<vmem>>) attributes {dimension_semantics = [#tpu.dimension_semantics<parallel>, #tpu.dimension_semantics<arbitrary>, #tpu.dimension_semantics<arbitrary>], iteration_bounds = array<i64: 2, 2, 1>, scalar_prefetch = 0 : i64, scratch_operands = 3 : i64, tpu.core_type = #tpu.core_type<tc>, window_params = [{transform_indices = @transform_0, window_bounds = array<i64: 2, 256, 3>}, {pipeline_mode = #tpu.pipeline_mode<synchronous>, transform_indices = @transform_1, window_bounds = array<i64: 3, 128>}, {pipeline_mode = #tpu.pipeline_mode<synchronous>, transform_indices = @transform_2, window_bounds = array<i64: 1, 128>}, {pipeline_mode = #tpu.pipeline_mode<synchronous>, transform_indices = @transform_3, window_bounds = array<i64: 128, 256>}, {pipeline_mode = #tpu.pipeline_mode<synchronous>, transform_indices = @transform_4, window_bounds = array<i64: 1, 256>}, {pipeline_mode = #tpu.pipeline_mode<synchronous>, transform_indices = @transform_5, window_bounds = array<i64: 256, 512>}, {pipeline_mode = #tpu.pipeline_mode<synchronous>, transform_indices = @transform_6, window_bounds = array<i64: 256, 512>}, {pipeline_mode = #tpu.pipeline_mode<synchronous>, transform_indices = @transform_7, window_bounds = array<i64: 1, 512>}, {pipeline_mode = #tpu.pipeline_mode<synchronous>, transform_indices = @transform_8, window_bounds = array<i64: 512, 1024>}, {pipeline_mode = #tpu.pipeline_mode<synchronous>, transform_indices = @transform_9, window_bounds = array<i64: 1, 1024>}, {transform_indices = @transform_10, window_bounds = array<i64: 1, 2, 1024>}]} {
    %c0_i32 = arith.constant 0 : i32
    %0 = arith.cmpi eq, %arg1, %c0_i32 : i32
    %c0_i32_0 = arith.constant 0 : i32
    %1 = arith.cmpi eq, %arg2, %c0_i32_0 : i32
    %2 = arith.andi %0, %1 : i1
    %3 = arith.extui %2 : i1 to i32
    %c0_i32_1 = arith.constant 0 : i32
    %4 = arith.cmpi ne, %3, %c0_i32_1 : i32
    scf.if %4 {
      %cst = arith.constant 0xFF800000 : f32
      %16 = vector.broadcast %cst : f32 to vector<2x1x256xf32>
      %c0 = arith.constant 0 : index
      %c0_8 = arith.constant 0 : index
      %c0_9 = arith.constant 0 : index
      %17 = vector.load %arg15[%c0, %c0_8, %c0_9] : memref<2x1x256xf32, #tpu.memory_space<vmem>>, vector<2x1x256xf32>
      tpu.vector_store %arg15[%c0, %c0_8, %c0_9], %16 {strides = array<i32>} : memref<2x1x256xf32, #tpu.memory_space<vmem>>, vector<2x1x256xf32>,
      %cst_10 = arith.constant 0xFF800000 : f32
      %18 = vector.broadcast %cst_10 : f32 to vector<2x1024xf32>
      %c0_11 = arith.constant 0 : index
      %c0_12 = arith.constant 0 : index
      %19 = vector.load %arg16[%c0_11, %c0_12] : memref<2x1024xf32, #tpu.memory_space<vmem>>, vector<2x1024xf32>
      tpu.vector_store %arg16[%c0_11, %c0_12], %18 {strides = array<i32>} : memref<2x1024xf32, #tpu.memory_space<vmem>>, vector<2x1024xf32>,
    } else {
    }
    %c0_i32_2 = arith.constant 0 : i32
    %5 = arith.cmpi eq, %arg1, %c0_i32_2 : i32
    %6 = arith.extui %5 : i1 to i32
    %c0_i32_3 = arith.constant 0 : i32
    %7 = arith.cmpi ne, %6, %c0_i32_3 : i32
    scf.if %7 {
      %c0 = arith.constant 0 : index
      %c0_8 = arith.constant 0 : index
      %c0_9 = arith.constant 0 : index
      %16 = vector.load %arg3[%c0, %c0_8, %c0_9] : memref<2x256x3xf32, #tpu.memory_space<vmem>>, vector<2x256x3xf32>
      %17 = vector.extract_strided_slice %16 {offsets = [0, 0, 0], sizes = [2, 256, 1], strides = [1, 1, 1]} : vector<2x256x3xf32> to vector<2x256x1xf32>
      %c0_10 = arith.constant 0 : index
      %c0_11 = arith.constant 0 : index
      %18 = vector.load %arg4[%c0_10, %c0_11] : memref<3x128xf32, #tpu.memory_space<vmem>>, vector<1x128xf32>
      %19 = vector.shape_cast %18 : vector<1x128xf32> to vector<1x1x128xf32>
      %20 = vector.broadcast %17 : vector<2x256x1xf32> to vector<2x256x128xf32>
      %21 = vector.broadcast %19 : vector<1x1x128xf32> to vector<2x256x128xf32>
      %22 = arith.mulf %20, %21 : vector<2x256x128xf32>
      %23 = vector.extract_strided_slice %16 {offsets = [0, 0, 1], sizes = [2, 256, 1], strides = [1, 1, 1]} : vector<2x256x3xf32> to vector<2x256x1xf32>
      %c1 = arith.constant 1 : index
      %c0_12 = arith.constant 0 : index
      %24 = vector.load %arg4[%c1, %c0_12] : memref<3x128xf32, #tpu.memory_space<vmem>>, vector<1x128xf32>
      %25 = vector.shape_cast %24 : vector<1x128xf32> to vector<1x1x128xf32>
      %26 = vector.broadcast %23 : vector<2x256x1xf32> to vector<2x256x128xf32>
      %27 = vector.broadcast %25 : vector<1x1x128xf32> to vector<2x256x128xf32>
      %28 = arith.mulf %26, %27 : vector<2x256x128xf32>
      %29 = arith.addf %22, %28 : vector<2x256x128xf32>
      %30 = vector.extract_strided_slice %16 {offsets = [0, 0, 2], sizes = [2, 256, 1], strides = [1, 1, 1]} : vector<2x256x3xf32> to vector<2x256x1xf32>
      %c2 = arith.constant 2 : index
      %c0_13 = arith.constant 0 : index
      %31 = vector.load %arg4[%c2, %c0_13] : memref<3x128xf32, #tpu.memory_space<vmem>>, vector<1x128xf32>
      %32 = vector.shape_cast %31 : vector<1x128xf32> to vector<1x1x128xf32>
      %33 = vector.broadcast %30 : vector<2x256x1xf32> to vector<2x256x128xf32>
      %34 = vector.broadcast %32 : vector<1x1x128xf32> to vector<2x256x128xf32>
      %35 = arith.mulf %33, %34 : vector<2x256x128xf32>
      %36 = arith.addf %29, %35 : vector<2x256x128xf32>
      %c0_14 = arith.constant 0 : index
      %c0_15 = arith.constant 0 : index
      %37 = vector.load %arg5[%c0_14, %c0_15] : memref<1x128xf32, #tpu.memory_space<vmem>>, vector<1x128xf32>
      %38 = vector.shape_cast %37 : vector<1x128xf32> to vector<1x1x128xf32>
      %39 = vector.broadcast %38 : vector<1x1x128xf32> to vector<2x256x128xf32>
      %40 = arith.addf %36, %39 : vector<2x256x128xf32>
      %cst = arith.constant 0.000000e+00 : f32
      %41 = vector.broadcast %cst : f32 to vector<2x256x128xf32>
      %42 = arith.maximumf %40, %41 : vector<2x256x128xf32>
      %43 = arith.truncf %42 : vector<2x256x128xf32> to vector<2x256x128xbf16>
      %44 = vector.shape_cast %43 : vector<2x256x128xbf16> to vector<512x128xbf16>
      %c0_16 = arith.constant 0 : index
      %c0_17 = arith.constant 0 : index
      %45 = vector.load %arg6[%c0_16, %c0_17] : memref<128x256xbf16, #tpu.memory_space<vmem>>, vector<128x256xbf16>
      %cst_18 = arith.constant dense<0.000000e+00> : vector<512x256xf32>
      %46 = tpu.matmul %44, %45, %cst_18 {dimension_numbers = #tpu.dot_dimension_numbers<[1], [0], [0], [1], [0, 0, 1, 1], [], []>} : vector<512x128xbf16>, vector<128x256xbf16>, vector<512x256xf32> -> vector<512x256xf32>
      %47 = vector.shape_cast %46 : vector<512x256xf32> to vector<2x256x256xf32>
      %c0_19 = arith.constant 0 : index
      %c0_20 = arith.constant 0 : index
      %48 = vector.load %arg7[%c0_19, %c0_20] : memref<1x256xf32, #tpu.memory_space<vmem>>, vector<1x256xf32>
      %49 = vector.shape_cast %48 : vector<1x256xf32> to vector<1x1x256xf32>
      %50 = vector.broadcast %49 : vector<1x1x256xf32> to vector<2x256x256xf32>
      %51 = arith.addf %47, %50 : vector<2x256x256xf32>
      %52 = arith.index_cast %arg2 : i32 to index
      %c0_21 = arith.constant 0 : index
      %c0_22 = arith.constant 0 : index
      %c0_23 = arith.constant 0 : index
      %53 = vector.load %arg14[%52, %c0_21, %c0_22, %c0_23] : memref<1x2x256x256xf32, #tpu.memory_space<vmem>>, vector<1x2x256x256xf32>
      %54 = vector.shape_cast %53 : vector<1x2x256x256xf32> to vector<2x256x256xf32>
      %55 = vector.shape_cast %51 : vector<2x256x256xf32> to vector<1x2x256x256xf32>
      tpu.vector_store %arg14[%52, %c0_21, %c0_22, %c0_23], %55 {strides = array<i32>} : memref<1x2x256x256xf32, #tpu.memory_space<vmem>>, vector<1x2x256x256xf32>,
      %c0_24 = arith.constant 0 : index
      %c0_25 = arith.constant 0 : index
      %c0_26 = arith.constant 0 : index
      %56 = vector.load %arg15[%c0_24, %c0_25, %c0_26] : memref<2x1x256xf32, #tpu.memory_space<vmem>>, vector<2x1x256xf32>
      %cst_27 = arith.constant dense<0xFF800000> : vector<2x256xf32>
      %57 = vector.multi_reduction <maximumf>, %51, %cst_27 [1] : vector<2x256x256xf32> to vector<2x256xf32>
      %58 = vector.shape_cast %57 : vector<2x256xf32> to vector<2x1x256xf32>
      %59 = arith.maximumf %56, %58 : vector<2x1x256xf32>
      %c0_28 = arith.constant 0 : index
      %c0_29 = arith.constant 0 : index
      %c0_30 = arith.constant 0 : index
      %60 = vector.load %arg15[%c0_28, %c0_29, %c0_30] : memref<2x1x256xf32, #tpu.memory_space<vmem>>, vector<2x1x256xf32>
      tpu.vector_store %arg15[%c0_28, %c0_29, %c0_30], %59 {strides = array<i32>} : memref<2x1x256xf32, #tpu.memory_space<vmem>>, vector<2x1x256xf32>,
    } else {
    }
    %c1_i32 = arith.constant 1 : i32
    %8 = arith.cmpi eq, %arg1, %c1_i32 : i32
    %9 = arith.extui %8 : i1 to i32
    %c0_i32_4 = arith.constant 0 : i32
    %10 = arith.cmpi ne, %9, %c0_i32_4 : i32
    scf.if %10 {
      %16 = arith.index_cast %arg2 : i32 to index
      %c0 = arith.constant 0 : index
      %c0_8 = arith.constant 0 : index
      %c0_9 = arith.constant 0 : index
      %17 = vector.load %arg14[%16, %c0, %c0_8, %c0_9] : memref<1x2x256x256xf32, #tpu.memory_space<vmem>>, vector<1x2x256x256xf32>
      %18 = vector.shape_cast %17 : vector<1x2x256x256xf32> to vector<2x256x256xf32>
      %19 = arith.truncf %18 : vector<2x256x256xf32> to vector<2x256x256xbf16>
      %20 = vector.shape_cast %19 : vector<2x256x256xbf16> to vector<512x256xbf16>
      %c0_10 = arith.constant 0 : index
      %c0_11 = arith.constant 0 : index
      %c0_12 = arith.constant 0 : index
      %21 = vector.load %arg15[%c0_10, %c0_11, %c0_12] : memref<2x1x256xf32, #tpu.memory_space<vmem>>, vector<2x1x256xf32>
      %22 = arith.truncf %21 : vector<2x1x256xf32> to vector<2x1x256xbf16>
      %23 = vector.shape_cast %22 : vector<2x1x256xbf16> to vector<2x256xbf16>
      %c0_13 = arith.constant 0 : index
      %c0_14 = arith.constant 0 : index
      %24 = vector.load %arg8[%c0_13, %c0_14] : memref<256x512xbf16, #tpu.memory_space<vmem>>, vector<256x512xbf16>
      %cst = arith.constant dense<0.000000e+00> : vector<512x512xf32>
      %25 = tpu.matmul %20, %24, %cst {dimension_numbers = #tpu.dot_dimension_numbers<[1], [0], [0], [1], [0, 0, 1, 1], [], []>} : vector<512x256xbf16>, vector<256x512xbf16>, vector<512x512xf32> -> vector<512x512xf32>
      %26 = vector.shape_cast %25 : vector<512x512xf32> to vector<2x256x512xf32>
      %c0_15 = arith.constant 0 : index
      %c0_16 = arith.constant 0 : index
      %27 = vector.load %arg9[%c0_15, %c0_16] : memref<256x512xbf16, #tpu.memory_space<vmem>>, vector<256x512xbf16>
      %cst_17 = arith.constant dense<0.000000e+00> : vector<2x512xf32>
      %28 = tpu.matmul %23, %27, %cst_17 {dimension_numbers = #tpu.dot_dimension_numbers<[1], [0], [0], [1], [0, 0, 1, 1], [], []>} : vector<2x256xbf16>, vector<256x512xbf16>, vector<2x512xf32> -> vector<2x512xf32>
      %29 = vector.shape_cast %28 : vector<2x512xf32> to vector<2x1x512xf32>
      %30 = vector.broadcast %29 : vector<2x1x512xf32> to vector<2x256x512xf32>
      %31 = arith.addf %26, %30 : vector<2x256x512xf32>
      %c0_18 = arith.constant 0 : index
      %c0_19 = arith.constant 0 : index
      %32 = vector.load %arg10[%c0_18, %c0_19] : memref<1x512xf32, #tpu.memory_space<vmem>>, vector<1x512xf32>
      %33 = vector.shape_cast %32 : vector<1x512xf32> to vector<1x1x512xf32>
      %34 = vector.broadcast %33 : vector<1x1x512xf32> to vector<2x256x512xf32>
      %35 = arith.addf %31, %34 : vector<2x256x512xf32>
      %cst_20 = arith.constant 0.000000e+00 : f32
      %36 = vector.broadcast %cst_20 : f32 to vector<2x256x512xf32>
      %37 = arith.maximumf %35, %36 : vector<2x256x512xf32>
      %38 = arith.truncf %37 : vector<2x256x512xf32> to vector<2x256x512xbf16>
      %39 = vector.shape_cast %38 : vector<2x256x512xbf16> to vector<512x512xbf16>
      %c0_21 = arith.constant 0 : index
      %c0_22 = arith.constant 0 : index
      %40 = vector.load %arg11[%c0_21, %c0_22] : memref<512x1024xbf16, #tpu.memory_space<vmem>>, vector<512x1024xbf16>
      %cst_23 = arith.constant dense<0.000000e+00> : vector<512x1024xf32>
      %41 = tpu.matmul %39, %40, %cst_23 {dimension_numbers = #tpu.dot_dimension_numbers<[1], [0], [0], [1], [0, 0, 1, 1], [], []>} : vector<512x512xbf16>, vector<512x1024xbf16>, vector<512x1024xf32> -> vector<512x1024xf32>
      %42 = vector.shape_cast %41 : vector<512x1024xf32> to vector<2x256x1024xf32>
      %c0_24 = arith.constant 0 : index
      %c0_25 = arith.constant 0 : index
      %43 = vector.load %arg12[%c0_24, %c0_25] : memref<1x1024xf32, #tpu.memory_space<vmem>>, vector<1x1024xf32>
      %44 = vector.shape_cast %43 : vector<1x1024xf32> to vector<1x1x1024xf32>
      %45 = vector.broadcast %44 : vector<1x1x1024xf32> to vector<2x256x1024xf32>
      %46 = arith.addf %42, %45 : vector<2x256x1024xf32>
      %c0_26 = arith.constant 0 : index
      %c0_27 = arith.constant 0 : index
      %47 = vector.load %arg16[%c0_26, %c0_27] : memref<2x1024xf32, #tpu.memory_space<vmem>>, vector<2x1024xf32>
      %cst_28 = arith.constant dense<0xFF800000> : vector<2x1024xf32>
      %48 = vector.multi_reduction <maximumf>, %46, %cst_28 [1] : vector<2x256x1024xf32> to vector<2x1024xf32>
      %49 = arith.maximumf %47, %48 : vector<2x1024xf32>
      %c0_29 = arith.constant 0 : index
      %c0_30 = arith.constant 0 : index
      %50 = vector.load %arg16[%c0_29, %c0_30] : memref<2x1024xf32, #tpu.memory_space<vmem>>, vector<2x1024xf32>
      tpu.vector_store %arg16[%c0_29, %c0_30], %49 {strides = array<i32>} : memref<2x1024xf32, #tpu.memory_space<vmem>>, vector<2x1024xf32>,
    } else {
    }
    %c1_i32_5 = arith.constant 1 : i32
    %11 = arith.cmpi eq, %arg1, %c1_i32_5 : i32
    %c0_i32_6 = arith.constant 0 : i32
    %12 = arith.cmpi eq, %arg2, %c0_i32_6 : i32
    %13 = arith.andi %11, %12 : i1
    %14 = arith.extui %13 : i1 to i32
    %c0_i32_7 = arith.constant 0 : i32
    %15 = arith.cmpi ne, %14, %c0_i32_7 : i32
    scf.if %15 {
      %c0 = arith.constant 0 : index
      %c0_8 = arith.constant 0 : index
      %16 = vector.load %arg16[%c0, %c0_8] : memref<2x1024xf32, #tpu.memory_space<vmem>>, vector<2x1024xf32>
      %c0_9 = arith.constant 0 : index
      %c0_10 = arith.constant 0 : index
      %c0_11 = arith.constant 0 : index
      %17 = vector.load %arg13[%c0_9, %c0_10, %c0_11] : memref<1x2x1024xf32, #tpu.memory_space<vmem>>, vector<1x2x1024xf32>
      %18 = vector.shape_cast %17 : vector<1x2x1024xf32> to vector<2x1024xf32>
      %19 = vector.shape_cast %16 : vector<2x1024xf32> to vector<1x2x1024xf32>
      tpu.vector_store %arg13[%c0_9, %c0_10, %c0_11], %19 {strides = array<i32>} : memref<1x2x1024xf32, #tpu.memory_space<vmem>>, vector<1x2x1024xf32>,
    } else {
    }
    return
  }
  func.func @transform_0(%arg0: i32, %arg1: i32, %arg2: i32) -> (i32, i32, i32) {
    %c0_i32 = arith.constant 0 : i32
    %c0_i32_0 = arith.constant 0 : i32
    return %arg0, %arg2, %c0_i32 : i32, i32, i32
  }
  func.func @transform_1(%arg0: i32, %arg1: i32, %arg2: i32) -> (i32, i32) {
    %c0_i32 = arith.constant 0 : i32
    %c0_i32_0 = arith.constant 0 : i32
    %c0_i32_1 = arith.constant 0 : i32
    return %c0_i32, %c0_i32_0 : i32, i32
  }
  func.func @transform_2(%arg0: i32, %arg1: i32, %arg2: i32) -> (i32, i32) {
    %c0_i32 = arith.constant 0 : i32
    %c0_i32_0 = arith.constant 0 : i32
    %c0_i32_1 = arith.constant 0 : i32
    return %c0_i32, %c0_i32_0 : i32, i32
  }
  func.func @transform_3(%arg0: i32, %arg1: i32, %arg2: i32) -> (i32, i32) {
    %c0_i32 = arith.constant 0 : i32
    %c0_i32_0 = arith.constant 0 : i32
    %c0_i32_1 = arith.constant 0 : i32
    return %c0_i32, %c0_i32_0 : i32, i32
  }
  func.func @transform_4(%arg0: i32, %arg1: i32, %arg2: i32) -> (i32, i32) {
    %c0_i32 = arith.constant 0 : i32
    %c0_i32_0 = arith.constant 0 : i32
    %c0_i32_1 = arith.constant 0 : i32
    return %c0_i32, %c0_i32_0 : i32, i32
  }
  func.func @transform_5(%arg0: i32, %arg1: i32, %arg2: i32) -> (i32, i32) {
    %c0_i32 = arith.constant 0 : i32
    %c0_i32_0 = arith.constant 0 : i32
    %c0_i32_1 = arith.constant 0 : i32
    return %c0_i32, %c0_i32_0 : i32, i32
  }
  func.func @transform_6(%arg0: i32, %arg1: i32, %arg2: i32) -> (i32, i32) {
    %c0_i32 = arith.constant 0 : i32
    %c0_i32_0 = arith.constant 0 : i32
    %c0_i32_1 = arith.constant 0 : i32
    return %c0_i32, %c0_i32_0 : i32, i32
  }
  func.func @transform_7(%arg0: i32, %arg1: i32, %arg2: i32) -> (i32, i32) {
    %c0_i32 = arith.constant 0 : i32
    %c0_i32_0 = arith.constant 0 : i32
    %c0_i32_1 = arith.constant 0 : i32
    return %c0_i32, %c0_i32_0 : i32, i32
  }
  func.func @transform_8(%arg0: i32, %arg1: i32, %arg2: i32) -> (i32, i32) {
    %c0_i32 = arith.constant 0 : i32
    %c0_i32_0 = arith.constant 0 : i32
    %c0_i32_1 = arith.constant 0 : i32
    return %c0_i32, %c0_i32_0 : i32, i32
  }
  func.func @transform_9(%arg0: i32, %arg1: i32, %arg2: i32) -> (i32, i32) {
    %c0_i32 = arith.constant 0 : i32
    %c0_i32_0 = arith.constant 0 : i32
    %c0_i32_1 = arith.constant 0 : i32
    return %c0_i32, %c0_i32_0 : i32, i32
  }
  func.func @transform_10(%arg0: i32, %arg1: i32, %arg2: i32) -> (i32, i32, i32) {
    %c0_i32 = arith.constant 0 : i32
    %c0_i32_0 = arith.constant 0 : i32
    %c0_i32_1 = arith.constant 0 : i32
    return %arg0, %c0_i32, %c0_i32_0 : i32, i32, i32
  }
}

</mosaic_0001>

<llo_original>
// kernel: tpu_custom_call.1
$region0: #{tpu_custom_call.1}
  #allocation0 [shape = 'u32[]', space=smem, size = 0x4, offset = 0x4, fixed_abs, tag = 'smem constant byte address 0x4 - core index']
  #allocation1 [shape = 'u32[144,128]{1,0:T(1,128)}', space=vmem, size = 0x12000, scoped, tag = 'internal scratch']
  #allocation2 [shape = 'f32[1,2,256,256]{3,2,1,0:T(8,128)}', space=vmem, size = 0x80000, scoped, tag = 'scratch operand']
  #allocation3 [shape = 'f32[2,1,256]{2,1,0:T(1,128)}', space=vmem, size = 0x800, scoped, tag = 'scratch operand']
  #allocation4 [shape = 'f32[2,1024]{1,0:T(2,128)}', space=vmem, size = 0x2000, scoped, tag = 'scratch operand']
  %s0 = inlined_call_operand.vmem [shape: f32[4,256,3], index: 0, kind: input, shape index: {}]
  %s1 = inlined_call_operand.vmem [shape: f32[3,128], index: 1, kind: input, shape index: {}]
  %s2 = inlined_call_operand.vmem [shape: f32[1,128], index: 2, kind: input, shape index: {}]
  %s3 = inlined_call_operand.hbm [shape: bf16[128,256], index: 3, kind: input, shape index: {}]
  %s4 = inlined_call_operand.vmem [shape: f32[1,256], index: 4, kind: input, shape index: {}]
  %s5 = inlined_call_operand.vmem [shape: bf16[256,512], index: 5, kind: input, shape index: {}]
  %s6 = inlined_call_operand.vmem [shape: bf16[256,512], index: 6, kind: input, shape index: {}]
  %s7 = inlined_call_operand.vmem [shape: f32[1,512], index: 7, kind: input, shape index: {}]
  %s8 = inlined_call_operand.hbm [shape: bf16[512,1024], index: 8, kind: input, shape index: {}]
  %s9 = inlined_call_operand.vmem [shape: f32[1,1024], index: 9, kind: input, shape index: {}]
  %s10 = inlined_call_operand.hbm [shape: f32[2,2,1024], index: 10, kind: output, shape index: {}]
  %s11 = sld [smem:[#allocation0]]
  $region97: #{tpu_custom_call.1} parent=0
    _
  %s13 = ssub.s32 1, %s11
  %s14 = scalar_select 0, %s13, %s11
  $region1: #{tpu_custom_call.1} parent=0
    #allocation5 [shape = 'u8[65536]{0}', space=vmem, size = 0x10000, scoped, tag = 'input window, operand 3, single buffered']
    #allocation6 [shape = 's32[2]{0}', space=sflag, size = 0x8, scoped, tag = 'scoped memory for tpu_custom_call.1']
    #allocation7 [shape = 's32[2]{0}', space=sflag, size = 0x8, scoped, tag = 'scoped memory for tpu_custom_call.1']
    #allocation8 [shape = 'u8[1048576]{0}', space=vmem, size = 0x100000, scoped, tag = 'input window, operand 8, single buffered']
    #allocation9 [shape = 's32[1]{0}', space=sflag, size = 0x4, scoped, tag = 'scoped memory for tpu_custom_call.1']
    #allocation10 [shape = 'u8[16384]{0}', space=vmem, size = 0x4000, scoped, tag = 'output window, operand 0']
    %15 = vsyncpa [#allocation6], 0
    %16 = vsyncpa [#allocation9], 0
    %17 = vsyncpa [#allocation7], 0
    %s18 = scalar_lea.sflag [#allocation7], 1
    %19 = vsyncpa %s18, 0
    loop: start=0, step=1, limit=6
    $region2: #{tpu_custom_call.1} parent=1 // loop_pre_header
      _
    $region3: #{tpu_custom_call.1} parent=1 // loop_header
      %s21 = sphi 0, %s25
      %p22 = scmp.ge.s32.totalorder %s21, 6
      %s28 = sphi 0, %s47
      %s29 = sphi 0, %s43
      %s30 = sphi 0, %s39
      %s31 = sphi 0, %s28
      %s32 = sphi 0, %s29
      %s33 = sphi 0, %s30
      %s34 = sphi 0, %s31
      %s35 = sphi 0, %s32
      %s36 = sphi 0, %s33
      %s52 = sphi 0, %s54
      %s55 = sphi 0, %s52
      %s56 = sphi 0, %s55
      %s72 = sphi 0, %s56
      %s76 = sphi 0, %s76
      %s78 = sphi 0, %s76
      %s79 = sphi 0, %s78
      %s93 = sphi 0, %s79
      %s97 = sphi 0, %s97
      %s99 = sphi 0, %s97
      %s100 = sphi 0, %s99
      %s114 = sphi 0, %s100
      %s118 = sphi 0, %s118
      %s120 = sphi 0, %s118
      %s121 = sphi 0, %s120
      %s135 = sphi 0, %s121
      %s139 = sphi 0, %s139
      %s141 = sphi 0, %s139
      %s142 = sphi 0, %s141
      %s156 = sphi 0, %s142
      %s160 = sphi 0, %s160
      %s162 = sphi 0, %s160
      %s163 = sphi 0, %s162
      %s177 = sphi 0, %s163
      %s181 = sphi 0, %s181
      %s183 = sphi 0, %s181
      %s184 = sphi 0, %s183
      %s198 = sphi 0, %s184
      %s202 = sphi 0, %s202
      %s204 = sphi 0, %s202
      %s205 = sphi 0, %s204
      %s219 = sphi 0, %s205
      %s223 = sphi 0, %s223
      %s225 = sphi 0, %s223
      %s226 = sphi 0, %s225
      %s240 = sphi 0, %s226
      %s244 = sphi 0, %s244
      %s246 = sphi 0, %s244
      %s247 = sphi 0, %s246
      %s261 = sphi 0, %s247
      %s267 = sphi 0, %s269
      %s270 = sphi 0, %s267
      %s271 = sphi 0, %s270
      %s287 = sphi 0, %s271
    $region4: #{tpu_custom_call.1} parent=1 // loop_header_branch
      %24 = sbr.rel (%p22) target = $region8
    $region5: #{tpu_custom_call.1} parent=1 // loop_body
      %s26 = ssub.s32 %s21, 1
      %s27 = ssub.s32 %s21, 2
      %s37 = sadd.s32 1, %s30
      %p38 = scmp.ge.s32.totalorder %s37, 1
      %s39 = scalar_select %p38, 0, %s37
      %s40 = sadd.s32 1, %s29
      %s41 = scalar_select %p38, %s40, %s29
      %p42 = scmp.ge.s32.totalorder %s41, 2
      %s43 = scalar_select %p42, 0, %s41
      %s44 = sadd.s32 1, %s28
      %s45 = scalar_select %p42, %s44, %s28
      %p46 = scmp.ge.s32.totalorder %s45, 2
      %s47 = scalar_select %p46, 0, %s45
      %s48 = ssub.s32 %s28, %s47
      %s49 = ssub.s32 %s30, %s39
      %s50 = sor.u32 %s48, %s49
      %p51 = scmp.eq.s32.totalorder %s50, 0
      %s53 = sadd.s32 %s52, 1
      %s54 = scalar_select %p51, %s52, %s53
      %p57 = pneg %p51
      %p58 = scmp.eq.s32.totalorder %s21, 3
      %p59 = por %p57, %p58
      %p60 = scmp.ne.s32.totalorder %s52, %s55
      %p61 = scmp.eq.s32.totalorder %s21, 0
      %p62 = por %p60, %p61
      %p63 = scmp.ne.s32.totalorder %s52, %s55
      %p64 = scmp.eq.s32.totalorder %s26, 3
      %p65 = por %p63, %p64
      %p66 = scmp.ne.s32.totalorder %s55, %s56
      %p67 = scmp.eq.s32.totalorder %s26, 0
      %p68 = por %p66, %p67
      %p69 = scmp.ne.s32.totalorder %s55, %s56
      %p70 = scmp.eq.s32.totalorder %s27, 3
      %p71 = por %p69, %p70
      %p73 = scmp.ne.s32.totalorder %s56, %s72
      %p74 = scmp.eq.s32.totalorder %s27, 0
      %p75 = por %p73, %p74
      %s77 = sadd.s32 %s76, 1
      %p80 = scmp.eq.s32.totalorder %s21, 3
      %p81 = scmp.ne.s32.totalorder %s76, %s78
      %p82 = scmp.eq.s32.totalorder %s21, 0
      %p83 = por %p81, %p82
      %p84 = scmp.ne.s32.totalorder %s76, %s78
      %p85 = scmp.eq.s32.totalorder %s26, 3
      %p86 = por %p84, %p85
      %p87 = scmp.ne.s32.totalorder %s78, %s79
      %p88 = scmp.eq.s32.totalorder %s26, 0
      %p89 = por %p87, %p88
      %p90 = scmp.ne.s32.totalorder %s78, %s79
      %p91 = scmp.eq.s32.totalorder %s27, 3
      %p92 = por %p90, %p91
      %p94 = scmp.ne.s32.totalorder %s79, %s93
      %p95 = scmp.eq.s32.totalorder %s27, 0
      %p96 = por %p94, %p95
      %s98 = sadd.s32 %s97, 1
      %p101 = scmp.eq.s32.totalorder %s21, 3
      %p102 = scmp.ne.s32.totalorder %s97, %s99
      %p103 = scmp.eq.s32.totalorder %s21, 0
      %p104 = por %p102, %p103
      %p105 = scmp.ne.s32.totalorder %s97, %s99
      %p106 = scmp.eq.s32.totalorder %s26, 3
      %p107 = por %p105, %p106
      %p108 = scmp.ne.s32.totalorder %s99, %s100
      %p109 = scmp.eq.s32.totalorder %s26, 0
      %p110 = por %p108, %p109
      %p111 = scmp.ne.s32.totalorder %s99, %s100
      %p112 = scmp.eq.s32.totalorder %s27, 3
      %p113 = por %p111, %p112
      %p115 = scmp.ne.s32.totalorder %s100, %s114
      %p116 = scmp.eq.s32.totalorder %s27, 0
      %p117 = por %p115, %p116
      %s119 = sadd.s32 %s118, 1
      %p122 = scmp.eq.s32.totalorder %s21, 3
      %p123 = scmp.ne.s32.totalorder %s118, %s120
      %p124 = scmp.eq.s32.totalorder %s21, 0
      %p125 = por %p123, %p124
      %p126 = scmp.ne.s32.totalorder %s118, %s120
      %p127 = scmp.eq.s32.totalorder %s26, 3
      %p128 = por %p126, %p127
      %p129 = scmp.ne.s32.totalorder %s120, %s121
      %p130 = scmp.eq.s32.totalorder %s26, 0
      %p131 = por %p129, %p130
      %p132 = scmp.ne.s32.totalorder %s120, %s121
      %p133 = scmp.eq.s32.totalorder %s27, 3
      %p134 = por %p132, %p133
      %p136 = scmp.ne.s32.totalorder %s121, %s135
      %p137 = scmp.eq.s32.totalorder %s27, 0
      %p138 = por %p136, %p137
      %s140 = sadd.s32 %s139, 1
      %p143 = scmp.eq.s32.totalorder %s21, 3
      %p144 = scmp.ne.s32.totalorder %s139, %s141
      %p145 = scmp.eq.s32.totalorder %s21, 0
      %p146 = por %p144, %p145
      %p147 = scmp.ne.s32.totalorder %s139, %s141
      %p148 = scmp.eq.s32.totalorder %s26, 3
      %p149 = por %p147, %p148
      %p150 = scmp.ne.s32.totalorder %s141, %s142
      %p151 = scmp.eq.s32.totalorder %s26, 0
      %p152 = por %p150, %p151
      %p153 = scmp.ne.s32.totalorder %s141, %s142
      %p154 = scmp.eq.s32.totalorder %s27, 3
      %p155 = por %p153, %p154
      %p157 = scmp.ne.s32.totalorder %s142, %s156
      %p158 = scmp.eq.s32.totalorder %s27, 0
      %p159 = por %p157, %p158
      %s161 = sadd.s32 %s160, 1
      %p164 = scmp.eq.s32.totalorder %s21, 3
      %p165 = scmp.ne.s32.totalorder %s160, %s162
      %p166 = scmp.eq.s32.totalorder %s21, 0
      %p167 = por %p165, %p166
      %p168 = scmp.ne.s32.totalorder %s160, %s162
      %p169 = scmp.eq.s32.totalorder %s26, 3
      %p170 = por %p168, %p169
      %p171 = scmp.ne.s32.totalorder %s162, %s163
      %p172 = scmp.eq.s32.totalorder %s26, 0
      %p173 = por %p171, %p172
      %p174 = scmp.ne.s32.totalorder %s162, %s163
      %p175 = scmp.eq.s32.totalorder %s27, 3
      %p176 = por %p174, %p175
      %p178 = scmp.ne.s32.totalorder %s163, %s177
      %p179 = scmp.eq.s32.totalorder %s27, 0
      %p180 = por %p178, %p179
      %s182 = sadd.s32 %s181, 1
      %p185 = scmp.eq.s32.totalorder %s21, 3
      %p186 = scmp.ne.s32.totalorder %s181, %s183
      %p187 = scmp.eq.s32.totalorder %s21, 0
      %p188 = por %p186, %p187
      %p189 = scmp.ne.s32.totalorder %s181, %s183
      %p190 = scmp.eq.s32.totalorder %s26, 3
      %p191 = por %p189, %p190
      %p192 = scmp.ne.s32.totalorder %s183, %s184
      %p193 = scmp.eq.s32.totalorder %s26, 0
      %p194 = por %p192, %p193
      %p195 = scmp.ne.s32.totalorder %s183, %s184
      %p196 = scmp.eq.s32.totalorder %s27, 3
      %p197 = por %p195, %p196
      %p199 = scmp.ne.s32.totalorder %s184, %s198
      %p200 = scmp.eq.s32.totalorder %s27, 0
      %p201 = por %p199, %p200
      %s203 = sadd.s32 %s202, 1
      %p206 = scmp.eq.s32.totalorder %s21, 3
      %p207 = scmp.ne.s32.totalorder %s202, %s204
      %p208 = scmp.eq.s32.totalorder %s21, 0
      %p209 = por %p207, %p208
      %p210 = scmp.ne.s32.totalorder %s202, %s204
      %p211 = scmp.eq.s32.totalorder %s26, 3
      %p212 = por %p210, %p211
      %p213 = scmp.ne.s32.totalorder %s204, %s205
      %p214 = scmp.eq.s32.totalorder %s26, 0
      %p215 = por %p213, %p214
      %p216 = scmp.ne.s32.totalorder %s204, %s205
      %p217 = scmp.eq.s32.totalorder %s27, 3
      %p218 = por %p216, %p217
      %p220 = scmp.ne.s32.totalorder %s205, %s219
      %p221 = scmp.eq.s32.totalorder %s27, 0
      %p222 = por %p220, %p221
      %s224 = sadd.s32 %s223, 1
      %p227 = scmp.eq.s32.totalorder %s21, 3
      %p228 = scmp.ne.s32.totalorder %s223, %s225
      %p229 = scmp.eq.s32.totalorder %s21, 0
      %p230 = por %p228, %p229
      %p231 = scmp.ne.s32.totalorder %s223, %s225
      %p232 = scmp.eq.s32.totalorder %s26, 3
      %p233 = por %p231, %p232
      %p234 = scmp.ne.s32.totalorder %s225, %s226
      %p235 = scmp.eq.s32.totalorder %s26, 0
      %p236 = por %p234, %p235
      %p237 = scmp.ne.s32.totalorder %s225, %s226
      %p238 = scmp.eq.s32.totalorder %s27, 3
      %p239 = por %p237, %p238
      %p241 = scmp.ne.s32.totalorder %s226, %s240
      %p242 = scmp.eq.s32.totalorder %s27, 0
      %p243 = por %p241, %p242
      %s245 = sadd.s32 %s244, 1
      %p248 = scmp.eq.s32.totalorder %s21, 3
      %p249 = scmp.ne.s32.totalorder %s244, %s246
      %p250 = scmp.eq.s32.totalorder %s21, 0
      %p251 = por %p249, %p250
      %p252 = scmp.ne.s32.totalorder %s244, %s246
      %p253 = scmp.eq.s32.totalorder %s26, 3
      %p254 = por %p252, %p253
      %p255 = scmp.ne.s32.totalorder %s246, %s247
      %p256 = scmp.eq.s32.totalorder %s26, 0
      %p257 = por %p255, %p256
      %p258 = scmp.ne.s32.totalorder %s246, %s247
      %p259 = scmp.eq.s32.totalorder %s27, 3
      %p260 = por %p258, %p259
      %p262 = scmp.ne.s32.totalorder %s247, %s261
      %p263 = scmp.eq.s32.totalorder %s27, 0
      %p264 = por %p262, %p263
      %s265 = ssub.s32 %s28, %s47
      %p266 = scmp.eq.s32.totalorder %s265, 0
      %s268 = sadd.s32 %s267, 1
      %s269 = scalar_select %p266, %s267, %s268
      %p272 = pneg %p266
      %p273 = scmp.eq.s32.totalorder %s21, 3
      %p274 = por %p272, %p273
      %p275 = scmp.ne.s32.totalorder %s267, %s270
      %p276 = scmp.eq.s32.totalorder %s21, 0
      %p277 = por %p275, %p276
      %p278 = scmp.ne.s32.totalorder %s267, %s270
      %p279 = scmp.eq.s32.totalorder %s26, 3
      %p280 = por %p278, %p279
      %p281 = scmp.ne.s32.totalorder %s270, %s271
      %p282 = scmp.eq.s32.totalorder %s26, 0
      %p283 = por %p281, %p282
      %p284 = scmp.ne.s32.totalorder %s270, %s271
      %p285 = scmp.eq.s32.totalorder %s27, 3
      %p286 = por %p284, %p285
      %p288 = scmp.ne.s32.totalorder %s271, %s287
      %p289 = scmp.eq.s32.totalorder %s27, 0
      %p290 = por %p288, %p289
      %p291 = scmp.le.s32.totalorder 1, %s21
      %p292 = scmp.lt.s32.totalorder %s21, 5
      %p293 = pnand %p291, %p292
      %p294 = pneg %p293
      // Predicated region
      $region9: #{tpu_custom_call.1} parent=5 // pred_check
        _
      $region10: #{tpu_custom_call.1} parent=5 // pred_check_branch
        %296 = sbr.rel (%p293) target = $region12
      $region11: #{tpu_custom_call.1} parent=5 // pred_region
        %s297 = ssub.s32 %s21, 1
        // Predicated region
        $region13: #{tpu_custom_call.1} parent=11 // pred_check
          %p298 = pneg %p89
        $region14: #{tpu_custom_call.1} parent=11 // pred_check_branch
          %300 = sbr.rel (%p298) target = $region16
        $region15: #{tpu_custom_call.1} parent=11 // pred_region
          _
        $region16: #{tpu_custom_call.1} parent=11 // pred_fallthru
          _
        // Predicated region
        $region17: #{tpu_custom_call.1} parent=11 // pred_check
          %p301 = pneg %p110
        $region18: #{tpu_custom_call.1} parent=11 // pred_check_branch
          %303 = sbr.rel (%p301) target = $region20
        $region19: #{tpu_custom_call.1} parent=11 // pred_region
          _
        $region20: #{tpu_custom_call.1} parent=11 // pred_fallthru
          _
        // Predicated region
        $region21: #{tpu_custom_call.1} parent=11 // pred_check
          %p304 = pneg %p131
        $region22: #{tpu_custom_call.1} parent=11 // pred_check_branch
          %306 = sbr.rel (%p304) target = $region24
        $region23: #{tpu_custom_call.1} parent=11 // pred_region
          %s308 = ssub.s32 2048, 2048
          %309 = vsyncadd [#allocation6], %s308
          %s310 = sshll.u32 [#allocation5], 4
          %s311 = int_to_ptr.vmem [resolvable:$true] %s310
          %316 = dma.hbm_to_vmem [thread:$0]  %s3, 2048, %s311, [#allocation6], 128, 128, 8
        $region24: #{tpu_custom_call.1} parent=11 // pred_fallthru
          _
        // Predicated region
        $region25: #{tpu_custom_call.1} parent=11 // pred_check
          %p317 = pneg %p152
        $region26: #{tpu_custom_call.1} parent=11 // pred_check_branch
          %319 = sbr.rel (%p317) target = $region28
        $region27: #{tpu_custom_call.1} parent=11 // pred_region
          _
        $region28: #{tpu_custom_call.1} parent=11 // pred_fallthru
          _
        // Predicated region
        $region29: #{tpu_custom_call.1} parent=11 // pred_check
          %p320 = pneg %p173
        $region30: #{tpu_custom_call.1} parent=11 // pred_check_branch
          %322 = sbr.rel (%p320) target = $region32
        $region31: #{tpu_custom_call.1} parent=11 // pred_region
          _
        $region32: #{tpu_custom_call.1} parent=11 // pred_fallthru
          _
        // Predicated region
        $region33: #{tpu_custom_call.1} parent=11 // pred_check
          %p323 = pneg %p194
        $region34: #{tpu_custom_call.1} parent=11 // pred_check_branch
          %325 = sbr.rel (%p323) target = $region36
        $region35: #{tpu_custom_call.1} parent=11 // pred_region
          _
        $region36: #{tpu_custom_call.1} parent=11 // pred_fallthru
          _
        // Predicated region
        $region37: #{tpu_custom_call.1} parent=11 // pred_check
          %p326 = pneg %p215
        $region38: #{tpu_custom_call.1} parent=11 // pred_check_branch
          %328 = sbr.rel (%p326) target = $region40
        $region39: #{tpu_custom_call.1} parent=11 // pred_region
          _
        $region40: #{tpu_custom_call.1} parent=11 // pred_fallthru
          _
        // Predicated region
        $region41: #{tpu_custom_call.1} parent=11 // pred_check
          %p329 = pneg %p236
        $region42: #{tpu_custom_call.1} parent=11 // pred_check_branch
          %331 = sbr.rel (%p329) target = $region44
        $region43: #{tpu_custom_call.1} parent=11 // pred_region
          %s333 = ssub.s32 32768, 32768
          %334 = vsyncadd [#allocation9], %s333
          %s335 = sshll.u32 [#allocation8], 4
          %s336 = int_to_ptr.vmem [resolvable:$true] %s335
          %341 = dma.hbm_to_vmem [thread:$0]  %s8, 32768, %s336, [#allocation9], 512, 512, 32
        $region44: #{tpu_custom_call.1} parent=11 // pred_fallthru
          _
        // Predicated region
        $region45: #{tpu_custom_call.1} parent=11 // pred_check
          %p342 = pneg %p257
        $region46: #{tpu_custom_call.1} parent=11 // pred_check_branch
          %344 = sbr.rel (%p342) target = $region48
        $region47: #{tpu_custom_call.1} parent=11 // pred_region
          _
        $region48: #{tpu_custom_call.1} parent=11 // pred_fallthru
          _
      $region12: #{tpu_custom_call.1} parent=5 // pred_fallthru
        _
      %p345 = scmp.lt.s32.totalorder %s21, 4
      // Predicated region
      $region49: #{tpu_custom_call.1} parent=5 // pred_check
        %p346 = pneg %p345
      $region50: #{tpu_custom_call.1} parent=5 // pred_check_branch
        %348 = sbr.rel (%p346) target = $region52
      $region51: #{tpu_custom_call.1} parent=5 // pred_region
        // Predicated region
        $region53: #{tpu_custom_call.1} parent=51 // pred_check
          %p349 = pneg %p62
        $region54: #{tpu_custom_call.1} parent=51 // pred_check_branch
          %351 = sbr.rel (%p349) target = $region56
        $region55: #{tpu_custom_call.1} parent=51 // pred_region
          %s352 = smul.u32 2, %s28
          %s353 = smul.u32 32, %s30
          %p354 = scmp.lt.s32.totalorder %s352, 3
          %s355 = scalar_select %p354, %s352, 3
          %p356 = scmp.lt.s32.totalorder %s353, 31
          %s357 = scalar_select %p356, %s353, 31
          %s358 = smul.addr %s355, 32
          %s359 = sadd.s32 %s357, %s358
          %s360 = smul.addr %s359, 8
          %s361 = scalar_lea.vmem %s0, %s360
          %s362 = smul.u32 2, %s28
          %s363 = smul.u32 32, %s30
        $region56: #{tpu_custom_call.1} parent=51 // pred_fallthru
          _
      $region52: #{tpu_custom_call.1} parent=5 // pred_fallthru
        _
      %p364 = scmp.le.s32.totalorder 1, %s21
      %p365 = scmp.lt.s32.totalorder %s21, 5
      %p366 = pnand %p364, %p365
      %p367 = pneg %p366
      // Predicated region
      $region57: #{tpu_custom_call.1} parent=5 // pred_check
        _
      $region58: #{tpu_custom_call.1} parent=5 // pred_check_branch
        %369 = sbr.rel (%p366) target = $region60
      $region59: #{tpu_custom_call.1} parent=5 // pred_region
        %s370 = ssub.s32 %s21, 1
        // Predicated region
        $region61: #{tpu_custom_call.1} parent=59 // pred_check
          %p371 = pneg %p131
        $region62: #{tpu_custom_call.1} parent=59 // pred_check_branch
          %373 = sbr.rel (%p371) target = $region64
        $region63: #{tpu_custom_call.1} parent=59 // pred_region
          %374 = dma.done [#allocation6], 2048
        $region64: #{tpu_custom_call.1} parent=59 // pred_fallthru
          _
        // Predicated region
        $region65: #{tpu_custom_call.1} parent=59 // pred_check
          %p375 = pneg %p236
        $region66: #{tpu_custom_call.1} parent=59 // pred_check_branch
          %377 = sbr.rel (%p375) target = $region68
        $region67: #{tpu_custom_call.1} parent=59 // pred_region
          %378 = dma.done [#allocation9], 32768
        $region68: #{tpu_custom_call.1} parent=59 // pred_fallthru
          _
        %s379 = smul.u32 2, %s31
        %s380 = smul.u32 32, %s33
        %p381 = scmp.lt.s32.totalorder %s379, 3
        %s382 = scalar_select %p381, %s379, 3
        %p383 = scmp.lt.s32.totalorder %s380, 31
        %s384 = scalar_select %p383, %s380, 31
        %s385 = smul.addr %s382, 32
        %s386 = sadd.s32 %s384, %s385
        %s387 = smul.addr %s386, 8
        %s388 = scalar_lea.vmem %s0, %s387
        %p389 = pneg %p68
        %p390 = pneg %p65
        %p391 = pneg %p89
        %p392 = pneg %p86
        %p393 = pneg %p110
        %p394 = pneg %p107
        %p395 = pneg %p131
        %p396 = pneg %p128
        %p397 = pneg %p152
        %p398 = pneg %p149
        %p399 = pneg %p173
        %p400 = pneg %p170
        %p401 = pneg %p194
        %p402 = pneg %p191
        %p403 = pneg %p215
        %p404 = pneg %p212
        %p405 = pneg %p236
        %p406 = pneg %p233
        %p407 = pneg %p257
        %p408 = pneg %p254
        %p409 = pneg %p283
        %p410 = pneg %p280
        %s411 = sand.u32 %s270, 1
        %s412 = scalar_lea.sflag [#allocation7], %s411
        %s413 = sand.u32 %s270, 1
        %s414 = smul.addr %s413, 16
        %s415 = scalar_lea.vmem [#allocation10], %s414
        %s416 = smul.u32 2, %s31
        %s417 = smul.u32 32, %s33
        %p418 = scmp.lt.s32.totalorder %s416, 3
        %s419 = scalar_select %p418, %s416, 3
        %p420 = scmp.lt.s32.totalorder %s417, 31
        %s421 = scalar_select %p420, %s417, 31
        %s422 = smul.addr %s419, 32
        %s423 = sadd.s32 %s421, %s422
        %s424 = smul.addr %s423, 8
        %s425 = scalar_lea.vmem %s0, %s424
        %s426 = smul.u32 2, %s31
        %s427 = smul.u32 32, %s33
        %p429 = scmp.eq.s32.totalorder %s32, 0
        %p430 = scmp.eq.s32.totalorder %s33, 0
        %p431 = pnand %p429, %p430
        %p432 = pneg %p431
        // Predicated region
        $region69: #{tpu_custom_call.1} parent=59 // pred_check
          _
        $region70: #{tpu_custom_call.1} parent=59 // pred_check_branch
          %434 = sbr.rel (%p431) target = $region72
        $region71: #{tpu_custom_call.1} parent=59 // pred_region
          %v435 = vlaneseq
          %vm436 = vcmp.ge.s32.totalorder %v435, 0
          %vm437 = vcmp.lt.s32.totalorder %v435, 256
          %vm438 = vmand %vm436, %vm437
          %439 = vst.msk [vmem:[#allocation3] sm:$0x3] %vm438, -inf
          %440 = vst.msk [vmem:[#allocation3 + $0x2] sm:$0x3] %vm438, -inf
          %441 = vst [vmem:[#allocation4] sm:$0xff] -inf
          %442 = vst [vmem:[#allocation4 + $0x8] sm:$0xff] -inf
        $region72: #{tpu_custom_call.1} parent=59 // pred_fallthru
          _
        // Predicated region
        $region73: #{tpu_custom_call.1} parent=59 // pred_check
          %p443 = pneg %p429
        $region74: #{tpu_custom_call.1} parent=59 // pred_check_branch
          %445 = sbr.rel (%p443) target = $region76
        $region75: #{tpu_custom_call.1} parent=59 // pred_region
          %v446 = vld [vmem:[%s425] sm:$0xff]
          %v447 = vld [vmem:[%s425 + $0x8] sm:$0xff]
          %v448 = vld [vmem:[%s425 + $0x10] sm:$0xff]
          %v449 = vld [vmem:[%s425 + $0x18] sm:$0xff]
          %v450 = vld [vmem:[%s425 + $0x20] sm:$0xff]
          %v451 = vld [vmem:[%s425 + $0x28] sm:$0xff]
          %v452 = vld [vmem:[%s425 + $0x30] sm:$0xff]
          %v453 = vld [vmem:[%s425 + $0x38] sm:$0xff]
          %v454 = vld [vmem:[%s425 + $0x40] sm:$0xff]
          %v455 = vld [vmem:[%s425 + $0x48] sm:$0xff]
          %v456 = vld [vmem:[%s425 + $0x50] sm:$0xff]
          %v457 = vld [vmem:[%s425 + $0x58] sm:$0xff]
          %v458 = vld [vmem:[%s425 + $0x60] sm:$0xff]
          %v459 = vld [vmem:[%s425 + $0x68] sm:$0xff]
          %v460 = vld [vmem:[%s425 + $0x70] sm:$0xff]
          %v461 = vld [vmem:[%s425 + $0x78] sm:$0xff]
          %v462 = vld [vmem:[%s425 + $0x80] sm:$0xff]
          %v463 = vld [vmem:[%s425 + $0x88] sm:$0xff]
          %v464 = vld [vmem:[%s425 + $0x90] sm:$0xff]
          %v465 = vld [vmem:[%s425 + $0x98] sm:$0xff]
          %v466 = vld [vmem:[%s425 + $0xa0] sm:$0xff]
          %v467 = vld [vmem:[%s425 + $0xa8] sm:$0xff]
          %v468 = vld [vmem:[%s425 + $0xb0] sm:$0xff]
          %v469 = vld [vmem:[%s425 + $0xb8] sm:$0xff]
          %v470 = vld [vmem:[%s425 + $0xc0] sm:$0xff]
          %v471 = vld [vmem:[%s425 + $0xc8] sm:$0xff]
          %v472 = vld [vmem:[%s425 + $0xd0] sm:$0xff]
          %v473 = vld [vmem:[%s425 + $0xd8] sm:$0xff]
          %v474 = vld [vmem:[%s425 + $0xe0] sm:$0xff]
          %v475 = vld [vmem:[%s425 + $0xe8] sm:$0xff]
          %v476 = vld [vmem:[%s425 + $0xf0] sm:$0xff]
          %v477 = vld [vmem:[%s425 + $0xf8] sm:$0xff]
          %v478 = vld [vmem:[%s425 + $0x100] sm:$0xff]
          %v479 = vld [vmem:[%s425 + $0x108] sm:$0xff]
          %v480 = vld [vmem:[%s425 + $0x110] sm:$0xff]
          %v481 = vld [vmem:[%s425 + $0x118] sm:$0xff]
          %v482 = vld [vmem:[%s425 + $0x120] sm:$0xff]
          %v483 = vld [vmem:[%s425 + $0x128] sm:$0xff]
          %v484 = vld [vmem:[%s425 + $0x130] sm:$0xff]
          %v485 = vld [vmem:[%s425 + $0x138] sm:$0xff]
          %v486 = vld [vmem:[%s425 + $0x140] sm:$0xff]
          %v487 = vld [vmem:[%s425 + $0x148] sm:$0xff]
          %v488 = vld [vmem:[%s425 + $0x150] sm:$0xff]
          %v489 = vld [vmem:[%s425 + $0x158] sm:$0xff]
          %v490 = vld [vmem:[%s425 + $0x160] sm:$0xff]
          %v491 = vld [vmem:[%s425 + $0x168] sm:$0xff]
          %v492 = vld [vmem:[%s425 + $0x170] sm:$0xff]
          %v493 = vld [vmem:[%s425 + $0x178] sm:$0xff]
          %v494 = vld [vmem:[%s425 + $0x180] sm:$0xff]
          %v495 = vld [vmem:[%s425 + $0x188] sm:$0xff]
          %v496 = vld [vmem:[%s425 + $0x190] sm:$0xff]
          %v497 = vld [vmem:[%s425 + $0x198] sm:$0xff]
          %v498 = vld [vmem:[%s425 + $0x1a0] sm:$0xff]
          %v499 = vld [vmem:[%s425 + $0x1a8] sm:$0xff]
          %v500 = vld [vmem:[%s425 + $0x1b0] sm:$0xff]
          %v501 = vld [vmem:[%s425 + $0x1b8] sm:$0xff]
          %v502 = vld [vmem:[%s425 + $0x1c0] sm:$0xff]
          %v503 = vld [vmem:[%s425 + $0x1c8] sm:$0xff]
          %v504 = vld [vmem:[%s425 + $0x1d0] sm:$0xff]
          %v505 = vld [vmem:[%s425 + $0x1d8] sm:$0xff]
          %v506 = vld [vmem:[%s425 + $0x1e0] sm:$0xff]
          %v507 = vld [vmem:[%s425 + $0x1e8] sm:$0xff]
          %v508 = vld [vmem:[%s425 + $0x1f0] sm:$0xff]
          %v509 = vld [vmem:[%s425 + $0x1f8] sm:$0xff]
          %v510 = vld [vmem:[%s1] sm:$0x1]
          %512 = vset.pattern.permute.xlu0 0
          %513 = vperm.xlu0 %512, %v446
          %v514 = vpop.permute.xlu0 %513
          %517 = vset.pattern.permute.xlu0 0
          %518 = vperm.xlu0 %517, %v447
          %v519 = vpop.permute.xlu0 %518
          %522 = vset.pattern.permute.xlu0 0
          %523 = vperm.xlu0 %522, %v448
          %v524 = vpop.permute.xlu0 %523
          %527 = vset.pattern.permute.xlu0 0
          %528 = vperm.xlu0 %527, %v449
          %v529 = vpop.permute.xlu0 %528
          %532 = vset.pattern.permute.xlu0 0
          %533 = vperm.xlu0 %532, %v450
          %v534 = vpop.permute.xlu0 %533
          %537 = vset.pattern.permute.xlu0 0
          %538 = vperm.xlu0 %537, %v451
          %v539 = vpop.permute.xlu0 %538
          %542 = vset.pattern.permute.xlu0 0
          %543 = vperm.xlu0 %542, %v452
          %v544 = vpop.permute.xlu0 %543
          %547 = vset.pattern.permute.xlu0 0
          %548 = vperm.xlu0 %547, %v453
          %v549 = vpop.permute.xlu0 %548
          %552 = vset.pattern.permute.xlu0 0
          %553 = vperm.xlu0 %552, %v454
          %v554 = vpop.permute.xlu0 %553
          %557 = vset.pattern.permute.xlu0 0
          %558 = vperm.xlu0 %557, %v455
          %v559 = vpop.permute.xlu0 %558
          %562 = vset.pattern.permute.xlu0 0
          %563 = vperm.xlu0 %562, %v456
          %v564 = vpop.permute.xlu0 %563
          %567 = vset.pattern.permute.xlu0 0
          %568 = vperm.xlu0 %567, %v457
          %v569 = vpop.permute.xlu0 %568
          %572 = vset.pattern.permute.xlu0 0
          %573 = vperm.xlu0 %572, %v458
          %v574 = vpop.permute.xlu0 %573
          %577 = vset.pattern.permute.xlu0 0
          %578 = vperm.xlu0 %577, %v459
          %v579 = vpop.permute.xlu0 %578
          %582 = vset.pattern.permute.xlu0 0
          %583 = vperm.xlu0 %582, %v460
          %v584 = vpop.permute.xlu0 %583
          %587 = vset.pattern.permute.xlu0 0
          %588 = vperm.xlu0 %587, %v461
          %v589 = vpop.permute.xlu0 %588
          %592 = vset.pattern.permute.xlu0 0
          %593 = vperm.xlu0 %592, %v462
          %v594 = vpop.permute.xlu0 %593
          %597 = vset.pattern.permute.xlu0 0
          %598 = vperm.xlu0 %597, %v463
          %v599 = vpop.permute.xlu0 %598
          %602 = vset.pattern.permute.xlu0 0
          %603 = vperm.xlu0 %602, %v464
          %v604 = vpop.permute.xlu0 %603
          %607 = vset.pattern.permute.xlu0 0
          %608 = vperm.xlu0 %607, %v465
          %v609 = vpop.permute.xlu0 %608
          %612 = vset.pattern.permute.xlu0 0
          %613 = vperm.xlu0 %612, %v466
          %v614 = vpop.permute.xlu0 %613
          %617 = vset.pattern.permute.xlu0 0
          %618 = vperm.xlu0 %617, %v467
          %v619 = vpop.permute.xlu0 %618
          %622 = vset.pattern.permute.xlu0 0
          %623 = vperm.xlu0 %622, %v468
          %v624 = vpop.permute.xlu0 %623
          %627 = vset.pattern.permute.xlu0 0
          %628 = vperm.xlu0 %627, %v469
          %v629 = vpop.permute.xlu0 %628
          %632 = vset.pattern.permute.xlu0 0
          %633 = vperm.xlu0 %632, %v470
          %v634 = vpop.permute.xlu0 %633
          %637 = vset.pattern.permute.xlu0 0
          %638 = vperm.xlu0 %637, %v471
          %v639 = vpop.permute.xlu0 %638
          %642 = vset.pattern.permute.xlu0 0
          %643 = vperm.xlu0 %642, %v472
          %v644 = vpop.permute.xlu0 %643
          %647 = vset.pattern.permute.xlu0 0
          %648 = vperm.xlu0 %647, %v473
          %v649 = vpop.permute.xlu0 %648
          %652 = vset.pattern.permute.xlu0 0
          %653 = vperm.xlu0 %652, %v474
          %v654 = vpop.permute.xlu0 %653
          %657 = vset.pattern.permute.xlu0 0
          %658 = vperm.xlu0 %657, %v475
          %v659 = vpop.permute.xlu0 %658
          %662 = vset.pattern.permute.xlu0 0
          %663 = vperm.xlu0 %662, %v476
          %v664 = vpop.permute.xlu0 %663
          %667 = vset.pattern.permute.xlu0 0
          %668 = vperm.xlu0 %667, %v477
          %v669 = vpop.permute.xlu0 %668
          %672 = vset.pattern.permute.xlu0 0
          %673 = vperm.xlu0 %672, %v478
          %v674 = vpop.permute.xlu0 %673
          %677 = vset.pattern.permute.xlu0 0
          %678 = vperm.xlu0 %677, %v479
          %v679 = vpop.permute.xlu0 %678
          %682 = vset.pattern.permute.xlu0 0
          %683 = vperm.xlu0 %682, %v480
          %v684 = vpop.permute.xlu0 %683
          %687 = vset.pattern.permute.xlu0 0
          %688 = vperm.xlu0 %687, %v481
          %v689 = vpop.permute.xlu0 %688
          %692 = vset.pattern.permute.xlu0 0
          %693 = vperm.xlu0 %692, %v482
          %v694 = vpop.permute.xlu0 %693
          %697 = vset.pattern.permute.xlu0 0
          %698 = vperm.xlu0 %697, %v483
          %v699 = vpop.permute.xlu0 %698
          %702 = vset.pattern.permute.xlu0 0
          %703 = vperm.xlu0 %702, %v484
          %v704 = vpop.permute.xlu0 %703
          %707 = vset.pattern.permute.xlu0 0
          %708 = vperm.xlu0 %707, %v485
          %v709 = vpop.permute.xlu0 %708
          %712 = vset.pattern.permute.xlu0 0
          %713 = vperm.xlu0 %712, %v486
          %v714 = vpop.permute.xlu0 %713
          %717 = vset.pattern.permute.xlu0 0
          %718 = vperm.xlu0 %717, %v487
          %v719 = vpop.permute.xlu0 %718
          %722 = vset.pattern.permute.xlu0 0
          %723 = vperm.xlu0 %722, %v488
          %v724 = vpop.permute.xlu0 %723
          %727 = vset.pattern.permute.xlu0 0
          %728 = vperm.xlu0 %727, %v489
          %v729 = vpop.permute.xlu0 %728
          %732 = vset.pattern.permute.xlu0 0
          %733 = vperm.xlu0 %732, %v490
          %v734 = vpop.permute.xlu0 %733
          %737 = vset.pattern.permute.xlu0 0
          %738 = vperm.xlu0 %737, %v491
          %v739 = vpop.permute.xlu0 %738
          %742 = vset.pattern.permute.xlu0 0
          %743 = vperm.xlu0 %742, %v492
          %v744 = vpop.permute.xlu0 %743
          %747 = vset.pattern.permute.xlu0 0
          %748 = vperm.xlu0 %747, %v493
          %v749 = vpop.permute.xlu0 %748
          %752 = vset.pattern.permute.xlu0 0
          %753 = vperm.xlu0 %752, %v494
          %v754 = vpop.permute.xlu0 %753
          %757 = vset.pattern.permute.xlu0 0
          %758 = vperm.xlu0 %757, %v495
          %v759 = vpop.permute.xlu0 %758
          %762 = vset.pattern.permute.xlu0 0
          %763 = vperm.xlu0 %762, %v496
          %v764 = vpop.permute.xlu0 %763
          %767 = vset.pattern.permute.xlu0 0
          %768 = vperm.xlu0 %767, %v497
          %v769 = vpop.permute.xlu0 %768
          %772 = vset.pattern.permute.xlu0 0
          %773 = vperm.xlu0 %772, %v498
          %v774 = vpop.permute.xlu0 %773
          %777 = vset.pattern.permute.xlu0 0
          %778 = vperm.xlu0 %777, %v499
          %v779 = vpop.permute.xlu0 %778
          %782 = vset.pattern.permute.xlu0 0
          %783 = vperm.xlu0 %782, %v500
          %v784 = vpop.permute.xlu0 %783
          %787 = vset.pattern.permute.xlu0 0
          %788 = vperm.xlu0 %787, %v501
          %v789 = vpop.permute.xlu0 %788
          %792 = vset.pattern.permute.xlu0 0
          %793 = vperm.xlu0 %792, %v502
          %v794 = vpop.permute.xlu0 %793
          %797 = vset.pattern.permute.xlu0 0
          %798 = vperm.xlu0 %797, %v503
          %v799 = vpop.permute.xlu0 %798
          %802 = vset.pattern.permute.xlu0 0
          %803 = vperm.xlu0 %802, %v504
          %v804 = vpop.permute.xlu0 %803
          %807 = vset.pattern.permute.xlu0 0
          %808 = vperm.xlu0 %807, %v505
          %v809 = vpop.permute.xlu0 %808
          %812 = vset.pattern.permute.xlu0 0
          %813 = vperm.xlu0 %812, %v506
          %v814 = vpop.permute.xlu0 %813
          %817 = vset.pattern.permute.xlu0 0
          %818 = vperm.xlu0 %817, %v507
          %v819 = vpop.permute.xlu0 %818
          %822 = vset.pattern.permute.xlu0 0
          %823 = vperm.xlu0 %822, %v508
          %v824 = vpop.permute.xlu0 %823
          %827 = vset.pattern.permute.xlu0 0
          %828 = vperm.xlu0 %827, %v509
          %v829 = vpop.permute.xlu0 %828
          %v831 = vlaneseq
          %v832 = vshrl.u32 %v831, 7
          %v833 = vsub.s32 0, %v832
          %v834 = vrot.slane %v510, %v833
          %v835 = vmul.f32 %v514, %v834
          %v836 = vmul.f32 %v519, %v834
          %v837 = vmul.f32 %v524, %v834
          %v838 = vmul.f32 %v529, %v834
          %v839 = vmul.f32 %v534, %v834
          %v840 = vmul.f32 %v539, %v834
          %v841 = vmul.f32 %v544, %v834
          %v842 = vmul.f32 %v549, %v834
          %v843 = vmul.f32 %v554, %v834
          %v844 = vmul.f32 %v559, %v834
          %v845 = vmul.f32 %v564, %v834
          %v846 = vmul.f32 %v569, %v834
          %v847 = vmul.f32 %v574, %v834
          %v848 = vmul.f32 %v579, %v834
          %v849 = vmul.f32 %v584, %v834
          %v850 = vmul.f32 %v589, %v834
          %v851 = vmul.f32 %v594, %v834
          %v852 = vmul.f32 %v599, %v834
          %v853 = vmul.f32 %v604, %v834
          %v854 = vmul.f32 %v609, %v834
          %v855 = vmul.f32 %v614, %v834
          %v856 = vmul.f32 %v619, %v834
          %v857 = vmul.f32 %v624, %v834
          %v858 = vmul.f32 %v629, %v834
          %v859 = vmul.f32 %v634, %v834
          %v860 = vmul.f32 %v639, %v834
          %v861 = vmul.f32 %v644, %v834
          %v862 = vmul.f32 %v649, %v834
          %v863 = vmul.f32 %v654, %v834
          %v864 = vmul.f32 %v659, %v834
          %v865 = vmul.f32 %v664, %v834
          %v866 = vmul.f32 %v669, %v834
          %v867 = vmul.f32 %v674, %v834
          %v868 = vmul.f32 %v679, %v834
          %v869 = vmul.f32 %v684, %v834
          %v870 = vmul.f32 %v689, %v834
          %v871 = vmul.f32 %v694, %v834
          %v872 = vmul.f32 %v699, %v834
          %v873 = vmul.f32 %v704, %v834
          %v874 = vmul.f32 %v709, %v834
          %v875 = vmul.f32 %v714, %v834
          %v876 = vmul.f32 %v719, %v834
          %v877 = vmul.f32 %v724, %v834
          %v878 = vmul.f32 %v729, %v834
          %v879 = vmul.f32 %v734, %v834
          %v880 = vmul.f32 %v739, %v834
          %v881 = vmul.f32 %v744, %v834
          %v882 = vmul.f32 %v749, %v834
          %v883 = vmul.f32 %v754, %v834
          %v884 = vmul.f32 %v759, %v834
          %v885 = vmul.f32 %v764, %v834
          %v886 = vmul.f32 %v769, %v834
          %v887 = vmul.f32 %v774, %v834
          %v888 = vmul.f32 %v779, %v834
          %v889 = vmul.f32 %v784, %v834
          %v890 = vmul.f32 %v789, %v834
          %v891 = vmul.f32 %v794, %v834
          %v892 = vmul.f32 %v799, %v834
          %v893 = vmul.f32 %v804, %v834
          %v894 = vmul.f32 %v809, %v834
          %v895 = vmul.f32 %v814, %v834
          %v896 = vmul.f32 %v819, %v834
          %v897 = vmul.f32 %v824, %v834
          %v898 = vmul.f32 %v829, %v834
          %v899 = vld [vmem:[%s1 + $0x1] sm:$0x1]
          %900 = vset.pattern.permute.xlu0 1
          %901 = vperm.xlu0 %900, %v446
          %v902 = vpop.permute.xlu0 %901
          %904 = vset.pattern.permute.xlu0 1
          %905 = vperm.xlu0 %904, %v447
          %v906 = vpop.permute.xlu0 %905
          %908 = vset.pattern.permute.xlu0 1
          %909 = vperm.xlu0 %908, %v448
          %v910 = vpop.permute.xlu0 %909
          %912 = vset.pattern.permute.xlu0 1
          %913 = vperm.xlu0 %912, %v449
          %v914 = vpop.permute.xlu0 %913
          %916 = vset.pattern.permute.xlu0 1
          %917 = vperm.xlu0 %916, %v450
          %v918 = vpop.permute.xlu0 %917
          %920 = vset.pattern.permute.xlu0 1
          %921 = vperm.xlu0 %920, %v451
          %v922 = vpop.permute.xlu0 %921
          %924 = vset.pattern.permute.xlu0 1
          %925 = vperm.xlu0 %924, %v452
          %v926 = vpop.permute.xlu0 %925
          %928 = vset.pattern.permute.xlu0 1
          %929 = vperm.xlu0 %928, %v453
          %v930 = vpop.permute.xlu0 %929
          %932 = vset.pattern.permute.xlu0 1
          %933 = vperm.xlu0 %932, %v454
          %v934 = vpop.permute.xlu0 %933
          %936 = vset.pattern.permute.xlu0 1
          %937 = vperm.xlu0 %936, %v455
          %v938 = vpop.permute.xlu0 %937
          %940 = vset.pattern.permute.xlu0 1
          %941 = vperm.xlu0 %940, %v456
          %v942 = vpop.permute.xlu0 %941
          %944 = vset.pattern.permute.xlu0 1
          %945 = vperm.xlu0 %944, %v457
          %v946 = vpop.permute.xlu0 %945
          %948 = vset.pattern.permute.xlu0 1
          %949 = vperm.xlu0 %948, %v458
          %v950 = vpop.permute.xlu0 %949
          %952 = vset.pattern.permute.xlu0 1
          %953 = vperm.xlu0 %952, %v459
          %v954 = vpop.permute.xlu0 %953
          %956 = vset.pattern.permute.xlu0 1
          %957 = vperm.xlu0 %956, %v460
          %v958 = vpop.permute.xlu0 %957
          %960 = vset.pattern.permute.xlu0 1
          %961 = vperm.xlu0 %960, %v461
          %v962 = vpop.permute.xlu0 %961
          %964 = vset.pattern.permute.xlu0 1
          %965 = vperm.xlu0 %964, %v462
          %v966 = vpop.permute.xlu0 %965
          %968 = vset.pattern.permute.xlu0 1
          %969 = vperm.xlu0 %968, %v463
          %v970 = vpop.permute.xlu0 %969
          %972 = vset.pattern.permute.xlu0 1
          %973 = vperm.xlu0 %972, %v464
          %v974 = vpop.permute.xlu0 %973
          %976 = vset.pattern.permute.xlu0 1
          %977 = vperm.xlu0 %976, %v465
          %v978 = vpop.permute.xlu0 %977
          %980 = vset.pattern.permute.xlu0 1
          %981 = vperm.xlu0 %980, %v466
          %v982 = vpop.permute.xlu0 %981
          %984 = vset.pattern.permute.xlu0 1
          %985 = vperm.xlu0 %984, %v467
          %v986 = vpop.permute.xlu0 %985
          %988 = vset.pattern.permute.xlu0 1
          %989 = vperm.xlu0 %988, %v468
          %v990 = vpop.permute.xlu0 %989
          %992 = vset.pattern.permute.xlu0 1
          %993 = vperm.xlu0 %992, %v469
          %v994 = vpop.permute.xlu0 %993
          %996 = vset.pattern.permute.xlu0 1
          %997 = vperm.xlu0 %996, %v470
          %v998 = vpop.permute.xlu0 %997
          %1000 = vset.pattern.permute.xlu0 1
          %1001 = vperm.xlu0 %1000, %v471
          %v1002 = vpop.permute.xlu0 %1001
          %1004 = vset.pattern.permute.xlu0 1
          %1005 = vperm.xlu0 %1004, %v472
          %v1006 = vpop.permute.xlu0 %1005
          %1008 = vset.pattern.permute.xlu0 1
          %1009 = vperm.xlu0 %1008, %v473
          %v1010 = vpop.permute.xlu0 %1009
          %1012 = vset.pattern.permute.xlu0 1
          %1013 = vperm.xlu0 %1012, %v474
          %v1014 = vpop.permute.xlu0 %1013
          %1016 = vset.pattern.permute.xlu0 1
          %1017 = vperm.xlu0 %1016, %v475
          %v1018 = vpop.permute.xlu0 %1017
          %1020 = vset.pattern.permute.xlu0 1
          %1021 = vperm.xlu0 %1020, %v476
          %v1022 = vpop.permute.xlu0 %1021
          %1024 = vset.pattern.permute.xlu0 1
          %1025 = vperm.xlu0 %1024, %v477
          %v1026 = vpop.permute.xlu0 %1025
          %1028 = vset.pattern.permute.xlu0 1
          %1029 = vperm.xlu0 %1028, %v478
          %v1030 = vpop.permute.xlu0 %1029
          %1032 = vset.pattern.permute.xlu0 1
          %1033 = vperm.xlu0 %1032, %v479
          %v1034 = vpop.permute.xlu0 %1033
          %1036 = vset.pattern.permute.xlu0 1
          %1037 = vperm.xlu0 %1036, %v480
          %v1038 = vpop.permute.xlu0 %1037
          %1040 = vset.pattern.permute.xlu0 1
          %1041 = vperm.xlu0 %1040, %v481
          %v1042 = vpop.permute.xlu0 %1041
          %1044 = vset.pattern.permute.xlu0 1
          %1045 = vperm.xlu0 %1044, %v482
          %v1046 = vpop.permute.xlu0 %1045
          %1048 = vset.pattern.permute.xlu0 1
          %1049 = vperm.xlu0 %1048, %v483
          %v1050 = vpop.permute.xlu0 %1049
          %1052 = vset.pattern.permute.xlu0 1
          %1053 = vperm.xlu0 %1052, %v484
          %v1054 = vpop.permute.xlu0 %1053
          %1056 = vset.pattern.permute.xlu0 1
          %1057 = vperm.xlu0 %1056, %v485
          %v1058 = vpop.permute.xlu0 %1057
          %1060 = vset.pattern.permute.xlu0 1
          %1061 = vperm.xlu0 %1060, %v486
          %v1062 = vpop.permute.xlu0 %1061
          %1064 = vset.pattern.permute.xlu0 1
          %1065 = vperm.xlu0 %1064, %v487
          %v1066 = vpop.permute.xlu0 %1065
          %1068 = vset.pattern.permute.xlu0 1
          %1069 = vperm.xlu0 %1068, %v488
          %v1070 = vpop.permute.xlu0 %1069
          %1072 = vset.pattern.permute.xlu0 1
          %1073 = vperm.xlu0 %1072, %v489
          %v1074 = vpop.permute.xlu0 %1073
          %1076 = vset.pattern.permute.xlu0 1
          %1077 = vperm.xlu0 %1076, %v490
          %v1078 = vpop.permute.xlu0 %1077
          %1080 = vset.pattern.permute.xlu0 1
          %1081 = vperm.xlu0 %1080, %v491
          %v1082 = vpop.permute.xlu0 %1081
          %1084 = vset.pattern.permute.xlu0 1
          %1085 = vperm.xlu0 %1084, %v492
          %v1086 = vpop.permute.xlu0 %1085
          %1088 = vset.pattern.permute.xlu0 1
          %1089 = vperm.xlu0 %1088, %v493
          %v1090 = vpop.permute.xlu0 %1089
          %1092 = vset.pattern.permute.xlu0 1
          %1093 = vperm.xlu0 %1092, %v494
          %v1094 = vpop.permute.xlu0 %1093
          %1096 = vset.pattern.permute.xlu0 1
          %1097 = vperm.xlu0 %1096, %v495
          %v1098 = vpop.permute.xlu0 %1097
          %1100 = vset.pattern.permute.xlu0 1
          %1101 = vperm.xlu0 %1100, %v496
          %v1102 = vpop.permute.xlu0 %1101
          %1104 = vset.pattern.permute.xlu0 1
          %1105 = vperm.xlu0 %1104, %v497
          %v1106 = vpop.permute.xlu0 %1105
          %1108 = vset.pattern.permute.xlu0 1
          %1109 = vperm.xlu0 %1108, %v498
          %v1110 = vpop.permute.xlu0 %1109
          %1112 = vset.pattern.permute.xlu0 1
          %1113 = vperm.xlu0 %1112, %v499
          %v1114 = vpop.permute.xlu0 %1113
          %1116 = vset.pattern.permute.xlu0 1
          %1117 = vperm.xlu0 %1116, %v500
          %v1118 = vpop.permute.xlu0 %1117
          %1120 = vset.pattern.permute.xlu0 1
          %1121 = vperm.xlu0 %1120, %v501
          %v1122 = vpop.permute.xlu0 %1121
          %1124 = vset.pattern.permute.xlu0 1
          %1125 = vperm.xlu0 %1124, %v502
          %v1126 = vpop.permute.xlu0 %1125
          %1128 = vset.pattern.permute.xlu0 1
          %1129 = vperm.xlu0 %1128, %v503
          %v1130 = vpop.permute.xlu0 %1129
          %1132 = vset.pattern.permute.xlu0 1
          %1133 = vperm.xlu0 %1132, %v504
          %v1134 = vpop.permute.xlu0 %1133
          %1136 = vset.pattern.permute.xlu0 1
          %1137 = vperm.xlu0 %1136, %v505
          %v1138 = vpop.permute.xlu0 %1137
          %1140 = vset.pattern.permute.xlu0 1
          %1141 = vperm.xlu0 %1140, %v506
          %v1142 = vpop.permute.xlu0 %1141
          %1144 = vset.pattern.permute.xlu0 1
          %1145 = vperm.xlu0 %1144, %v507
          %v1146 = vpop.permute.xlu0 %1145
          %1148 = vset.pattern.permute.xlu0 1
          %1149 = vperm.xlu0 %1148, %v508
          %v1150 = vpop.permute.xlu0 %1149
          %1152 = vset.pattern.permute.xlu0 1
          %1153 = vperm.xlu0 %1152, %v509
          %v1154 = vpop.permute.xlu0 %1153
          %v1156 = vlaneseq
          %v1157 = vshrl.u32 %v1156, 7
          %v1158 = vsub.s32 0, %v1157
          %v1159 = vrot.slane %v899, %v1158
          %v1160 = vmul.f32 %v902, %v1159
          %v1161 = vmul.f32 %v906, %v1159
          %v1162 = vmul.f32 %v910, %v1159
          %v1163 = vmul.f32 %v914, %v1159
          %v1164 = vmul.f32 %v918, %v1159
          %v1165 = vmul.f32 %v922, %v1159
          %v1166 = vmul.f32 %v926, %v1159
          %v1167 = vmul.f32 %v930, %v1159
          %v1168 = vmul.f32 %v934, %v1159
          %v1169 = vmul.f32 %v938, %v1159
          %v1170 = vmul.f32 %v942, %v1159
          %v1171 = vmul.f32 %v946, %v1159
          %v1172 = vmul.f32 %v950, %v1159
          %v1173 = vmul.f32 %v954, %v1159
          %v1174 = vmul.f32 %v958, %v1159
          %v1175 = vmul.f32 %v962, %v1159
          %v1176 = vmul.f32 %v966, %v1159
          %v1177 = vmul.f32 %v970, %v1159
          %v1178 = vmul.f32 %v974, %v1159
          %v1179 = vmul.f32 %v978, %v1159
          %v1180 = vmul.f32 %v982, %v1159
          %v1181 = vmul.f32 %v986, %v1159
          %v1182 = vmul.f32 %v990, %v1159
          %v1183 = vmul.f32 %v994, %v1159
          %v1184 = vmul.f32 %v998, %v1159
          %v1185 = vmul.f32 %v1002, %v1159
          %v1186 = vmul.f32 %v1006, %v1159
          %v1187 = vmul.f32 %v1010, %v1159
          %v1188 = vmul.f32 %v1014, %v1159
          %v1189 = vmul.f32 %v1018, %v1159
          %v1190 = vmul.f32 %v1022, %v1159
          %v1191 = vmul.f32 %v1026, %v1159
          %v1192 = vmul.f32 %v1030, %v1159
          %v1193 = vmul.f32 %v1034, %v1159
          %v1194 = vmul.f32 %v1038, %v1159
          %v1195 = vmul.f32 %v1042, %v1159
          %v1196 = vmul.f32 %v1046, %v1159
          %v1197 = vmul.f32 %v1050, %v1159
          %v1198 = vmul.f32 %v1054, %v1159
          %v1199 = vmul.f32 %v1058, %v1159
          %v1200 = vmul.f32 %v1062, %v1159
          %v1201 = vmul.f32 %v1066, %v1159
          %v1202 = vmul.f32 %v1070, %v1159
          %v1203 = vmul.f32 %v1074, %v1159
          %v1204 = vmul.f32 %v1078, %v1159
          %v1205 = vmul.f32 %v1082, %v1159
          %v1206 = vmul.f32 %v1086, %v1159
          %v1207 = vmul.f32 %v1090, %v1159
          %v1208 = vmul.f32 %v1094, %v1159
          %v1209 = vmul.f32 %v1098, %v1159
          %v1210 = vmul.f32 %v1102, %v1159
          %v1211 = vmul.f32 %v1106, %v1159
          %v1212 = vmul.f32 %v1110, %v1159
          %v1213 = vmul.f32 %v1114, %v1159
          %v1214 = vmul.f32 %v1118, %v1159
          %v1215 = vmul.f32 %v1122, %v1159
          %v1216 = vmul.f32 %v1126, %v1159
          %v1217 = vmul.f32 %v1130, %v1159
          %v1218 = vmul.f32 %v1134, %v1159
          %v1219 = vmul.f32 %v1138, %v1159
          %v1220 = vmul.f32 %v1142, %v1159
          %v1221 = vmul.f32 %v1146, %v1159
          %v1222 = vmul.f32 %v1150, %v1159
          %v1223 = vmul.f32 %v1154, %v1159
          %v1224 = vadd.f32 %v835, %v1160
          %v1225 = vadd.f32 %v836, %v1161
          %v1226 = vadd.f32 %v837, %v1162
          %v1227 = vadd.f32 %v838, %v1163
          %v1228 = vadd.f32 %v839, %v1164
          %v1229 = vadd.f32 %v840, %v1165
          %v1230 = vadd.f32 %v841, %v1166
          %v1231 = vadd.f32 %v842, %v1167
          %v1232 = vadd.f32 %v843, %v1168
          %v1233 = vadd.f32 %v844, %v1169
          %v1234 = vadd.f32 %v845, %v1170
          %v1235 = vadd.f32 %v846, %v1171
          %v1236 = vadd.f32 %v847, %v1172
          %v1237 = vadd.f32 %v848, %v1173
          %v1238 = vadd.f32 %v849, %v1174
          %v1239 = vadd.f32 %v850, %v1175
          %v1240 = vadd.f32 %v851, %v1176
          %v1241 = vadd.f32 %v852, %v1177
          %v1242 = vadd.f32 %v853, %v1178
          %v1243 = vadd.f32 %v854, %v1179
          %v1244 = vadd.f32 %v855, %v1180
          %v1245 = vadd.f32 %v856, %v1181
          %v1246 = vadd.f32 %v857, %v1182
          %v1247 = vadd.f32 %v858, %v1183
          %v1248 = vadd.f32 %v859, %v1184
          %v1249 = vadd.f32 %v860, %v1185
          %v1250 = vadd.f32 %v861, %v1186
          %v1251 = vadd.f32 %v862, %v1187
          %v1252 = vadd.f32 %v863, %v1188
          %v1253 = vadd.f32 %v864, %v1189
          %v1254 = vadd.f32 %v865, %v1190
          %v1255 = vadd.f32 %v866, %v1191
          %v1256 = vadd.f32 %v867, %v1192
          %v1257 = vadd.f32 %v868, %v1193
          %v1258 = vadd.f32 %v869, %v1194
          %v1259 = vadd.f32 %v870, %v1195
          %v1260 = vadd.f32 %v871, %v1196
          %v1261 = vadd.f32 %v872, %v1197
          %v1262 = vadd.f32 %v873, %v1198
          %v1263 = vadd.f32 %v874, %v1199
          %v1264 = vadd.f32 %v875, %v1200
          %v1265 = vadd.f32 %v876, %v1201
          %v1266 = vadd.f32 %v877, %v1202
          %v1267 = vadd.f32 %v878, %v1203
          %v1268 = vadd.f32 %v879, %v1204
          %v1269 = vadd.f32 %v880, %v1205
          %v1270 = vadd.f32 %v881, %v1206
          %v1271 = vadd.f32 %v882, %v1207
          %v1272 = vadd.f32 %v883, %v1208
          %v1273 = vadd.f32 %v884, %v1209
          %v1274 = vadd.f32 %v885, %v1210
          %v1275 = vadd.f32 %v886, %v1211
          %v1276 = vadd.f32 %v887, %v1212
          %v1277 = vadd.f32 %v888, %v1213
          %v1278 = vadd.f32 %v889, %v1214
          %v1279 = vadd.f32 %v890, %v1215
          %v1280 = vadd.f32 %v891, %v1216
          %v1281 = vadd.f32 %v892, %v1217
          %v1282 = vadd.f32 %v893, %v1218
          %v1283 = vadd.f32 %v894, %v1219
          %v1284 = vadd.f32 %v895, %v1220
          %v1285 = vadd.f32 %v896, %v1221
          %v1286 = vadd.f32 %v897, %v1222
          %v1287 = vadd.f32 %v898, %v1223
          %v1288 = vld [vmem:[%s1 + $0x2] sm:$0x1]
          %1289 = vset.pattern.permute.xlu0 2
          %1290 = vperm.xlu0 %1289, %v446
          %v1291 = vpop.permute.xlu0 %1290
          %1293 = vset.pattern.permute.xlu0 2
          %1294 = vperm.xlu0 %1293, %v447
          %v1295 = vpop.permute.xlu0 %1294
          %1297 = vset.pattern.permute.xlu0 2
          %1298 = vperm.xlu0 %1297, %v448
          %v1299 = vpop.permute.xlu0 %1298
          %1301 = vset.pattern.permute.xlu0 2
          %1302 = vperm.xlu0 %1301, %v449
          %v1303 = vpop.permute.xlu0 %1302
          %1305 = vset.pattern.permute.xlu0 2
          %1306 = vperm.xlu0 %1305, %v450
          %v1307 = vpop.permute.xlu0 %1306
          %1309 = vset.pattern.permute.xlu0 2
          %1310 = vperm.xlu0 %1309, %v451
          %v1311 = vpop.permute.xlu0 %1310
          %1313 = vset.pattern.permute.xlu0 2
          %1314 = vperm.xlu0 %1313, %v452
          %v1315 = vpop.permute.xlu0 %1314
          %1317 = vset.pattern.permute.xlu0 2
          %1318 = vperm.xlu0 %1317, %v453
          %v1319 = vpop.permute.xlu0 %1318
          %1321 = vset.pattern.permute.xlu0 2
          %1322 = vperm.xlu0 %1321, %v454
          %v1323 = vpop.permute.xlu0 %1322
          %1325 = vset.pattern.permute.xlu0 2
          %1326 = vperm.xlu0 %1325, %v455
          %v1327 = vpop.permute.xlu0 %1326
          %1329 = vset.pattern.permute.xlu0 2
          %1330 = vperm.xlu0 %1329, %v456
          %v1331 = vpop.permute.xlu0 %1330
          %1333 = vset.pattern.permute.xlu0 2
          %1334 = vperm.xlu0 %1333, %v457
          %v1335 = vpop.permute.xlu0 %1334
          %1337 = vset.pattern.permute.xlu0 2
          %1338 = vperm.xlu0 %1337, %v458
          %v1339 = vpop.permute.xlu0 %1338
          %1341 = vset.pattern.permute.xlu0 2
          %1342 = vperm.xlu0 %1341, %v459
          %v1343 = vpop.permute.xlu0 %1342
          %1345 = vset.pattern.permute.xlu0 2
          %1346 = vperm.xlu0 %1345, %v460
          %v1347 = vpop.permute.xlu0 %1346
          %1349 = vset.pattern.permute.xlu0 2
          %1350 = vperm.xlu0 %1349, %v461
          %v1351 = vpop.permute.xlu0 %1350
          %1353 = vset.pattern.permute.xlu0 2
          %1354 = vperm.xlu0 %1353, %v462
          %v1355 = vpop.permute.xlu0 %1354
          %1357 = vset.pattern.permute.xlu0 2
          %1358 = vperm.xlu0 %1357, %v463
          %v1359 = vpop.permute.xlu0 %1358
          %1361 = vset.pattern.permute.xlu0 2
          %1362 = vperm.xlu0 %1361, %v464
          %v1363 = vpop.permute.xlu0 %1362
          %1365 = vset.pattern.permute.xlu0 2
          %1366 = vperm.xlu0 %1365, %v465
          %v1367 = vpop.permute.xlu0 %1366
          %1369 = vset.pattern.permute.xlu0 2
          %1370 = vperm.xlu0 %1369, %v466
          %v1371 = vpop.permute.xlu0 %1370
          %1373 = vset.pattern.permute.xlu0 2
          %1374 = vperm.xlu0 %1373, %v467
          %v1375 = vpop.permute.xlu0 %1374
          %1377 = vset.pattern.permute.xlu0 2
          %1378 = vperm.xlu0 %1377, %v468
          %v1379 = vpop.permute.xlu0 %1378
          %1381 = vset.pattern.permute.xlu0 2
          %1382 = vperm.xlu0 %1381, %v469
          %v1383 = vpop.permute.xlu0 %1382
          %1385 = vset.pattern.permute.xlu0 2
          %1386 = vperm.xlu0 %1385, %v470
          %v1387 = vpop.permute.xlu0 %1386
          %1389 = vset.pattern.permute.xlu0 2
          %1390 = vperm.xlu0 %1389, %v471
          %v1391 = vpop.permute.xlu0 %1390
          %1393 = vset.pattern.permute.xlu0 2
          %1394 = vperm.xlu0 %1393, %v472
          %v1395 = vpop.permute.xlu0 %1394
          %1397 = vset.pattern.permute.xlu0 2
          %1398 = vperm.xlu0 %1397, %v473
          %v1399 = vpop.permute.xlu0 %1398
          %1401 = vset.pattern.permute.xlu0 2
          %1402 = vperm.xlu0 %1401, %v474
          %v1403 = vpop.permute.xlu0 %1402
          %1405 = vset.pattern.permute.xlu0 2
          %1406 = vperm.xlu0 %1405, %v475
          %v1407 = vpop.permute.xlu0 %1406
          %1409 = vset.pattern.permute.xlu0 2
          %1410 = vperm.xlu0 %1409, %v476
          %v1411 = vpop.permute.xlu0 %1410
          %1413 = vset.pattern.permute.xlu0 2
          %1414 = vperm.xlu0 %1413, %v477
          %v1415 = vpop.permute.xlu0 %1414
          %1417 = vset.pattern.permute.xlu0 2
          %1418 = vperm.xlu0 %1417, %v478
          %v1419 = vpop.permute.xlu0 %1418
          %1421 = vset.pattern.permute.xlu0 2
          %1422 = vperm.xlu0 %1421, %v479
          %v1423 = vpop.permute.xlu0 %1422
          %1425 = vset.pattern.permute.xlu0 2
          %1426 = vperm.xlu0 %1425, %v480
          %v1427 = vpop.permute.xlu0 %1426
          %1429 = vset.pattern.permute.xlu0 2
          %1430 = vperm.xlu0 %1429, %v481
          %v1431 = vpop.permute.xlu0 %1430
          %1433 = vset.pattern.permute.xlu0 2
          %1434 = vperm.xlu0 %1433, %v482
          %v1435 = vpop.permute.xlu0 %1434
          %1437 = vset.pattern.permute.xlu0 2
          %1438 = vperm.xlu0 %1437, %v483
          %v1439 = vpop.permute.xlu0 %1438
          %1441 = vset.pattern.permute.xlu0 2
          %1442 = vperm.xlu0 %1441, %v484
          %v1443 = vpop.permute.xlu0 %1442
          %1445 = vset.pattern.permute.xlu0 2
          %1446 = vperm.xlu0 %1445, %v485
          %v1447 = vpop.permute.xlu0 %1446
          %1449 = vset.pattern.permute.xlu0 2
          %1450 = vperm.xlu0 %1449, %v486
          %v1451 = vpop.permute.xlu0 %1450
          %1453 = vset.pattern.permute.xlu0 2
          %1454 = vperm.xlu0 %1453, %v487
          %v1455 = vpop.permute.xlu0 %1454
          %1457 = vset.pattern.permute.xlu0 2
          %1458 = vperm.xlu0 %1457, %v488
          %v1459 = vpop.permute.xlu0 %1458
          %1461 = vset.pattern.permute.xlu0 2
          %1462 = vperm.xlu0 %1461, %v489
          %v1463 = vpop.permute.xlu0 %1462
          %1465 = vset.pattern.permute.xlu0 2
          %1466 = vperm.xlu0 %1465, %v490
          %v1467 = vpop.permute.xlu0 %1466
          %1469 = vset.pattern.permute.xlu0 2
          %1470 = vperm.xlu0 %1469, %v491
          %v1471 = vpop.permute.xlu0 %1470
          %1473 = vset.pattern.permute.xlu0 2
          %1474 = vperm.xlu0 %1473, %v492
          %v1475 = vpop.permute.xlu0 %1474
          %1477 = vset.pattern.permute.xlu0 2
          %1478 = vperm.xlu0 %1477, %v493
          %v1479 = vpop.permute.xlu0 %1478
          %1481 = vset.pattern.permute.xlu0 2
          %1482 = vperm.xlu0 %1481, %v494
          %v1483 = vpop.permute.xlu0 %1482
          %1485 = vset.pattern.permute.xlu0 2
          %1486 = vperm.xlu0 %1485, %v495
          %v1487 = vpop.permute.xlu0 %1486
          %1489 = vset.pattern.permute.xlu0 2
          %1490 = vperm.xlu0 %1489, %v496
          %v1491 = vpop.permute.xlu0 %1490
          %1493 = vset.pattern.permute.xlu0 2
          %1494 = vperm.xlu0 %1493, %v497
          %v1495 = vpop.permute.xlu0 %1494
          %1497 = vset.pattern.permute.xlu0 2
          %1498 = vperm.xlu0 %1497, %v498
          %v1499 = vpop.permute.xlu0 %1498
          %1501 = vset.pattern.permute.xlu0 2
          %1502 = vperm.xlu0 %1501, %v499
          %v1503 = vpop.permute.xlu0 %1502
          %1505 = vset.pattern.permute.xlu0 2
          %1506 = vperm.xlu0 %1505, %v500
          %v1507 = vpop.permute.xlu0 %1506
          %1509 = vset.pattern.permute.xlu0 2
          %1510 = vperm.xlu0 %1509, %v501
          %v1511 = vpop.permute.xlu0 %1510
          %1513 = vset.pattern.permute.xlu0 2
          %1514 = vperm.xlu0 %1513, %v502
          %v1515 = vpop.permute.xlu0 %1514
          %1517 = vset.pattern.permute.xlu0 2
          %1518 = vperm.xlu0 %1517, %v503
          %v1519 = vpop.permute.xlu0 %1518
          %1521 = vset.pattern.permute.xlu0 2
          %1522 = vperm.xlu0 %1521, %v504
          %v1523 = vpop.permute.xlu0 %1522
          %1525 = vset.pattern.permute.xlu0 2
          %1526 = vperm.xlu0 %1525, %v505
          %v1527 = vpop.permute.xlu0 %1526
          %1529 = vset.pattern.permute.xlu0 2
          %1530 = vperm.xlu0 %1529, %v506
          %v1531 = vpop.permute.xlu0 %1530
          %1533 = vset.pattern.permute.xlu0 2
          %1534 = vperm.xlu0 %1533, %v507
          %v1535 = vpop.permute.xlu0 %1534
          %1537 = vset.pattern.permute.xlu0 2
          %1538 = vperm.xlu0 %1537, %v508
          %v1539 = vpop.permute.xlu0 %1538
          %1541 = vset.pattern.permute.xlu0 2
          %1542 = vperm.xlu0 %1541, %v509
          %v1543 = vpop.permute.xlu0 %1542
          %v1545 = vlaneseq
          %v1546 = vshrl.u32 %v1545, 7
          %v1547 = vsub.s32 0, %v1546
          %v1548 = vrot.slane %v1288, %v1547
          %v1549 = vmul.f32 %v1291, %v1548
          %v1550 = vmul.f32 %v1295, %v1548
          %v1551 = vmul.f32 %v1299, %v1548
          %v1552 = vmul.f32 %v1303, %v1548
          %v1553 = vmul.f32 %v1307, %v1548
          %v1554 = vmul.f32 %v1311, %v1548
          %v1555 = vmul.f32 %v1315, %v1548
          %v1556 = vmul.f32 %v1319, %v1548
          %v1557 = vmul.f32 %v1323, %v1548
          %v1558 = vmul.f32 %v1327, %v1548
          %v1559 = vmul.f32 %v1331, %v1548
          %v1560 = vmul.f32 %v1335, %v1548
          %v1561 = vmul.f32 %v1339, %v1548
          %v1562 = vmul.f32 %v1343, %v1548
          %v1563 = vmul.f32 %v1347, %v1548
          %v1564 = vmul.f32 %v1351, %v1548
          %v1565 = vmul.f32 %v1355, %v1548
          %v1566 = vmul.f32 %v1359, %v1548
          %v1567 = vmul.f32 %v1363, %v1548
          %v1568 = vmul.f32 %v1367, %v1548
          %v1569 = vmul.f32 %v1371, %v1548
          %v1570 = vmul.f32 %v1375, %v1548
          %v1571 = vmul.f32 %v1379, %v1548
          %v1572 = vmul.f32 %v1383, %v1548
          %v1573 = vmul.f32 %v1387, %v1548
          %v1574 = vmul.f32 %v1391, %v1548
          %v1575 = vmul.f32 %v1395, %v1548
          %v1576 = vmul.f32 %v1399, %v1548
          %v1577 = vmul.f32 %v1403, %v1548
          %v1578 = vmul.f32 %v1407, %v1548
          %v1579 = vmul.f32 %v1411, %v1548
          %v1580 = vmul.f32 %v1415, %v1548
          %v1581 = vmul.f32 %v1419, %v1548
          %v1582 = vmul.f32 %v1423, %v1548
          %v1583 = vmul.f32 %v1427, %v1548
          %v1584 = vmul.f32 %v1431, %v1548
          %v1585 = vmul.f32 %v1435, %v1548
          %v1586 = vmul.f32 %v1439, %v1548
          %v1587 = vmul.f32 %v1443, %v1548
          %v1588 = vmul.f32 %v1447, %v1548
          %v1589 = vmul.f32 %v1451, %v1548
          %v1590 = vmul.f32 %v1455, %v1548
          %v1591 = vmul.f32 %v1459, %v1548
          %v1592 = vmul.f32 %v1463, %v1548
          %v1593 = vmul.f32 %v1467, %v1548
          %v1594 = vmul.f32 %v1471, %v1548
          %v1595 = vmul.f32 %v1475, %v1548
          %v1596 = vmul.f32 %v1479, %v1548
          %v1597 = vmul.f32 %v1483, %v1548
          %v1598 = vmul.f32 %v1487, %v1548
          %v1599 = vmul.f32 %v1491, %v1548
          %v1600 = vmul.f32 %v1495, %v1548
          %v1601 = vmul.f32 %v1499, %v1548
          %v1602 = vmul.f32 %v1503, %v1548
          %v1603 = vmul.f32 %v1507, %v1548
          %v1604 = vmul.f32 %v1511, %v1548
          %v1605 = vmul.f32 %v1515, %v1548
          %v1606 = vmul.f32 %v1519, %v1548
          %v1607 = vmul.f32 %v1523, %v1548
          %v1608 = vmul.f32 %v1527, %v1548
          %v1609 = vmul.f32 %v1531, %v1548
          %v1610 = vmul.f32 %v1535, %v1548
          %v1611 = vmul.f32 %v1539, %v1548
          %v1612 = vmul.f32 %v1543, %v1548
          %v1613 = vadd.f32 %v1224, %v1549
          %v1614 = vadd.f32 %v1225, %v1550
          %v1615 = vadd.f32 %v1226, %v1551
          %v1616 = vadd.f32 %v1227, %v1552
          %v1617 = vadd.f32 %v1228, %v1553
          %v1618 = vadd.f32 %v1229, %v1554
          %v1619 = vadd.f32 %v1230, %v1555
          %v1620 = vadd.f32 %v1231, %v1556
          %v1621 = vadd.f32 %v1232, %v1557
          %v1622 = vadd.f32 %v1233, %v1558
          %v1623 = vadd.f32 %v1234, %v1559
          %v1624 = vadd.f32 %v1235, %v1560
          %v1625 = vadd.f32 %v1236, %v1561
          %v1626 = vadd.f32 %v1237, %v1562
          %v1627 = vadd.f32 %v1238, %v1563
          %v1628 = vadd.f32 %v1239, %v1564
          %v1629 = vadd.f32 %v1240, %v1565
          %v1630 = vadd.f32 %v1241, %v1566
          %v1631 = vadd.f32 %v1242, %v1567
          %v1632 = vadd.f32 %v1243, %v1568
          %v1633 = vadd.f32 %v1244, %v1569
          %v1634 = vadd.f32 %v1245, %v1570
          %v1635 = vadd.f32 %v1246, %v1571
          %v1636 = vadd.f32 %v1247, %v1572
          %v1637 = vadd.f32 %v1248, %v1573
          %v1638 = vadd.f32 %v1249, %v1574
          %v1639 = vadd.f32 %v1250, %v1575
          %v1640 = vadd.f32 %v1251, %v1576
          %v1641 = vadd.f32 %v1252, %v1577
          %v1642 = vadd.f32 %v1253, %v1578
          %v1643 = vadd.f32 %v1254, %v1579
          %v1644 = vadd.f32 %v1255, %v1580
          %v1645 = vadd.f32 %v1256, %v1581
          %v1646 = vadd.f32 %v1257, %v1582
          %v1647 = vadd.f32 %v1258, %v1583
          %v1648 = vadd.f32 %v1259, %v1584
          %v1649 = vadd.f32 %v1260, %v1585
          %v1650 = vadd.f32 %v1261, %v1586
          %v1651 = vadd.f32 %v1262, %v1587
          %v1652 = vadd.f32 %v1263, %v1588
          %v1653 = vadd.f32 %v1264, %v1589
          %v1654 = vadd.f32 %v1265, %v1590
          %v1655 = vadd.f32 %v1266, %v1591
          %v1656 = vadd.f32 %v1267, %v1592
          %v1657 = vadd.f32 %v1268, %v1593
          %v1658 = vadd.f32 %v1269, %v1594
          %v1659 = vadd.f32 %v1270, %v1595
          %v1660 = vadd.f32 %v1271, %v1596
          %v1661 = vadd.f32 %v1272, %v1597
          %v1662 = vadd.f32 %v1273, %v1598
          %v1663 = vadd.f32 %v1274, %v1599
          %v1664 = vadd.f32 %v1275, %v1600
          %v1665 = vadd.f32 %v1276, %v1601
          %v1666 = vadd.f32 %v1277, %v1602
          %v1667 = vadd.f32 %v1278, %v1603
          %v1668 = vadd.f32 %v1279, %v1604
          %v1669 = vadd.f32 %v1280, %v1605
          %v1670 = vadd.f32 %v1281, %v1606
          %v1671 = vadd.f32 %v1282, %v1607
          %v1672 = vadd.f32 %v1283, %v1608
          %v1673 = vadd.f32 %v1284, %v1609
          %v1674 = vadd.f32 %v1285, %v1610
          %v1675 = vadd.f32 %v1286, %v1611
          %v1676 = vadd.f32 %v1287, %v1612
          %v1677 = vld [vmem:[%s2] sm:$0x1]
          %v1679 = vlaneseq
          %v1680 = vshrl.u32 %v1679, 7
          %v1681 = vsub.s32 0, %v1680
          %v1682 = vrot.slane %v1677, %v1681
          %v1684 = vadd.f32 %v1613, %v1682
          %v1685 = vadd.f32 %v1614, %v1682
          %v1686 = vadd.f32 %v1615, %v1682
          %v1687 = vadd.f32 %v1616, %v1682
          %v1688 = vadd.f32 %v1617, %v1682
          %v1689 = vadd.f32 %v1618, %v1682
          %v1690 = vadd.f32 %v1619, %v1682
          %v1691 = vadd.f32 %v1620, %v1682
          %v1692 = vadd.f32 %v1621, %v1682
          %v1693 = vadd.f32 %v1622, %v1682
          %v1694 = vadd.f32 %v1623, %v1682
          %v1695 = vadd.f32 %v1624, %v1682
          %v1696 = vadd.f32 %v1625, %v1682
          %v1697 = vadd.f32 %v1626, %v1682
          %v1698 = vadd.f32 %v1627, %v1682
          %v1699 = vadd.f32 %v1628, %v1682
          %v1700 = vadd.f32 %v1629, %v1682
          %v1701 = vadd.f32 %v1630, %v1682
          %v1702 = vadd.f32 %v1631, %v1682
          %v1703 = vadd.f32 %v1632, %v1682
          %v1704 = vadd.f32 %v1633, %v1682
          %v1705 = vadd.f32 %v1634, %v1682
          %v1706 = vadd.f32 %v1635, %v1682
          %v1707 = vadd.f32 %v1636, %v1682
          %v1708 = vadd.f32 %v1637, %v1682
          %v1709 = vadd.f32 %v1638, %v1682
          %v1710 = vadd.f32 %v1639, %v1682
          %v1711 = vadd.f32 %v1640, %v1682
          %v1712 = vadd.f32 %v1641, %v1682
          %v1713 = vadd.f32 %v1642, %v1682
          %v1714 = vadd.f32 %v1643, %v1682
          %v1715 = vadd.f32 %v1644, %v1682
          %v1716 = vadd.f32 %v1645, %v1682
          %v1717 = vadd.f32 %v1646, %v1682
          %v1718 = vadd.f32 %v1647, %v1682
          %v1719 = vadd.f32 %v1648, %v1682
          %v1720 = vadd.f32 %v1649, %v1682
          %v1721 = vadd.f32 %v1650, %v1682
          %v1722 = vadd.f32 %v1651, %v1682
          %v1723 = vadd.f32 %v1652, %v1682
          %v1724 = vadd.f32 %v1653, %v1682
          %v1725 = vadd.f32 %v1654, %v1682
          %v1726 = vadd.f32 %v1655, %v1682
          %v1727 = vadd.f32 %v1656, %v1682
          %v1728 = vadd.f32 %v1657, %v1682
          %v1729 = vadd.f32 %v1658, %v1682
          %v1730 = vadd.f32 %v1659, %v1682
          %v1731 = vadd.f32 %v1660, %v1682
          %v1732 = vadd.f32 %v1661, %v1682
          %v1733 = vadd.f32 %v1662, %v1682
          %v1734 = vadd.f32 %v1663, %v1682
          %v1735 = vadd.f32 %v1664, %v1682
          %v1736 = vadd.f32 %v1665, %v1682
          %v1737 = vadd.f32 %v1666, %v1682
          %v1738 = vadd.f32 %v1667, %v1682
          %v1739 = vadd.f32 %v1668, %v1682
          %v1740 = vadd.f32 %v1669, %v1682
          %v1741 = vadd.f32 %v1670, %v1682
          %v1742 = vadd.f32 %v1671, %v1682
          %v1743 = vadd.f32 %v1672, %v1682
          %v1744 = vadd.f32 %v1673, %v1682
          %v1745 = vadd.f32 %v1674, %v1682
          %v1746 = vadd.f32 %v1675, %v1682
          %v1747 = vadd.f32 %v1676, %v1682
          %v1748 = vmax.f32 %v1684, 0.0
          %v1749 = vmax.f32 %v1685, 0.0
          %v1750 = vmax.f32 %v1686, 0.0
          %v1751 = vmax.f32 %v1687, 0.0
          %v1752 = vmax.f32 %v1688, 0.0
          %v1753 = vmax.f32 %v1689, 0.0
          %v1754 = vmax.f32 %v1690, 0.0
          %v1755 = vmax.f32 %v1691, 0.0
          %v1756 = vmax.f32 %v1692, 0.0
          %v1757 = vmax.f32 %v1693, 0.0
          %v1758 = vmax.f32 %v1694, 0.0
          %v1759 = vmax.f32 %v1695, 0.0
          %v1760 = vmax.f32 %v1696, 0.0
          %v1761 = vmax.f32 %v1697, 0.0
          %v1762 = vmax.f32 %v1698, 0.0
          %v1763 = vmax.f32 %v1699, 0.0
          %v1764 = vmax.f32 %v1700, 0.0
          %v1765 = vmax.f32 %v1701, 0.0
          %v1766 = vmax.f32 %v1702, 0.0
          %v1767 = vmax.f32 %v1703, 0.0
          %v1768 = vmax.f32 %v1704, 0.0
          %v1769 = vmax.f32 %v1705, 0.0
          %v1770 = vmax.f32 %v1706, 0.0
          %v1771 = vmax.f32 %v1707, 0.0
          %v1772 = vmax.f32 %v1708, 0.0
          %v1773 = vmax.f32 %v1709, 0.0
          %v1774 = vmax.f32 %v1710, 0.0
          %v1775 = vmax.f32 %v1711, 0.0
          %v1776 = vmax.f32 %v1712, 0.0
          %v1777 = vmax.f32 %v1713, 0.0
          %v1778 = vmax.f32 %v1714, 0.0
          %v1779 = vmax.f32 %v1715, 0.0
          %v1780 = vmax.f32 %v1716, 0.0
          %v1781 = vmax.f32 %v1717, 0.0
          %v1782 = vmax.f32 %v1718, 0.0
          %v1783 = vmax.f32 %v1719, 0.0
          %v1784 = vmax.f32 %v1720, 0.0
          %v1785 = vmax.f32 %v1721, 0.0
          %v1786 = vmax.f32 %v1722, 0.0
          %v1787 = vmax.f32 %v1723, 0.0
          %v1788 = vmax.f32 %v1724, 0.0
          %v1789 = vmax.f32 %v1725, 0.0
          %v1790 = vmax.f32 %v1726, 0.0
          %v1791 = vmax.f32 %v1727, 0.0
          %v1792 = vmax.f32 %v1728, 0.0
          %v1793 = vmax.f32 %v1729, 0.0
          %v1794 = vmax.f32 %v1730, 0.0
          %v1795 = vmax.f32 %v1731, 0.0
          %v1796 = vmax.f32 %v1732, 0.0
          %v1797 = vmax.f32 %v1733, 0.0
          %v1798 = vmax.f32 %v1734, 0.0
          %v1799 = vmax.f32 %v1735, 0.0
          %v1800 = vmax.f32 %v1736, 0.0
          %v1801 = vmax.f32 %v1737, 0.0
          %v1802 = vmax.f32 %v1738, 0.0
          %v1803 = vmax.f32 %v1739, 0.0
          %v1804 = vmax.f32 %v1740, 0.0
          %v1805 = vmax.f32 %v1741, 0.0
          %v1806 = vmax.f32 %v1742, 0.0
          %v1807 = vmax.f32 %v1743, 0.0
          %v1808 = vmax.f32 %v1744, 0.0
          %v1809 = vmax.f32 %v1745, 0.0
          %v1810 = vmax.f32 %v1746, 0.0
          %v1811 = vmax.f32 %v1747, 0.0
          %v1812 = vpack.c.bf16 %v1749, %v1748
          %v1813 = vpack.c.bf16 %v1751, %v1750
          %v1814 = vpack.c.bf16 %v1753, %v1752
          %v1815 = vpack.c.bf16 %v1755, %v1754
          %v1816 = vpack.c.bf16 %v1757, %v1756
          %v1817 = vpack.c.bf16 %v1759, %v1758
          %v1818 = vpack.c.bf16 %v1761, %v1760
          %v1819 = vpack.c.bf16 %v1763, %v1762
          %v1820 = vpack.c.bf16 %v1765, %v1764
          %v1821 = vpack.c.bf16 %v1767, %v1766
          %v1822 = vpack.c.bf16 %v1769, %v1768
          %v1823 = vpack.c.bf16 %v1771, %v1770
          %v1824 = vpack.c.bf16 %v1773, %v1772
          %v1825 = vpack.c.bf16 %v1775, %v1774
          %v1826 = vpack.c.bf16 %v1777, %v1776
          %v1827 = vpack.c.bf16 %v1779, %v1778
          %v1828 = vpack.c.bf16 %v1781, %v1780
          %v1829 = vpack.c.bf16 %v1783, %v1782
          %v1830 = vpack.c.bf16 %v1785, %v1784
          %v1831 = vpack.c.bf16 %v1787, %v1786
          %v1832 = vpack.c.bf16 %v1789, %v1788
          %v1833 = vpack.c.bf16 %v1791, %v1790
          %v1834 = vpack.c.bf16 %v1793, %v1792
          %v1835 = vpack.c.bf16 %v1795, %v1794
          %v1836 = vpack.c.bf16 %v1797, %v1796
          %v1837 = vpack.c.bf16 %v1799, %v1798
          %v1838 = vpack.c.bf16 %v1801, %v1800
          %v1839 = vpack.c.bf16 %v1803, %v1802
          %v1840 = vpack.c.bf16 %v1805, %v1804
          %v1841 = vpack.c.bf16 %v1807, %v1806
          %v1842 = vpack.c.bf16 %v1809, %v1808
          %v1843 = vpack.c.bf16 %v1811, %v1810
          %v1844 = vld [vmem:[#allocation5] sm:$0xff]
          %v1845 = vld [vmem:[#allocation5 + $0x8] sm:$0xff]
          %v1846 = vld [vmem:[#allocation5 + $0x10] sm:$0xff]
          %v1847 = vld [vmem:[#allocation5 + $0x18] sm:$0xff]
          %v1848 = vld [vmem:[#allocation5 + $0x20] sm:$0xff]
          %v1849 = vld [vmem:[#allocation5 + $0x28] sm:$0xff]
          %v1850 = vld [vmem:[#allocation5 + $0x30] sm:$0xff]
          %v1851 = vld [vmem:[#allocation5 + $0x38] sm:$0xff]
          %v1852 = vld [vmem:[#allocation5 + $0x40] sm:$0xff]
          %v1853 = vld [vmem:[#allocation5 + $0x48] sm:$0xff]
          %v1854 = vld [vmem:[#allocation5 + $0x50] sm:$0xff]
          %v1855 = vld [vmem:[#allocation5 + $0x58] sm:$0xff]
          %v1856 = vld [vmem:[#allocation5 + $0x60] sm:$0xff]
          %v1857 = vld [vmem:[#allocation5 + $0x68] sm:$0xff]
          %v1858 = vld [vmem:[#allocation5 + $0x70] sm:$0xff]
          %v1859 = vld [vmem:[#allocation5 + $0x78] sm:$0xff]
          %v1876 = vunpack.c.l.b16 %v1844
          %v1877 = vunpack.c.h.b16 %v1844
          %v1878 = vunpack.c.l.b16 %v1845
          %v1879 = vunpack.c.h.b16 %v1845
          %v1880 = vunpack.c.l.b16 %v1846
          %v1881 = vunpack.c.h.b16 %v1846
          %v1882 = vunpack.c.l.b16 %v1847
          %v1883 = vunpack.c.h.b16 %v1847
          %v1884 = vunpack.c.l.b16 %v1848
          %v1885 = vunpack.c.h.b16 %v1848
          %v1886 = vunpack.c.l.b16 %v1849
          %v1887 = vunpack.c.h.b16 %v1849
          %v1888 = vunpack.c.l.b16 %v1850
          %v1889 = vunpack.c.h.b16 %v1850
          %v1890 = vunpack.c.l.b16 %v1851
          %v1891 = vunpack.c.h.b16 %v1851
          %v1892 = vunpack.c.l.b16 %v1852
          %v1893 = vunpack.c.h.b16 %v1852
          %v1894 = vunpack.c.l.b16 %v1853
          %v1895 = vunpack.c.h.b16 %v1853
          %v1896 = vunpack.c.l.b16 %v1854
          %v1897 = vunpack.c.h.b16 %v1854
          %v1898 = vunpack.c.l.b16 %v1855
          %v1899 = vunpack.c.h.b16 %v1855
          %v1900 = vunpack.c.l.b16 %v1856
          %v1901 = vunpack.c.h.b16 %v1856
          %v1902 = vunpack.c.l.b16 %v1857
          %v1903 = vunpack.c.h.b16 %v1857
          %v1904 = vunpack.c.l.b16 %v1858
          %v1905 = vunpack.c.h.b16 %v1858
          %v1906 = vunpack.c.l.b16 %v1859
          %v1907 = vunpack.c.h.b16 %v1859
          %v1908 = vpack.c.b16 %v1878, %v1876
          %v1909 = vpack.c.b16 %v1879, %v1877
          %v1910 = vpack.c.b16 %v1882, %v1880
          %v1911 = vpack.c.b16 %v1883, %v1881
          %v1912 = vpack.c.b16 %v1886, %v1884
          %v1913 = vpack.c.b16 %v1887, %v1885
          %v1914 = vpack.c.b16 %v1890, %v1888
          %v1915 = vpack.c.b16 %v1891, %v1889
          %v1916 = vpack.c.b16 %v1894, %v1892
          %v1917 = vpack.c.b16 %v1895, %v1893
          %v1918 = vpack.c.b16 %v1898, %v1896
          %v1919 = vpack.c.b16 %v1899, %v1897
          %v1920 = vpack.c.b16 %v1902, %v1900
          %v1921 = vpack.c.b16 %v1903, %v1901
          %v1922 = vpack.c.b16 %v1906, %v1904
          %v1923 = vpack.c.b16 %v1907, %v1905
          %1940 = vmatprep.subr.bf16.mxu0 %v1909
          %1941 = vmatpush1.bf16.msra.mxu0 %v1908
          %1942 = vmatprep.subr.bf16.mxu0 %v1911
          %1943 = vmatpush1.bf16.msra.mxu0 %v1910
          %1944 = vmatprep.subr.bf16.mxu0 %v1913
          %1945 = vmatpush1.bf16.msra.mxu0 %v1912
          %1946 = vmatprep.subr.bf16.mxu0 %v1915
          %1947 = vmatpush1.bf16.msra.mxu0 %v1914
          %1948 = vmatprep.subr.bf16.mxu0 %v1917
          %1949 = vmatpush1.bf16.msra.mxu0 %v1916
          %1950 = vmatprep.subr.bf16.mxu0 %v1919
          %1951 = vmatpush1.bf16.msra.mxu0 %v1918
          %1952 = vmatprep.subr.bf16.mxu0 %v1921
          %1953 = vmatpush1.bf16.msra.mxu0 %v1920
          %1954 = vmatprep.subr.bf16.mxu0 %v1923
          %1955 = vmatpush1.bf16.msra.mxu0 %v1922
          %1956 = vmatprep.subr.bf16.mxu0 0
          %1957 = vmatpush1.bf16.msra.mxu0 0
          %1958 = vmatprep.subr.bf16.mxu0 0
          %1959 = vmatpush1.bf16.msra.mxu0 0
          %1960 = vmatprep.subr.bf16.mxu0 0
          %1961 = vmatpush1.bf16.msra.mxu0 0
          %1962 = vmatprep.subr.bf16.mxu0 0
          %1963 = vmatpush1.bf16.msra.mxu0 0
          %1964 = vmatprep.subr.bf16.mxu0 0
          %1965 = vmatpush1.bf16.msra.mxu0 0
          %1966 = vmatprep.subr.bf16.mxu0 0
          %1967 = vmatpush1.bf16.msra.mxu0 0
          %1968 = vmatprep.subr.bf16.mxu0 0
          %1969 = vmatpush1.bf16.msra.mxu0 0
          %1970 = vmatprep.subr.bf16.mxu0 0
          %1971 = vmatpush1.bf16.msra.mxu0 0
          %1972 = vmatprep.mubr.bf16.mxu0 0
          %1973 = vmatmul.mubr.bf16.gmra.mrb[0].mxu0 %v1812
          %v1974 = vpop.f32.mrb[0].mxu0
          %v1975 = vadd.f32 0.0, %v1974
          %v1976 = vpop.f32.mrb[0].mxu0
          %v1977 = vadd.f32 0.0, %v1976
          %v1978 = vpop.f32.mrb[0].mxu0
          %v1979 = vadd.f32 0.0, %v1978
          %v1980 = vpop.f32.mrb[0].mxu0
          %v1981 = vadd.f32 0.0, %v1980
          %1982 = vmatprep.mubr.bf16.mxu0 0
          %1983 = vmatmul.mubr.bf16.gmra.mrb[0].mxu0 %v1813
          %v1984 = vpop.f32.mrb[0].mxu0
          %v1985 = vadd.f32 0.0, %v1984
          %v1986 = vpop.f32.mrb[0].mxu0
          %v1987 = vadd.f32 0.0, %v1986
          %v1988 = vpop.f32.mrb[0].mxu0
          %v1989 = vadd.f32 0.0, %v1988
          %v1990 = vpop.f32.mrb[0].mxu0
          %v1991 = vadd.f32 0.0, %v1990
          %1992 = vmatprep.mubr.bf16.mxu0 0
          %1993 = vmatmul.mubr.bf16.gmra.mrb[0].mxu0 %v1814
          %v1994 = vpop.f32.mrb[0].mxu0
          %v1995 = vadd.f32 0.0, %v1994
          %v1996 = vpop.f32.mrb[0].mxu0
          %v1997 = vadd.f32 0.0, %v1996
          %v1998 = vpop.f32.mrb[0].mxu0
          %v1999 = vadd.f32 0.0, %v1998
          %v2000 = vpop.f32.mrb[0].mxu0
          %v2001 = vadd.f32 0.0, %v2000
          %2002 = vmatprep.mubr.bf16.mxu0 0
          %2003 = vmatmul.mubr.bf16.gmra.mrb[0].mxu0 %v1815
          %v2004 = vpop.f32.mrb[0].mxu0
          %v2005 = vadd.f32 0.0, %v2004
          %v2006 = vpop.f32.mrb[0].mxu0
          %v2007 = vadd.f32 0.0, %v2006
          %v2008 = vpop.f32.mrb[0].mxu0
          %v2009 = vadd.f32 0.0, %v2008
          %v2010 = vpop.f32.mrb[0].mxu0
          %v2011 = vadd.f32 0.0, %v2010
          %2012 = vmatprep.mubr.bf16.mxu0 0
          %2013 = vmatmul.mubr.bf16.gmra.mrb[0].mxu0 %v1816
          %v2014 = vpop.f32.mrb[0].mxu0
          %v2015 = vadd.f32 0.0, %v2014
          %v2016 = vpop.f32.mrb[0].mxu0
          %v2017 = vadd.f32 0.0, %v2016
          %v2018 = vpop.f32.mrb[0].mxu0
          %v2019 = vadd.f32 0.0, %v2018
          %v2020 = vpop.f32.mrb[0].mxu0
          %v2021 = vadd.f32 0.0, %v2020
          %2022 = vmatprep.mubr.bf16.mxu0 0
          %2023 = vmatmul.mubr.bf16.gmra.mrb[0].mxu0 %v1817
          %v2024 = vpop.f32.mrb[0].mxu0
          %v2025 = vadd.f32 0.0, %v2024
          %v2026 = vpop.f32.mrb[0].mxu0
          %v2027 = vadd.f32 0.0, %v2026
          %v2028 = vpop.f32.mrb[0].mxu0
          %v2029 = vadd.f32 0.0, %v2028
          %v2030 = vpop.f32.mrb[0].mxu0
          %v2031 = vadd.f32 0.0, %v2030
          %2032 = vmatprep.mubr.bf16.mxu0 0
          %2033 = vmatmul.mubr.bf16.gmra.mrb[0].mxu0 %v1818
          %v2034 = vpop.f32.mrb[0].mxu0
          %v2035 = vadd.f32 0.0, %v2034
          %v2036 = vpop.f32.mrb[0].mxu0
          %v2037 = vadd.f32 0.0, %v2036
          %v2038 = vpop.f32.mrb[0].mxu0
          %v2039 = vadd.f32 0.0, %v2038
          %v2040 = vpop.f32.mrb[0].mxu0
          %v2041 = vadd.f32 0.0, %v2040
          %2042 = vmatprep.mubr.bf16.mxu0 0
          %2043 = vmatmul.mubr.bf16.gmra.mrb[0].mxu0 %v1819
          %v2044 = vpop.f32.mrb[0].mxu0
          %v2045 = vadd.f32 0.0, %v2044
          %v2046 = vpop.f32.mrb[0].mxu0
          %v2047 = vadd.f32 0.0, %v2046
          %v2048 = vpop.f32.mrb[0].mxu0
          %v2049 = vadd.f32 0.0, %v2048
          %v2050 = vpop.f32.mrb[0].mxu0
          %v2051 = vadd.f32 0.0, %v2050
          %2052 = vmatprep.mubr.bf16.mxu0 0
          %2053 = vmatmul.mubr.bf16.gmra.mrb[0].mxu0 %v1820
          %v2054 = vpop.f32.mrb[0].mxu0
          %v2055 = vadd.f32 0.0, %v2054
          %v2056 = vpop.f32.mrb[0].mxu0
          %v2057 = vadd.f32 0.0, %v2056
          %v2058 = vpop.f32.mrb[0].mxu0
          %v2059 = vadd.f32 0.0, %v2058
          %v2060 = vpop.f32.mrb[0].mxu0
          %v2061 = vadd.f32 0.0, %v2060
          %2062 = vmatprep.mubr.bf16.mxu0 0
          %2063 = vmatmul.mubr.bf16.gmra.mrb[0].mxu0 %v1821
          %v2064 = vpop.f32.mrb[0].mxu0
          %v2065 = vadd.f32 0.0, %v2064
          %v2066 = vpop.f32.mrb[0].mxu0
          %v2067 = vadd.f32 0.0, %v2066
          %v2068 = vpop.f32.mrb[0].mxu0
          %v2069 = vadd.f32 0.0, %v2068
          %v2070 = vpop.f32.mrb[0].mxu0
          %v2071 = vadd.f32 0.0, %v2070
          %2072 = vmatprep.mubr.bf16.mxu0 0
          %2073 = vmatmul.mubr.bf16.gmra.mrb[0].mxu0 %v1822
          %v2074 = vpop.f32.mrb[0].mxu0
          %v2075 = vadd.f32 0.0, %v2074
          %v2076 = vpop.f32.mrb[0].mxu0
          %v2077 = vadd.f32 0.0, %v2076
          %v2078 = vpop.f32.mrb[0].mxu0
          %v2079 = vadd.f32 0.0, %v2078
          %v2080 = vpop.f32.mrb[0].mxu0
          %v2081 = vadd.f32 0.0, %v2080
          %2082 = vmatprep.mubr.bf16.mxu0 0
          %2083 = vmatmul.mubr.bf16.gmra.mrb[0].mxu0 %v1823
          %v2084 = vpop.f32.mrb[0].mxu0
          %v2085 = vadd.f32 0.0, %v2084
          %v2086 = vpop.f32.mrb[0].mxu0
          %v2087 = vadd.f32 0.0, %v2086
          %v2088 = vpop.f32.mrb[0].mxu0
          %v2089 = vadd.f32 0.0, %v2088
          %v2090 = vpop.f32.mrb[0].mxu0
          %v2091 = vadd.f32 0.0, %v2090
          %2092 = vmatprep.mubr.bf16.mxu0 0
          %2093 = vmatmul.mubr.bf16.gmra.mrb[0].mxu0 %v1824
          %v2094 = vpop.f32.mrb[0].mxu0
          %v2095 = vadd.f32 0.0, %v2094
          %v2096 = vpop.f32.mrb[0].mxu0
          %v2097 = vadd.f32 0.0, %v2096
          %v2098 = vpop.f32.mrb[0].mxu0
          %v2099 = vadd.f32 0.0, %v2098
          %v2100 = vpop.f32.mrb[0].mxu0
          %v2101 = vadd.f32 0.0, %v2100
          %2102 = vmatprep.mubr.bf16.mxu0 0
          %2103 = vmatmul.mubr.bf16.gmra.mrb[0].mxu0 %v1825
          %v2104 = vpop.f32.mrb[0].mxu0
          %v2105 = vadd.f32 0.0, %v2104
          %v2106 = vpop.f32.mrb[0].mxu0
          %v2107 = vadd.f32 0.0, %v2106
          %v2108 = vpop.f32.mrb[0].mxu0
          %v2109 = vadd.f32 0.0, %v2108
          %v2110 = vpop.f32.mrb[0].mxu0
          %v2111 = vadd.f32 0.0, %v2110
          %2112 = vmatprep.mubr.bf16.mxu0 0
          %2113 = vmatmul.mubr.bf16.gmra.mrb[0].mxu0 %v1826
          %v2114 = vpop.f32.mrb[0].mxu0
          %v2115 = vadd.f32 0.0, %v2114
          %v2116 = vpop.f32.mrb[0].mxu0
          %v2117 = vadd.f32 0.0, %v2116
          %v2118 = vpop.f32.mrb[0].mxu0
          %v2119 = vadd.f32 0.0, %v2118
          %v2120 = vpop.f32.mrb[0].mxu0
          %v2121 = vadd.f32 0.0, %v2120
          %2122 = vmatprep.mubr.bf16.mxu0 0
          %2123 = vmatmul.mubr.bf16.gmra.mrb[0].mxu0 %v1827
          %v2124 = vpop.f32.mrb[0].mxu0
          %v2125 = vadd.f32 0.0, %v2124
          %v2126 = vpop.f32.mrb[0].mxu0
          %v2127 = vadd.f32 0.0, %v2126
          %v2128 = vpop.f32.mrb[0].mxu0
          %v2129 = vadd.f32 0.0, %v2128
          %v2130 = vpop.f32.mrb[0].mxu0
          %v2131 = vadd.f32 0.0, %v2130
          %2132 = vmatprep.mubr.bf16.mxu0 0
          %2133 = vmatmul.mubr.bf16.gmra.mrb[0].mxu0 %v1828
          %v2134 = vpop.f32.mrb[0].mxu0
          %v2135 = vadd.f32 0.0, %v2134
          %v2136 = vpop.f32.mrb[0].mxu0
          %v2137 = vadd.f32 0.0, %v2136
          %v2138 = vpop.f32.mrb[0].mxu0
          %v2139 = vadd.f32 0.0, %v2138
          %v2140 = vpop.f32.mrb[0].mxu0
          %v2141 = vadd.f32 0.0, %v2140
          %2142 = vmatprep.mubr.bf16.mxu0 0
          %2143 = vmatmul.mubr.bf16.gmra.mrb[0].mxu0 %v1829
          %v2144 = vpop.f32.mrb[0].mxu0
          %v2145 = vadd.f32 0.0, %v2144
          %v2146 = vpop.f32.mrb[0].mxu0
          %v2147 = vadd.f32 0.0, %v2146
          %v2148 = vpop.f32.mrb[0].mxu0
          %v2149 = vadd.f32 0.0, %v2148
          %v2150 = vpop.f32.mrb[0].mxu0
          %v2151 = vadd.f32 0.0, %v2150
          %2152 = vmatprep.mubr.bf16.mxu0 0
          %2153 = vmatmul.mubr.bf16.gmra.mrb[0].mxu0 %v1830
          %v2154 = vpop.f32.mrb[0].mxu0
          %v2155 = vadd.f32 0.0, %v2154
          %v2156 = vpop.f32.mrb[0].mxu0
          %v2157 = vadd.f32 0.0, %v2156
          %v2158 = vpop.f32.mrb[0].mxu0
          %v2159 = vadd.f32 0.0, %v2158
          %v2160 = vpop.f32.mrb[0].mxu0
          %v2161 = vadd.f32 0.0, %v2160
          %2162 = vmatprep.mubr.bf16.mxu0 0
          %2163 = vmatmul.mubr.bf16.gmra.mrb[0].mxu0 %v1831
          %v2164 = vpop.f32.mrb[0].mxu0
          %v2165 = vadd.f32 0.0, %v2164
          %v2166 = vpop.f32.mrb[0].mxu0
          %v2167 = vadd.f32 0.0, %v2166
          %v2168 = vpop.f32.mrb[0].mxu0
          %v2169 = vadd.f32 0.0, %v2168
          %v2170 = vpop.f32.mrb[0].mxu0
          %v2171 = vadd.f32 0.0, %v2170
          %2172 = vmatprep.mubr.bf16.mxu0 0
          %2173 = vmatmul.mubr.bf16.gmra.mrb[0].mxu0 %v1832
          %v2174 = vpop.f32.mrb[0].mxu0
          %v2175 = vadd.f32 0.0, %v2174
          %v2176 = vpop.f32.mrb[0].mxu0
          %v2177 = vadd.f32 0.0, %v2176
          %v2178 = vpop.f32.mrb[0].mxu0
          %v2179 = vadd.f32 0.0, %v2178
          %v2180 = vpop.f32.mrb[0].mxu0
          %v2181 = vadd.f32 0.0, %v2180
          %2182 = vmatprep.mubr.bf16.mxu0 0
          %2183 = vmatmul.mubr.bf16.gmra.mrb[0].mxu0 %v1833
          %v2184 = vpop.f32.mrb[0].mxu0
          %v2185 = vadd.f32 0.0, %v2184
          %v2186 = vpop.f32.mrb[0].mxu0
          %v2187 = vadd.f32 0.0, %v2186
          %v2188 = vpop.f32.mrb[0].mxu0
          %v2189 = vadd.f32 0.0, %v2188
          %v2190 = vpop.f32.mrb[0].mxu0
          %v2191 = vadd.f32 0.0, %v2190
          %2192 = vmatprep.mubr.bf16.mxu0 0
          %2193 = vmatmul.mubr.bf16.gmra.mrb[0].mxu0 %v1834
          %v2194 = vpop.f32.mrb[0].mxu0
          %v2195 = vadd.f32 0.0, %v2194
          %v2196 = vpop.f32.mrb[0].mxu0
          %v2197 = vadd.f32 0.0, %v2196
          %v2198 = vpop.f32.mrb[0].mxu0
          %v2199 = vadd.f32 0.0, %v2198
          %v2200 = vpop.f32.mrb[0].mxu0
          %v2201 = vadd.f32 0.0, %v2200
          %2202 = vmatprep.mubr.bf16.mxu0 0
          %2203 = vmatmul.mubr.bf16.gmra.mrb[0].mxu0 %v1835
          %v2204 = vpop.f32.mrb[0].mxu0
          %v2205 = vadd.f32 0.0, %v2204
          %v2206 = vpop.f32.mrb[0].mxu0
          %v2207 = vadd.f32 0.0, %v2206
          %v2208 = vpop.f32.mrb[0].mxu0
          %v2209 = vadd.f32 0.0, %v2208
          %v2210 = vpop.f32.mrb[0].mxu0
          %v2211 = vadd.f32 0.0, %v2210
          %2212 = vmatprep.mubr.bf16.mxu0 0
          %2213 = vmatmul.mubr.bf16.gmra.mrb[0].mxu0 %v1836
          %v2214 = vpop.f32.mrb[0].mxu0
          %v2215 = vadd.f32 0.0, %v2214
          %v2216 = vpop.f32.mrb[0].mxu0
          %v2217 = vadd.f32 0.0, %v2216
          %v2218 = vpop.f32.mrb[0].mxu0
          %v2219 = vadd.f32 0.0, %v2218
          %v2220 = vpop.f32.mrb[0].mxu0
          %v2221 = vadd.f32 0.0, %v2220
          %2222 = vmatprep.mubr.bf16.mxu0 0
          %2223 = vmatmul.mubr.bf16.gmra.mrb[0].mxu0 %v1837
          %v2224 = vpop.f32.mrb[0].mxu0
          %v2225 = vadd.f32 0.0, %v2224
          %v2226 = vpop.f32.mrb[0].mxu0
          %v2227 = vadd.f32 0.0, %v2226
          %v2228 = vpop.f32.mrb[0].mxu0
          %v2229 = vadd.f32 0.0, %v2228
          %v2230 = vpop.f32.mrb[0].mxu0
          %v2231 = vadd.f32 0.0, %v2230
          %2232 = vmatprep.mubr.bf16.mxu0 0
          %2233 = vmatmul.mubr.bf16.gmra.mrb[0].mxu0 %v1838
          %v2234 = vpop.f32.mrb[0].mxu0
          %v2235 = vadd.f32 0.0, %v2234
          %v2236 = vpop.f32.mrb[0].mxu0
          %v2237 = vadd.f32 0.0, %v2236
          %v2238 = vpop.f32.mrb[0].mxu0
          %v2239 = vadd.f32 0.0, %v2238
          %v2240 = vpop.f32.mrb[0].mxu0
          %v2241 = vadd.f32 0.0, %v2240
          %2242 = vmatprep.mubr.bf16.mxu0 0
          %2243 = vmatmul.mubr.bf16.gmra.mrb[0].mxu0 %v1839
          %v2244 = vpop.f32.mrb[0].mxu0
          %v2245 = vadd.f32 0.0, %v2244
          %v2246 = vpop.f32.mrb[0].mxu0
          %v2247 = vadd.f32 0.0, %v2246
          %v2248 = vpop.f32.mrb[0].mxu0
          %v2249 = vadd.f32 0.0, %v2248
          %v2250 = vpop.f32.mrb[0].mxu0
          %v2251 = vadd.f32 0.0, %v2250
          %2252 = vmatprep.mubr.bf16.mxu0 0
          %2253 = vmatmul.mubr.bf16.gmra.mrb[0].mxu0 %v1840
          %v2254 = vpop.f32.mrb[0].mxu0
          %v2255 = vadd.f32 0.0, %v2254
          %v2256 = vpop.f32.mrb[0].mxu0
          %v2257 = vadd.f32 0.0, %v2256
          %v2258 = vpop.f32.mrb[0].mxu0
          %v2259 = vadd.f32 0.0, %v2258
          %v2260 = vpop.f32.mrb[0].mxu0
          %v2261 = vadd.f32 0.0, %v2260
          %2262 = vmatprep.mubr.bf16.mxu0 0
          %2263 = vmatmul.mubr.bf16.gmra.mrb[0].mxu0 %v1841
          %v2264 = vpop.f32.mrb[0].mxu0
          %v2265 = vadd.f32 0.0, %v2264
          %v2266 = vpop.f32.mrb[0].mxu0
          %v2267 = vadd.f32 0.0, %v2266
          %v2268 = vpop.f32.mrb[0].mxu0
          %v2269 = vadd.f32 0.0, %v2268
          %v2270 = vpop.f32.mrb[0].mxu0
          %v2271 = vadd.f32 0.0, %v2270
          %2272 = vmatprep.mubr.bf16.mxu0 0
          %2273 = vmatmul.mubr.bf16.gmra.mrb[0].mxu0 %v1842
          %v2274 = vpop.f32.mrb[0].mxu0
          %v2275 = vadd.f32 0.0, %v2274
          %v2276 = vpop.f32.mrb[0].mxu0
          %v2277 = vadd.f32 0.0, %v2276
          %v2278 = vpop.f32.mrb[0].mxu0
          %v2279 = vadd.f32 0.0, %v2278
          %v2280 = vpop.f32.mrb[0].mxu0
          %v2281 = vadd.f32 0.0, %v2280
          %2282 = vmatprep.mubr.bf16.mxu0 0
          %2283 = vmatmul.mubr.bf16.gmra.mrb[0].mxu0 %v1843
          %v2284 = vpop.f32.mrb[0].mxu0
          %v2285 = vadd.f32 0.0, %v2284
          %v2286 = vpop.f32.mrb[0].mxu0
          %v2287 = vadd.f32 0.0, %v2286
          %v2288 = vpop.f32.mrb[0].mxu0
          %v2289 = vadd.f32 0.0, %v2288
          %v2290 = vpop.f32.mrb[0].mxu0
          %v2291 = vadd.f32 0.0, %v2290
          %2292 = vdwg.mxu0
          %v2293 = vld [vmem:[%s4] sm:$0x3]
          %v2295 = vlaneseq
          %v2296 = vshrl.u32 %v2295, 7
          %v2297 = vsub.s32 0, %v2296
          %v2298 = vrot.slane %v2293, %v2297
          %v2299 = vlaneseq
          %v2300 = vshrl.u32 %v2299, 7
          %v2301 = vsub.s32 1, %v2300
          %v2302 = vrot.slane %v2293, %v2301
          %v2305 = vadd.f32 %v1975, %v2298
          %v2306 = vadd.f32 %v1977, %v2302
          %v2307 = vadd.f32 %v1979, %v2298
          %v2308 = vadd.f32 %v1981, %v2302
          %v2309 = vadd.f32 %v1985, %v2298
          %v2310 = vadd.f32 %v1987, %v2302
          %v2311 = vadd.f32 %v1989, %v2298
          %v2312 = vadd.f32 %v1991, %v2302
          %v2313 = vadd.f32 %v1995, %v2298
          %v2314 = vadd.f32 %v1997, %v2302
          %v2315 = vadd.f32 %v1999, %v2298
          %v2316 = vadd.f32 %v2001, %v2302
          %v2317 = vadd.f32 %v2005, %v2298
          %v2318 = vadd.f32 %v2007, %v2302
          %v2319 = vadd.f32 %v2009, %v2298
          %v2320 = vadd.f32 %v2011, %v2302
          %v2321 = vadd.f32 %v2015, %v2298
          %v2322 = vadd.f32 %v2017, %v2302
          %v2323 = vadd.f32 %v2019, %v2298
          %v2324 = vadd.f32 %v2021, %v2302
          %v2325 = vadd.f32 %v2025, %v2298
          %v2326 = vadd.f32 %v2027, %v2302
          %v2327 = vadd.f32 %v2029, %v2298
          %v2328 = vadd.f32 %v2031, %v2302
          %v2329 = vadd.f32 %v2035, %v2298
          %v2330 = vadd.f32 %v2037, %v2302
          %v2331 = vadd.f32 %v2039, %v2298
          %v2332 = vadd.f32 %v2041, %v2302
          %v2333 = vadd.f32 %v2045, %v2298
          %v2334 = vadd.f32 %v2047, %v2302
          %v2335 = vadd.f32 %v2049, %v2298
          %v2336 = vadd.f32 %v2051, %v2302
          %v2337 = vadd.f32 %v2055, %v2298
          %v2338 = vadd.f32 %v2057, %v2302
          %v2339 = vadd.f32 %v2059, %v2298
          %v2340 = vadd.f32 %v2061, %v2302
          %v2341 = vadd.f32 %v2065, %v2298
          %v2342 = vadd.f32 %v2067, %v2302
          %v2343 = vadd.f32 %v2069, %v2298
          %v2344 = vadd.f32 %v2071, %v2302
          %v2345 = vadd.f32 %v2075, %v2298
          %v2346 = vadd.f32 %v2077, %v2302
          %v2347 = vadd.f32 %v2079, %v2298
          %v2348 = vadd.f32 %v2081, %v2302
          %v2349 = vadd.f32 %v2085, %v2298
          %v2350 = vadd.f32 %v2087, %v2302
          %v2351 = vadd.f32 %v2089, %v2298
          %v2352 = vadd.f32 %v2091, %v2302
          %v2353 = vadd.f32 %v2095, %v2298
          %v2354 = vadd.f32 %v2097, %v2302
          %v2355 = vadd.f32 %v2099, %v2298
          %v2356 = vadd.f32 %v2101, %v2302
          %v2357 = vadd.f32 %v2105, %v2298
          %v2358 = vadd.f32 %v2107, %v2302
          %v2359 = vadd.f32 %v2109, %v2298
          %v2360 = vadd.f32 %v2111, %v2302
          %v2361 = vadd.f32 %v2115, %v2298
          %v2362 = vadd.f32 %v2117, %v2302
          %v2363 = vadd.f32 %v2119, %v2298
          %v2364 = vadd.f32 %v2121, %v2302
          %v2365 = vadd.f32 %v2125, %v2298
          %v2366 = vadd.f32 %v2127, %v2302
          %v2367 = vadd.f32 %v2129, %v2298
          %v2368 = vadd.f32 %v2131, %v2302
          %v2369 = vadd.f32 %v2135, %v2298
          %v2370 = vadd.f32 %v2137, %v2302
          %v2371 = vadd.f32 %v2139, %v2298
          %v2372 = vadd.f32 %v2141, %v2302
          %v2373 = vadd.f32 %v2145, %v2298
          %v2374 = vadd.f32 %v2147, %v2302
          %v2375 = vadd.f32 %v2149, %v2298
          %v2376 = vadd.f32 %v2151, %v2302
          %v2377 = vadd.f32 %v2155, %v2298
          %v2378 = vadd.f32 %v2157, %v2302
          %v2379 = vadd.f32 %v2159, %v2298
          %v2380 = vadd.f32 %v2161, %v2302
          %v2381 = vadd.f32 %v2165, %v2298
          %v2382 = vadd.f32 %v2167, %v2302
          %v2383 = vadd.f32 %v2169, %v2298
          %v2384 = vadd.f32 %v2171, %v2302
          %v2385 = vadd.f32 %v2175, %v2298
          %v2386 = vadd.f32 %v2177, %v2302
          %v2387 = vadd.f32 %v2179, %v2298
          %v2388 = vadd.f32 %v2181, %v2302
          %v2389 = vadd.f32 %v2185, %v2298
          %v2390 = vadd.f32 %v2187, %v2302
          %v2391 = vadd.f32 %v2189, %v2298
          %v2392 = vadd.f32 %v2191, %v2302
          %v2393 = vadd.f32 %v2195, %v2298
          %v2394 = vadd.f32 %v2197, %v2302
          %v2395 = vadd.f32 %v2199, %v2298
          %v2396 = vadd.f32 %v2201, %v2302
          %v2397 = vadd.f32 %v2205, %v2298
          %v2398 = vadd.f32 %v2207, %v2302
          %v2399 = vadd.f32 %v2209, %v2298
          %v2400 = vadd.f32 %v2211, %v2302
          %v2401 = vadd.f32 %v2215, %v2298
          %v2402 = vadd.f32 %v2217, %v2302
          %v2403 = vadd.f32 %v2219, %v2298
          %v2404 = vadd.f32 %v2221, %v2302
          %v2405 = vadd.f32 %v2225, %v2298
          %v2406 = vadd.f32 %v2227, %v2302
          %v2407 = vadd.f32 %v2229, %v2298
          %v2408 = vadd.f32 %v2231, %v2302
          %v2409 = vadd.f32 %v2235, %v2298
          %v2410 = vadd.f32 %v2237, %v2302
          %v2411 = vadd.f32 %v2239, %v2298
          %v2412 = vadd.f32 %v2241, %v2302
          %v2413 = vadd.f32 %v2245, %v2298
          %v2414 = vadd.f32 %v2247, %v2302
          %v2415 = vadd.f32 %v2249, %v2298
          %v2416 = vadd.f32 %v2251, %v2302
          %v2417 = vadd.f32 %v2255, %v2298
          %v2418 = vadd.f32 %v2257, %v2302
          %v2419 = vadd.f32 %v2259, %v2298
          %v2420 = vadd.f32 %v2261, %v2302
          %v2421 = vadd.f32 %v2265, %v2298
          %v2422 = vadd.f32 %v2267, %v2302
          %v2423 = vadd.f32 %v2269, %v2298
          %v2424 = vadd.f32 %v2271, %v2302
          %v2425 = vadd.f32 %v2275, %v2298
          %v2426 = vadd.f32 %v2277, %v2302
          %v2427 = vadd.f32 %v2279, %v2298
          %v2428 = vadd.f32 %v2281, %v2302
          %v2429 = vadd.f32 %v2285, %v2298
          %v2430 = vadd.f32 %v2287, %v2302
          %v2431 = vadd.f32 %v2289, %v2298
          %v2432 = vadd.f32 %v2291, %v2302
          %s2433 = smul.u32 %s33, 128
          %s2434 = smul.addr %s2433, 8
          %s2435 = scalar_lea.vmem [#allocation2], %s2434
          %2436 = vst [vmem:[%s2435] sm:$0xff] %v2305
          %2437 = vst [vmem:[%s2435 + $0x8] sm:$0xff] %v2306
          %2438 = vst [vmem:[%s2435 + $0x10] sm:$0xff] %v2307
          %2439 = vst [vmem:[%s2435 + $0x18] sm:$0xff] %v2308
          %2440 = vst [vmem:[%s2435 + $0x20] sm:$0xff] %v2309
          %2441 = vst [vmem:[%s2435 + $0x28] sm:$0xff] %v2310
          %2442 = vst [vmem:[%s2435 + $0x30] sm:$0xff] %v2311
          %2443 = vst [vmem:[%s2435 + $0x38] sm:$0xff] %v2312
          %2444 = vst [vmem:[%s2435 + $0x40] sm:$0xff] %v2313
          %2445 = vst [vmem:[%s2435 + $0x48] sm:$0xff] %v2314
          %2446 = vst [vmem:[%s2435 + $0x50] sm:$0xff] %v2315
          %2447 = vst [vmem:[%s2435 + $0x58] sm:$0xff] %v2316
          %2448 = vst [vmem:[%s2435 + $0x60] sm:$0xff] %v2317
          %2449 = vst [vmem:[%s2435 + $0x68] sm:$0xff] %v2318
          %2450 = vst [vmem:[%s2435 + $0x70] sm:$0xff] %v2319
          %2451 = vst [vmem:[%s2435 + $0x78] sm:$0xff] %v2320
          %2452 = vst [vmem:[%s2435 + $0x80] sm:$0xff] %v2321
          %2453 = vst [vmem:[%s2435 + $0x88] sm:$0xff] %v2322
          %2454 = vst [vmem:[%s2435 + $0x90] sm:$0xff] %v2323
          %2455 = vst [vmem:[%s2435 + $0x98] sm:$0xff] %v2324
          %2456 = vst [vmem:[%s2435 + $0xa0] sm:$0xff] %v2325
          %2457 = vst [vmem:[%s2435 + $0xa8] sm:$0xff] %v2326
          %2458 = vst [vmem:[%s2435 + $0xb0] sm:$0xff] %v2327
          %2459 = vst [vmem:[%s2435 + $0xb8] sm:$0xff] %v2328
          %2460 = vst [vmem:[%s2435 + $0xc0] sm:$0xff] %v2329
          %2461 = vst [vmem:[%s2435 + $0xc8] sm:$0xff] %v2330
          %2462 = vst [vmem:[%s2435 + $0xd0] sm:$0xff] %v2331
          %2463 = vst [vmem:[%s2435 + $0xd8] sm:$0xff] %v2332
          %2464 = vst [vmem:[%s2435 + $0xe0] sm:$0xff] %v2333
          %2465 = vst [vmem:[%s2435 + $0xe8] sm:$0xff] %v2334
          %2466 = vst [vmem:[%s2435 + $0xf0] sm:$0xff] %v2335
          %2467 = vst [vmem:[%s2435 + $0xf8] sm:$0xff] %v2336
          %2468 = vst [vmem:[%s2435 + $0x100] sm:$0xff] %v2337
          %2469 = vst [vmem:[%s2435 + $0x108] sm:$0xff] %v2338
          %2470 = vst [vmem:[%s2435 + $0x110] sm:$0xff] %v2339
          %2471 = vst [vmem:[%s2435 + $0x118] sm:$0xff] %v2340
          %2472 = vst [vmem:[%s2435 + $0x120] sm:$0xff] %v2341
          %2473 = vst [vmem:[%s2435 + $0x128] sm:$0xff] %v2342
          %2474 = vst [vmem:[%s2435 + $0x130] sm:$0xff] %v2343
          %2475 = vst [vmem:[%s2435 + $0x138] sm:$0xff] %v2344
          %2476 = vst [vmem:[%s2435 + $0x140] sm:$0xff] %v2345
          %2477 = vst [vmem:[%s2435 + $0x148] sm:$0xff] %v2346
          %2478 = vst [vmem:[%s2435 + $0x150] sm:$0xff] %v2347
          %2479 = vst [vmem:[%s2435 + $0x158] sm:$0xff] %v2348
          %2480 = vst [vmem:[%s2435 + $0x160] sm:$0xff] %v2349
          %2481 = vst [vmem:[%s2435 + $0x168] sm:$0xff] %v2350
          %2482 = vst [vmem:[%s2435 + $0x170] sm:$0xff] %v2351
          %2483 = vst [vmem:[%s2435 + $0x178] sm:$0xff] %v2352
          %2484 = vst [vmem:[%s2435 + $0x180] sm:$0xff] %v2353
          %2485 = vst [vmem:[%s2435 + $0x188] sm:$0xff] %v2354
          %2486 = vst [vmem:[%s2435 + $0x190] sm:$0xff] %v2355
          %2487 = vst [vmem:[%s2435 + $0x198] sm:$0xff] %v2356
          %2488 = vst [vmem:[%s2435 + $0x1a0] sm:$0xff] %v2357
          %2489 = vst [vmem:[%s2435 + $0x1a8] sm:$0xff] %v2358
          %2490 = vst [vmem:[%s2435 + $0x1b0] sm:$0xff] %v2359
          %2491 = vst [vmem:[%s2435 + $0x1b8] sm:$0xff] %v2360
          %2492 = vst [vmem:[%s2435 + $0x1c0] sm:$0xff] %v2361
          %2493 = vst [vmem:[%s2435 + $0x1c8] sm:$0xff] %v2362
          %2494 = vst [vmem:[%s2435 + $0x1d0] sm:$0xff] %v2363
          %2495 = vst [vmem:[%s2435 + $0x1d8] sm:$0xff] %v2364
          %2496 = vst [vmem:[%s2435 + $0x1e0] sm:$0xff] %v2365
          %2497 = vst [vmem:[%s2435 + $0x1e8] sm:$0xff] %v2366
          %2498 = vst [vmem:[%s2435 + $0x1f0] sm:$0xff] %v2367
          %2499 = vst [vmem:[%s2435 + $0x1f8] sm:$0xff] %v2368
          %2500 = vst [vmem:[%s2435 + $0x200] sm:$0xff] %v2369
          %2501 = vst [vmem:[%s2435 + $0x208] sm:$0xff] %v2370
          %2502 = vst [vmem:[%s2435 + $0x210] sm:$0xff] %v2371
          %2503 = vst [vmem:[%s2435 + $0x218] sm:$0xff] %v2372
          %2504 = vst [vmem:[%s2435 + $0x220] sm:$0xff] %v2373
          %2505 = vst [vmem:[%s2435 + $0x228] sm:$0xff] %v2374
          %2506 = vst [vmem:[%s2435 + $0x230] sm:$0xff] %v2375
          %2507 = vst [vmem:[%s2435 + $0x238] sm:$0xff] %v2376
          %2508 = vst [vmem:[%s2435 + $0x240] sm:$0xff] %v2377
          %2509 = vst [vmem:[%s2435 + $0x248] sm:$0xff] %v2378
          %2510 = vst [vmem:[%s2435 + $0x250] sm:$0xff] %v2379
          %2511 = vst [vmem:[%s2435 + $0x258] sm:$0xff] %v2380
          %2512 = vst [vmem:[%s2435 + $0x260] sm:$0xff] %v2381
          %2513 = vst [vmem:[%s2435 + $0x268] sm:$0xff] %v2382
          %2514 = vst [vmem:[%s2435 + $0x270] sm:$0xff] %v2383
          %2515 = vst [vmem:[%s2435 + $0x278] sm:$0xff] %v2384
          %2516 = vst [vmem:[%s2435 + $0x280] sm:$0xff] %v2385
          %2517 = vst [vmem:[%s2435 + $0x288] sm:$0xff] %v2386
          %2518 = vst [vmem:[%s2435 + $0x290] sm:$0xff] %v2387
          %2519 = vst [vmem:[%s2435 + $0x298] sm:$0xff] %v2388
          %2520 = vst [vmem:[%s2435 + $0x2a0] sm:$0xff] %v2389
          %2521 = vst [vmem:[%s2435 + $0x2a8] sm:$0xff] %v2390
          %2522 = vst [vmem:[%s2435 + $0x2b0] sm:$0xff] %v2391
          %2523 = vst [vmem:[%s2435 + $0x2b8] sm:$0xff] %v2392
          %2524 = vst [vmem:[%s2435 + $0x2c0] sm:$0xff] %v2393
          %2525 = vst [vmem:[%s2435 + $0x2c8] sm:$0xff] %v2394
          %2526 = vst [vmem:[%s2435 + $0x2d0] sm:$0xff] %v2395
          %2527 = vst [vmem:[%s2435 + $0x2d8] sm:$0xff] %v2396
          %2528 = vst [vmem:[%s2435 + $0x2e0] sm:$0xff] %v2397
          %2529 = vst [vmem:[%s2435 + $0x2e8] sm:$0xff] %v2398
          %2530 = vst [vmem:[%s2435 + $0x2f0] sm:$0xff] %v2399
          %2531 = vst [vmem:[%s2435 + $0x2f8] sm:$0xff] %v2400
          %2532 = vst [vmem:[%s2435 + $0x300] sm:$0xff] %v2401
          %2533 = vst [vmem:[%s2435 + $0x308] sm:$0xff] %v2402
          %2534 = vst [vmem:[%s2435 + $0x310] sm:$0xff] %v2403
          %2535 = vst [vmem:[%s2435 + $0x318] sm:$0xff] %v2404
          %2536 = vst [vmem:[%s2435 + $0x320] sm:$0xff] %v2405
          %2537 = vst [vmem:[%s2435 + $0x328] sm:$0xff] %v2406
          %2538 = vst [vmem:[%s2435 + $0x330] sm:$0xff] %v2407
          %2539 = vst [vmem:[%s2435 + $0x338] sm:$0xff] %v2408
          %2540 = vst [vmem:[%s2435 + $0x340] sm:$0xff] %v2409
          %2541 = vst [vmem:[%s2435 + $0x348] sm:$0xff] %v2410
          %2542 = vst [vmem:[%s2435 + $0x350] sm:$0xff] %v2411
          %2543 = vst [vmem:[%s2435 + $0x358] sm:$0xff] %v2412
          %2544 = vst [vmem:[%s2435 + $0x360] sm:$0xff] %v2413
          %2545 = vst [vmem:[%s2435 + $0x368] sm:$0xff] %v2414
          %2546 = vst [vmem:[%s2435 + $0x370] sm:$0xff] %v2415
          %2547 = vst [vmem:[%s2435 + $0x378] sm:$0xff] %v2416
          %2548 = vst [vmem:[%s2435 + $0x380] sm:$0xff] %v2417
          %2549 = vst [vmem:[%s2435 + $0x388] sm:$0xff] %v2418
          %2550 = vst [vmem:[%s2435 + $0x390] sm:$0xff] %v2419
          %2551 = vst [vmem:[%s2435 + $0x398] sm:$0xff] %v2420
          %2552 = vst [vmem:[%s2435 + $0x3a0] sm:$0xff] %v2421
          %2553 = vst [vmem:[%s2435 + $0x3a8] sm:$0xff] %v2422
          %2554 = vst [vmem:[%s2435 + $0x3b0] sm:$0xff] %v2423
          %2555 = vst [vmem:[%s2435 + $0x3b8] sm:$0xff] %v2424
          %2556 = vst [vmem:[%s2435 + $0x3c0] sm:$0xff] %v2425
          %2557 = vst [vmem:[%s2435 + $0x3c8] sm:$0xff] %v2426
          %2558 = vst [vmem:[%s2435 + $0x3d0] sm:$0xff] %v2427
          %2559 = vst [vmem:[%s2435 + $0x3d8] sm:$0xff] %v2428
          %2560 = vst [vmem:[%s2435 + $0x3e0] sm:$0xff] %v2429
          %2561 = vst [vmem:[%s2435 + $0x3e8] sm:$0xff] %v2430
          %2562 = vst [vmem:[%s2435 + $0x3f0] sm:$0xff] %v2431
          %2563 = vst [vmem:[%s2435 + $0x3f8] sm:$0xff] %v2432
          %v2564 = vld [vmem:[#allocation3] sm:$0x3]
          %v2565 = vld [vmem:[#allocation3 + $0x2] sm:$0x3]
          %v2566 = vmax.f32 %v2305, %v2307
          %v2567 = vmax.f32 %v2566, %v2309
          %v2568 = vmax.f32 %v2567, %v2311
          %v2569 = vmax.f32 %v2568, %v2313
          %v2570 = vmax.f32 %v2569, %v2315
          %v2571 = vmax.f32 %v2570, %v2317
          %v2572 = vmax.f32 %v2571, %v2319
          %v2573 = vmax.f32 %v2572, %v2321
          %v2574 = vmax.f32 %v2573, %v2323
          %v2575 = vmax.f32 %v2574, %v2325
          %v2576 = vmax.f32 %v2575, %v2327
          %v2577 = vmax.f32 %v2576, %v2329
          %v2578 = vmax.f32 %v2577, %v2331
          %v2579 = vmax.f32 %v2578, %v2333
          %v2580 = vmax.f32 %v2579, %v2335
          %v2581 = vmax.f32 %v2580, %v2337
          %v2582 = vmax.f32 %v2581, %v2339
          %v2583 = vmax.f32 %v2582, %v2341
          %v2584 = vmax.f32 %v2583, %v2343
          %v2585 = vmax.f32 %v2584, %v2345
          %v2586 = vmax.f32 %v2585, %v2347
          %v2587 = vmax.f32 %v2586, %v2349
          %v2588 = vmax.f32 %v2587, %v2351
          %v2589 = vmax.f32 %v2588, %v2353
          %v2590 = vmax.f32 %v2589, %v2355
          %v2591 = vmax.f32 %v2590, %v2357
          %v2592 = vmax.f32 %v2591, %v2359
          %v2593 = vmax.f32 %v2592, %v2361
          %v2594 = vmax.f32 %v2593, %v2363
          %v2595 = vmax.f32 %v2594, %v2365
          %v2596 = vmax.f32 %v2595, %v2367
          %v2597 = vrot.slane %v2596, 4
          %v2598 = vmax.f32 %v2596, %v2597
          %v2599 = vrot.slane %v2598, 2
          %v2600 = vmax.f32 %v2598, %v2599
          %v2601 = vrot.slane %v2600, 1
          %v2602 = vmax.f32 %v2600, %v2601
          %v2603 = vmax.f32 %v2306, %v2308
          %v2604 = vmax.f32 %v2603, %v2310
          %v2605 = vmax.f32 %v2604, %v2312
          %v2606 = vmax.f32 %v2605, %v2314
          %v2607 = vmax.f32 %v2606, %v2316
          %v2608 = vmax.f32 %v2607, %v2318
          %v2609 = vmax.f32 %v2608, %v2320
          %v2610 = vmax.f32 %v2609, %v2322
          %v2611 = vmax.f32 %v2610, %v2324
          %v2612 = vmax.f32 %v2611, %v2326
          %v2613 = vmax.f32 %v2612, %v2328
          %v2614 = vmax.f32 %v2613, %v2330
          %v2615 = vmax.f32 %v2614, %v2332
          %v2616 = vmax.f32 %v2615, %v2334
          %v2617 = vmax.f32 %v2616, %v2336
          %v2618 = vmax.f32 %v2617, %v2338
          %v2619 = vmax.f32 %v2618, %v2340
          %v2620 = vmax.f32 %v2619, %v2342
          %v2621 = vmax.f32 %v2620, %v2344
          %v2622 = vmax.f32 %v2621, %v2346
          %v2623 = vmax.f32 %v2622, %v2348
          %v2624 = vmax.f32 %v2623, %v2350
          %v2625 = vmax.f32 %v2624, %v2352
          %v2626 = vmax.f32 %v2625, %v2354
          %v2627 = vmax.f32 %v2626, %v2356
          %v2628 = vmax.f32 %v2627, %v2358
          %v2629 = vmax.f32 %v2628, %v2360
          %v2630 = vmax.f32 %v2629, %v2362
          %v2631 = vmax.f32 %v2630, %v2364
          %v2632 = vmax.f32 %v2631, %v2366
          %v2633 = vmax.f32 %v2632, %v2368
          %v2634 = vrot.slane %v2633, 4
          %v2635 = vmax.f32 %v2633, %v2634
          %v2636 = vrot.slane %v2635, 2
          %v2637 = vmax.f32 %v2635, %v2636
          %v2638 = vrot.slane %v2637, 1
          %v2639 = vmax.f32 %v2637, %v2638
          %v2640 = vmax.f32 %v2369, %v2371
          %v2641 = vmax.f32 %v2640, %v2373
          %v2642 = vmax.f32 %v2641, %v2375
          %v2643 = vmax.f32 %v2642, %v2377
          %v2644 = vmax.f32 %v2643, %v2379
          %v2645 = vmax.f32 %v2644, %v2381
          %v2646 = vmax.f32 %v2645, %v2383
          %v2647 = vmax.f32 %v2646, %v2385
          %v2648 = vmax.f32 %v2647, %v2387
          %v2649 = vmax.f32 %v2648, %v2389
          %v2650 = vmax.f32 %v2649, %v2391
          %v2651 = vmax.f32 %v2650, %v2393
          %v2652 = vmax.f32 %v2651, %v2395
          %v2653 = vmax.f32 %v2652, %v2397
          %v2654 = vmax.f32 %v2653, %v2399
          %v2655 = vmax.f32 %v2654, %v2401
          %v2656 = vmax.f32 %v2655, %v2403
          %v2657 = vmax.f32 %v2656, %v2405
          %v2658 = vmax.f32 %v2657, %v2407
          %v2659 = vmax.f32 %v2658, %v2409
          %v2660 = vmax.f32 %v2659, %v2411
          %v2661 = vmax.f32 %v2660, %v2413
          %v2662 = vmax.f32 %v2661, %v2415
          %v2663 = vmax.f32 %v2662, %v2417
          %v2664 = vmax.f32 %v2663, %v2419
          %v2665 = vmax.f32 %v2664, %v2421
          %v2666 = vmax.f32 %v2665, %v2423
          %v2667 = vmax.f32 %v2666, %v2425
          %v2668 = vmax.f32 %v2667, %v2427
          %v2669 = vmax.f32 %v2668, %v2429
          %v2670 = vmax.f32 %v2669, %v2431
          %v2671 = vrot.slane %v2670, 4
          %v2672 = vmax.f32 %v2670, %v2671
          %v2673 = vrot.slane %v2672, 2
          %v2674 = vmax.f32 %v2672, %v2673
          %v2675 = vrot.slane %v2674, 1
          %v2676 = vmax.f32 %v2674, %v2675
          %v2677 = vmax.f32 %v2370, %v2372
          %v2678 = vmax.f32 %v2677, %v2374
          %v2679 = vmax.f32 %v2678, %v2376
          %v2680 = vmax.f32 %v2679, %v2378
          %v2681 = vmax.f32 %v2680, %v2380
          %v2682 = vmax.f32 %v2681, %v2382
          %v2683 = vmax.f32 %v2682, %v2384
          %v2684 = vmax.f32 %v2683, %v2386
          %v2685 = vmax.f32 %v2684, %v2388
          %v2686 = vmax.f32 %v2685, %v2390
          %v2687 = vmax.f32 %v2686, %v2392
          %v2688 = vmax.f32 %v2687, %v2394
          %v2689 = vmax.f32 %v2688, %v2396
          %v2690 = vmax.f32 %v2689, %v2398
          %v2691 = vmax.f32 %v2690, %v2400
          %v2692 = vmax.f32 %v2691, %v2402
          %v2693 = vmax.f32 %v2692, %v2404
          %v2694 = vmax.f32 %v2693, %v2406
          %v2695 = vmax.f32 %v2694, %v2408
          %v2696 = vmax.f32 %v2695, %v2410
          %v2697 = vmax.f32 %v2696, %v2412
          %v2698 = vmax.f32 %v2697, %v2414
          %v2699 = vmax.f32 %v2698, %v2416
          %v2700 = vmax.f32 %v2699, %v2418
          %v2701 = vmax.f32 %v2700, %v2420
          %v2702 = vmax.f32 %v2701, %v2422
          %v2703 = vmax.f32 %v2702, %v2424
          %v2704 = vmax.f32 %v2703, %v2426
          %v2705 = vmax.f32 %v2704, %v2428
          %v2706 = vmax.f32 %v2705, %v2430
          %v2707 = vmax.f32 %v2706, %v2432
          %v2708 = vrot.slane %v2707, 4
          %v2709 = vmax.f32 %v2707, %v2708
          %v2710 = vrot.slane %v2709, 2
          %v2711 = vmax.f32 %v2709, %v2710
          %v2712 = vrot.slane %v2711, 1
          %v2713 = vmax.f32 %v2711, %v2712
          %v2718 = vcombine.low %v2602, %v2639
          %v2720 = vunpack.c.l.s4 1966171168
          %v2721 = vunpack.c.0.s8 %v2720
          %v2722 = vlaneseq
          %v2723 = vshrl.u32 %v2722, 7
          %v2724 = vsub.s32 %v2721, %v2723
          %v2725 = vrot.slane %v2718, %v2724
          %v2727 = vunpack.c.l.s4 1966171168
          %v2728 = vunpack.c.0.s8 %v2727
          %v2729 = vlaneseq
          %v2730 = vshrl.u32 %v2729, 7
          %v2731 = vsub.s32 %v2728, %v2730
          %v2732 = vrot.slane %v2725, %v2731
          %v2733 = vcombine.low %v2676, %v2713
          %v2735 = vunpack.c.l.s4 1966171168
          %v2736 = vunpack.c.0.s8 %v2735
          %v2737 = vlaneseq
          %v2738 = vshrl.u32 %v2737, 7
          %v2739 = vsub.s32 %v2736, %v2738
          %v2740 = vrot.slane %v2733, %v2739
          %v2742 = vunpack.c.l.s4 1966171168
          %v2743 = vunpack.c.0.s8 %v2742
          %v2744 = vlaneseq
          %v2745 = vshrl.u32 %v2744, 7
          %v2746 = vsub.s32 %v2743, %v2745
          %v2747 = vrot.slane %v2740, %v2746
          %v2750 = vmax.f32 %v2564, %v2732
          %v2751 = vmax.f32 %v2565, %v2747
          %v2752 = vlaneseq
          %vm2753 = vcmp.ge.s32.totalorder %v2752, 0
          %vm2754 = vcmp.lt.s32.totalorder %v2752, 256
          %vm2755 = vmand %vm2753, %vm2754
          %2756 = vst.msk [vmem:[#allocation3] sm:$0x3] %vm2755, %v2750
          %2757 = vst.msk [vmem:[#allocation3 + $0x2] sm:$0x3] %vm2755, %v2751
        $region76: #{tpu_custom_call.1} parent=59 // pred_fallthru
          _
        %p2758 = scmp.eq.s32.totalorder %s32, 1
        // Predicated region
        $region77: #{tpu_custom_call.1} parent=59 // pred_check
          %p2759 = pneg %p2758
        $region78: #{tpu_custom_call.1} parent=59 // pred_check_branch
          %2761 = sbr.rel (%p2759) target = $region80
        $region79: #{tpu_custom_call.1} parent=59 // pred_region
          %s2762 = smul.u32 %s33, 128
          %s2763 = smul.addr %s2762, 8
          %s2764 = scalar_lea.vmem [#allocation2], %s2763
          %v2765 = vld [vmem:[%s2764] sm:$0xff]
          %v2766 = vld [vmem:[%s2764 + $0x8] sm:$0xff]
          %v2767 = vld [vmem:[%s2764 + $0x10] sm:$0xff]
          %v2768 = vld [vmem:[%s2764 + $0x18] sm:$0xff]
          %v2769 = vld [vmem:[%s2764 + $0x20] sm:$0xff]
          %v2770 = vld [vmem:[%s2764 + $0x28] sm:$0xff]
          %v2771 = vld [vmem:[%s2764 + $0x30] sm:$0xff]
          %v2772 = vld [vmem:[%s2764 + $0x38] sm:$0xff]
          %v2773 = vld [vmem:[%s2764 + $0x40] sm:$0xff]
          %v2774 = vld [vmem:[%s2764 + $0x48] sm:$0xff]
          %v2775 = vld [vmem:[%s2764 + $0x50] sm:$0xff]
          %v2776 = vld [vmem:[%s2764 + $0x58] sm:$0xff]
          %v2777 = vld [vmem:[%s2764 + $0x60] sm:$0xff]
          %v2778 = vld [vmem:[%s2764 + $0x68] sm:$0xff]
          %v2779 = vld [vmem:[%s2764 + $0x70] sm:$0xff]
          %v2780 = vld [vmem:[%s2764 + $0x78] sm:$0xff]
          %v2781 = vld [vmem:[%s2764 + $0x80] sm:$0xff]
          %v2782 = vld [vmem:[%s2764 + $0x88] sm:$0xff]
          %v2783 = vld [vmem:[%s2764 + $0x90] sm:$0xff]
          %v2784 = vld [vmem:[%s2764 + $0x98] sm:$0xff]
          %v2785 = vld [vmem:[%s2764 + $0xa0] sm:$0xff]
          %v2786 = vld [vmem:[%s2764 + $0xa8] sm:$0xff]
          %v2787 = vld [vmem:[%s2764 + $0xb0] sm:$0xff]
          %v2788 = vld [vmem:[%s2764 + $0xb8] sm:$0xff]
          %v2789 = vld [vmem:[%s2764 + $0xc0] sm:$0xff]
          %v2790 = vld [vmem:[%s2764 + $0xc8] sm:$0xff]
          %v2791 = vld [vmem:[%s2764 + $0xd0] sm:$0xff]
          %v2792 = vld [vmem:[%s2764 + $0xd8] sm:$0xff]
          %v2793 = vld [vmem:[%s2764 + $0xe0] sm:$0xff]
          %v2794 = vld [vmem:[%s2764 + $0xe8] sm:$0xff]
          %v2795 = vld [vmem:[%s2764 + $0xf0] sm:$0xff]
          %v2796 = vld [vmem:[%s2764 + $0xf8] sm:$0xff]
          %v2797 = vld [vmem:[%s2764 + $0x100] sm:$0xff]
          %v2798 = vld [vmem:[%s2764 + $0x108] sm:$0xff]
          %v2799 = vld [vmem:[%s2764 + $0x110] sm:$0xff]
          %v2800 = vld [vmem:[%s2764 + $0x118] sm:$0xff]
          %v2801 = vld [vmem:[%s2764 + $0x120] sm:$0xff]
          %v2802 = vld [vmem:[%s2764 + $0x128] sm:$0xff]
          %v2803 = vld [vmem:[%s2764 + $0x130] sm:$0xff]
          %v2804 = vld [vmem:[%s2764 + $0x138] sm:$0xff]
          %v2805 = vld [vmem:[%s2764 + $0x140] sm:$0xff]
          %v2806 = vld [vmem:[%s2764 + $0x148] sm:$0xff]
          %v2807 = vld [vmem:[%s2764 + $0x150] sm:$0xff]
          %v2808 = vld [vmem:[%s2764 + $0x158] sm:$0xff]
          %v2809 = vld [vmem:[%s2764 + $0x160] sm:$0xff]
          %v2810 = vld [vmem:[%s2764 + $0x168] sm:$0xff]
          %v2811 = vld [vmem:[%s2764 + $0x170] sm:$0xff]
          %v2812 = vld [vmem:[%s2764 + $0x178] sm:$0xff]
          %v2813 = vld [vmem:[%s2764 + $0x180] sm:$0xff]
          %v2814 = vld [vmem:[%s2764 + $0x188] sm:$0xff]
          %v2815 = vld [vmem:[%s2764 + $0x190] sm:$0xff]
          %v2816 = vld [vmem:[%s2764 + $0x198] sm:$0xff]
          %v2817 = vld [vmem:[%s2764 + $0x1a0] sm:$0xff]
          %v2818 = vld [vmem:[%s2764 + $0x1a8] sm:$0xff]
          %v2819 = vld [vmem:[%s2764 + $0x1b0] sm:$0xff]
          %v2820 = vld [vmem:[%s2764 + $0x1b8] sm:$0xff]
          %v2821 = vld [vmem:[%s2764 + $0x1c0] sm:$0xff]
          %v2822 = vld [vmem:[%s2764 + $0x1c8] sm:$0xff]
          %v2823 = vld [vmem:[%s2764 + $0x1d0] sm:$0xff]
          %v2824 = vld [vmem:[%s2764 + $0x1d8] sm:$0xff]
          %v2825 = vld [vmem:[%s2764 + $0x1e0] sm:$0xff]
          %v2826 = vld [vmem:[%s2764 + $0x1e8] sm:$0xff]
          %v2827 = vld [vmem:[%s2764 + $0x1f0] sm:$0xff]
          %v2828 = vld [vmem:[%s2764 + $0x1f8] sm:$0xff]
          %v2829 = vld [vmem:[%s2764 + $0x200] sm:$0xff]
          %v2830 = vld [vmem:[%s2764 + $0x208] sm:$0xff]
          %v2831 = vld [vmem:[%s2764 + $0x210] sm:$0xff]
          %v2832 = vld [vmem:[%s2764 + $0x218] sm:$0xff]
          %v2833 = vld [vmem:[%s2764 + $0x220] sm:$0xff]
          %v2834 = vld [vmem:[%s2764 + $0x228] sm:$0xff]
          %v2835 = vld [vmem:[%s2764 + $0x230] sm:$0xff]
          %v2836 = vld [vmem:[%s2764 + $0x238] sm:$0xff]
          %v2837 = vld [vmem:[%s2764 + $0x240] sm:$0xff]
          %v2838 = vld [vmem:[%s2764 + $0x248] sm:$0xff]
          %v2839 = vld [vmem:[%s2764 + $0x250] sm:$0xff]
          %v2840 = vld [vmem:[%s2764 + $0x258] sm:$0xff]
          %v2841 = vld [vmem:[%s2764 + $0x260] sm:$0xff]
          %v2842 = vld [vmem:[%s2764 + $0x268] sm:$0xff]
          %v2843 = vld [vmem:[%s2764 + $0x270] sm:$0xff]
          %v2844 = vld [vmem:[%s2764 + $0x278] sm:$0xff]
          %v2845 = vld [vmem:[%s2764 + $0x280] sm:$0xff]
          %v2846 = vld [vmem:[%s2764 + $0x288] sm:$0xff]
          %v2847 = vld [vmem:[%s2764 + $0x290] sm:$0xff]
          %v2848 = vld [vmem:[%s2764 + $0x298] sm:$0xff]
          %v2849 = vld [vmem:[%s2764 + $0x2a0] sm:$0xff]
          %v2850 = vld [vmem:[%s2764 + $0x2a8] sm:$0xff]
          %v2851 = vld [vmem:[%s2764 + $0x2b0] sm:$0xff]
          %v2852 = vld [vmem:[%s2764 + $0x2b8] sm:$0xff]
          %v2853 = vld [vmem:[%s2764 + $0x2c0] sm:$0xff]
          %v2854 = vld [vmem:[%s2764 + $0x2c8] sm:$0xff]
          %v2855 = vld [vmem:[%s2764 + $0x2d0] sm:$0xff]
          %v2856 = vld [vmem:[%s2764 + $0x2d8] sm:$0xff]
          %v2857 = vld [vmem:[%s2764 + $0x2e0] sm:$0xff]
          %v2858 = vld [vmem:[%s2764 + $0x2e8] sm:$0xff]
          %v2859 = vld [vmem:[%s2764 + $0x2f0] sm:$0xff]
          %v2860 = vld [vmem:[%s2764 + $0x2f8] sm:$0xff]
          %v2861 = vld [vmem:[%s2764 + $0x300] sm:$0xff]
          %v2862 = vld [vmem:[%s2764 + $0x308] sm:$0xff]
          %v2863 = vld [vmem:[%s2764 + $0x310] sm:$0xff]
          %v2864 = vld [vmem:[%s2764 + $0x318] sm:$0xff]
          %v2865 = vld [vmem:[%s2764 + $0x320] sm:$0xff]
          %v2866 = vld [vmem:[%s2764 + $0x328] sm:$0xff]
          %v2867 = vld [vmem:[%s2764 + $0x330] sm:$0xff]
          %v2868 = vld [vmem:[%s2764 + $0x338] sm:$0xff]
          %v2869 = vld [vmem:[%s2764 + $0x340] sm:$0xff]
          %v2870 = vld [vmem:[%s2764 + $0x348] sm:$0xff]
          %v2871 = vld [vmem:[%s2764 + $0x350] sm:$0xff]
          %v2872 = vld [vmem:[%s2764 + $0x358] sm:$0xff]
          %v2873 = vld [vmem:[%s2764 + $0x360] sm:$0xff]
          %v2874 = vld [vmem:[%s2764 + $0x368] sm:$0xff]
          %v2875 = vld [vmem:[%s2764 + $0x370] sm:$0xff]
          %v2876 = vld [vmem:[%s2764 + $0x378] sm:$0xff]
          %v2877 = vld [vmem:[%s2764 + $0x380] sm:$0xff]
          %v2878 = vld [vmem:[%s2764 + $0x388] sm:$0xff]
          %v2879 = vld [vmem:[%s2764 + $0x390] sm:$0xff]
          %v2880 = vld [vmem:[%s2764 + $0x398] sm:$0xff]
          %v2881 = vld [vmem:[%s2764 + $0x3a0] sm:$0xff]
          %v2882 = vld [vmem:[%s2764 + $0x3a8] sm:$0xff]
          %v2883 = vld [vmem:[%s2764 + $0x3b0] sm:$0xff]
          %v2884 = vld [vmem:[%s2764 + $0x3b8] sm:$0xff]
          %v2885 = vld [vmem:[%s2764 + $0x3c0] sm:$0xff]
          %v2886 = vld [vmem:[%s2764 + $0x3c8] sm:$0xff]
          %v2887 = vld [vmem:[%s2764 + $0x3d0] sm:$0xff]
          %v2888 = vld [vmem:[%s2764 + $0x3d8] sm:$0xff]
          %v2889 = vld [vmem:[%s2764 + $0x3e0] sm:$0xff]
          %v2890 = vld [vmem:[%s2764 + $0x3e8] sm:$0xff]
          %v2891 = vld [vmem:[%s2764 + $0x3f0] sm:$0xff]
          %v2892 = vld [vmem:[%s2764 + $0x3f8] sm:$0xff]
          %v2893 = vpack.c.bf16 %v2767, %v2765
          %v2894 = vpack.c.bf16 %v2768, %v2766
          %v2895 = vpack.c.bf16 %v2771, %v2769
          %v2896 = vpack.c.bf16 %v2772, %v2770
          %v2897 = vpack.c.bf16 %v2775, %v2773
          %v2898 = vpack.c.bf16 %v2776, %v2774
          %v2899 = vpack.c.bf16 %v2779, %v2777
          %v2900 = vpack.c.bf16 %v2780, %v2778
          %v2901 = vpack.c.bf16 %v2783, %v2781
          %v2902 = vpack.c.bf16 %v2784, %v2782
          %v2903 = vpack.c.bf16 %v2787, %v2785
          %v2904 = vpack.c.bf16 %v2788, %v2786
          %v2905 = vpack.c.bf16 %v2791, %v2789
          %v2906 = vpack.c.bf16 %v2792, %v2790
          %v2907 = vpack.c.bf16 %v2795, %v2793
          %v2908 = vpack.c.bf16 %v2796, %v2794
          %v2909 = vpack.c.bf16 %v2799, %v2797
          %v2910 = vpack.c.bf16 %v2800, %v2798
          %v2911 = vpack.c.bf16 %v2803, %v2801
          %v2912 = vpack.c.bf16 %v2804, %v2802
          %v2913 = vpack.c.bf16 %v2807, %v2805
          %v2914 = vpack.c.bf16 %v2808, %v2806
          %v2915 = vpack.c.bf16 %v2811, %v2809
          %v2916 = vpack.c.bf16 %v2812, %v2810
          %v2917 = vpack.c.bf16 %v2815, %v2813
          %v2918 = vpack.c.bf16 %v2816, %v2814
          %v2919 = vpack.c.bf16 %v2819, %v2817
          %v2920 = vpack.c.bf16 %v2820, %v2818
          %v2921 = vpack.c.bf16 %v2823, %v2821
          %v2922 = vpack.c.bf16 %v2824, %v2822
          %v2923 = vpack.c.bf16 %v2827, %v2825
          %v2924 = vpack.c.bf16 %v2828, %v2826
          %v2925 = vpack.c.bf16 %v2831, %v2829
          %v2926 = vpack.c.bf16 %v2832, %v2830
          %v2927 = vpack.c.bf16 %v2835, %v2833
          %v2928 = vpack.c.bf16 %v2836, %v2834
          %v2929 = vpack.c.bf16 %v2839, %v2837
          %v2930 = vpack.c.bf16 %v2840, %v2838
          %v2931 = vpack.c.bf16 %v2843, %v2841
          %v2932 = vpack.c.bf16 %v2844, %v2842
          %v2933 = vpack.c.bf16 %v2847, %v2845
          %v2934 = vpack.c.bf16 %v2848, %v2846
          %v2935 = vpack.c.bf16 %v2851, %v2849
          %v2936 = vpack.c.bf16 %v2852, %v2850
          %v2937 = vpack.c.bf16 %v2855, %v2853
          %v2938 = vpack.c.bf16 %v2856, %v2854
          %v2939 = vpack.c.bf16 %v2859, %v2857
          %v2940 = vpack.c.bf16 %v2860, %v2858
          %v2941 = vpack.c.bf16 %v2863, %v2861
          %v2942 = vpack.c.bf16 %v2864, %v2862
          %v2943 = vpack.c.bf16 %v2867, %v2865
          %v2944 = vpack.c.bf16 %v2868, %v2866
          %v2945 = vpack.c.bf16 %v2871, %v2869
          %v2946 = vpack.c.bf16 %v2872, %v2870
          %v2947 = vpack.c.bf16 %v2875, %v2873
          %v2948 = vpack.c.bf16 %v2876, %v2874
          %v2949 = vpack.c.bf16 %v2879, %v2877
          %v2950 = vpack.c.bf16 %v2880, %v2878
          %v2951 = vpack.c.bf16 %v2883, %v2881
          %v2952 = vpack.c.bf16 %v2884, %v2882
          %v2953 = vpack.c.bf16 %v2887, %v2885
          %v2954 = vpack.c.bf16 %v2888, %v2886
          %v2955 = vpack.c.bf16 %v2891, %v2889
          %v2956 = vpack.c.bf16 %v2892, %v2890
          %v2957 = vld [vmem:[#allocation3] sm:$0x3]
          %v2958 = vld [vmem:[#allocation3 + $0x2] sm:$0x3]
          %v2961 = vlaneseq
          %v2962 = vshrl.u32 %v2961, 7
          %v2963 = vsub.s32 0, %v2962
          %v2964 = vrot.slane %v2957, %v2963
          %v2965 = vlaneseq
          %v2966 = vshrl.u32 %v2965, 7
          %v2967 = vsub.s32 1, %v2966
          %v2968 = vrot.slane %v2957, %v2967
          %v2969 = vlaneseq
          %v2970 = vshrl.u32 %v2969, 7
          %v2971 = vsub.s32 0, %v2970
          %v2972 = vrot.slane %v2958, %v2971
          %v2973 = vlaneseq
          %v2974 = vshrl.u32 %v2973, 7
          %v2975 = vsub.s32 1, %v2974
          %v2976 = vrot.slane %v2958, %v2975
          %v2981 = vpack.c.bf16 %v2964, %v2964
          %v2982 = vpack.c.bf16 %v2968, %v2968
          %v2983 = vpack.c.bf16 %v2972, %v2972
          %v2984 = vpack.c.bf16 %v2976, %v2976
          %v2985 = vld [vmem:[%s5] sm:$0xff]
          %v2986 = vld [vmem:[%s5 + $0x8] sm:$0xff]
          %v2987 = vld [vmem:[%s5 + $0x10] sm:$0xff]
          %v2988 = vld [vmem:[%s5 + $0x18] sm:$0xff]
          %v2989 = vld [vmem:[%s5 + $0x20] sm:$0xff]
          %v2990 = vld [vmem:[%s5 + $0x28] sm:$0xff]
          %v2991 = vld [vmem:[%s5 + $0x30] sm:$0xff]
          %v2992 = vld [vmem:[%s5 + $0x38] sm:$0xff]
          %v2993 = vld [vmem:[%s5 + $0x40] sm:$0xff]
          %v2994 = vld [vmem:[%s5 + $0x48] sm:$0xff]
          %v2995 = vld [vmem:[%s5 + $0x50] sm:$0xff]
          %v2996 = vld [vmem:[%s5 + $0x58] sm:$0xff]
          %v2997 = vld [vmem:[%s5 + $0x60] sm:$0xff]
          %v2998 = vld [vmem:[%s5 + $0x68] sm:$0xff]
          %v2999 = vld [vmem:[%s5 + $0x70] sm:$0xff]
          %v3000 = vld [vmem:[%s5 + $0x78] sm:$0xff]
          %v3001 = vld [vmem:[%s5 + $0x80] sm:$0xff]
          %v3002 = vld [vmem:[%s5 + $0x88] sm:$0xff]
          %v3003 = vld [vmem:[%s5 + $0x90] sm:$0xff]
          %v3004 = vld [vmem:[%s5 + $0x98] sm:$0xff]
          %v3005 = vld [vmem:[%s5 + $0xa0] sm:$0xff]
          %v3006 = vld [vmem:[%s5 + $0xa8] sm:$0xff]
          %v3007 = vld [vmem:[%s5 + $0xb0] sm:$0xff]
          %v3008 = vld [vmem:[%s5 + $0xb8] sm:$0xff]
          %v3009 = vld [vmem:[%s5 + $0xc0] sm:$0xff]
          %v3010 = vld [vmem:[%s5 + $0xc8] sm:$0xff]
          %v3011 = vld [vmem:[%s5 + $0xd0] sm:$0xff]
          %v3012 = vld [vmem:[%s5 + $0xd8] sm:$0xff]
          %v3013 = vld [vmem:[%s5 + $0xe0] sm:$0xff]
          %v3014 = vld [vmem:[%s5 + $0xe8] sm:$0xff]
          %v3015 = vld [vmem:[%s5 + $0xf0] sm:$0xff]
          %v3016 = vld [vmem:[%s5 + $0xf8] sm:$0xff]
          %v3017 = vld [vmem:[%s5 + $0x100] sm:$0xff]
          %v3018 = vld [vmem:[%s5 + $0x108] sm:$0xff]
          %v3019 = vld [vmem:[%s5 + $0x110] sm:$0xff]
          %v3020 = vld [vmem:[%s5 + $0x118] sm:$0xff]
          %v3021 = vld [vmem:[%s5 + $0x120] sm:$0xff]
          %v3022 = vld [vmem:[%s5 + $0x128] sm:$0xff]
          %v3023 = vld [vmem:[%s5 + $0x130] sm:$0xff]
          %v3024 = vld [vmem:[%s5 + $0x138] sm:$0xff]
          %v3025 = vld [vmem:[%s5 + $0x140] sm:$0xff]
          %v3026 = vld [vmem:[%s5 + $0x148] sm:$0xff]
          %v3027 = vld [vmem:[%s5 + $0x150] sm:$0xff]
          %v3028 = vld [vmem:[%s5 + $0x158] sm:$0xff]
          %v3029 = vld [vmem:[%s5 + $0x160] sm:$0xff]
          %v3030 = vld [vmem:[%s5 + $0x168] sm:$0xff]
          %v3031 = vld [vmem:[%s5 + $0x170] sm:$0xff]
          %v3032 = vld [vmem:[%s5 + $0x178] sm:$0xff]
          %v3033 = vld [vmem:[%s5 + $0x180] sm:$0xff]
          %v3034 = vld [vmem:[%s5 + $0x188] sm:$0xff]
          %v3035 = vld [vmem:[%s5 + $0x190] sm:$0xff]
          %v3036 = vld [vmem:[%s5 + $0x198] sm:$0xff]
          %v3037 = vld [vmem:[%s5 + $0x1a0] sm:$0xff]
          %v3038 = vld [vmem:[%s5 + $0x1a8] sm:$0xff]
          %v3039 = vld [vmem:[%s5 + $0x1b0] sm:$0xff]
          %v3040 = vld [vmem:[%s5 + $0x1b8] sm:$0xff]
          %v3041 = vld [vmem:[%s5 + $0x1c0] sm:$0xff]
          %v3042 = vld [vmem:[%s5 + $0x1c8] sm:$0xff]
          %v3043 = vld [vmem:[%s5 + $0x1d0] sm:$0xff]
          %v3044 = vld [vmem:[%s5 + $0x1d8] sm:$0xff]
          %v3045 = vld [vmem:[%s5 + $0x1e0] sm:$0xff]
          %v3046 = vld [vmem:[%s5 + $0x1e8] sm:$0xff]
          %v3047 = vld [vmem:[%s5 + $0x1f0] sm:$0xff]
          %v3048 = vld [vmem:[%s5 + $0x1f8] sm:$0xff]
          %v3113 = vunpack.c.l.b16 %v2985
          %v3114 = vunpack.c.h.b16 %v2985
          %v3115 = vunpack.c.l.b16 %v2986
          %v3116 = vunpack.c.h.b16 %v2986
          %v3117 = vunpack.c.l.b16 %v2987
          %v3118 = vunpack.c.h.b16 %v2987
          %v3119 = vunpack.c.l.b16 %v2988
          %v3120 = vunpack.c.h.b16 %v2988
          %v3121 = vunpack.c.l.b16 %v2989
          %v3122 = vunpack.c.h.b16 %v2989
          %v3123 = vunpack.c.l.b16 %v2990
          %v3124 = vunpack.c.h.b16 %v2990
          %v3125 = vunpack.c.l.b16 %v2991
          %v3126 = vunpack.c.h.b16 %v2991
          %v3127 = vunpack.c.l.b16 %v2992
          %v3128 = vunpack.c.h.b16 %v2992
          %v3129 = vunpack.c.l.b16 %v2993
          %v3130 = vunpack.c.h.b16 %v2993
          %v3131 = vunpack.c.l.b16 %v2994
          %v3132 = vunpack.c.h.b16 %v2994
          %v3133 = vunpack.c.l.b16 %v2995
          %v3134 = vunpack.c.h.b16 %v2995
          %v3135 = vunpack.c.l.b16 %v2996
          %v3136 = vunpack.c.h.b16 %v2996
          %v3137 = vunpack.c.l.b16 %v2997
          %v3138 = vunpack.c.h.b16 %v2997
          %v3139 = vunpack.c.l.b16 %v2998
          %v3140 = vunpack.c.h.b16 %v2998
          %v3141 = vunpack.c.l.b16 %v2999
          %v3142 = vunpack.c.h.b16 %v2999
          %v3143 = vunpack.c.l.b16 %v3000
          %v3144 = vunpack.c.h.b16 %v3000
          %v3145 = vunpack.c.l.b16 %v3001
          %v3146 = vunpack.c.h.b16 %v3001
          %v3147 = vunpack.c.l.b16 %v3002
          %v3148 = vunpack.c.h.b16 %v3002
          %v3149 = vunpack.c.l.b16 %v3003
          %v3150 = vunpack.c.h.b16 %v3003
          %v3151 = vunpack.c.l.b16 %v3004
          %v3152 = vunpack.c.h.b16 %v3004
          %v3153 = vunpack.c.l.b16 %v3005
          %v3154 = vunpack.c.h.b16 %v3005
          %v3155 = vunpack.c.l.b16 %v3006
          %v3156 = vunpack.c.h.b16 %v3006
          %v3157 = vunpack.c.l.b16 %v3007
          %v3158 = vunpack.c.h.b16 %v3007
          %v3159 = vunpack.c.l.b16 %v3008
          %v3160 = vunpack.c.h.b16 %v3008
          %v3161 = vunpack.c.l.b16 %v3009
          %v3162 = vunpack.c.h.b16 %v3009
          %v3163 = vunpack.c.l.b16 %v3010
          %v3164 = vunpack.c.h.b16 %v3010
          %v3165 = vunpack.c.l.b16 %v3011
          %v3166 = vunpack.c.h.b16 %v3011
          %v3167 = vunpack.c.l.b16 %v3012
          %v3168 = vunpack.c.h.b16 %v3012
          %v3169 = vunpack.c.l.b16 %v3013
          %v3170 = vunpack.c.h.b16 %v3013
          %v3171 = vunpack.c.l.b16 %v3014
          %v3172 = vunpack.c.h.b16 %v3014
          %v3173 = vunpack.c.l.b16 %v3015
          %v3174 = vunpack.c.h.b16 %v3015
          %v3175 = vunpack.c.l.b16 %v3016
          %v3176 = vunpack.c.h.b16 %v3016
          %v3177 = vunpack.c.l.b16 %v3017
          %v3178 = vunpack.c.h.b16 %v3017
          %v3179 = vunpack.c.l.b16 %v3018
          %v3180 = vunpack.c.h.b16 %v3018
          %v3181 = vunpack.c.l.b16 %v3019
          %v3182 = vunpack.c.h.b16 %v3019
          %v3183 = vunpack.c.l.b16 %v3020
          %v3184 = vunpack.c.h.b16 %v3020
          %v3185 = vunpack.c.l.b16 %v3021
          %v3186 = vunpack.c.h.b16 %v3021
          %v3187 = vunpack.c.l.b16 %v3022
          %v3188 = vunpack.c.h.b16 %v3022
          %v3189 = vunpack.c.l.b16 %v3023
          %v3190 = vunpack.c.h.b16 %v3023
          %v3191 = vunpack.c.l.b16 %v3024
          %v3192 = vunpack.c.h.b16 %v3024
          %v3193 = vunpack.c.l.b16 %v3025
          %v3194 = vunpack.c.h.b16 %v3025
          %v3195 = vunpack.c.l.b16 %v3026
          %v3196 = vunpack.c.h.b16 %v3026
          %v3197 = vunpack.c.l.b16 %v3027
          %v3198 = vunpack.c.h.b16 %v3027
          %v3199 = vunpack.c.l.b16 %v3028
          %v3200 = vunpack.c.h.b16 %v3028
          %v3201 = vunpack.c.l.b16 %v3029
          %v3202 = vunpack.c.h.b16 %v3029
          %v3203 = vunpack.c.l.b16 %v3030
          %v3204 = vunpack.c.h.b16 %v3030
          %v3205 = vunpack.c.l.b16 %v3031
          %v3206 = vunpack.c.h.b16 %v3031
          %v3207 = vunpack.c.l.b16 %v3032
          %v3208 = vunpack.c.h.b16 %v3032
          %v3209 = vunpack.c.l.b16 %v3033
          %v3210 = vunpack.c.h.b16 %v3033
          %v3211 = vunpack.c.l.b16 %v3034
          %v3212 = vunpack.c.h.b16 %v3034
          %v3213 = vunpack.c.l.b16 %v3035
          %v3214 = vunpack.c.h.b16 %v3035
          %v3215 = vunpack.c.l.b16 %v3036
          %v3216 = vunpack.c.h.b16 %v3036
          %v3217 = vunpack.c.l.b16 %v3037
          %v3218 = vunpack.c.h.b16 %v3037
          %v3219 = vunpack.c.l.b16 %v3038
          %v3220 = vunpack.c.h.b16 %v3038
          %v3221 = vunpack.c.l.b16 %v3039
          %v3222 = vunpack.c.h.b16 %v3039
          %v3223 = vunpack.c.l.b16 %v3040
          %v3224 = vunpack.c.h.b16 %v3040
          %v3225 = vunpack.c.l.b16 %v3041
          %v3226 = vunpack.c.h.b16 %v3041
          %v3227 = vunpack.c.l.b16 %v3042
          %v3228 = vunpack.c.h.b16 %v3042
          %v3229 = vunpack.c.l.b16 %v3043
          %v3230 = vunpack.c.h.b16 %v3043
          %v3231 = vunpack.c.l.b16 %v3044
          %v3232 = vunpack.c.h.b16 %v3044
          %v3233 = vunpack.c.l.b16 %v3045
          %v3234 = vunpack.c.h.b16 %v3045
          %v3235 = vunpack.c.l.b16 %v3046
          %v3236 = vunpack.c.h.b16 %v3046
          %v3237 = vunpack.c.l.b16 %v3047
          %v3238 = vunpack.c.h.b16 %v3047
          %v3239 = vunpack.c.l.b16 %v3048
          %v3240 = vunpack.c.h.b16 %v3048
          %v3241 = vpack.c.b16 %v3117, %v3113
          %v3242 = vpack.c.b16 %v3118, %v3114
          %v3243 = vpack.c.b16 %v3119, %v3115
          %v3244 = vpack.c.b16 %v3120, %v3116
          %v3245 = vpack.c.b16 %v3125, %v3121
          %v3246 = vpack.c.b16 %v3126, %v3122
          %v3247 = vpack.c.b16 %v3127, %v3123
          %v3248 = vpack.c.b16 %v3128, %v3124
          %v3249 = vpack.c.b16 %v3133, %v3129
          %v3250 = vpack.c.b16 %v3134, %v3130
          %v3251 = vpack.c.b16 %v3135, %v3131
          %v3252 = vpack.c.b16 %v3136, %v3132
          %v3253 = vpack.c.b16 %v3141, %v3137
          %v3254 = vpack.c.b16 %v3142, %v3138
          %v3255 = vpack.c.b16 %v3143, %v3139
          %v3256 = vpack.c.b16 %v3144, %v3140
          %v3257 = vpack.c.b16 %v3149, %v3145
          %v3258 = vpack.c.b16 %v3150, %v3146
          %v3259 = vpack.c.b16 %v3151, %v3147
          %v3260 = vpack.c.b16 %v3152, %v3148
          %v3261 = vpack.c.b16 %v3157, %v3153
          %v3262 = vpack.c.b16 %v3158, %v3154
          %v3263 = vpack.c.b16 %v3159, %v3155
          %v3264 = vpack.c.b16 %v3160, %v3156
          %v3265 = vpack.c.b16 %v3165, %v3161
          %v3266 = vpack.c.b16 %v3166, %v3162
          %v3267 = vpack.c.b16 %v3167, %v3163
          %v3268 = vpack.c.b16 %v3168, %v3164
          %v3269 = vpack.c.b16 %v3173, %v3169
          %v3270 = vpack.c.b16 %v3174, %v3170
          %v3271 = vpack.c.b16 %v3175, %v3171
          %v3272 = vpack.c.b16 %v3176, %v3172
          %v3273 = vpack.c.b16 %v3181, %v3177
          %v3274 = vpack.c.b16 %v3182, %v3178
          %v3275 = vpack.c.b16 %v3183, %v3179
          %v3276 = vpack.c.b16 %v3184, %v3180
          %v3277 = vpack.c.b16 %v3189, %v3185
          %v3278 = vpack.c.b16 %v3190, %v3186
          %v3279 = vpack.c.b16 %v3191, %v3187
          %v3280 = vpack.c.b16 %v3192, %v3188
          %v3281 = vpack.c.b16 %v3197, %v3193
          %v3282 = vpack.c.b16 %v3198, %v3194
          %v3283 = vpack.c.b16 %v3199, %v3195
          %v3284 = vpack.c.b16 %v3200, %v3196
          %v3285 = vpack.c.b16 %v3205, %v3201
          %v3286 = vpack.c.b16 %v3206, %v3202
          %v3287 = vpack.c.b16 %v3207, %v3203
          %v3288 = vpack.c.b16 %v3208, %v3204
          %v3289 = vpack.c.b16 %v3213, %v3209
          %v3290 = vpack.c.b16 %v3214, %v3210
          %v3291 = vpack.c.b16 %v3215, %v3211
          %v3292 = vpack.c.b16 %v3216, %v3212
          %v3293 = vpack.c.b16 %v3221, %v3217
          %v3294 = vpack.c.b16 %v3222, %v3218
          %v3295 = vpack.c.b16 %v3223, %v3219
          %v3296 = vpack.c.b16 %v3224, %v3220
          %v3297 = vpack.c.b16 %v3229, %v3225
          %v3298 = vpack.c.b16 %v3230, %v3226
          %v3299 = vpack.c.b16 %v3231, %v3227
          %v3300 = vpack.c.b16 %v3232, %v3228
          %v3301 = vpack.c.b16 %v3237, %v3233
          %v3302 = vpack.c.b16 %v3238, %v3234
          %v3303 = vpack.c.b16 %v3239, %v3235
          %v3304 = vpack.c.b16 %v3240, %v3236
          %3369 = vmatprep.subr.bf16.mxu0 %v3242
          %3370 = vmatpush1.bf16.msra.mxu0 %v3241
          %3371 = vmatprep.subr.bf16.mxu0 %v3246
          %3372 = vmatpush1.bf16.msra.mxu0 %v3245
          %3373 = vmatprep.subr.bf16.mxu0 %v3250
          %3374 = vmatpush1.bf16.msra.mxu0 %v3249
          %3375 = vmatprep.subr.bf16.mxu0 %v3254
          %3376 = vmatpush1.bf16.msra.mxu0 %v3253
          %3377 = vmatprep.subr.bf16.mxu0 %v3258
          %3378 = vmatpush1.bf16.msra.mxu0 %v3257
          %3379 = vmatprep.subr.bf16.mxu0 %v3262
          %3380 = vmatpush1.bf16.msra.mxu0 %v3261
          %3381 = vmatprep.subr.bf16.mxu0 %v3266
          %3382 = vmatpush1.bf16.msra.mxu0 %v3265
          %3383 = vmatprep.subr.bf16.mxu0 %v3270
          %3384 = vmatpush1.bf16.msra.mxu0 %v3269
          %3385 = vmatprep.subr.bf16.mxu0 %v3274
          %3386 = vmatpush1.bf16.msra.mxu0 %v3273
          %3387 = vmatprep.subr.bf16.mxu0 %v3278
          %3388 = vmatpush1.bf16.msra.mxu0 %v3277
          %3389 = vmatprep.subr.bf16.mxu0 %v3282
          %3390 = vmatpush1.bf16.msra.mxu0 %v3281
          %3391 = vmatprep.subr.bf16.mxu0 %v3286
          %3392 = vmatpush1.bf16.msra.mxu0 %v3285
          %3393 = vmatprep.subr.bf16.mxu0 %v3290
          %3394 = vmatpush1.bf16.msra.mxu0 %v3289
          %3395 = vmatprep.subr.bf16.mxu0 %v3294
          %3396 = vmatpush1.bf16.msra.mxu0 %v3293
          %3397 = vmatprep.subr.bf16.mxu0 %v3298
          %3398 = vmatpush1.bf16.msra.mxu0 %v3297
          %3399 = vmatprep.subr.bf16.mxu0 %v3302
          %3400 = vmatpush1.bf16.msra.mxu0 %v3301
          %3401 = vmatprep.mubr.bf16.mxu0 %v2894
          %3402 = vmatmul.mubr.bf16.gmra.mrb[0].mxu0 %v2893
          %v3403 = vpop.f32.mrb[0].mxu0
          %v3404 = vadd.f32 0.0, %v3403
          %v3405 = vpop.f32.mrb[0].mxu0
          %v3406 = vadd.f32 0.0, %v3405
          %v3407 = vpop.f32.mrb[0].mxu0
          %v3408 = vadd.f32 0.0, %v3407
          %v3409 = vpop.f32.mrb[0].mxu0
          %v3410 = vadd.f32 0.0, %v3409
          %3411 = vmatprep.mubr.bf16.mxu0 %v2896
          %3412 = vmatmul.mubr.bf16.gmra.mrb[0].mxu0 %v2895
          %v3413 = vpop.f32.mrb[0].mxu0
          %v3414 = vadd.f32 0.0, %v3413
          %v3415 = vpop.f32.mrb[0].mxu0
          %v3416 = vadd.f32 0.0, %v3415
          %v3417 = vpop.f32.mrb[0].mxu0
          %v3418 = vadd.f32 0.0, %v3417
          %v3419 = vpop.f32.mrb[0].mxu0
          %v3420 = vadd.f32 0.0, %v3419
          %3421 = vmatprep.mubr.bf16.mxu0 %v2898
          %3422 = vmatmul.mubr.bf16.gmra.mrb[0].mxu0 %v2897
          %v3423 = vpop.f32.mrb[0].mxu0
          %v3424 = vadd.f32 0.0, %v3423
          %v3425 = vpop.f32.mrb[0].mxu0
          %v3426 = vadd.f32 0.0, %v3425
          %v3427 = vpop.f32.mrb[0].mxu0
          %v3428 = vadd.f32 0.0, %v3427
          %v3429 = vpop.f32.mrb[0].mxu0
          %v3430 = vadd.f32 0.0, %v3429
          %3431 = vmatprep.mubr.bf16.mxu0 %v2900
          %3432 = vmatmul.mubr.bf16.gmra.mrb[0].mxu0 %v2899
          %v3433 = vpop.f32.mrb[0].mxu0
          %v3434 = vadd.f32 0.0, %v3433
          %v3435 = vpop.f32.mrb[0].mxu0
          %v3436 = vadd.f32 0.0, %v3435
          %v3437 = vpop.f32.mrb[0].mxu0
          %v3438 = vadd.f32 0.0, %v3437
          %v3439 = vpop.f32.mrb[0].mxu0
          %v3440 = vadd.f32 0.0, %v3439
          %3441 = vmatprep.mubr.bf16.mxu0 %v2902
          %3442 = vmatmul.mubr.bf16.gmra.mrb[0].mxu0 %v2901
          %v3443 = vpop.f32.mrb[0].mxu0
          %v3444 = vadd.f32 0.0, %v3443
          %v3445 = vpop.f32.mrb[0].mxu0
          %v3446 = vadd.f32 0.0, %v3445
          %v3447 = vpop.f32.mrb[0].mxu0
          %v3448 = vadd.f32 0.0, %v3447
          %v3449 = vpop.f32.mrb[0].mxu0
          %v3450 = vadd.f32 0.0, %v3449
          %3451 = vmatprep.mubr.bf16.mxu0 %v2904
          %3452 = vmatmul.mubr.bf16.gmra.mrb[0].mxu0 %v2903
          %v3453 = vpop.f32.mrb[0].mxu0
          %v3454 = vadd.f32 0.0, %v3453
          %v3455 = vpop.f32.mrb[0].mxu0
          %v3456 = vadd.f32 0.0, %v3455
          %v3457 = vpop.f32.mrb[0].mxu0
          %v3458 = vadd.f32 0.0, %v3457
          %v3459 = vpop.f32.mrb[0].mxu0
          %v3460 = vadd.f32 0.0, %v3459
          %3461 = vmatprep.mubr.bf16.mxu0 %v2906
          %3462 = vmatmul.mubr.bf16.gmra.mrb[0].mxu0 %v2905
          %v3463 = vpop.f32.mrb[0].mxu0
          %v3464 = vadd.f32 0.0, %v3463
          %v3465 = vpop.f32.mrb[0].mxu0
          %v3466 = vadd.f32 0.0, %v3465
          %v3467 = vpop.f32.mrb[0].mxu0
          %v3468 = vadd.f32 0.0, %v3467
          %v3469 = vpop.f32.mrb[0].mxu0
          %v3470 = vadd.f32 0.0, %v3469
          %3471 = vmatprep.mubr.bf16.mxu0 %v2908
          %3472 = vmatmul.mubr.bf16.gmra.mrb[0].mxu0 %v2907
          %v3473 = vpop.f32.mrb[0].mxu0
          %v3474 = vadd.f32 0.0, %v3473
          %v3475 = vpop.f32.mrb[0].mxu0
          %v3476 = vadd.f32 0.0, %v3475
          %v3477 = vpop.f32.mrb[0].mxu0
          %v3478 = vadd.f32 0.0, %v3477
          %v3479 = vpop.f32.mrb[0].mxu0
          %v3480 = vadd.f32 0.0, %v3479
          %3481 = vmatprep.mubr.bf16.mxu0 %v2910
          %3482 = vmatmul.mubr.bf16.gmra.mrb[0].mxu0 %v2909
          %v3483 = vpop.f32.mrb[0].mxu0
          %v3484 = vadd.f32 0.0, %v3483
          %v3485 = vpop.f32.mrb[0].mxu0
          %v3486 = vadd.f32 0.0, %v3485
          %v3487 = vpop.f32.mrb[0].mxu0
          %v3488 = vadd.f32 0.0, %v3487
          %v3489 = vpop.f32.mrb[0].mxu0
          %v3490 = vadd.f32 0.0, %v3489
          %3491 = vmatprep.mubr.bf16.mxu0 %v2912
          %3492 = vmatmul.mubr.bf16.gmra.mrb[0].mxu0 %v2911
          %v3493 = vpop.f32.mrb[0].mxu0
          %v3494 = vadd.f32 0.0, %v3493
          %v3495 = vpop.f32.mrb[0].mxu0
          %v3496 = vadd.f32 0.0, %v3495
          %v3497 = vpop.f32.mrb[0].mxu0
          %v3498 = vadd.f32 0.0, %v3497
          %v3499 = vpop.f32.mrb[0].mxu0
          %v3500 = vadd.f32 0.0, %v3499
          %3501 = vmatprep.mubr.bf16.mxu0 %v2914
          %3502 = vmatmul.mubr.bf16.gmra.mrb[0].mxu0 %v2913
          %v3503 = vpop.f32.mrb[0].mxu0
          %v3504 = vadd.f32 0.0, %v3503
          %v3505 = vpop.f32.mrb[0].mxu0
          %v3506 = vadd.f32 0.0, %v3505
          %v3507 = vpop.f32.mrb[0].mxu0
          %v3508 = vadd.f32 0.0, %v3507
          %v3509 = vpop.f32.mrb[0].mxu0
          %v3510 = vadd.f32 0.0, %v3509
          %3511 = vmatprep.mubr.bf16.mxu0 %v2916
          %3512 = vmatmul.mubr.bf16.gmra.mrb[0].mxu0 %v2915
          %v3513 = vpop.f32.mrb[0].mxu0
          %v3514 = vadd.f32 0.0, %v3513
          %v3515 = vpop.f32.mrb[0].mxu0
          %v3516 = vadd.f32 0.0, %v3515
          %v3517 = vpop.f32.mrb[0].mxu0
          %v3518 = vadd.f32 0.0, %v3517
          %v3519 = vpop.f32.mrb[0].mxu0
          %v3520 = vadd.f32 0.0, %v3519
          %3521 = vmatprep.mubr.bf16.mxu0 %v2918
          %3522 = vmatmul.mubr.bf16.gmra.mrb[0].mxu0 %v2917
          %v3523 = vpop.f32.mrb[0].mxu0
          %v3524 = vadd.f32 0.0, %v3523
          %v3525 = vpop.f32.mrb[0].mxu0
          %v3526 = vadd.f32 0.0, %v3525
          %v3527 = vpop.f32.mrb[0].mxu0
          %v3528 = vadd.f32 0.0, %v3527
          %v3529 = vpop.f32.mrb[0].mxu0
          %v3530 = vadd.f32 0.0, %v3529
          %3531 = vmatprep.mubr.bf16.mxu0 %v2920
          %3532 = vmatmul.mubr.bf16.gmra.mrb[0].mxu0 %v2919
          %v3533 = vpop.f32.mrb[0].mxu0
          %v3534 = vadd.f32 0.0, %v3533
          %v3535 = vpop.f32.mrb[0].mxu0
          %v3536 = vadd.f32 0.0, %v3535
          %v3537 = vpop.f32.mrb[0].mxu0
          %v3538 = vadd.f32 0.0, %v3537
          %v3539 = vpop.f32.mrb[0].mxu0
          %v3540 = vadd.f32 0.0, %v3539
          %3541 = vmatprep.mubr.bf16.mxu0 %v2922
          %3542 = vmatmul.mubr.bf16.gmra.mrb[0].mxu0 %v2921
          %v3543 = vpop.f32.mrb[0].mxu0
          %v3544 = vadd.f32 0.0, %v3543
          %v3545 = vpop.f32.mrb[0].mxu0
          %v3546 = vadd.f32 0.0, %v3545
          %v3547 = vpop.f32.mrb[0].mxu0
          %v3548 = vadd.f32 0.0, %v3547
          %v3549 = vpop.f32.mrb[0].mxu0
          %v3550 = vadd.f32 0.0, %v3549
          %3551 = vmatprep.mubr.bf16.mxu0 %v2924
          %3552 = vmatmul.mubr.bf16.gmra.mrb[0].mxu0 %v2923
          %v3553 = vpop.f32.mrb[0].mxu0
          %v3554 = vadd.f32 0.0, %v3553
          %v3555 = vpop.f32.mrb[0].mxu0
          %v3556 = vadd.f32 0.0, %v3555
          %v3557 = vpop.f32.mrb[0].mxu0
          %v3558 = vadd.f32 0.0, %v3557
          %v3559 = vpop.f32.mrb[0].mxu0
          %v3560 = vadd.f32 0.0, %v3559
          %3561 = vmatprep.mubr.bf16.mxu0 %v2926
          %3562 = vmatmul.mubr.bf16.gmra.mrb[0].mxu0 %v2925
          %v3563 = vpop.f32.mrb[0].mxu0
          %v3564 = vadd.f32 0.0, %v3563
          %v3565 = vpop.f32.mrb[0].mxu0
          %v3566 = vadd.f32 0.0, %v3565
          %v3567 = vpop.f32.mrb[0].mxu0
          %v3568 = vadd.f32 0.0, %v3567
          %v3569 = vpop.f32.mrb[0].mxu0
          %v3570 = vadd.f32 0.0, %v3569
          %3571 = vmatprep.mubr.bf16.mxu0 %v2928
          %3572 = vmatmul.mubr.bf16.gmra.mrb[0].mxu0 %v2927
          %v3573 = vpop.f32.mrb[0].mxu0
          %v3574 = vadd.f32 0.0, %v3573
          %v3575 = vpop.f32.mrb[0].mxu0
          %v3576 = vadd.f32 0.0, %v3575
          %v3577 = vpop.f32.mrb[0].mxu0
          %v3578 = vadd.f32 0.0, %v3577
          %v3579 = vpop.f32.mrb[0].mxu0
          %v3580 = vadd.f32 0.0, %v3579
          %3581 = vmatprep.mubr.bf16.mxu0 %v2930
          %3582 = vmatmul.mubr.bf16.gmra.mrb[0].mxu0 %v2929
          %v3583 = vpop.f32.mrb[0].mxu0
          %v3584 = vadd.f32 0.0, %v3583
          %v3585 = vpop.f32.mrb[0].mxu0
          %v3586 = vadd.f32 0.0, %v3585
          %v3587 = vpop.f32.mrb[0].mxu0
          %v3588 = vadd.f32 0.0, %v3587
          %v3589 = vpop.f32.mrb[0].mxu0
          %v3590 = vadd.f32 0.0, %v3589
          %3591 = vmatprep.mubr.bf16.mxu0 %v2932
          %3592 = vmatmul.mubr.bf16.gmra.mrb[0].mxu0 %v2931
          %v3593 = vpop.f32.mrb[0].mxu0
          %v3594 = vadd.f32 0.0, %v3593
          %v3595 = vpop.f32.mrb[0].mxu0
          %v3596 = vadd.f32 0.0, %v3595
          %v3597 = vpop.f32.mrb[0].mxu0
          %v3598 = vadd.f32 0.0, %v3597
          %v3599 = vpop.f32.mrb[0].mxu0
          %v3600 = vadd.f32 0.0, %v3599
          %3601 = vmatprep.mubr.bf16.mxu0 %v2934
          %3602 = vmatmul.mubr.bf16.gmra.mrb[0].mxu0 %v2933
          %v3603 = vpop.f32.mrb[0].mxu0
          %v3604 = vadd.f32 0.0, %v3603
          %v3605 = vpop.f32.mrb[0].mxu0
          %v3606 = vadd.f32 0.0, %v3605
          %v3607 = vpop.f32.mrb[0].mxu0
          %v3608 = vadd.f32 0.0, %v3607
          %v3609 = vpop.f32.mrb[0].mxu0
          %v3610 = vadd.f32 0.0, %v3609
          %3611 = vmatprep.mubr.bf16.mxu0 %v2936
          %3612 = vmatmul.mubr.bf16.gmra.mrb[0].mxu0 %v2935
          %v3613 = vpop.f32.mrb[0].mxu0
          %v3614 = vadd.f32 0.0, %v3613
          %v3615 = vpop.f32.mrb[0].mxu0
          %v3616 = vadd.f32 0.0, %v3615
          %v3617 = vpop.f32.mrb[0].mxu0
          %v3618 = vadd.f32 0.0, %v3617
          %v3619 = vpop.f32.mrb[0].mxu0
          %v3620 = vadd.f32 0.0, %v3619
          %3621 = vmatprep.mubr.bf16.mxu0 %v2938
          %3622 = vmatmul.mubr.bf16.gmra.mrb[0].mxu0 %v2937
          %v3623 = vpop.f32.mrb[0].mxu0
          %v3624 = vadd.f32 0.0, %v3623
          %v3625 = vpop.f32.mrb[0].mxu0
          %v3626 = vadd.f32 0.0, %v3625
          %v3627 = vpop.f32.mrb[0].mxu0
          %v3628 = vadd.f32 0.0, %v3627
          %v3629 = vpop.f32.mrb[0].mxu0
          %v3630 = vadd.f32 0.0, %v3629
          %3631 = vmatprep.mubr.bf16.mxu0 %v2940
          %3632 = vmatmul.mubr.bf16.gmra.mrb[0].mxu0 %v2939
          %v3633 = vpop.f32.mrb[0].mxu0
          %v3634 = vadd.f32 0.0, %v3633
          %v3635 = vpop.f32.mrb[0].mxu0
          %v3636 = vadd.f32 0.0, %v3635
          %v3637 = vpop.f32.mrb[0].mxu0
          %v3638 = vadd.f32 0.0, %v3637
          %v3639 = vpop.f32.mrb[0].mxu0
          %v3640 = vadd.f32 0.0, %v3639
          %3641 = vmatprep.mubr.bf16.mxu0 %v2942
          %3642 = vmatmul.mubr.bf16.gmra.mrb[0].mxu0 %v2941
          %v3643 = vpop.f32.mrb[0].mxu0
          %v3644 = vadd.f32 0.0, %v3643
          %v3645 = vpop.f32.mrb[0].mxu0
          %v3646 = vadd.f32 0.0, %v3645
          %v3647 = vpop.f32.mrb[0].mxu0
          %v3648 = vadd.f32 0.0, %v3647
          %v3649 = vpop.f32.mrb[0].mxu0
          %v3650 = vadd.f32 0.0, %v3649
          %3651 = vmatprep.mubr.bf16.mxu0 %v2944
          %3652 = vmatmul.mubr.bf16.gmra.mrb[0].mxu0 %v2943
          %v3653 = vpop.f32.mrb[0].mxu0
          %v3654 = vadd.f32 0.0, %v3653
          %v3655 = vpop.f32.mrb[0].mxu0
          %v3656 = vadd.f32 0.0, %v3655
          %v3657 = vpop.f32.mrb[0].mxu0
          %v3658 = vadd.f32 0.0, %v3657
          %v3659 = vpop.f32.mrb[0].mxu0
          %v3660 = vadd.f32 0.0, %v3659
          %3661 = vmatprep.mubr.bf16.mxu0 %v2946
          %3662 = vmatmul.mubr.bf16.gmra.mrb[0].mxu0 %v2945
          %v3663 = vpop.f32.mrb[0].mxu0
          %v3664 = vadd.f32 0.0, %v3663
          %v3665 = vpop.f32.mrb[0].mxu0
          %v3666 = vadd.f32 0.0, %v3665
          %v3667 = vpop.f32.mrb[0].mxu0
          %v3668 = vadd.f32 0.0, %v3667
          %v3669 = vpop.f32.mrb[0].mxu0
          %v3670 = vadd.f32 0.0, %v3669
          %3671 = vmatprep.mubr.bf16.mxu0 %v2948
          %3672 = vmatmul.mubr.bf16.gmra.mrb[0].mxu0 %v2947
          %v3673 = vpop.f32.mrb[0].mxu0
          %v3674 = vadd.f32 0.0, %v3673
          %v3675 = vpop.f32.mrb[0].mxu0
          %v3676 = vadd.f32 0.0, %v3675
          %v3677 = vpop.f32.mrb[0].mxu0
          %v3678 = vadd.f32 0.0, %v3677
          %v3679 = vpop.f32.mrb[0].mxu0
          %v3680 = vadd.f32 0.0, %v3679
          %3681 = vmatprep.mubr.bf16.mxu0 %v2950
          %3682 = vmatmul.mubr.bf16.gmra.mrb[0].mxu0 %v2949
          %v3683 = vpop.f32.mrb[0].mxu0
          %v3684 = vadd.f32 0.0, %v3683
          %v3685 = vpop.f32.mrb[0].mxu0
          %v3686 = vadd.f32 0.0, %v3685
          %v3687 = vpop.f32.mrb[0].mxu0
          %v3688 = vadd.f32 0.0, %v3687
          %v3689 = vpop.f32.mrb[0].mxu0
          %v3690 = vadd.f32 0.0, %v3689
          %3691 = vmatprep.mubr.bf16.mxu0 %v2952
          %3692 = vmatmul.mubr.bf16.gmra.mrb[0].mxu0 %v2951
          %v3693 = vpop.f32.mrb[0].mxu0
          %v3694 = vadd.f32 0.0, %v3693
          %v3695 = vpop.f32.mrb[0].mxu0
          %v3696 = vadd.f32 0.0, %v3695
          %v3697 = vpop.f32.mrb[0].mxu0
          %v3698 = vadd.f32 0.0, %v3697
          %v3699 = vpop.f32.mrb[0].mxu0
          %v3700 = vadd.f32 0.0, %v3699
          %3701 = vmatprep.mubr.bf16.mxu0 %v2954
          %3702 = vmatmul.mubr.bf16.gmra.mrb[0].mxu0 %v2953
          %v3703 = vpop.f32.mrb[0].mxu0
          %v3704 = vadd.f32 0.0, %v3703
          %v3705 = vpop.f32.mrb[0].mxu0
          %v3706 = vadd.f32 0.0, %v3705
          %v3707 = vpop.f32.mrb[0].mxu0
          %v3708 = vadd.f32 0.0, %v3707
          %v3709 = vpop.f32.mrb[0].mxu0
          %v3710 = vadd.f32 0.0, %v3709
          %3711 = vmatprep.mubr.bf16.mxu0 %v2956
          %3712 = vmatmul.mubr.bf16.gmra.mrb[0].mxu0 %v2955
          %v3713 = vpop.f32.mrb[0].mxu0
          %v3714 = vadd.f32 0.0, %v3713
          %v3715 = vpop.f32.mrb[0].mxu0
          %v3716 = vadd.f32 0.0, %v3715
          %v3717 = vpop.f32.mrb[0].mxu0
          %v3718 = vadd.f32 0.0, %v3717
          %v3719 = vpop.f32.mrb[0].mxu0
          %v3720 = vadd.f32 0.0, %v3719
          %3721 = vdwg.mxu0
          %3722 = vmatprep.subr.bf16.mxu0 %v3244
          %3723 = vmatpush1.bf16.msra.mxu0 %v3243
          %3724 = vmatprep.subr.bf16.mxu0 %v3248
          %3725 = vmatpush1.bf16.msra.mxu0 %v3247
          %3726 = vmatprep.subr.bf16.mxu0 %v3252
          %3727 = vmatpush1.bf16.msra.mxu0 %v3251
          %3728 = vmatprep.subr.bf16.mxu0 %v3256
          %3729 = vmatpush1.bf16.msra.mxu0 %v3255
          %3730 = vmatprep.subr.bf16.mxu0 %v3260
          %3731 = vmatpush1.bf16.msra.mxu0 %v3259
          %3732 = vmatprep.subr.bf16.mxu0 %v3264
          %3733 = vmatpush1.bf16.msra.mxu0 %v3263
          %3734 = vmatprep.subr.bf16.mxu0 %v3268
          %3735 = vmatpush1.bf16.msra.mxu0 %v3267
          %3736 = vmatprep.subr.bf16.mxu0 %v3272
          %3737 = vmatpush1.bf16.msra.mxu0 %v3271
          %3738 = vmatprep.subr.bf16.mxu0 %v3276
          %3739 = vmatpush1.bf16.msra.mxu0 %v3275
          %3740 = vmatprep.subr.bf16.mxu0 %v3280
          %3741 = vmatpush1.bf16.msra.mxu0 %v3279
          %3742 = vmatprep.subr.bf16.mxu0 %v3284
          %3743 = vmatpush1.bf16.msra.mxu0 %v3283
          %3744 = vmatprep.subr.bf16.mxu0 %v3288
          %3745 = vmatpush1.bf16.msra.mxu0 %v3287
          %3746 = vmatprep.subr.bf16.mxu0 %v3292
          %3747 = vmatpush1.bf16.msra.mxu0 %v3291
          %3748 = vmatprep.subr.bf16.mxu0 %v3296
          %3749 = vmatpush1.bf16.msra.mxu0 %v3295
          %3750 = vmatprep.subr.bf16.mxu0 %v3300
          %3751 = vmatpush1.bf16.msra.mxu0 %v3299
          %3752 = vmatprep.subr.bf16.mxu0 %v3304
          %3753 = vmatpush1.bf16.msra.mxu0 %v3303
          %3754 = vmatprep.mubr.bf16.mxu0 %v2894
          %3755 = vmatmul.mubr.bf16.gmra.mrb[0].mxu0 %v2893
          %v3756 = vpop.f32.mrb[0].mxu0
          %v3757 = vadd.f32 0.0, %v3756
          %v3758 = vpop.f32.mrb[0].mxu0
          %v3759 = vadd.f32 0.0, %v3758
          %v3760 = vpop.f32.mrb[0].mxu0
          %v3761 = vadd.f32 0.0, %v3760
          %v3762 = vpop.f32.mrb[0].mxu0
          %v3763 = vadd.f32 0.0, %v3762
          %3764 = vmatprep.mubr.bf16.mxu0 %v2896
          %3765 = vmatmul.mubr.bf16.gmra.mrb[0].mxu0 %v2895
          %v3766 = vpop.f32.mrb[0].mxu0
          %v3767 = vadd.f32 0.0, %v3766
          %v3768 = vpop.f32.mrb[0].mxu0
          %v3769 = vadd.f32 0.0, %v3768
          %v3770 = vpop.f32.mrb[0].mxu0
          %v3771 = vadd.f32 0.0, %v3770
          %v3772 = vpop.f32.mrb[0].mxu0
          %v3773 = vadd.f32 0.0, %v3772
          %3774 = vmatprep.mubr.bf16.mxu0 %v2898
          %3775 = vmatmul.mubr.bf16.gmra.mrb[0].mxu0 %v2897
          %v3776 = vpop.f32.mrb[0].mxu0
          %v3777 = vadd.f32 0.0, %v3776
          %v3778 = vpop.f32.mrb[0].mxu0
          %v3779 = vadd.f32 0.0, %v3778
          %v3780 = vpop.f32.mrb[0].mxu0
          %v3781 = vadd.f32 0.0, %v3780
          %v3782 = vpop.f32.mrb[0].mxu0
          %v3783 = vadd.f32 0.0, %v3782
          %3784 = vmatprep.mubr.bf16.mxu0 %v2900
          %3785 = vmatmul.mubr.bf16.gmra.mrb[0].mxu0 %v2899
          %v3786 = vpop.f32.mrb[0].mxu0
          %v3787 = vadd.f32 0.0, %v3786
          %v3788 = vpop.f32.mrb[0].mxu0
          %v3789 = vadd.f32 0.0, %v3788
          %v3790 = vpop.f32.mrb[0].mxu0
          %v3791 = vadd.f32 0.0, %v3790
          %v3792 = vpop.f32.mrb[0].mxu0
          %v3793 = vadd.f32 0.0, %v3792
          %3794 = vmatprep.mubr.bf16.mxu0 %v2902
          %3795 = vmatmul.mubr.bf16.gmra.mrb[0].mxu0 %v2901
          %v3796 = vpop.f32.mrb[0].mxu0
          %v3797 = vadd.f32 0.0, %v3796
          %v3798 = vpop.f32.mrb[0].mxu0
          %v3799 = vadd.f32 0.0, %v3798
          %v3800 = vpop.f32.mrb[0].mxu0
          %v3801 = vadd.f32 0.0, %v3800
          %v3802 = vpop.f32.mrb[0].mxu0
          %v3803 = vadd.f32 0.0, %v3802
          %3804 = vmatprep.mubr.bf16.mxu0 %v2904
          %3805 = vmatmul.mubr.bf16.gmra.mrb[0].mxu0 %v2903
          %v3806 = vpop.f32.mrb[0].mxu0
          %v3807 = vadd.f32 0.0, %v3806
          %v3808 = vpop.f32.mrb[0].mxu0
          %v3809 = vadd.f32 0.0, %v3808
          %v3810 = vpop.f32.mrb[0].mxu0
          %v3811 = vadd.f32 0.0, %v3810
          %v3812 = vpop.f32.mrb[0].mxu0
          %v3813 = vadd.f32 0.0, %v3812
          %3814 = vmatprep.mubr.bf16.mxu0 %v2906
          %3815 = vmatmul.mubr.bf16.gmra.mrb[0].mxu0 %v2905
          %v3816 = vpop.f32.mrb[0].mxu0
          %v3817 = vadd.f32 0.0, %v3816
          %v3818 = vpop.f32.mrb[0].mxu0
          %v3819 = vadd.f32 0.0, %v3818
          %v3820 = vpop.f32.mrb[0].mxu0
          %v3821 = vadd.f32 0.0, %v3820
          %v3822 = vpop.f32.mrb[0].mxu0
          %v3823 = vadd.f32 0.0, %v3822
          %3824 = vmatprep.mubr.bf16.mxu0 %v2908
          %3825 = vmatmul.mubr.bf16.gmra.mrb[0].mxu0 %v2907
          %v3826 = vpop.f32.mrb[0].mxu0
          %v3827 = vadd.f32 0.0, %v3826
          %v3828 = vpop.f32.mrb[0].mxu0
          %v3829 = vadd.f32 0.0, %v3828
          %v3830 = vpop.f32.mrb[0].mxu0
          %v3831 = vadd.f32 0.0, %v3830
          %v3832 = vpop.f32.mrb[0].mxu0
          %v3833 = vadd.f32 0.0, %v3832
          %3834 = vmatprep.mubr.bf16.mxu0 %v2910
          %3835 = vmatmul.mubr.bf16.gmra.mrb[0].mxu0 %v2909
          %v3836 = vpop.f32.mrb[0].mxu0
          %v3837 = vadd.f32 0.0, %v3836
          %v3838 = vpop.f32.mrb[0].mxu0
          %v3839 = vadd.f32 0.0, %v3838
          %v3840 = vpop.f32.mrb[0].mxu0
          %v3841 = vadd.f32 0.0, %v3840
          %v3842 = vpop.f32.mrb[0].mxu0
          %v3843 = vadd.f32 0.0, %v3842
          %3844 = vmatprep.mubr.bf16.mxu0 %v2912
          %3845 = vmatmul.mubr.bf16.gmra.mrb[0].mxu0 %v2911
          %v3846 = vpop.f32.mrb[0].mxu0
          %v3847 = vadd.f32 0.0, %v3846
          %v3848 = vpop.f32.mrb[0].mxu0
          %v3849 = vadd.f32 0.0, %v3848
          %v3850 = vpop.f32.mrb[0].mxu0
          %v3851 = vadd.f32 0.0, %v3850
          %v3852 = vpop.f32.mrb[0].mxu0
          %v3853 = vadd.f32 0.0, %v3852
          %3854 = vmatprep.mubr.bf16.mxu0 %v2914
          %3855 = vmatmul.mubr.bf16.gmra.mrb[0].mxu0 %v2913
          %v3856 = vpop.f32.mrb[0].mxu0
          %v3857 = vadd.f32 0.0, %v3856
          %v3858 = vpop.f32.mrb[0].mxu0
          %v3859 = vadd.f32 0.0, %v3858
          %v3860 = vpop.f32.mrb[0].mxu0
          %v3861 = vadd.f32 0.0, %v3860
          %v3862 = vpop.f32.mrb[0].mxu0
          %v3863 = vadd.f32 0.0, %v3862
          %3864 = vmatprep.mubr.bf16.mxu0 %v2916
          %3865 = vmatmul.mubr.bf16.gmra.mrb[0].mxu0 %v2915
          %v3866 = vpop.f32.mrb[0].mxu0
          %v3867 = vadd.f32 0.0, %v3866
          %v3868 = vpop.f32.mrb[0].mxu0
          %v3869 = vadd.f32 0.0, %v3868
          %v3870 = vpop.f32.mrb[0].mxu0
          %v3871 = vadd.f32 0.0, %v3870
          %v3872 = vpop.f32.mrb[0].mxu0
          %v3873 = vadd.f32 0.0, %v3872
          %3874 = vmatprep.mubr.bf16.mxu0 %v2918
          %3875 = vmatmul.mubr.bf16.gmra.mrb[0].mxu0 %v2917
          %v3876 = vpop.f32.mrb[0].mxu0
          %v3877 = vadd.f32 0.0, %v3876
          %v3878 = vpop.f32.mrb[0].mxu0
          %v3879 = vadd.f32 0.0, %v3878
          %v3880 = vpop.f32.mrb[0].mxu0
          %v3881 = vadd.f32 0.0, %v3880
          %v3882 = vpop.f32.mrb[0].mxu0
          %v3883 = vadd.f32 0.0, %v3882
          %3884 = vmatprep.mubr.bf16.mxu0 %v2920
          %3885 = vmatmul.mubr.bf16.gmra.mrb[0].mxu0 %v2919
          %v3886 = vpop.f32.mrb[0].mxu0
          %v3887 = vadd.f32 0.0, %v3886
          %v3888 = vpop.f32.mrb[0].mxu0
          %v3889 = vadd.f32 0.0, %v3888
          %v3890 = vpop.f32.mrb[0].mxu0
          %v3891 = vadd.f32 0.0, %v3890
          %v3892 = vpop.f32.mrb[0].mxu0
          %v3893 = vadd.f32 0.0, %v3892
          %3894 = vmatprep.mubr.bf16.mxu0 %v2922
          %3895 = vmatmul.mubr.bf16.gmra.mrb[0].mxu0 %v2921
          %v3896 = vpop.f32.mrb[0].mxu0
          %v3897 = vadd.f32 0.0, %v3896
          %v3898 = vpop.f32.mrb[0].mxu0
          %v3899 = vadd.f32 0.0, %v3898
          %v3900 = vpop.f32.mrb[0].mxu0
          %v3901 = vadd.f32 0.0, %v3900
          %v3902 = vpop.f32.mrb[0].mxu0
          %v3903 = vadd.f32 0.0, %v3902
          %3904 = vmatprep.mubr.bf16.mxu0 %v2924
          %3905 = vmatmul.mubr.bf16.gmra.mrb[0].mxu0 %v2923
          %v3906 = vpop.f32.mrb[0].mxu0
          %v3907 = vadd.f32 0.0, %v3906
          %v3908 = vpop.f32.mrb[0].mxu0
          %v3909 = vadd.f32 0.0, %v3908
          %v3910 = vpop.f32.mrb[0].mxu0
          %v3911 = vadd.f32 0.0, %v3910
          %v3912 = vpop.f32.mrb[0].mxu0
          %v3913 = vadd.f32 0.0, %v3912
          %3914 = vmatprep.mubr.bf16.mxu0 %v2926
          %3915 = vmatmul.mubr.bf16.gmra.mrb[0].mxu0 %v2925
          %v3916 = vpop.f32.mrb[0].mxu0
          %v3917 = vadd.f32 0.0, %v3916
          %v3918 = vpop.f32.mrb[0].mxu0
          %v3919 = vadd.f32 0.0, %v3918
          %v3920 = vpop.f32.mrb[0].mxu0
          %v3921 = vadd.f32 0.0, %v3920
          %v3922 = vpop.f32.mrb[0].mxu0
          %v3923 = vadd.f32 0.0, %v3922
          %3924 = vmatprep.mubr.bf16.mxu0 %v2928
          %3925 = vmatmul.mubr.bf16.gmra.mrb[0].mxu0 %v2927
          %v3926 = vpop.f32.mrb[0].mxu0
          %v3927 = vadd.f32 0.0, %v3926
          %v3928 = vpop.f32.mrb[0].mxu0
          %v3929 = vadd.f32 0.0, %v3928
          %v3930 = vpop.f32.mrb[0].mxu0
          %v3931 = vadd.f32 0.0, %v3930
          %v3932 = vpop.f32.mrb[0].mxu0
          %v3933 = vadd.f32 0.0, %v3932
          %3934 = vmatprep.mubr.bf16.mxu0 %v2930
          %3935 = vmatmul.mubr.bf16.gmra.mrb[0].mxu0 %v2929
          %v3936 = vpop.f32.mrb[0].mxu0
          %v3937 = vadd.f32 0.0, %v3936
          %v3938 = vpop.f32.mrb[0].mxu0
          %v3939 = vadd.f32 0.0, %v3938
          %v3940 = vpop.f32.mrb[0].mxu0
          %v3941 = vadd.f32 0.0, %v3940
          %v3942 = vpop.f32.mrb[0].mxu0
          %v3943 = vadd.f32 0.0, %v3942
          %3944 = vmatprep.mubr.bf16.mxu0 %v2932
          %3945 = vmatmul.mubr.bf16.gmra.mrb[0].mxu0 %v2931
          %v3946 = vpop.f32.mrb[0].mxu0
          %v3947 = vadd.f32 0.0, %v3946
          %v3948 = vpop.f32.mrb[0].mxu0
          %v3949 = vadd.f32 0.0, %v3948
          %v3950 = vpop.f32.mrb[0].mxu0
          %v3951 = vadd.f32 0.0, %v3950
          %v3952 = vpop.f32.mrb[0].mxu0
          %v3953 = vadd.f32 0.0, %v3952
          %3954 = vmatprep.mubr.bf16.mxu0 %v2934
          %3955 = vmatmul.mubr.bf16.gmra.mrb[0].mxu0 %v2933
          %v3956 = vpop.f32.mrb[0].mxu0
          %v3957 = vadd.f32 0.0, %v3956
          %v3958 = vpop.f32.mrb[0].mxu0
          %v3959 = vadd.f32 0.0, %v3958
          %v3960 = vpop.f32.mrb[0].mxu0
          %v3961 = vadd.f32 0.0, %v3960
          %v3962 = vpop.f32.mrb[0].mxu0
          %v3963 = vadd.f32 0.0, %v3962
          %3964 = vmatprep.mubr.bf16.mxu0 %v2936
          %3965 = vmatmul.mubr.bf16.gmra.mrb[0].mxu0 %v2935
          %v3966 = vpop.f32.mrb[0].mxu0
          %v3967 = vadd.f32 0.0, %v3966
          %v3968 = vpop.f32.mrb[0].mxu0
          %v3969 = vadd.f32 0.0, %v3968
          %v3970 = vpop.f32.mrb[0].mxu0
          %v3971 = vadd.f32 0.0, %v3970
          %v3972 = vpop.f32.mrb[0].mxu0
          %v3973 = vadd.f32 0.0, %v3972
          %3974 = vmatprep.mubr.bf16.mxu0 %v2938
          %3975 = vmatmul.mubr.bf16.gmra.mrb[0].mxu0 %v2937
          %v3976 = vpop.f32.mrb[0].mxu0
          %v3977 = vadd.f32 0.0, %v3976
          %v3978 = vpop.f32.mrb[0].mxu0
          %v3979 = vadd.f32 0.0, %v3978
          %v3980 = vpop.f32.mrb[0].mxu0
          %v3981 = vadd.f32 0.0, %v3980
          %v3982 = vpop.f32.mrb[0].mxu0
          %v3983 = vadd.f32 0.0, %v3982
          %3984 = vmatprep.mubr.bf16.mxu0 %v2940
          %3985 = vmatmul.mubr.bf16.gmra.mrb[0].mxu0 %v2939
          %v3986 = vpop.f32.mrb[0].mxu0
          %v3987 = vadd.f32 0.0, %v3986
          %v3988 = vpop.f32.mrb[0].mxu0
          %v3989 = vadd.f32 0.0, %v3988
          %v3990 = vpop.f32.mrb[0].mxu0
          %v3991 = vadd.f32 0.0, %v3990
          %v3992 = vpop.f32.mrb[0].mxu0
          %v3993 = vadd.f32 0.0, %v3992
          %3994 = vmatprep.mubr.bf16.mxu0 %v2942
          %3995 = vmatmul.mubr.bf16.gmra.mrb[0].mxu0 %v2941
          %v3996 = vpop.f32.mrb[0].mxu0
          %v3997 = vadd.f32 0.0, %v3996
          %v3998 = vpop.f32.mrb[0].mxu0
          %v3999 = vadd.f32 0.0, %v3998
          %v4000 = vpop.f32.mrb[0].mxu0
          %v4001 = vadd.f32 0.0, %v4000
          %v4002 = vpop.f32.mrb[0].mxu0
          %v4003 = vadd.f32 0.0, %v4002
          %4004 = vmatprep.mubr.bf16.mxu0 %v2944
          %4005 = vmatmul.mubr.bf16.gmra.mrb[0].mxu0 %v2943
          %v4006 = vpop.f32.mrb[0].mxu0
          %v4007 = vadd.f32 0.0, %v4006
          %v4008 = vpop.f32.mrb[0].mxu0
          %v4009 = vadd.f32 0.0, %v4008
          %v4010 = vpop.f32.mrb[0].mxu0
          %v4011 = vadd.f32 0.0, %v4010
          %v4012 = vpop.f32.mrb[0].mxu0
          %v4013 = vadd.f32 0.0, %v4012
          %4014 = vmatprep.mubr.bf16.mxu0 %v2946
          %4015 = vmatmul.mubr.bf16.gmra.mrb[0].mxu0 %v2945
          %v4016 = vpop.f32.mrb[0].mxu0
          %v4017 = vadd.f32 0.0, %v4016
          %v4018 = vpop.f32.mrb[0].mxu0
          %v4019 = vadd.f32 0.0, %v4018
          %v4020 = vpop.f32.mrb[0].mxu0
          %v4021 = vadd.f32 0.0, %v4020
          %v4022 = vpop.f32.mrb[0].mxu0
          %v4023 = vadd.f32 0.0, %v4022
          %4024 = vmatprep.mubr.bf16.mxu0 %v2948
          %4025 = vmatmul.mubr.bf16.gmra.mrb[0].mxu0 %v2947
          %v4026 = vpop.f32.mrb[0].mxu0
          %v4027 = vadd.f32 0.0, %v4026
          %v4028 = vpop.f32.mrb[0].mxu0
          %v4029 = vadd.f32 0.0, %v4028
          %v4030 = vpop.f32.mrb[0].mxu0
          %v4031 = vadd.f32 0.0, %v4030
          %v4032 = vpop.f32.mrb[0].mxu0
          %v4033 = vadd.f32 0.0, %v4032
          %4034 = vmatprep.mubr.bf16.mxu0 %v2950
          %4035 = vmatmul.mubr.bf16.gmra.mrb[0].mxu0 %v2949
          %v4036 = vpop.f32.mrb[0].mxu0
          %v4037 = vadd.f32 0.0, %v4036
          %v4038 = vpop.f32.mrb[0].mxu0
          %v4039 = vadd.f32 0.0, %v4038
          %v4040 = vpop.f32.mrb[0].mxu0
          %v4041 = vadd.f32 0.0, %v4040
          %v4042 = vpop.f32.mrb[0].mxu0
          %v4043 = vadd.f32 0.0, %v4042
          %4044 = vmatprep.mubr.bf16.mxu0 %v2952
          %4045 = vmatmul.mubr.bf16.gmra.mrb[0].mxu0 %v2951
          %v4046 = vpop.f32.mrb[0].mxu0
          %v4047 = vadd.f32 0.0, %v4046
          %v4048 = vpop.f32.mrb[0].mxu0
          %v4049 = vadd.f32 0.0, %v4048
          %v4050 = vpop.f32.mrb[0].mxu0
          %v4051 = vadd.f32 0.0, %v4050
          %v4052 = vpop.f32.mrb[0].mxu0
          %v4053 = vadd.f32 0.0, %v4052
          %4054 = vmatprep.mubr.bf16.mxu0 %v2954
          %4055 = vmatmul.mubr.bf16.gmra.mrb[0].mxu0 %v2953
          %v4056 = vpop.f32.mrb[0].mxu0
          %v4057 = vadd.f32 0.0, %v4056
          %v4058 = vpop.f32.mrb[0].mxu0
          %v4059 = vadd.f32 0.0, %v4058
          %v4060 = vpop.f32.mrb[0].mxu0
          %v4061 = vadd.f32 0.0, %v4060
          %v4062 = vpop.f32.mrb[0].mxu0
          %v4063 = vadd.f32 0.0, %v4062
          %4064 = vmatprep.mubr.bf16.mxu0 %v2956
          %4065 = vmatmul.mubr.bf16.gmra.mrb[0].mxu0 %v2955
          %v4066 = vpop.f32.mrb[0].mxu0
          %v4067 = vadd.f32 0.0, %v4066
          %v4068 = vpop.f32.mrb[0].mxu0
          %v4069 = vadd.f32 0.0, %v4068
          %v4070 = vpop.f32.mrb[0].mxu0
          %v4071 = vadd.f32 0.0, %v4070
          %v4072 = vpop.f32.mrb[0].mxu0
          %v4073 = vadd.f32 0.0, %v4072
          %4074 = vdwg.mxu0
          %v4075 = vld [vmem:[%s6] sm:$0xff]
          %v4076 = vld [vmem:[%s6 + $0x8] sm:$0xff]
          %v4077 = vld [vmem:[%s6 + $0x10] sm:$0xff]
          %v4078 = vld [vmem:[%s6 + $0x18] sm:$0xff]
          %v4079 = vld [vmem:[%s6 + $0x20] sm:$0xff]
          %v4080 = vld [vmem:[%s6 + $0x28] sm:$0xff]
          %v4081 = vld [vmem:[%s6 + $0x30] sm:$0xff]
          %v4082 = vld [vmem:[%s6 + $0x38] sm:$0xff]
          %v4083 = vld [vmem:[%s6 + $0x40] sm:$0xff]
          %v4084 = vld [vmem:[%s6 + $0x48] sm:$0xff]
          %v4085 = vld [vmem:[%s6 + $0x50] sm:$0xff]
          %v4086 = vld [vmem:[%s6 + $0x58] sm:$0xff]
          %v4087 = vld [vmem:[%s6 + $0x60] sm:$0xff]
          %v4088 = vld [vmem:[%s6 + $0x68] sm:$0xff]
          %v4089 = vld [vmem:[%s6 + $0x70] sm:$0xff]
          %v4090 = vld [vmem:[%s6 + $0x78] sm:$0xff]
          %v4091 = vld [vmem:[%s6 + $0x80] sm:$0xff]
          %v4092 = vld [vmem:[%s6 + $0x88] sm:$0xff]
          %v4093 = vld [vmem:[%s6 + $0x90] sm:$0xff]
          %v4094 = vld [vmem:[%s6 + $0x98] sm:$0xff]
          %v4095 = vld [vmem:[%s6 + $0xa0] sm:$0xff]
          %v4096 = vld [vmem:[%s6 + $0xa8] sm:$0xff]
          %v4097 = vld [vmem:[%s6 + $0xb0] sm:$0xff]
          %v4098 = vld [vmem:[%s6 + $0xb8] sm:$0xff]
          %v4099 = vld [vmem:[%s6 + $0xc0] sm:$0xff]
          %v4100 = vld [vmem:[%s6 + $0xc8] sm:$0xff]
          %v4101 = vld [vmem:[%s6 + $0xd0] sm:$0xff]
          %v4102 = vld [vmem:[%s6 + $0xd8] sm:$0xff]
          %v4103 = vld [vmem:[%s6 + $0xe0] sm:$0xff]
          %v4104 = vld [vmem:[%s6 + $0xe8] sm:$0xff]
          %v4105 = vld [vmem:[%s6 + $0xf0] sm:$0xff]
          %v4106 = vld [vmem:[%s6 + $0xf8] sm:$0xff]
          %v4107 = vld [vmem:[%s6 + $0x100] sm:$0xff]
          %v4108 = vld [vmem:[%s6 + $0x108] sm:$0xff]
          %v4109 = vld [vmem:[%s6 + $0x110] sm:$0xff]
          %v4110 = vld [vmem:[%s6 + $0x118] sm:$0xff]
          %v4111 = vld [vmem:[%s6 + $0x120] sm:$0xff]
          %v4112 = vld [vmem:[%s6 + $0x128] sm:$0xff]
          %v4113 = vld [vmem:[%s6 + $0x130] sm:$0xff]
          %v4114 = vld [vmem:[%s6 + $0x138] sm:$0xff]
          %v4115 = vld [vmem:[%s6 + $0x140] sm:$0xff]
          %v4116 = vld [vmem:[%s6 + $0x148] sm:$0xff]
          %v4117 = vld [vmem:[%s6 + $0x150] sm:$0xff]
          %v4118 = vld [vmem:[%s6 + $0x158] sm:$0xff]
          %v4119 = vld [vmem:[%s6 + $0x160] sm:$0xff]
          %v4120 = vld [vmem:[%s6 + $0x168] sm:$0xff]
          %v4121 = vld [vmem:[%s6 + $0x170] sm:$0xff]
          %v4122 = vld [vmem:[%s6 + $0x178] sm:$0xff]
          %v4123 = vld [vmem:[%s6 + $0x180] sm:$0xff]
          %v4124 = vld [vmem:[%s6 + $0x188] sm:$0xff]
          %v4125 = vld [vmem:[%s6 + $0x190] sm:$0xff]
          %v4126 = vld [vmem:[%s6 + $0x198] sm:$0xff]
          %v4127 = vld [vmem:[%s6 + $0x1a0] sm:$0xff]
          %v4128 = vld [vmem:[%s6 + $0x1a8] sm:$0xff]
          %v4129 = vld [vmem:[%s6 + $0x1b0] sm:$0xff]
          %v4130 = vld [vmem:[%s6 + $0x1b8] sm:$0xff]
          %v4131 = vld [vmem:[%s6 + $0x1c0] sm:$0xff]
          %v4132 = vld [vmem:[%s6 + $0x1c8] sm:$0xff]
          %v4133 = vld [vmem:[%s6 + $0x1d0] sm:$0xff]
          %v4134 = vld [vmem:[%s6 + $0x1d8] sm:$0xff]
          %v4135 = vld [vmem:[%s6 + $0x1e0] sm:$0xff]
          %v4136 = vld [vmem:[%s6 + $0x1e8] sm:$0xff]
          %v4137 = vld [vmem:[%s6 + $0x1f0] sm:$0xff]
          %v4138 = vld [vmem:[%s6 + $0x1f8] sm:$0xff]
          %v4143 = vunpack.c.l.b16 %v2981
          %v4144 = vunpack.c.l.b16 %v2982
          %v4145 = vunpack.c.l.b16 %v2983
          %v4146 = vunpack.c.l.b16 %v2984
          %v4147 = vrot.slane %v4145, 7
          %vm4148 = vcmask 1041409
          %v4149 = vsel %vm4148, %v4147, %v4143
          %v4150 = vrot.slane %v4146, 7
          %v4151 = vsel %vm4148, %v4150, %v4144
          %v4152 = vpack.c.b16 %v4149, %v4149
          %v4153 = vpack.c.b16 %v4151, %v4151
          %v4220 = vunpack.c.l.b16 %v4075
          %v4221 = vunpack.c.h.b16 %v4075
          %v4222 = vunpack.c.l.b16 %v4076
          %v4223 = vunpack.c.h.b16 %v4076
          %v4224 = vunpack.c.l.b16 %v4077
          %v4225 = vunpack.c.h.b16 %v4077
          %v4226 = vunpack.c.l.b16 %v4078
          %v4227 = vunpack.c.h.b16 %v4078
          %v4228 = vunpack.c.l.b16 %v4079
          %v4229 = vunpack.c.h.b16 %v4079
          %v4230 = vunpack.c.l.b16 %v4080
          %v4231 = vunpack.c.h.b16 %v4080
          %v4232 = vunpack.c.l.b16 %v4081
          %v4233 = vunpack.c.h.b16 %v4081
          %v4234 = vunpack.c.l.b16 %v4082
          %v4235 = vunpack.c.h.b16 %v4082
          %v4236 = vunpack.c.l.b16 %v4083
          %v4237 = vunpack.c.h.b16 %v4083
          %v4238 = vunpack.c.l.b16 %v4084
          %v4239 = vunpack.c.h.b16 %v4084
          %v4240 = vunpack.c.l.b16 %v4085
          %v4241 = vunpack.c.h.b16 %v4085
          %v4242 = vunpack.c.l.b16 %v4086
          %v4243 = vunpack.c.h.b16 %v4086
          %v4244 = vunpack.c.l.b16 %v4087
          %v4245 = vunpack.c.h.b16 %v4087
          %v4246 = vunpack.c.l.b16 %v4088
          %v4247 = vunpack.c.h.b16 %v4088
          %v4248 = vunpack.c.l.b16 %v4089
          %v4249 = vunpack.c.h.b16 %v4089
          %v4250 = vunpack.c.l.b16 %v4090
          %v4251 = vunpack.c.h.b16 %v4090
          %v4252 = vunpack.c.l.b16 %v4091
          %v4253 = vunpack.c.h.b16 %v4091
          %v4254 = vunpack.c.l.b16 %v4092
          %v4255 = vunpack.c.h.b16 %v4092
          %v4256 = vunpack.c.l.b16 %v4093
          %v4257 = vunpack.c.h.b16 %v4093
          %v4258 = vunpack.c.l.b16 %v4094
          %v4259 = vunpack.c.h.b16 %v4094
          %v4260 = vunpack.c.l.b16 %v4095
          %v4261 = vunpack.c.h.b16 %v4095
          %v4262 = vunpack.c.l.b16 %v4096
          %v4263 = vunpack.c.h.b16 %v4096
          %v4264 = vunpack.c.l.b16 %v4097
          %v4265 = vunpack.c.h.b16 %v4097
          %v4266 = vunpack.c.l.b16 %v4098
          %v4267 = vunpack.c.h.b16 %v4098
          %v4268 = vunpack.c.l.b16 %v4099
          %v4269 = vunpack.c.h.b16 %v4099
          %v4270 = vunpack.c.l.b16 %v4100
          %v4271 = vunpack.c.h.b16 %v4100
          %v4272 = vunpack.c.l.b16 %v4101
          %v4273 = vunpack.c.h.b16 %v4101
          %v4274 = vunpack.c.l.b16 %v4102
          %v4275 = vunpack.c.h.b16 %v4102
          %v4276 = vunpack.c.l.b16 %v4103
          %v4277 = vunpack.c.h.b16 %v4103
          %v4278 = vunpack.c.l.b16 %v4104
          %v4279 = vunpack.c.h.b16 %v4104
          %v4280 = vunpack.c.l.b16 %v4105
          %v4281 = vunpack.c.h.b16 %v4105
          %v4282 = vunpack.c.l.b16 %v4106
          %v4283 = vunpack.c.h.b16 %v4106
          %v4284 = vunpack.c.l.b16 %v4107
          %v4285 = vunpack.c.h.b16 %v4107
          %v4286 = vunpack.c.l.b16 %v4108
          %v4287 = vunpack.c.h.b16 %v4108
          %v4288 = vunpack.c.l.b16 %v4109
          %v4289 = vunpack.c.h.b16 %v4109
          %v4290 = vunpack.c.l.b16 %v4110
          %v4291 = vunpack.c.h.b16 %v4110
          %v4292 = vunpack.c.l.b16 %v4111
          %v4293 = vunpack.c.h.b16 %v4111
          %v4294 = vunpack.c.l.b16 %v4112
          %v4295 = vunpack.c.h.b16 %v4112
          %v4296 = vunpack.c.l.b16 %v4113
          %v4297 = vunpack.c.h.b16 %v4113
          %v4298 = vunpack.c.l.b16 %v4114
          %v4299 = vunpack.c.h.b16 %v4114
          %v4300 = vunpack.c.l.b16 %v4115
          %v4301 = vunpack.c.h.b16 %v4115
          %v4302 = vunpack.c.l.b16 %v4116
          %v4303 = vunpack.c.h.b16 %v4116
          %v4304 = vunpack.c.l.b16 %v4117
          %v4305 = vunpack.c.h.b16 %v4117
          %v4306 = vunpack.c.l.b16 %v4118
          %v4307 = vunpack.c.h.b16 %v4118
          %v4308 = vunpack.c.l.b16 %v4119
          %v4309 = vunpack.c.h.b16 %v4119
          %v4310 = vunpack.c.l.b16 %v4120
          %v4311 = vunpack.c.h.b16 %v4120
          %v4312 = vunpack.c.l.b16 %v4121
          %v4313 = vunpack.c.h.b16 %v4121
          %v4314 = vunpack.c.l.b16 %v4122
          %v4315 = vunpack.c.h.b16 %v4122
          %v4316 = vunpack.c.l.b16 %v4123
          %v4317 = vunpack.c.h.b16 %v4123
          %v4318 = vunpack.c.l.b16 %v4124
          %v4319 = vunpack.c.h.b16 %v4124
          %v4320 = vunpack.c.l.b16 %v4125
          %v4321 = vunpack.c.h.b16 %v4125
          %v4322 = vunpack.c.l.b16 %v4126
          %v4323 = vunpack.c.h.b16 %v4126
          %v4324 = vunpack.c.l.b16 %v4127
          %v4325 = vunpack.c.h.b16 %v4127
          %v4326 = vunpack.c.l.b16 %v4128
          %v4327 = vunpack.c.h.b16 %v4128
          %v4328 = vunpack.c.l.b16 %v4129
          %v4329 = vunpack.c.h.b16 %v4129
          %v4330 = vunpack.c.l.b16 %v4130
          %v4331 = vunpack.c.h.b16 %v4130
          %v4332 = vunpack.c.l.b16 %v4131
          %v4333 = vunpack.c.h.b16 %v4131
          %v4334 = vunpack.c.l.b16 %v4132
          %v4335 = vunpack.c.h.b16 %v4132
          %v4336 = vunpack.c.l.b16 %v4133
          %v4337 = vunpack.c.h.b16 %v4133
          %v4338 = vunpack.c.l.b16 %v4134
          %v4339 = vunpack.c.h.b16 %v4134
          %v4340 = vunpack.c.l.b16 %v4135
          %v4341 = vunpack.c.h.b16 %v4135
          %v4342 = vunpack.c.l.b16 %v4136
          %v4343 = vunpack.c.h.b16 %v4136
          %v4344 = vunpack.c.l.b16 %v4137
          %v4345 = vunpack.c.h.b16 %v4137
          %v4346 = vunpack.c.l.b16 %v4138
          %v4347 = vunpack.c.h.b16 %v4138
          %v4348 = vpack.c.b16 %v4224, %v4220
          %v4349 = vpack.c.b16 %v4225, %v4221
          %v4350 = vpack.c.b16 %v4226, %v4222
          %v4351 = vpack.c.b16 %v4227, %v4223
          %v4352 = vpack.c.b16 %v4232, %v4228
          %v4353 = vpack.c.b16 %v4233, %v4229
          %v4354 = vpack.c.b16 %v4234, %v4230
          %v4355 = vpack.c.b16 %v4235, %v4231
          %v4356 = vpack.c.b16 %v4240, %v4236
          %v4357 = vpack.c.b16 %v4241, %v4237
          %v4358 = vpack.c.b16 %v4242, %v4238
          %v4359 = vpack.c.b16 %v4243, %v4239
          %v4360 = vpack.c.b16 %v4248, %v4244
          %v4361 = vpack.c.b16 %v4249, %v4245
          %v4362 = vpack.c.b16 %v4250, %v4246
          %v4363 = vpack.c.b16 %v4251, %v4247
          %v4364 = vpack.c.b16 %v4256, %v4252
          %v4365 = vpack.c.b16 %v4257, %v4253
          %v4366 = vpack.c.b16 %v4258, %v4254
          %v4367 = vpack.c.b16 %v4259, %v4255
          %v4368 = vpack.c.b16 %v4264, %v4260
          %v4369 = vpack.c.b16 %v4265, %v4261
          %v4370 = vpack.c.b16 %v4266, %v4262
          %v4371 = vpack.c.b16 %v4267, %v4263
          %v4372 = vpack.c.b16 %v4272, %v4268
          %v4373 = vpack.c.b16 %v4273, %v4269
          %v4374 = vpack.c.b16 %v4274, %v4270
          %v4375 = vpack.c.b16 %v4275, %v4271
          %v4376 = vpack.c.b16 %v4280, %v4276
          %v4377 = vpack.c.b16 %v4281, %v4277
          %v4378 = vpack.c.b16 %v4282, %v4278
          %v4379 = vpack.c.b16 %v4283, %v4279
          %v4380 = vpack.c.b16 %v4288, %v4284
          %v4381 = vpack.c.b16 %v4289, %v4285
          %v4382 = vpack.c.b16 %v4290, %v4286
          %v4383 = vpack.c.b16 %v4291, %v4287
          %v4384 = vpack.c.b16 %v4296, %v4292
          %v4385 = vpack.c.b16 %v4297, %v4293
          %v4386 = vpack.c.b16 %v4298, %v4294
          %v4387 = vpack.c.b16 %v4299, %v4295
          %v4388 = vpack.c.b16 %v4304, %v4300
          %v4389 = vpack.c.b16 %v4305, %v4301
          %v4390 = vpack.c.b16 %v4306, %v4302
          %v4391 = vpack.c.b16 %v4307, %v4303
          %v4392 = vpack.c.b16 %v4312, %v4308
          %v4393 = vpack.c.b16 %v4313, %v4309
          %v4394 = vpack.c.b16 %v4314, %v4310
          %v4395 = vpack.c.b16 %v4315, %v4311
          %v4396 = vpack.c.b16 %v4320, %v4316
          %v4397 = vpack.c.b16 %v4321, %v4317
          %v4398 = vpack.c.b16 %v4322, %v4318
          %v4399 = vpack.c.b16 %v4323, %v4319
          %v4400 = vpack.c.b16 %v4328, %v4324
          %v4401 = vpack.c.b16 %v4329, %v4325
          %v4402 = vpack.c.b16 %v4330, %v4326
          %v4403 = vpack.c.b16 %v4331, %v4327
          %v4404 = vpack.c.b16 %v4336, %v4332
          %v4405 = vpack.c.b16 %v4337, %v4333
          %v4406 = vpack.c.b16 %v4338, %v4334
          %v4407 = vpack.c.b16 %v4339, %v4335
          %v4408 = vpack.c.b16 %v4344, %v4340
          %v4409 = vpack.c.b16 %v4345, %v4341
          %v4410 = vpack.c.b16 %v4346, %v4342
          %v4411 = vpack.c.b16 %v4347, %v4343
          %4476 = vmatprep.subr.bf16.mxu0 %v4349
          %4477 = vmatpush1.bf16.msra.mxu0 %v4348
          %4478 = vmatprep.subr.bf16.mxu0 %v4353
          %4479 = vmatpush1.bf16.msra.mxu0 %v4352
          %4480 = vmatprep.subr.bf16.mxu0 %v4357
          %4481 = vmatpush1.bf16.msra.mxu0 %v4356
          %4482 = vmatprep.subr.bf16.mxu0 %v4361
          %4483 = vmatpush1.bf16.msra.mxu0 %v4360
          %4484 = vmatprep.subr.bf16.mxu0 %v4365
          %4485 = vmatpush1.bf16.msra.mxu0 %v4364
          %4486 = vmatprep.subr.bf16.mxu0 %v4369
          %4487 = vmatpush1.bf16.msra.mxu0 %v4368
          %4488 = vmatprep.subr.bf16.mxu0 %v4373
          %4489 = vmatpush1.bf16.msra.mxu0 %v4372
          %4490 = vmatprep.subr.bf16.mxu0 %v4377
          %4491 = vmatpush1.bf16.msra.mxu0 %v4376
          %4492 = vmatprep.subr.bf16.mxu0 %v4381
          %4493 = vmatpush1.bf16.msra.mxu0 %v4380
          %4494 = vmatprep.subr.bf16.mxu0 %v4385
          %4495 = vmatpush1.bf16.msra.mxu0 %v4384
          %4496 = vmatprep.subr.bf16.mxu0 %v4389
          %4497 = vmatpush1.bf16.msra.mxu0 %v4388
          %4498 = vmatprep.subr.bf16.mxu0 %v4393
          %4499 = vmatpush1.bf16.msra.mxu0 %v4392
          %4500 = vmatprep.subr.bf16.mxu0 %v4397
          %4501 = vmatpush1.bf16.msra.mxu0 %v4396
          %4502 = vmatprep.subr.bf16.mxu0 %v4401
          %4503 = vmatpush1.bf16.msra.mxu0 %v4400
          %4504 = vmatprep.subr.bf16.mxu0 %v4405
          %4505 = vmatpush1.bf16.msra.mxu0 %v4404
          %4506 = vmatprep.subr.bf16.mxu0 %v4409
          %4507 = vmatpush1.bf16.msra.mxu0 %v4408
          %4508 = vmatprep.mubr.bf16.mxu0 %v4153
          %4509 = vmatmul.mubr.bf16.gmra.mrb[0].mxu0 %v4152
          %v4510 = vpop.f32.mrb[0].mxu0
          %v4511 = vadd.f32 0.0, %v4510
          %v4512 = vpop.f32.mrb[0].mxu0
          %v4513 = vadd.f32 0.0, %v4512
          %v4514 = vpop.f32.mrb[0].mxu0
          %v4515 = vpop.f32.mrb[0].mxu0
          %4516 = vdwg.mxu0
          %4517 = vmatprep.subr.bf16.mxu0 %v4351
          %4518 = vmatpush1.bf16.msra.mxu0 %v4350
          %4519 = vmatprep.subr.bf16.mxu0 %v4355
          %4520 = vmatpush1.bf16.msra.mxu0 %v4354
          %4521 = vmatprep.subr.bf16.mxu0 %v4359
          %4522 = vmatpush1.bf16.msra.mxu0 %v4358
          %4523 = vmatprep.subr.bf16.mxu0 %v4363
          %4524 = vmatpush1.bf16.msra.mxu0 %v4362
          %4525 = vmatprep.subr.bf16.mxu0 %v4367
          %4526 = vmatpush1.bf16.msra.mxu0 %v4366
          %4527 = vmatprep.subr.bf16.mxu0 %v4371
          %4528 = vmatpush1.bf16.msra.mxu0 %v4370
          %4529 = vmatprep.subr.bf16.mxu0 %v4375
          %4530 = vmatpush1.bf16.msra.mxu0 %v4374
          %4531 = vmatprep.subr.bf16.mxu0 %v4379
          %4532 = vmatpush1.bf16.msra.mxu0 %v4378
          %4533 = vmatprep.subr.bf16.mxu0 %v4383
          %4534 = vmatpush1.bf16.msra.mxu0 %v4382
          %4535 = vmatprep.subr.bf16.mxu0 %v4387
          %4536 = vmatpush1.bf16.msra.mxu0 %v4386
          %4537 = vmatprep.subr.bf16.mxu0 %v4391
          %4538 = vmatpush1.bf16.msra.mxu0 %v4390
          %4539 = vmatprep.subr.bf16.mxu0 %v4395
          %4540 = vmatpush1.bf16.msra.mxu0 %v4394
          %4541 = vmatprep.subr.bf16.mxu0 %v4399
          %4542 = vmatpush1.bf16.msra.mxu0 %v4398
          %4543 = vmatprep.subr.bf16.mxu0 %v4403
          %4544 = vmatpush1.bf16.msra.mxu0 %v4402
          %4545 = vmatprep.subr.bf16.mxu0 %v4407
          %4546 = vmatpush1.bf16.msra.mxu0 %v4406
          %4547 = vmatprep.subr.bf16.mxu0 %v4411
          %4548 = vmatpush1.bf16.msra.mxu0 %v4410
          %4549 = vmatprep.mubr.bf16.mxu0 %v4153
          %4550 = vmatmul.mubr.bf16.gmra.mrb[0].mxu0 %v4152
          %v4551 = vpop.f32.mrb[0].mxu0
          %v4552 = vadd.f32 0.0, %v4551
          %v4553 = vpop.f32.mrb[0].mxu0
          %v4554 = vadd.f32 0.0, %v4553
          %v4555 = vpop.f32.mrb[0].mxu0
          %v4556 = vpop.f32.mrb[0].mxu0
          %4557 = vdwg.mxu0
          %v4562 = vcombine.low %v4511, %v4513
          %v4563 = vcombine.low %v4552, %v4554
          %v4565 = vunpack.c.l.s4 1966171168
          %v4566 = vunpack.c.0.s8 %v4565
          %v4567 = vlaneseq
          %v4568 = vshrl.u32 %v4567, 7
          %v4569 = vsub.s32 %v4566, %v4568
          %v4570 = vrot.slane %v4562, %v4569
          %v4572 = vunpack.c.l.s4 1966171168
          %v4573 = vunpack.c.0.s8 %v4572
          %v4574 = vlaneseq
          %v4575 = vshrl.u32 %v4574, 7
          %v4576 = vsub.s32 %v4573, %v4575
          %v4577 = vrot.slane %v4563, %v4576
          %v4578 = vcombine.low %v4570, %v4577
          %v4579 = vcombine.high %v4570, %v4577
          %v4581 = vunpack.c.l.s4 1966171168
          %v4582 = vunpack.c.0.s8 %v4581
          %v4583 = vlaneseq
          %v4584 = vshrl.u32 %v4583, 7
          %v4585 = vsub.s32 %v4582, %v4584
          %v4586 = vrot.slane %v4578, %v4585
          %v4588 = vunpack.c.l.s4 1966171168
          %v4589 = vunpack.c.0.s8 %v4588
          %v4590 = vlaneseq
          %v4591 = vshrl.u32 %v4590, 7
          %v4592 = vsub.s32 %v4589, %v4591
          %v4593 = vrot.slane %v4579, %v4592
          %v4594 = vlaneseq
          %v4595 = vshrl.u32 %v4594, 7
          %v4596 = vsub.s32 0, %v4595
          %v4597 = vrot.slane %v4586, %v4596
          %v4598 = vlaneseq
          %v4599 = vshrl.u32 %v4598, 7
          %v4600 = vsub.s32 1, %v4599
          %v4601 = vrot.slane %v4586, %v4600
          %v4602 = vlaneseq
          %v4603 = vshrl.u32 %v4602, 7
          %v4604 = vsub.s32 2, %v4603
          %v4605 = vrot.slane %v4586, %v4604
          %v4606 = vlaneseq
          %v4607 = vshrl.u32 %v4606, 7
          %v4608 = vsub.s32 3, %v4607
          %v4609 = vrot.slane %v4586, %v4608
          %v4610 = vlaneseq
          %v4611 = vshrl.u32 %v4610, 7
          %v4612 = vsub.s32 0, %v4611
          %v4613 = vrot.slane %v4593, %v4612
          %v4614 = vlaneseq
          %v4615 = vshrl.u32 %v4614, 7
          %v4616 = vsub.s32 1, %v4615
          %v4617 = vrot.slane %v4593, %v4616
          %v4618 = vlaneseq
          %v4619 = vshrl.u32 %v4618, 7
          %v4620 = vsub.s32 2, %v4619
          %v4621 = vrot.slane %v4593, %v4620
          %v4622 = vlaneseq
          %v4623 = vshrl.u32 %v4622, 7
          %v4624 = vsub.s32 3, %v4623
          %v4625 = vrot.slane %v4593, %v4624
          %v4634 = vadd.f32 %v3404, %v4597
          %v4635 = vadd.f32 %v3406, %v4601
          %v4636 = vadd.f32 %v3757, %v4605
          %v4637 = vadd.f32 %v3759, %v4609
          %v4638 = vadd.f32 %v3408, %v4597
          %v4639 = vadd.f32 %v3410, %v4601
          %v4640 = vadd.f32 %v3761, %v4605
          %v4641 = vadd.f32 %v3763, %v4609
          %v4642 = vadd.f32 %v3414, %v4597
          %v4643 = vadd.f32 %v3416, %v4601
          %v4644 = vadd.f32 %v3767, %v4605
          %v4645 = vadd.f32 %v3769, %v4609
          %v4646 = vadd.f32 %v3418, %v4597
          %v4647 = vadd.f32 %v3420, %v4601
          %v4648 = vadd.f32 %v3771, %v4605
          %v4649 = vadd.f32 %v3773, %v4609
          %v4650 = vadd.f32 %v3424, %v4597
          %v4651 = vadd.f32 %v3426, %v4601
          %v4652 = vadd.f32 %v3777, %v4605
          %v4653 = vadd.f32 %v3779, %v4609
          %v4654 = vadd.f32 %v3428, %v4597
          %v4655 = vadd.f32 %v3430, %v4601
          %v4656 = vadd.f32 %v3781, %v4605
          %v4657 = vadd.f32 %v3783, %v4609
          %v4658 = vadd.f32 %v3434, %v4597
          %v4659 = vadd.f32 %v3436, %v4601
          %v4660 = vadd.f32 %v3787, %v4605
          %v4661 = vadd.f32 %v3789, %v4609
          %v4662 = vadd.f32 %v3438, %v4597
          %v4663 = vadd.f32 %v3440, %v4601
          %v4664 = vadd.f32 %v3791, %v4605
          %v4665 = vadd.f32 %v3793, %v4609
          %v4666 = vadd.f32 %v3444, %v4597
          %v4667 = vadd.f32 %v3446, %v4601
          %v4668 = vadd.f32 %v3797, %v4605
          %v4669 = vadd.f32 %v3799, %v4609
          %v4670 = vadd.f32 %v3448, %v4597
          %v4671 = vadd.f32 %v3450, %v4601
          %v4672 = vadd.f32 %v3801, %v4605
          %v4673 = vadd.f32 %v3803, %v4609
          %v4674 = vadd.f32 %v3454, %v4597
          %v4675 = vadd.f32 %v3456, %v4601
          %v4676 = vadd.f32 %v3807, %v4605
          %v4677 = vadd.f32 %v3809, %v4609
          %v4678 = vadd.f32 %v3458, %v4597
          %v4679 = vadd.f32 %v3460, %v4601
          %v4680 = vadd.f32 %v3811, %v4605
          %v4681 = vadd.f32 %v3813, %v4609
          %v4682 = vadd.f32 %v3464, %v4597
          %v4683 = vadd.f32 %v3466, %v4601
          %v4684 = vadd.f32 %v3817, %v4605
          %v4685 = vadd.f32 %v3819, %v4609
          %v4686 = vadd.f32 %v3468, %v4597
          %v4687 = vadd.f32 %v3470, %v4601
          %v4688 = vadd.f32 %v3821, %v4605
          %v4689 = vadd.f32 %v3823, %v4609
          %v4690 = vadd.f32 %v3474, %v4597
          %v4691 = vadd.f32 %v3476, %v4601
          %v4692 = vadd.f32 %v3827, %v4605
          %v4693 = vadd.f32 %v3829, %v4609
          %v4694 = vadd.f32 %v3478, %v4597
          %v4695 = vadd.f32 %v3480, %v4601
          %v4696 = vadd.f32 %v3831, %v4605
          %v4697 = vadd.f32 %v3833, %v4609
          %v4698 = vadd.f32 %v3484, %v4597
          %v4699 = vadd.f32 %v3486, %v4601
          %v4700 = vadd.f32 %v3837, %v4605
          %v4701 = vadd.f32 %v3839, %v4609
          %v4702 = vadd.f32 %v3488, %v4597
          %v4703 = vadd.f32 %v3490, %v4601
          %v4704 = vadd.f32 %v3841, %v4605
          %v4705 = vadd.f32 %v3843, %v4609
          %v4706 = vadd.f32 %v3494, %v4597
          %v4707 = vadd.f32 %v3496, %v4601
          %v4708 = vadd.f32 %v3847, %v4605
          %v4709 = vadd.f32 %v3849, %v4609
          %v4710 = vadd.f32 %v3498, %v4597
          %v4711 = vadd.f32 %v3500, %v4601
          %v4712 = vadd.f32 %v3851, %v4605
          %v4713 = vadd.f32 %v3853, %v4609
          %v4714 = vadd.f32 %v3504, %v4597
          %v4715 = vadd.f32 %v3506, %v4601
          %v4716 = vadd.f32 %v3857, %v4605
          %v4717 = vadd.f32 %v3859, %v4609
          %v4718 = vadd.f32 %v3508, %v4597
          %v4719 = vadd.f32 %v3510, %v4601
          %v4720 = vadd.f32 %v3861, %v4605
          %v4721 = vadd.f32 %v3863, %v4609
          %v4722 = vadd.f32 %v3514, %v4597
          %v4723 = vadd.f32 %v3516, %v4601
          %v4724 = vadd.f32 %v3867, %v4605
          %v4725 = vadd.f32 %v3869, %v4609
          %v4726 = vadd.f32 %v3518, %v4597
          %v4727 = vadd.f32 %v3520, %v4601
          %v4728 = vadd.f32 %v3871, %v4605
          %v4729 = vadd.f32 %v3873, %v4609
          %v4730 = vadd.f32 %v3524, %v4597
          %v4731 = vadd.f32 %v3526, %v4601
          %v4732 = vadd.f32 %v3877, %v4605
          %v4733 = vadd.f32 %v3879, %v4609
          %v4734 = vadd.f32 %v3528, %v4597
          %v4735 = vadd.f32 %v3530, %v4601
          %v4736 = vadd.f32 %v3881, %v4605
          %v4737 = vadd.f32 %v3883, %v4609
          %v4738 = vadd.f32 %v3534, %v4597
          %v4739 = vadd.f32 %v3536, %v4601
          %v4740 = vadd.f32 %v3887, %v4605
          %v4741 = vadd.f32 %v3889, %v4609
          %v4742 = vadd.f32 %v3538, %v4597
          %v4743 = vadd.f32 %v3540, %v4601
          %v4744 = vadd.f32 %v3891, %v4605
          %v4745 = vadd.f32 %v3893, %v4609
          %v4746 = vadd.f32 %v3544, %v4597
          %v4747 = vadd.f32 %v3546, %v4601
          %v4748 = vadd.f32 %v3897, %v4605
          %v4749 = vadd.f32 %v3899, %v4609
          %v4750 = vadd.f32 %v3548, %v4597
          %v4751 = vadd.f32 %v3550, %v4601
          %v4752 = vadd.f32 %v3901, %v4605
          %v4753 = vadd.f32 %v3903, %v4609
          %v4754 = vadd.f32 %v3554, %v4597
          %v4755 = vadd.f32 %v3556, %v4601
          %v4756 = vadd.f32 %v3907, %v4605
          %v4757 = vadd.f32 %v3909, %v4609
          %v4758 = vadd.f32 %v3558, %v4597
          %v4759 = vadd.f32 %v3560, %v4601
          %v4760 = vadd.f32 %v3911, %v4605
          %v4761 = vadd.f32 %v3913, %v4609
          %v4762 = vadd.f32 %v3564, %v4613
          %v4763 = vadd.f32 %v3566, %v4617
          %v4764 = vadd.f32 %v3917, %v4621
          %v4765 = vadd.f32 %v3919, %v4625
          %v4766 = vadd.f32 %v3568, %v4613
          %v4767 = vadd.f32 %v3570, %v4617
          %v4768 = vadd.f32 %v3921, %v4621
          %v4769 = vadd.f32 %v3923, %v4625
          %v4770 = vadd.f32 %v3574, %v4613
          %v4771 = vadd.f32 %v3576, %v4617
          %v4772 = vadd.f32 %v3927, %v4621
          %v4773 = vadd.f32 %v3929, %v4625
          %v4774 = vadd.f32 %v3578, %v4613
          %v4775 = vadd.f32 %v3580, %v4617
          %v4776 = vadd.f32 %v3931, %v4621
          %v4777 = vadd.f32 %v3933, %v4625
          %v4778 = vadd.f32 %v3584, %v4613
          %v4779 = vadd.f32 %v3586, %v4617
          %v4780 = vadd.f32 %v3937, %v4621
          %v4781 = vadd.f32 %v3939, %v4625
          %v4782 = vadd.f32 %v3588, %v4613
          %v4783 = vadd.f32 %v3590, %v4617
          %v4784 = vadd.f32 %v3941, %v4621
          %v4785 = vadd.f32 %v3943, %v4625
          %v4786 = vadd.f32 %v3594, %v4613
          %v4787 = vadd.f32 %v3596, %v4617
          %v4788 = vadd.f32 %v3947, %v4621
          %v4789 = vadd.f32 %v3949, %v4625
          %v4790 = vadd.f32 %v3598, %v4613
          %v4791 = vadd.f32 %v3600, %v4617
          %v4792 = vadd.f32 %v3951, %v4621
          %v4793 = vadd.f32 %v3953, %v4625
          %v4794 = vadd.f32 %v3604, %v4613
          %v4795 = vadd.f32 %v3606, %v4617
          %v4796 = vadd.f32 %v3957, %v4621
          %v4797 = vadd.f32 %v3959, %v4625
          %v4798 = vadd.f32 %v3608, %v4613
          %v4799 = vadd.f32 %v3610, %v4617
          %v4800 = vadd.f32 %v3961, %v4621
          %v4801 = vadd.f32 %v3963, %v4625
          %v4802 = vadd.f32 %v3614, %v4613
          %v4803 = vadd.f32 %v3616, %v4617
          %v4804 = vadd.f32 %v3967, %v4621
          %v4805 = vadd.f32 %v3969, %v4625
          %v4806 = vadd.f32 %v3618, %v4613
          %v4807 = vadd.f32 %v3620, %v4617
          %v4808 = vadd.f32 %v3971, %v4621
          %v4809 = vadd.f32 %v3973, %v4625
          %v4810 = vadd.f32 %v3624, %v4613
          %v4811 = vadd.f32 %v3626, %v4617
          %v4812 = vadd.f32 %v3977, %v4621
          %v4813 = vadd.f32 %v3979, %v4625
          %v4814 = vadd.f32 %v3628, %v4613
          %v4815 = vadd.f32 %v3630, %v4617
          %v4816 = vadd.f32 %v3981, %v4621
          %v4817 = vadd.f32 %v3983, %v4625
          %v4818 = vadd.f32 %v3634, %v4613
          %v4819 = vadd.f32 %v3636, %v4617
          %v4820 = vadd.f32 %v3987, %v4621
          %v4821 = vadd.f32 %v3989, %v4625
          %v4822 = vadd.f32 %v3638, %v4613
          %v4823 = vadd.f32 %v3640, %v4617
          %v4824 = vadd.f32 %v3991, %v4621
          %v4825 = vadd.f32 %v3993, %v4625
          %v4826 = vadd.f32 %v3644, %v4613
          %v4827 = vadd.f32 %v3646, %v4617
          %v4828 = vadd.f32 %v3997, %v4621
          %v4829 = vadd.f32 %v3999, %v4625
          %v4830 = vadd.f32 %v3648, %v4613
          %v4831 = vadd.f32 %v3650, %v4617
          %v4832 = vadd.f32 %v4001, %v4621
          %v4833 = vadd.f32 %v4003, %v4625
          %v4834 = vadd.f32 %v3654, %v4613
          %v4835 = vadd.f32 %v3656, %v4617
          %v4836 = vadd.f32 %v4007, %v4621
          %v4837 = vadd.f32 %v4009, %v4625
          %v4838 = vadd.f32 %v3658, %v4613
          %v4839 = vadd.f32 %v3660, %v4617
          %v4840 = vadd.f32 %v4011, %v4621
          %v4841 = vadd.f32 %v4013, %v4625
          %v4842 = vadd.f32 %v3664, %v4613
          %v4843 = vadd.f32 %v3666, %v4617
          %v4844 = vadd.f32 %v4017, %v4621
          %v4845 = vadd.f32 %v4019, %v4625
          %v4846 = vadd.f32 %v3668, %v4613
          %v4847 = vadd.f32 %v3670, %v4617
          %v4848 = vadd.f32 %v4021, %v4621
          %v4849 = vadd.f32 %v4023, %v4625
          %v4850 = vadd.f32 %v3674, %v4613
          %v4851 = vadd.f32 %v3676, %v4617
          %v4852 = vadd.f32 %v4027, %v4621
          %v4853 = vadd.f32 %v4029, %v4625
          %v4854 = vadd.f32 %v3678, %v4613
          %v4855 = vadd.f32 %v3680, %v4617
          %v4856 = vadd.f32 %v4031, %v4621
          %v4857 = vadd.f32 %v4033, %v4625
          %v4858 = vadd.f32 %v3684, %v4613
          %v4859 = vadd.f32 %v3686, %v4617
          %v4860 = vadd.f32 %v4037, %v4621
          %v4861 = vadd.f32 %v4039, %v4625
          %v4862 = vadd.f32 %v3688, %v4613
          %v4863 = vadd.f32 %v3690, %v4617
          %v4864 = vadd.f32 %v4041, %v4621
          %v4865 = vadd.f32 %v4043, %v4625
          %v4866 = vadd.f32 %v3694, %v4613
          %v4867 = vadd.f32 %v3696, %v4617
          %v4868 = vadd.f32 %v4047, %v4621
          %v4869 = vadd.f32 %v4049, %v4625
          %v4870 = vadd.f32 %v3698, %v4613
          %v4871 = vadd.f32 %v3700, %v4617
          %v4872 = vadd.f32 %v4051, %v4621
          %v4873 = vadd.f32 %v4053, %v4625
          %v4874 = vadd.f32 %v3704, %v4613
          %v4875 = vadd.f32 %v3706, %v4617
          %v4876 = vadd.f32 %v4057, %v4621
          %v4877 = vadd.f32 %v4059, %v4625
          %v4878 = vadd.f32 %v3708, %v4613
          %v4879 = vadd.f32 %v3710, %v4617
          %v4880 = vadd.f32 %v4061, %v4621
          %v4881 = vadd.f32 %v4063, %v4625
          %v4882 = vadd.f32 %v3714, %v4613
          %v4883 = vadd.f32 %v3716, %v4617
          %v4884 = vadd.f32 %v4067, %v4621
          %v4885 = vadd.f32 %v4069, %v4625
          %v4886 = vadd.f32 %v3718, %v4613
          %v4887 = vadd.f32 %v3720, %v4617
          %v4888 = vadd.f32 %v4071, %v4621
          %v4889 = vadd.f32 %v4073, %v4625
          %v4890 = vld [vmem:[%s7] sm:$0xf]
          %v4892 = vlaneseq
          %v4893 = vshrl.u32 %v4892, 7
          %v4894 = vsub.s32 0, %v4893
          %v4895 = vrot.slane %v4890, %v4894
          %v4896 = vlaneseq
          %v4897 = vshrl.u32 %v4896, 7
          %v4898 = vsub.s32 1, %v4897
          %v4899 = vrot.slane %v4890, %v4898
          %v4900 = vlaneseq
          %v4901 = vshrl.u32 %v4900, 7
          %v4902 = vsub.s32 2, %v4901
          %v4903 = vrot.slane %v4890, %v4902
          %v4904 = vlaneseq
          %v4905 = vshrl.u32 %v4904, 7
          %v4906 = vsub.s32 3, %v4905
          %v4907 = vrot.slane %v4890, %v4906
          %v4912 = vadd.f32 %v4634, %v4895
          %v4913 = vadd.f32 %v4635, %v4899
          %v4914 = vadd.f32 %v4636, %v4903
          %v4915 = vadd.f32 %v4637, %v4907
          %v4916 = vadd.f32 %v4638, %v4895
          %v4917 = vadd.f32 %v4639, %v4899
          %v4918 = vadd.f32 %v4640, %v4903
          %v4919 = vadd.f32 %v4641, %v4907
          %v4920 = vadd.f32 %v4642, %v4895
          %v4921 = vadd.f32 %v4643, %v4899
          %v4922 = vadd.f32 %v4644, %v4903
          %v4923 = vadd.f32 %v4645, %v4907
          %v4924 = vadd.f32 %v4646, %v4895
          %v4925 = vadd.f32 %v4647, %v4899
          %v4926 = vadd.f32 %v4648, %v4903
          %v4927 = vadd.f32 %v4649, %v4907
          %v4928 = vadd.f32 %v4650, %v4895
          %v4929 = vadd.f32 %v4651, %v4899
          %v4930 = vadd.f32 %v4652, %v4903
          %v4931 = vadd.f32 %v4653, %v4907
          %v4932 = vadd.f32 %v4654, %v4895
          %v4933 = vadd.f32 %v4655, %v4899
          %v4934 = vadd.f32 %v4656, %v4903
          %v4935 = vadd.f32 %v4657, %v4907
          %v4936 = vadd.f32 %v4658, %v4895
          %v4937 = vadd.f32 %v4659, %v4899
          %v4938 = vadd.f32 %v4660, %v4903
          %v4939 = vadd.f32 %v4661, %v4907
          %v4940 = vadd.f32 %v4662, %v4895
          %v4941 = vadd.f32 %v4663, %v4899
          %v4942 = vadd.f32 %v4664, %v4903
          %v4943 = vadd.f32 %v4665, %v4907
          %v4944 = vadd.f32 %v4666, %v4895
          %v4945 = vadd.f32 %v4667, %v4899
          %v4946 = vadd.f32 %v4668, %v4903
          %v4947 = vadd.f32 %v4669, %v4907
          %v4948 = vadd.f32 %v4670, %v4895
          %v4949 = vadd.f32 %v4671, %v4899
          %v4950 = vadd.f32 %v4672, %v4903
          %v4951 = vadd.f32 %v4673, %v4907
          %v4952 = vadd.f32 %v4674, %v4895
          %v4953 = vadd.f32 %v4675, %v4899
          %v4954 = vadd.f32 %v4676, %v4903
          %v4955 = vadd.f32 %v4677, %v4907
          %v4956 = vadd.f32 %v4678, %v4895
          %v4957 = vadd.f32 %v4679, %v4899
          %v4958 = vadd.f32 %v4680, %v4903
          %v4959 = vadd.f32 %v4681, %v4907
          %v4960 = vadd.f32 %v4682, %v4895
          %v4961 = vadd.f32 %v4683, %v4899
          %v4962 = vadd.f32 %v4684, %v4903
          %v4963 = vadd.f32 %v4685, %v4907
          %v4964 = vadd.f32 %v4686, %v4895
          %v4965 = vadd.f32 %v4687, %v4899
          %v4966 = vadd.f32 %v4688, %v4903
          %v4967 = vadd.f32 %v4689, %v4907
          %v4968 = vadd.f32 %v4690, %v4895
          %v4969 = vadd.f32 %v4691, %v4899
          %v4970 = vadd.f32 %v4692, %v4903
          %v4971 = vadd.f32 %v4693, %v4907
          %v4972 = vadd.f32 %v4694, %v4895
          %v4973 = vadd.f32 %v4695, %v4899
          %v4974 = vadd.f32 %v4696, %v4903
          %v4975 = vadd.f32 %v4697, %v4907
          %v4976 = vadd.f32 %v4698, %v4895
          %v4977 = vadd.f32 %v4699, %v4899
          %v4978 = vadd.f32 %v4700, %v4903
          %v4979 = vadd.f32 %v4701, %v4907
          %v4980 = vadd.f32 %v4702, %v4895
          %v4981 = vadd.f32 %v4703, %v4899
          %v4982 = vadd.f32 %v4704, %v4903
          %v4983 = vadd.f32 %v4705, %v4907
          %v4984 = vadd.f32 %v4706, %v4895
          %v4985 = vadd.f32 %v4707, %v4899
          %v4986 = vadd.f32 %v4708, %v4903
          %v4987 = vadd.f32 %v4709, %v4907
          %v4988 = vadd.f32 %v4710, %v4895
          %v4989 = vadd.f32 %v4711, %v4899
          %v4990 = vadd.f32 %v4712, %v4903
          %v4991 = vadd.f32 %v4713, %v4907
          %v4992 = vadd.f32 %v4714, %v4895
          %v4993 = vadd.f32 %v4715, %v4899
          %v4994 = vadd.f32 %v4716, %v4903
          %v4995 = vadd.f32 %v4717, %v4907
          %v4996 = vadd.f32 %v4718, %v4895
          %v4997 = vadd.f32 %v4719, %v4899
          %v4998 = vadd.f32 %v4720, %v4903
          %v4999 = vadd.f32 %v4721, %v4907
          %v5000 = vadd.f32 %v4722, %v4895
          %v5001 = vadd.f32 %v4723, %v4899
          %v5002 = vadd.f32 %v4724, %v4903
          %v5003 = vadd.f32 %v4725, %v4907
          %v5004 = vadd.f32 %v4726, %v4895
          %v5005 = vadd.f32 %v4727, %v4899
          %v5006 = vadd.f32 %v4728, %v4903
          %v5007 = vadd.f32 %v4729, %v4907
          %v5008 = vadd.f32 %v4730, %v4895
          %v5009 = vadd.f32 %v4731, %v4899
          %v5010 = vadd.f32 %v4732, %v4903
          %v5011 = vadd.f32 %v4733, %v4907
          %v5012 = vadd.f32 %v4734, %v4895
          %v5013 = vadd.f32 %v4735, %v4899
          %v5014 = vadd.f32 %v4736, %v4903
          %v5015 = vadd.f32 %v4737, %v4907
          %v5016 = vadd.f32 %v4738, %v4895
          %v5017 = vadd.f32 %v4739, %v4899
          %v5018 = vadd.f32 %v4740, %v4903
          %v5019 = vadd.f32 %v4741, %v4907
          %v5020 = vadd.f32 %v4742, %v4895
          %v5021 = vadd.f32 %v4743, %v4899
          %v5022 = vadd.f32 %v4744, %v4903
          %v5023 = vadd.f32 %v4745, %v4907
          %v5024 = vadd.f32 %v4746, %v4895
          %v5025 = vadd.f32 %v4747, %v4899
          %v5026 = vadd.f32 %v4748, %v4903
          %v5027 = vadd.f32 %v4749, %v4907
          %v5028 = vadd.f32 %v4750, %v4895
          %v5029 = vadd.f32 %v4751, %v4899
          %v5030 = vadd.f32 %v4752, %v4903
          %v5031 = vadd.f32 %v4753, %v4907
          %v5032 = vadd.f32 %v4754, %v4895
          %v5033 = vadd.f32 %v4755, %v4899
          %v5034 = vadd.f32 %v4756, %v4903
          %v5035 = vadd.f32 %v4757, %v4907
          %v5036 = vadd.f32 %v4758, %v4895
          %v5037 = vadd.f32 %v4759, %v4899
          %v5038 = vadd.f32 %v4760, %v4903
          %v5039 = vadd.f32 %v4761, %v4907
          %v5040 = vadd.f32 %v4762, %v4895
          %v5041 = vadd.f32 %v4763, %v4899
          %v5042 = vadd.f32 %v4764, %v4903
          %v5043 = vadd.f32 %v4765, %v4907
          %v5044 = vadd.f32 %v4766, %v4895
          %v5045 = vadd.f32 %v4767, %v4899
          %v5046 = vadd.f32 %v4768, %v4903
          %v5047 = vadd.f32 %v4769, %v4907
          %v5048 = vadd.f32 %v4770, %v4895
          %v5049 = vadd.f32 %v4771, %v4899
          %v5050 = vadd.f32 %v4772, %v4903
          %v5051 = vadd.f32 %v4773, %v4907
          %v5052 = vadd.f32 %v4774, %v4895
          %v5053 = vadd.f32 %v4775, %v4899
          %v5054 = vadd.f32 %v4776, %v4903
          %v5055 = vadd.f32 %v4777, %v4907
          %v5056 = vadd.f32 %v4778, %v4895
          %v5057 = vadd.f32 %v4779, %v4899
          %v5058 = vadd.f32 %v4780, %v4903
          %v5059 = vadd.f32 %v4781, %v4907
          %v5060 = vadd.f32 %v4782, %v4895
          %v5061 = vadd.f32 %v4783, %v4899
          %v5062 = vadd.f32 %v4784, %v4903
          %v5063 = vadd.f32 %v4785, %v4907
          %v5064 = vadd.f32 %v4786, %v4895
          %v5065 = vadd.f32 %v4787, %v4899
          %v5066 = vadd.f32 %v4788, %v4903
          %v5067 = vadd.f32 %v4789, %v4907
          %v5068 = vadd.f32 %v4790, %v4895
          %v5069 = vadd.f32 %v4791, %v4899
          %v5070 = vadd.f32 %v4792, %v4903
          %v5071 = vadd.f32 %v4793, %v4907
          %v5072 = vadd.f32 %v4794, %v4895
          %v5073 = vadd.f32 %v4795, %v4899
          %v5074 = vadd.f32 %v4796, %v4903
          %v5075 = vadd.f32 %v4797, %v4907
          %v5076 = vadd.f32 %v4798, %v4895
          %v5077 = vadd.f32 %v4799, %v4899
          %v5078 = vadd.f32 %v4800, %v4903
          %v5079 = vadd.f32 %v4801, %v4907
          %v5080 = vadd.f32 %v4802, %v4895
          %v5081 = vadd.f32 %v4803, %v4899
          %v5082 = vadd.f32 %v4804, %v4903
          %v5083 = vadd.f32 %v4805, %v4907
          %v5084 = vadd.f32 %v4806, %v4895
          %v5085 = vadd.f32 %v4807, %v4899
          %v5086 = vadd.f32 %v4808, %v4903
          %v5087 = vadd.f32 %v4809, %v4907
          %v5088 = vadd.f32 %v4810, %v4895
          %v5089 = vadd.f32 %v4811, %v4899
          %v5090 = vadd.f32 %v4812, %v4903
          %v5091 = vadd.f32 %v4813, %v4907
          %v5092 = vadd.f32 %v4814, %v4895
          %v5093 = vadd.f32 %v4815, %v4899
          %v5094 = vadd.f32 %v4816, %v4903
          %v5095 = vadd.f32 %v4817, %v4907
          %v5096 = vadd.f32 %v4818, %v4895
          %v5097 = vadd.f32 %v4819, %v4899
          %v5098 = vadd.f32 %v4820, %v4903
          %v5099 = vadd.f32 %v4821, %v4907
          %v5100 = vadd.f32 %v4822, %v4895
          %v5101 = vadd.f32 %v4823, %v4899
          %v5102 = vadd.f32 %v4824, %v4903
          %v5103 = vadd.f32 %v4825, %v4907
          %v5104 = vadd.f32 %v4826, %v4895
          %v5105 = vadd.f32 %v4827, %v4899
          %v5106 = vadd.f32 %v4828, %v4903
          %v5107 = vadd.f32 %v4829, %v4907
          %v5108 = vadd.f32 %v4830, %v4895
          %v5109 = vadd.f32 %v4831, %v4899
          %v5110 = vadd.f32 %v4832, %v4903
          %v5111 = vadd.f32 %v4833, %v4907
          %v5112 = vadd.f32 %v4834, %v4895
          %v5113 = vadd.f32 %v4835, %v4899
          %v5114 = vadd.f32 %v4836, %v4903
          %v5115 = vadd.f32 %v4837, %v4907
          %v5116 = vadd.f32 %v4838, %v4895
          %v5117 = vadd.f32 %v4839, %v4899
          %v5118 = vadd.f32 %v4840, %v4903
          %v5119 = vadd.f32 %v4841, %v4907
          %v5120 = vadd.f32 %v4842, %v4895
          %v5121 = vadd.f32 %v4843, %v4899
          %v5122 = vadd.f32 %v4844, %v4903
          %v5123 = vadd.f32 %v4845, %v4907
          %v5124 = vadd.f32 %v4846, %v4895
          %v5125 = vadd.f32 %v4847, %v4899
          %v5126 = vadd.f32 %v4848, %v4903
          %v5127 = vadd.f32 %v4849, %v4907
          %v5128 = vadd.f32 %v4850, %v4895
          %v5129 = vadd.f32 %v4851, %v4899
          %v5130 = vadd.f32 %v4852, %v4903
          %v5131 = vadd.f32 %v4853, %v4907
          %v5132 = vadd.f32 %v4854, %v4895
          %v5133 = vadd.f32 %v4855, %v4899
          %v5134 = vadd.f32 %v4856, %v4903
          %v5135 = vadd.f32 %v4857, %v4907
          %v5136 = vadd.f32 %v4858, %v4895
          %v5137 = vadd.f32 %v4859, %v4899
          %v5138 = vadd.f32 %v4860, %v4903
          %v5139 = vadd.f32 %v4861, %v4907
          %v5140 = vadd.f32 %v4862, %v4895
          %v5141 = vadd.f32 %v4863, %v4899
          %v5142 = vadd.f32 %v4864, %v4903
          %v5143 = vadd.f32 %v4865, %v4907
          %v5144 = vadd.f32 %v4866, %v4895
          %v5145 = vadd.f32 %v4867, %v4899
          %v5146 = vadd.f32 %v4868, %v4903
          %v5147 = vadd.f32 %v4869, %v4907
          %v5148 = vadd.f32 %v4870, %v4895
          %v5149 = vadd.f32 %v4871, %v4899
          %v5150 = vadd.f32 %v4872, %v4903
          %v5151 = vadd.f32 %v4873, %v4907
          %v5152 = vadd.f32 %v4874, %v4895
          %v5153 = vadd.f32 %v4875, %v4899
          %v5154 = vadd.f32 %v4876, %v4903
          %v5155 = vadd.f32 %v4877, %v4907
          %v5156 = vadd.f32 %v4878, %v4895
          %v5157 = vadd.f32 %v4879, %v4899
          %v5158 = vadd.f32 %v4880, %v4903
          %v5159 = vadd.f32 %v4881, %v4907
          %v5160 = vadd.f32 %v4882, %v4895
          %v5161 = vadd.f32 %v4883, %v4899
          %v5162 = vadd.f32 %v4884, %v4903
          %v5163 = vadd.f32 %v4885, %v4907
          %v5164 = vadd.f32 %v4886, %v4895
          %v5165 = vadd.f32 %v4887, %v4899
          %v5166 = vadd.f32 %v4888, %v4903
          %v5167 = vadd.f32 %v4889, %v4907
          %v5168 = vmax.f32 %v4912, 0.0
          %v5169 = vmax.f32 %v4913, 0.0
          %v5170 = vmax.f32 %v4914, 0.0
          %v5171 = vmax.f32 %v4915, 0.0
          %v5172 = vmax.f32 %v4916, 0.0
          %v5173 = vmax.f32 %v4917, 0.0
          %v5174 = vmax.f32 %v4918, 0.0
          %v5175 = vmax.f32 %v4919, 0.0
          %v5176 = vmax.f32 %v4920, 0.0
          %v5177 = vmax.f32 %v4921, 0.0
          %v5178 = vmax.f32 %v4922, 0.0
          %v5179 = vmax.f32 %v4923, 0.0
          %v5180 = vmax.f32 %v4924, 0.0
          %v5181 = vmax.f32 %v4925, 0.0
          %v5182 = vmax.f32 %v4926, 0.0
          %v5183 = vmax.f32 %v4927, 0.0
          %v5184 = vmax.f32 %v4928, 0.0
          %v5185 = vmax.f32 %v4929, 0.0
          %v5186 = vmax.f32 %v4930, 0.0
          %v5187 = vmax.f32 %v4931, 0.0
          %v5188 = vmax.f32 %v4932, 0.0
          %v5189 = vmax.f32 %v4933, 0.0
          %v5190 = vmax.f32 %v4934, 0.0
          %v5191 = vmax.f32 %v4935, 0.0
          %v5192 = vmax.f32 %v4936, 0.0
          %v5193 = vmax.f32 %v4937, 0.0
          %v5194 = vmax.f32 %v4938, 0.0
          %v5195 = vmax.f32 %v4939, 0.0
          %v5196 = vmax.f32 %v4940, 0.0
          %v5197 = vmax.f32 %v4941, 0.0
          %v5198 = vmax.f32 %v4942, 0.0
          %v5199 = vmax.f32 %v4943, 0.0
          %v5200 = vmax.f32 %v4944, 0.0
          %v5201 = vmax.f32 %v4945, 0.0
          %v5202 = vmax.f32 %v4946, 0.0
          %v5203 = vmax.f32 %v4947, 0.0
          %v5204 = vmax.f32 %v4948, 0.0
          %v5205 = vmax.f32 %v4949, 0.0
          %v5206 = vmax.f32 %v4950, 0.0
          %v5207 = vmax.f32 %v4951, 0.0
          %v5208 = vmax.f32 %v4952, 0.0
          %v5209 = vmax.f32 %v4953, 0.0
          %v5210 = vmax.f32 %v4954, 0.0
          %v5211 = vmax.f32 %v4955, 0.0
          %v5212 = vmax.f32 %v4956, 0.0
          %v5213 = vmax.f32 %v4957, 0.0
          %v5214 = vmax.f32 %v4958, 0.0
          %v5215 = vmax.f32 %v4959, 0.0
          %v5216 = vmax.f32 %v4960, 0.0
          %v5217 = vmax.f32 %v4961, 0.0
          %v5218 = vmax.f32 %v4962, 0.0
          %v5219 = vmax.f32 %v4963, 0.0
          %v5220 = vmax.f32 %v4964, 0.0
          %v5221 = vmax.f32 %v4965, 0.0
          %v5222 = vmax.f32 %v4966, 0.0
          %v5223 = vmax.f32 %v4967, 0.0
          %v5224 = vmax.f32 %v4968, 0.0
          %v5225 = vmax.f32 %v4969, 0.0
          %v5226 = vmax.f32 %v4970, 0.0
          %v5227 = vmax.f32 %v4971, 0.0
          %v5228 = vmax.f32 %v4972, 0.0
          %v5229 = vmax.f32 %v4973, 0.0
          %v5230 = vmax.f32 %v4974, 0.0
          %v5231 = vmax.f32 %v4975, 0.0
          %v5232 = vmax.f32 %v4976, 0.0
          %v5233 = vmax.f32 %v4977, 0.0
          %v5234 = vmax.f32 %v4978, 0.0
          %v5235 = vmax.f32 %v4979, 0.0
          %v5236 = vmax.f32 %v4980, 0.0
          %v5237 = vmax.f32 %v4981, 0.0
          %v5238 = vmax.f32 %v4982, 0.0
          %v5239 = vmax.f32 %v4983, 0.0
          %v5240 = vmax.f32 %v4984, 0.0
          %v5241 = vmax.f32 %v4985, 0.0
          %v5242 = vmax.f32 %v4986, 0.0
          %v5243 = vmax.f32 %v4987, 0.0
          %v5244 = vmax.f32 %v4988, 0.0
          %v5245 = vmax.f32 %v4989, 0.0
          %v5246 = vmax.f32 %v4990, 0.0
          %v5247 = vmax.f32 %v4991, 0.0
          %v5248 = vmax.f32 %v4992, 0.0
          %v5249 = vmax.f32 %v4993, 0.0
          %v5250 = vmax.f32 %v4994, 0.0
          %v5251 = vmax.f32 %v4995, 0.0
          %v5252 = vmax.f32 %v4996, 0.0
          %v5253 = vmax.f32 %v4997, 0.0
          %v5254 = vmax.f32 %v4998, 0.0
          %v5255 = vmax.f32 %v4999, 0.0
          %v5256 = vmax.f32 %v5000, 0.0
          %v5257 = vmax.f32 %v5001, 0.0
          %v5258 = vmax.f32 %v5002, 0.0
          %v5259 = vmax.f32 %v5003, 0.0
          %v5260 = vmax.f32 %v5004, 0.0
          %v5261 = vmax.f32 %v5005, 0.0
          %v5262 = vmax.f32 %v5006, 0.0
          %v5263 = vmax.f32 %v5007, 0.0
          %v5264 = vmax.f32 %v5008, 0.0
          %v5265 = vmax.f32 %v5009, 0.0
          %v5266 = vmax.f32 %v5010, 0.0
          %v5267 = vmax.f32 %v5011, 0.0
          %v5268 = vmax.f32 %v5012, 0.0
          %v5269 = vmax.f32 %v5013, 0.0
          %v5270 = vmax.f32 %v5014, 0.0
          %v5271 = vmax.f32 %v5015, 0.0
          %v5272 = vmax.f32 %v5016, 0.0
          %v5273 = vmax.f32 %v5017, 0.0
          %v5274 = vmax.f32 %v5018, 0.0
          %v5275 = vmax.f32 %v5019, 0.0
          %v5276 = vmax.f32 %v5020, 0.0
          %v5277 = vmax.f32 %v5021, 0.0
          %v5278 = vmax.f32 %v5022, 0.0
          %v5279 = vmax.f32 %v5023, 0.0
          %v5280 = vmax.f32 %v5024, 0.0
          %v5281 = vmax.f32 %v5025, 0.0
          %v5282 = vmax.f32 %v5026, 0.0
          %v5283 = vmax.f32 %v5027, 0.0
          %v5284 = vmax.f32 %v5028, 0.0
          %v5285 = vmax.f32 %v5029, 0.0
          %v5286 = vmax.f32 %v5030, 0.0
          %v5287 = vmax.f32 %v5031, 0.0
          %v5288 = vmax.f32 %v5032, 0.0
          %v5289 = vmax.f32 %v5033, 0.0
          %v5290 = vmax.f32 %v5034, 0.0
          %v5291 = vmax.f32 %v5035, 0.0
          %v5292 = vmax.f32 %v5036, 0.0
          %v5293 = vmax.f32 %v5037, 0.0
          %v5294 = vmax.f32 %v5038, 0.0
          %v5295 = vmax.f32 %v5039, 0.0
          %v5296 = vmax.f32 %v5040, 0.0
          %v5297 = vmax.f32 %v5041, 0.0
          %v5298 = vmax.f32 %v5042, 0.0
          %v5299 = vmax.f32 %v5043, 0.0
          %v5300 = vmax.f32 %v5044, 0.0
          %v5301 = vmax.f32 %v5045, 0.0
          %v5302 = vmax.f32 %v5046, 0.0
          %v5303 = vmax.f32 %v5047, 0.0
          %v5304 = vmax.f32 %v5048, 0.0
          %v5305 = vmax.f32 %v5049, 0.0
          %v5306 = vmax.f32 %v5050, 0.0
          %v5307 = vmax.f32 %v5051, 0.0
          %v5308 = vmax.f32 %v5052, 0.0
          %v5309 = vmax.f32 %v5053, 0.0
          %v5310 = vmax.f32 %v5054, 0.0
          %v5311 = vmax.f32 %v5055, 0.0
          %v5312 = vmax.f32 %v5056, 0.0
          %v5313 = vmax.f32 %v5057, 0.0
          %v5314 = vmax.f32 %v5058, 0.0
          %v5315 = vmax.f32 %v5059, 0.0
          %v5316 = vmax.f32 %v5060, 0.0
          %v5317 = vmax.f32 %v5061, 0.0
          %v5318 = vmax.f32 %v5062, 0.0
          %v5319 = vmax.f32 %v5063, 0.0
          %v5320 = vmax.f32 %v5064, 0.0
          %v5321 = vmax.f32 %v5065, 0.0
          %v5322 = vmax.f32 %v5066, 0.0
          %v5323 = vmax.f32 %v5067, 0.0
          %v5324 = vmax.f32 %v5068, 0.0
          %v5325 = vmax.f32 %v5069, 0.0
          %v5326 = vmax.f32 %v5070, 0.0
          %v5327 = vmax.f32 %v5071, 0.0
          %v5328 = vmax.f32 %v5072, 0.0
          %v5329 = vmax.f32 %v5073, 0.0
          %v5330 = vmax.f32 %v5074, 0.0
          %v5331 = vmax.f32 %v5075, 0.0
          %v5332 = vmax.f32 %v5076, 0.0
          %v5333 = vmax.f32 %v5077, 0.0
          %v5334 = vmax.f32 %v5078, 0.0
          %v5335 = vmax.f32 %v5079, 0.0
          %v5336 = vmax.f32 %v5080, 0.0
          %v5337 = vmax.f32 %v5081, 0.0
          %v5338 = vmax.f32 %v5082, 0.0
          %v5339 = vmax.f32 %v5083, 0.0
          %v5340 = vmax.f32 %v5084, 0.0
          %v5341 = vmax.f32 %v5085, 0.0
          %v5342 = vmax.f32 %v5086, 0.0
          %v5343 = vmax.f32 %v5087, 0.0
          %v5344 = vmax.f32 %v5088, 0.0
          %v5345 = vmax.f32 %v5089, 0.0
          %v5346 = vmax.f32 %v5090, 0.0
          %v5347 = vmax.f32 %v5091, 0.0
          %v5348 = vmax.f32 %v5092, 0.0
          %v5349 = vmax.f32 %v5093, 0.0
          %v5350 = vmax.f32 %v5094, 0.0
          %v5351 = vmax.f32 %v5095, 0.0
          %v5352 = vmax.f32 %v5096, 0.0
          %v5353 = vmax.f32 %v5097, 0.0
          %v5354 = vmax.f32 %v5098, 0.0
          %v5355 = vmax.f32 %v5099, 0.0
          %v5356 = vmax.f32 %v5100, 0.0
          %v5357 = vmax.f32 %v5101, 0.0
          %v5358 = vmax.f32 %v5102, 0.0
          %v5359 = vmax.f32 %v5103, 0.0
          %v5360 = vmax.f32 %v5104, 0.0
          %v5361 = vmax.f32 %v5105, 0.0
          %v5362 = vmax.f32 %v5106, 0.0
          %v5363 = vmax.f32 %v5107, 0.0
          %v5364 = vmax.f32 %v5108, 0.0
          %v5365 = vmax.f32 %v5109, 0.0
          %v5366 = vmax.f32 %v5110, 0.0
          %v5367 = vmax.f32 %v5111, 0.0
          %v5368 = vmax.f32 %v5112, 0.0
          %v5369 = vmax.f32 %v5113, 0.0
          %v5370 = vmax.f32 %v5114, 0.0
          %v5371 = vmax.f32 %v5115, 0.0
          %v5372 = vmax.f32 %v5116, 0.0
          %v5373 = vmax.f32 %v5117, 0.0
          %v5374 = vmax.f32 %v5118, 0.0
          %v5375 = vmax.f32 %v5119, 0.0
          %v5376 = vmax.f32 %v5120, 0.0
          %v5377 = vmax.f32 %v5121, 0.0
          %v5378 = vmax.f32 %v5122, 0.0
          %v5379 = vmax.f32 %v5123, 0.0
          %v5380 = vmax.f32 %v5124, 0.0
          %v5381 = vmax.f32 %v5125, 0.0
          %v5382 = vmax.f32 %v5126, 0.0
          %v5383 = vmax.f32 %v5127, 0.0
          %v5384 = vmax.f32 %v5128, 0.0
          %v5385 = vmax.f32 %v5129, 0.0
          %v5386 = vmax.f32 %v5130, 0.0
          %v5387 = vmax.f32 %v5131, 0.0
          %v5388 = vmax.f32 %v5132, 0.0
          %v5389 = vmax.f32 %v5133, 0.0
          %v5390 = vmax.f32 %v5134, 0.0
          %v5391 = vmax.f32 %v5135, 0.0
          %v5392 = vmax.f32 %v5136, 0.0
          %v5393 = vmax.f32 %v5137, 0.0
          %v5394 = vmax.f32 %v5138, 0.0
          %v5395 = vmax.f32 %v5139, 0.0
          %v5396 = vmax.f32 %v5140, 0.0
          %v5397 = vmax.f32 %v5141, 0.0
          %v5398 = vmax.f32 %v5142, 0.0
          %v5399 = vmax.f32 %v5143, 0.0
          %v5400 = vmax.f32 %v5144, 0.0
          %v5401 = vmax.f32 %v5145, 0.0
          %v5402 = vmax.f32 %v5146, 0.0
          %v5403 = vmax.f32 %v5147, 0.0
          %v5404 = vmax.f32 %v5148, 0.0
          %v5405 = vmax.f32 %v5149, 0.0
          %v5406 = vmax.f32 %v5150, 0.0
          %v5407 = vmax.f32 %v5151, 0.0
          %v5408 = vmax.f32 %v5152, 0.0
          %v5409 = vmax.f32 %v5153, 0.0
          %v5410 = vmax.f32 %v5154, 0.0
          %v5411 = vmax.f32 %v5155, 0.0
          %v5412 = vmax.f32 %v5156, 0.0
          %v5413 = vmax.f32 %v5157, 0.0
          %v5414 = vmax.f32 %v5158, 0.0
          %v5415 = vmax.f32 %v5159, 0.0
          %v5416 = vmax.f32 %v5160, 0.0
          %v5417 = vmax.f32 %v5161, 0.0
          %v5418 = vmax.f32 %v5162, 0.0
          %v5419 = vmax.f32 %v5163, 0.0
          %v5420 = vmax.f32 %v5164, 0.0
          %v5421 = vmax.f32 %v5165, 0.0
          %v5422 = vmax.f32 %v5166, 0.0
          %v5423 = vmax.f32 %v5167, 0.0
          %v5424 = vpack.c.bf16 %v5172, %v5168
          %v5425 = vpack.c.bf16 %v5173, %v5169
          %v5426 = vpack.c.bf16 %v5174, %v5170
          %v5427 = vpack.c.bf16 %v5175, %v5171
          %v5428 = vpack.c.bf16 %v5180, %v5176
          %v5429 = vpack.c.bf16 %v5181, %v5177
          %v5430 = vpack.c.bf16 %v5182, %v5178
          %v5431 = vpack.c.bf16 %v5183, %v5179
          %v5432 = vpack.c.bf16 %v5188, %v5184
          %v5433 = vpack.c.bf16 %v5189, %v5185
          %v5434 = vpack.c.bf16 %v5190, %v5186
          %v5435 = vpack.c.bf16 %v5191, %v5187
          %v5436 = vpack.c.bf16 %v5196, %v5192
          %v5437 = vpack.c.bf16 %v5197, %v5193
          %v5438 = vpack.c.bf16 %v5198, %v5194
          %v5439 = vpack.c.bf16 %v5199, %v5195
          %v5440 = vpack.c.bf16 %v5204, %v5200
          %v5441 = vpack.c.bf16 %v5205, %v5201
          %v5442 = vpack.c.bf16 %v5206, %v5202
          %v5443 = vpack.c.bf16 %v5207, %v5203
          %v5444 = vpack.c.bf16 %v5212, %v5208
          %v5445 = vpack.c.bf16 %v5213, %v5209
          %v5446 = vpack.c.bf16 %v5214, %v5210
          %v5447 = vpack.c.bf16 %v5215, %v5211
          %v5448 = vpack.c.bf16 %v5220, %v5216
          %v5449 = vpack.c.bf16 %v5221, %v5217
          %v5450 = vpack.c.bf16 %v5222, %v5218
          %v5451 = vpack.c.bf16 %v5223, %v5219
          %v5452 = vpack.c.bf16 %v5228, %v5224
          %v5453 = vpack.c.bf16 %v5229, %v5225
          %v5454 = vpack.c.bf16 %v5230, %v5226
          %v5455 = vpack.c.bf16 %v5231, %v5227
          %v5456 = vpack.c.bf16 %v5236, %v5232
          %v5457 = vpack.c.bf16 %v5237, %v5233
          %v5458 = vpack.c.bf16 %v5238, %v5234
          %v5459 = vpack.c.bf16 %v5239, %v5235
          %v5460 = vpack.c.bf16 %v5244, %v5240
          %v5461 = vpack.c.bf16 %v5245, %v5241
          %v5462 = vpack.c.bf16 %v5246, %v5242
          %v5463 = vpack.c.bf16 %v5247, %v5243
          %v5464 = vpack.c.bf16 %v5252, %v5248
          %v5465 = vpack.c.bf16 %v5253, %v5249
          %v5466 = vpack.c.bf16 %v5254, %v5250
          %v5467 = vpack.c.bf16 %v5255, %v5251
          %v5468 = vpack.c.bf16 %v5260, %v5256
          %v5469 = vpack.c.bf16 %v5261, %v5257
          %v5470 = vpack.c.bf16 %v5262, %v5258
          %v5471 = vpack.c.bf16 %v5263, %v5259
          %v5472 = vpack.c.bf16 %v5268, %v5264
          %v5473 = vpack.c.bf16 %v5269, %v5265
          %v5474 = vpack.c.bf16 %v5270, %v5266
          %v5475 = vpack.c.bf16 %v5271, %v5267
          %v5476 = vpack.c.bf16 %v5276, %v5272
          %v5477 = vpack.c.bf16 %v5277, %v5273
          %v5478 = vpack.c.bf16 %v5278, %v5274
          %v5479 = vpack.c.bf16 %v5279, %v5275
          %v5480 = vpack.c.bf16 %v5284, %v5280
          %v5481 = vpack.c.bf16 %v5285, %v5281
          %v5482 = vpack.c.bf16 %v5286, %v5282
          %v5483 = vpack.c.bf16 %v5287, %v5283
          %v5484 = vpack.c.bf16 %v5292, %v5288
          %v5485 = vpack.c.bf16 %v5293, %v5289
          %v5486 = vpack.c.bf16 %v5294, %v5290
          %v5487 = vpack.c.bf16 %v5295, %v5291
          %v5488 = vpack.c.bf16 %v5300, %v5296
          %v5489 = vpack.c.bf16 %v5301, %v5297
          %v5490 = vpack.c.bf16 %v5302, %v5298
          %v5491 = vpack.c.bf16 %v5303, %v5299
          %v5492 = vpack.c.bf16 %v5308, %v5304
          %v5493 = vpack.c.bf16 %v5309, %v5305
          %v5494 = vpack.c.bf16 %v5310, %v5306
          %v5495 = vpack.c.bf16 %v5311, %v5307
          %v5496 = vpack.c.bf16 %v5316, %v5312
          %v5497 = vpack.c.bf16 %v5317, %v5313
          %v5498 = vpack.c.bf16 %v5318, %v5314
          %v5499 = vpack.c.bf16 %v5319, %v5315
          %v5500 = vpack.c.bf16 %v5324, %v5320
          %v5501 = vpack.c.bf16 %v5325, %v5321
          %v5502 = vpack.c.bf16 %v5326, %v5322
          %v5503 = vpack.c.bf16 %v5327, %v5323
          %v5504 = vpack.c.bf16 %v5332, %v5328
          %v5505 = vpack.c.bf16 %v5333, %v5329
          %v5506 = vpack.c.bf16 %v5334, %v5330
          %v5507 = vpack.c.bf16 %v5335, %v5331
          %v5508 = vpack.c.bf16 %v5340, %v5336
          %v5509 = vpack.c.bf16 %v5341, %v5337
          %v5510 = vpack.c.bf16 %v5342, %v5338
          %v5511 = vpack.c.bf16 %v5343, %v5339
          %v5512 = vpack.c.bf16 %v5348, %v5344
          %v5513 = vpack.c.bf16 %v5349, %v5345
          %v5514 = vpack.c.bf16 %v5350, %v5346
          %v5515 = vpack.c.bf16 %v5351, %v5347
          %v5516 = vpack.c.bf16 %v5356, %v5352
          %v5517 = vpack.c.bf16 %v5357, %v5353
          %v5518 = vpack.c.bf16 %v5358, %v5354
          %v5519 = vpack.c.bf16 %v5359, %v5355
          %v5520 = vpack.c.bf16 %v5364, %v5360
          %v5521 = vpack.c.bf16 %v5365, %v5361
          %v5522 = vpack.c.bf16 %v5366, %v5362
          %v5523 = vpack.c.bf16 %v5367, %v5363
          %v5524 = vpack.c.bf16 %v5372, %v5368
          %v5525 = vpack.c.bf16 %v5373, %v5369
          %v5526 = vpack.c.bf16 %v5374, %v5370
          %v5527 = vpack.c.bf16 %v5375, %v5371
          %v5528 = vpack.c.bf16 %v5380, %v5376
          %v5529 = vpack.c.bf16 %v5381, %v5377
          %v5530 = vpack.c.bf16 %v5382, %v5378
          %v5531 = vpack.c.bf16 %v5383, %v5379
          %v5532 = vpack.c.bf16 %v5388, %v5384
          %v5533 = vpack.c.bf16 %v5389, %v5385
          %v5534 = vpack.c.bf16 %v5390, %v5386
          %v5535 = vpack.c.bf16 %v5391, %v5387
          %v5536 = vpack.c.bf16 %v5396, %v5392
          %v5537 = vpack.c.bf16 %v5397, %v5393
          %v5538 = vpack.c.bf16 %v5398, %v5394
          %v5539 = vpack.c.bf16 %v5399, %v5395
          %v5540 = vpack.c.bf16 %v5404, %v5400
          %v5541 = vpack.c.bf16 %v5405, %v5401
          %v5542 = vpack.c.bf16 %v5406, %v5402
          %v5543 = vpack.c.bf16 %v5407, %v5403
          %v5544 = vpack.c.bf16 %v5412, %v5408
          %v5545 = vpack.c.bf16 %v5413, %v5409
          %v5546 = vpack.c.bf16 %v5414, %v5410
          %v5547 = vpack.c.bf16 %v5415, %v5411
          %v5548 = vpack.c.bf16 %v5420, %v5416
          %v5549 = vpack.c.bf16 %v5421, %v5417
          %v5550 = vpack.c.bf16 %v5422, %v5418
          %v5551 = vpack.c.bf16 %v5423, %v5419
          %v5552 = vld [vmem:[#allocation8] sm:$0xff]
          %v5553 = vld [vmem:[#allocation8 + $0x8] sm:$0xff]
          %v5554 = vld [vmem:[#allocation8 + $0x10] sm:$0xff]
          %v5555 = vld [vmem:[#allocation8 + $0x18] sm:$0xff]
          %v5556 = vld [vmem:[#allocation8 + $0x20] sm:$0xff]
          %v5557 = vld [vmem:[#allocation8 + $0x28] sm:$0xff]
          %v5558 = vld [vmem:[#allocation8 + $0x30] sm:$0xff]
          %v5559 = vld [vmem:[#allocation8 + $0x38] sm:$0xff]
          %v5560 = vld [vmem:[#allocation8 + $0x40] sm:$0xff]
          %v5561 = vld [vmem:[#allocation8 + $0x48] sm:$0xff]
          %v5562 = vld [vmem:[#allocation8 + $0x50] sm:$0xff]
          %v5563 = vld [vmem:[#allocation8 + $0x58] sm:$0xff]
          %v5564 = vld [vmem:[#allocation8 + $0x60] sm:$0xff]
          %v5565 = vld [vmem:[#allocation8 + $0x68] sm:$0xff]
          %v5566 = vld [vmem:[#allocation8 + $0x70] sm:$0xff]
          %v5567 = vld [vmem:[#allocation8 + $0x78] sm:$0xff]
          %v5568 = vld [vmem:[#allocation8 + $0x80] sm:$0xff]
          %v5569 = vld [vmem:[#allocation8 + $0x88] sm:$0xff]
          %v5570 = vld [vmem:[#allocation8 + $0x90] sm:$0xff]
          %v5571 = vld [vmem:[#allocation8 + $0x98] sm:$0xff]
          %v5572 = vld [vmem:[#allocation8 + $0xa0] sm:$0xff]
          %v5573 = vld [vmem:[#allocation8 + $0xa8] sm:$0xff]
          %v5574 = vld [vmem:[#allocation8 + $0xb0] sm:$0xff]
          %v5575 = vld [vmem:[#allocation8 + $0xb8] sm:$0xff]
          %v5576 = vld [vmem:[#allocation8 + $0xc0] sm:$0xff]
          %v5577 = vld [vmem:[#allocation8 + $0xc8] sm:$0xff]
          %v5578 = vld [vmem:[#allocation8 + $0xd0] sm:$0xff]
          %v5579 = vld [vmem:[#allocation8 + $0xd8] sm:$0xff]
          %v5580 = vld [vmem:[#allocation8 + $0xe0] sm:$0xff]
          %v5581 = vld [vmem:[#allocation8 + $0xe8] sm:$0xff]
          %v5582 = vld [vmem:[#allocation8 + $0xf0] sm:$0xff]
          %v5583 = vld [vmem:[#allocation8 + $0xf8] sm:$0xff]
          %v5584 = vld [vmem:[#allocation8 + $0x100] sm:$0xff]
          %v5585 = vld [vmem:[#allocation8 + $0x108] sm:$0xff]
          %v5586 = vld [vmem:[#allocation8 + $0x110] sm:$0xff]
          %v5587 = vld [vmem:[#allocation8 + $0x118] sm:$0xff]
          %v5588 = vld [vmem:[#allocation8 + $0x120] sm:$0xff]
          %v5589 = vld [vmem:[#allocation8 + $0x128] sm:$0xff]
          %v5590 = vld [vmem:[#allocation8 + $0x130] sm:$0xff]
          %v5591 = vld [vmem:[#allocation8 + $0x138] sm:$0xff]
          %v5592 = vld [vmem:[#allocation8 + $0x140] sm:$0xff]
          %v5593 = vld [vmem:[#allocation8 + $0x148] sm:$0xff]
          %v5594 = vld [vmem:[#allocation8 + $0x150] sm:$0xff]
          %v5595 = vld [vmem:[#allocation8 + $0x158] sm:$0xff]
          %v5596 = vld [vmem:[#allocation8 + $0x160] sm:$0xff]
          %v5597 = vld [vmem:[#allocation8 + $0x168] sm:$0xff]
          %v5598 = vld [vmem:[#allocation8 + $0x170] sm:$0xff]
          %v5599 = vld [vmem:[#allocation8 + $0x178] sm:$0xff]
          %v5600 = vld [vmem:[#allocation8 + $0x180] sm:$0xff]
          %v5601 = vld [vmem:[#allocation8 + $0x188] sm:$0xff]
          %v5602 = vld [vmem:[#allocation8 + $0x190] sm:$0xff]
          %v5603 = vld [vmem:[#allocation8 + $0x198] sm:$0xff]
          %v5604 = vld [vmem:[#allocation8 + $0x1a0] sm:$0xff]
          %v5605 = vld [vmem:[#allocation8 + $0x1a8] sm:$0xff]
          %v5606 = vld [vmem:[#allocation8 + $0x1b0] sm:$0xff]
          %v5607 = vld [vmem:[#allocation8 + $0x1b8] sm:$0xff]
          %v5608 = vld [vmem:[#allocation8 + $0x1c0] sm:$0xff]
          %v5609 = vld [vmem:[#allocation8 + $0x1c8] sm:$0xff]
          %v5610 = vld [vmem:[#allocation8 + $0x1d0] sm:$0xff]
          %v5611 = vld [vmem:[#allocation8 + $0x1d8] sm:$0xff]
          %v5612 = vld [vmem:[#allocation8 + $0x1e0] sm:$0xff]
          %v5613 = vld [vmem:[#allocation8 + $0x1e8] sm:$0xff]
          %v5614 = vld [vmem:[#allocation8 + $0x1f0] sm:$0xff]
          %v5615 = vld [vmem:[#allocation8 + $0x1f8] sm:$0xff]
          %v5616 = vld [vmem:[#allocation8 + $0x200] sm:$0xff]
          %v5617 = vld [vmem:[#allocation8 + $0x208] sm:$0xff]
          %v5618 = vld [vmem:[#allocation8 + $0x210] sm:$0xff]
          %v5619 = vld [vmem:[#allocation8 + $0x218] sm:$0xff]
          %v5620 = vld [vmem:[#allocation8 + $0x220] sm:$0xff]
          %v5621 = vld [vmem:[#allocation8 + $0x228] sm:$0xff]
          %v5622 = vld [vmem:[#allocation8 + $0x230] sm:$0xff]
          %v5623 = vld [vmem:[#allocation8 + $0x238] sm:$0xff]
          %v5624 = vld [vmem:[#allocation8 + $0x240] sm:$0xff]
          %v5625 = vld [vmem:[#allocation8 + $0x248] sm:$0xff]
          %v5626 = vld [vmem:[#allocation8 + $0x250] sm:$0xff]
          %v5627 = vld [vmem:[#allocation8 + $0x258] sm:$0xff]
          %v5628 = vld [vmem:[#allocation8 + $0x260] sm:$0xff]
          %v5629 = vld [vmem:[#allocation8 + $0x268] sm:$0xff]
          %v5630 = vld [vmem:[#allocation8 + $0x270] sm:$0xff]
          %v5631 = vld [vmem:[#allocation8 + $0x278] sm:$0xff]
          %v5632 = vld [vmem:[#allocation8 + $0x280] sm:$0xff]
          %v5633 = vld [vmem:[#allocation8 + $0x288] sm:$0xff]
          %v5634 = vld [vmem:[#allocation8 + $0x290] sm:$0xff]
          %v5635 = vld [vmem:[#allocation8 + $0x298] sm:$0xff]
          %v5636 = vld [vmem:[#allocation8 + $0x2a0] sm:$0xff]
          %v5637 = vld [vmem:[#allocation8 + $0x2a8] sm:$0xff]
          %v5638 = vld [vmem:[#allocation8 + $0x2b0] sm:$0xff]
          %v5639 = vld [vmem:[#allocation8 + $0x2b8] sm:$0xff]
          %v5640 = vld [vmem:[#allocation8 + $0x2c0] sm:$0xff]
          %v5641 = vld [vmem:[#allocation8 + $0x2c8] sm:$0xff]
          %v5642 = vld [vmem:[#allocation8 + $0x2d0] sm:$0xff]
          %v5643 = vld [vmem:[#allocation8 + $0x2d8] sm:$0xff]
          %v5644 = vld [vmem:[#allocation8 + $0x2e0] sm:$0xff]
          %v5645 = vld [vmem:[#allocation8 + $0x2e8] sm:$0xff]
          %v5646 = vld [vmem:[#allocation8 + $0x2f0] sm:$0xff]
          %v5647 = vld [vmem:[#allocation8 + $0x2f8] sm:$0xff]
          %v5648 = vld [vmem:[#allocation8 + $0x300] sm:$0xff]
          %v5649 = vld [vmem:[#allocation8 + $0x308] sm:$0xff]
          %v5650 = vld [vmem:[#allocation8 + $0x310] sm:$0xff]
          %v5651 = vld [vmem:[#allocation8 + $0x318] sm:$0xff]
          %v5652 = vld [vmem:[#allocation8 + $0x320] sm:$0xff]
          %v5653 = vld [vmem:[#allocation8 + $0x328] sm:$0xff]
          %v5654 = vld [vmem:[#allocation8 + $0x330] sm:$0xff]
          %v5655 = vld [vmem:[#allocation8 + $0x338] sm:$0xff]
          %v5656 = vld [vmem:[#allocation8 + $0x340] sm:$0xff]
          %v5657 = vld [vmem:[#allocation8 + $0x348] sm:$0xff]
          %v5658 = vld [vmem:[#allocation8 + $0x350] sm:$0xff]
          %v5659 = vld [vmem:[#allocation8 + $0x358] sm:$0xff]
          %v5660 = vld [vmem:[#allocation8 + $0x360] sm:$0xff]
          %v5661 = vld [vmem:[#allocation8 + $0x368] sm:$0xff]
          %v5662 = vld [vmem:[#allocation8 + $0x370] sm:$0xff]
          %v5663 = vld [vmem:[#allocation8 + $0x378] sm:$0xff]
          %v5664 = vld [vmem:[#allocation8 + $0x380] sm:$0xff]
          %v5665 = vld [vmem:[#allocation8 + $0x388] sm:$0xff]
          %v5666 = vld [vmem:[#allocation8 + $0x390] sm:$0xff]
          %v5667 = vld [vmem:[#allocation8 + $0x398] sm:$0xff]
          %v5668 = vld [vmem:[#allocation8 + $0x3a0] sm:$0xff]
          %v5669 = vld [vmem:[#allocation8 + $0x3a8] sm:$0xff]
          %v5670 = vld [vmem:[#allocation8 + $0x3b0] sm:$0xff]
          %v5671 = vld [vmem:[#allocation8 + $0x3b8] sm:$0xff]
          %v5672 = vld [vmem:[#allocation8 + $0x3c0] sm:$0xff]
          %v5673 = vld [vmem:[#allocation8 + $0x3c8] sm:$0xff]
          %v5674 = vld [vmem:[#allocation8 + $0x3d0] sm:$0xff]
          %v5675 = vld [vmem:[#allocation8 + $0x3d8] sm:$0xff]
          %v5676 = vld [vmem:[#allocation8 + $0x3e0] sm:$0xff]
          %v5677 = vld [vmem:[#allocation8 + $0x3e8] sm:$0xff]
          %v5678 = vld [vmem:[#allocation8 + $0x3f0] sm:$0xff]
          %v5679 = vld [vmem:[#allocation8 + $0x3f8] sm:$0xff]
          %v5680 = vld [vmem:[#allocation8 + $0x400] sm:$0xff]
          %v5681 = vld [vmem:[#allocation8 + $0x408] sm:$0xff]
          %v5682 = vld [vmem:[#allocation8 + $0x410] sm:$0xff]
          %v5683 = vld [vmem:[#allocation8 + $0x418] sm:$0xff]
          %v5684 = vld [vmem:[#allocation8 + $0x420] sm:$0xff]
          %v5685 = vld [vmem:[#allocation8 + $0x428] sm:$0xff]
          %v5686 = vld [vmem:[#allocation8 + $0x430] sm:$0xff]
          %v5687 = vld [vmem:[#allocation8 + $0x438] sm:$0xff]
          %v5688 = vld [vmem:[#allocation8 + $0x440] sm:$0xff]
          %v5689 = vld [vmem:[#allocation8 + $0x448] sm:$0xff]
          %v5690 = vld [vmem:[#allocation8 + $0x450] sm:$0xff]
          %v5691 = vld [vmem:[#allocation8 + $0x458] sm:$0xff]
          %v5692 = vld [vmem:[#allocation8 + $0x460] sm:$0xff]
          %v5693 = vld [vmem:[#allocation8 + $0x468] sm:$0xff]
          %v5694 = vld [vmem:[#allocation8 + $0x470] sm:$0xff]
          %v5695 = vld [vmem:[#allocation8 + $0x478] sm:$0xff]
          %v5696 = vld [vmem:[#allocation8 + $0x480] sm:$0xff]
          %v5697 = vld [vmem:[#allocation8 + $0x488] sm:$0xff]
          %v5698 = vld [vmem:[#allocation8 + $0x490] sm:$0xff]
          %v5699 = vld [vmem:[#allocation8 + $0x498] sm:$0xff]
          %v5700 = vld [vmem:[#allocation8 + $0x4a0] sm:$0xff]
          %v5701 = vld [vmem:[#allocation8 + $0x4a8] sm:$0xff]
          %v5702 = vld [vmem:[#allocation8 + $0x4b0] sm:$0xff]
          %v5703 = vld [vmem:[#allocation8 + $0x4b8] sm:$0xff]
          %v5704 = vld [vmem:[#allocation8 + $0x4c0] sm:$0xff]
          %v5705 = vld [vmem:[#allocation8 + $0x4c8] sm:$0xff]
          %v5706 = vld [vmem:[#allocation8 + $0x4d0] sm:$0xff]
          %v5707 = vld [vmem:[#allocation8 + $0x4d8] sm:$0xff]
          %v5708 = vld [vmem:[#allocation8 + $0x4e0] sm:$0xff]
          %v5709 = vld [vmem:[#allocation8 + $0x4e8] sm:$0xff]
          %v5710 = vld [vmem:[#allocation8 + $0x4f0] sm:$0xff]
          %v5711 = vld [vmem:[#allocation8 + $0x4f8] sm:$0xff]
          %v5712 = vld [vmem:[#allocation8 + $0x500] sm:$0xff]
          %v5713 = vld [vmem:[#allocation8 + $0x508] sm:$0xff]
          %v5714 = vld [vmem:[#allocation8 + $0x510] sm:$0xff]
          %v5715 = vld [vmem:[#allocation8 + $0x518] sm:$0xff]
          %v5716 = vld [vmem:[#allocation8 + $0x520] sm:$0xff]
          %v5717 = vld [vmem:[#allocation8 + $0x528] sm:$0xff]
          %v5718 = vld [vmem:[#allocation8 + $0x530] sm:$0xff]
          %v5719 = vld [vmem:[#allocation8 + $0x538] sm:$0xff]
          %v5720 = vld [vmem:[#allocation8 + $0x540] sm:$0xff]
          %v5721 = vld [vmem:[#allocation8 + $0x548] sm:$0xff]
          %v5722 = vld [vmem:[#allocation8 + $0x550] sm:$0xff]
          %v5723 = vld [vmem:[#allocation8 + $0x558] sm:$0xff]
          %v5724 = vld [vmem:[#allocation8 + $0x560] sm:$0xff]
          %v5725 = vld [vmem:[#allocation8 + $0x568] sm:$0xff]
          %v5726 = vld [vmem:[#allocation8 + $0x570] sm:$0xff]
          %v5727 = vld [vmem:[#allocation8 + $0x578] sm:$0xff]
          %v5728 = vld [vmem:[#allocation8 + $0x580] sm:$0xff]
          %v5729 = vld [vmem:[#allocation8 + $0x588] sm:$0xff]
          %v5730 = vld [vmem:[#allocation8 + $0x590] sm:$0xff]
          %v5731 = vld [vmem:[#allocation8 + $0x598] sm:$0xff]
          %v5732 = vld [vmem:[#allocation8 + $0x5a0] sm:$0xff]
          %v5733 = vld [vmem:[#allocation8 + $0x5a8] sm:$0xff]
          %v5734 = vld [vmem:[#allocation8 + $0x5b0] sm:$0xff]
          %v5735 = vld [vmem:[#allocation8 + $0x5b8] sm:$0xff]
          %v5736 = vld [vmem:[#allocation8 + $0x5c0] sm:$0xff]
          %v5737 = vld [vmem:[#allocation8 + $0x5c8] sm:$0xff]
          %v5738 = vld [vmem:[#allocation8 + $0x5d0] sm:$0xff]
          %v5739 = vld [vmem:[#allocation8 + $0x5d8] sm:$0xff]
          %v5740 = vld [vmem:[#allocation8 + $0x5e0] sm:$0xff]
          %v5741 = vld [vmem:[#allocation8 + $0x5e8] sm:$0xff]
          %v5742 = vld [vmem:[#allocation8 + $0x5f0] sm:$0xff]
          %v5743 = vld [vmem:[#allocation8 + $0x5f8] sm:$0xff]
          %v5744 = vld [vmem:[#allocation8 + $0x600] sm:$0xff]
          %v5745 = vld [vmem:[#allocation8 + $0x608] sm:$0xff]
          %v5746 = vld [vmem:[#allocation8 + $0x610] sm:$0xff]
          %v5747 = vld [vmem:[#allocation8 + $0x618] sm:$0xff]
          %v5748 = vld [vmem:[#allocation8 + $0x620] sm:$0xff]
          %v5749 = vld [vmem:[#allocation8 + $0x628] sm:$0xff]
          %v5750 = vld [vmem:[#allocation8 + $0x630] sm:$0xff]
          %v5751 = vld [vmem:[#allocation8 + $0x638] sm:$0xff]
          %v5752 = vld [vmem:[#allocation8 + $0x640] sm:$0xff]
          %v5753 = vld [vmem:[#allocation8 + $0x648] sm:$0xff]
          %v5754 = vld [vmem:[#allocation8 + $0x650] sm:$0xff]
          %v5755 = vld [vmem:[#allocation8 + $0x658] sm:$0xff]
          %v5756 = vld [vmem:[#allocation8 + $0x660] sm:$0xff]
          %v5757 = vld [vmem:[#allocation8 + $0x668] sm:$0xff]
          %v5758 = vld [vmem:[#allocation8 + $0x670] sm:$0xff]
          %v5759 = vld [vmem:[#allocation8 + $0x678] sm:$0xff]
          %v5760 = vld [vmem:[#allocation8 + $0x680] sm:$0xff]
          %v5761 = vld [vmem:[#allocation8 + $0x688] sm:$0xff]
          %v5762 = vld [vmem:[#allocation8 + $0x690] sm:$0xff]
          %v5763 = vld [vmem:[#allocation8 + $0x698] sm:$0xff]
          %v5764 = vld [vmem:[#allocation8 + $0x6a0] sm:$0xff]
          %v5765 = vld [vmem:[#allocation8 + $0x6a8] sm:$0xff]
          %v5766 = vld [vmem:[#allocation8 + $0x6b0] sm:$0xff]
          %v5767 = vld [vmem:[#allocation8 + $0x6b8] sm:$0xff]
          %v5768 = vld [vmem:[#allocation8 + $0x6c0] sm:$0xff]
          %v5769 = vld [vmem:[#allocation8 + $0x6c8] sm:$0xff]
          %v5770 = vld [vmem:[#allocation8 + $0x6d0] sm:$0xff]
          %v5771 = vld [vmem:[#allocation8 + $0x6d8] sm:$0xff]
          %v5772 = vld [vmem:[#allocation8 + $0x6e0] sm:$0xff]
          %v5773 = vld [vmem:[#allocation8 + $0x6e8] sm:$0xff]
          %v5774 = vld [vmem:[#allocation8 + $0x6f0] sm:$0xff]
          %v5775 = vld [vmem:[#allocation8 + $0x6f8] sm:$0xff]
          %v5776 = vld [vmem:[#allocation8 + $0x700] sm:$0xff]
          %v5777 = vld [vmem:[#allocation8 + $0x708] sm:$0xff]
          %v5778 = vld [vmem:[#allocation8 + $0x710] sm:$0xff]
          %v5779 = vld [vmem:[#allocation8 + $0x718] sm:$0xff]
          %v5780 = vld [vmem:[#allocation8 + $0x720] sm:$0xff]
          %v5781 = vld [vmem:[#allocation8 + $0x728] sm:$0xff]
          %v5782 = vld [vmem:[#allocation8 + $0x730] sm:$0xff]
          %v5783 = vld [vmem:[#allocation8 + $0x738] sm:$0xff]
          %v5784 = vld [vmem:[#allocation8 + $0x740] sm:$0xff]
          %v5785 = vld [vmem:[#allocation8 + $0x748] sm:$0xff]
          %v5786 = vld [vmem:[#allocation8 + $0x750] sm:$0xff]
          %v5787 = vld [vmem:[#allocation8 + $0x758] sm:$0xff]
          %v5788 = vld [vmem:[#allocation8 + $0x760] sm:$0xff]
          %v5789 = vld [vmem:[#allocation8 + $0x768] sm:$0xff]
          %v5790 = vld [vmem:[#allocation8 + $0x770] sm:$0xff]
          %v5791 = vld [vmem:[#allocation8 + $0x778] sm:$0xff]
          %v5792 = vld [vmem:[#allocation8 + $0x780] sm:$0xff]
          %v5793 = vld [vmem:[#allocation8 + $0x788] sm:$0xff]
          %v5794 = vld [vmem:[#allocation8 + $0x790] sm:$0xff]
          %v5795 = vld [vmem:[#allocation8 + $0x798] sm:$0xff]
          %v5796 = vld [vmem:[#allocation8 + $0x7a0] sm:$0xff]
          %v5797 = vld [vmem:[#allocation8 + $0x7a8] sm:$0xff]
          %v5798 = vld [vmem:[#allocation8 + $0x7b0] sm:$0xff]
          %v5799 = vld [vmem:[#allocation8 + $0x7b8] sm:$0xff]
          %v5800 = vld [vmem:[#allocation8 + $0x7c0] sm:$0xff]
          %v5801 = vld [vmem:[#allocation8 + $0x7c8] sm:$0xff]
          %v5802 = vld [vmem:[#allocation8 + $0x7d0] sm:$0xff]
          %v5803 = vld [vmem:[#allocation8 + $0x7d8] sm:$0xff]
          %v5804 = vld [vmem:[#allocation8 + $0x7e0] sm:$0xff]
          %v5805 = vld [vmem:[#allocation8 + $0x7e8] sm:$0xff]
          %v5806 = vld [vmem:[#allocation8 + $0x7f0] sm:$0xff]
          %v5807 = vld [vmem:[#allocation8 + $0x7f8] sm:$0xff]
          %v6064 = vunpack.c.l.b16 %v5552
          %v6065 = vunpack.c.h.b16 %v5552
          %v6066 = vunpack.c.l.b16 %v5553
          %v6067 = vunpack.c.h.b16 %v5553
          %v6068 = vunpack.c.l.b16 %v5554
          %v6069 = vunpack.c.h.b16 %v5554
          %v6070 = vunpack.c.l.b16 %v5555
          %v6071 = vunpack.c.h.b16 %v5555
          %v6072 = vunpack.c.l.b16 %v5556
          %v6073 = vunpack.c.h.b16 %v5556
          %v6074 = vunpack.c.l.b16 %v5557
          %v6075 = vunpack.c.h.b16 %v5557
          %v6076 = vunpack.c.l.b16 %v5558
          %v6077 = vunpack.c.h.b16 %v5558
          %v6078 = vunpack.c.l.b16 %v5559
          %v6079 = vunpack.c.h.b16 %v5559
          %v6080 = vunpack.c.l.b16 %v5560
          %v6081 = vunpack.c.h.b16 %v5560
          %v6082 = vunpack.c.l.b16 %v5561
          %v6083 = vunpack.c.h.b16 %v5561
          %v6084 = vunpack.c.l.b16 %v5562
          %v6085 = vunpack.c.h.b16 %v5562
          %v6086 = vunpack.c.l.b16 %v5563
          %v6087 = vunpack.c.h.b16 %v5563
          %v6088 = vunpack.c.l.b16 %v5564
          %v6089 = vunpack.c.h.b16 %v5564
          %v6090 = vunpack.c.l.b16 %v5565
          %v6091 = vunpack.c.h.b16 %v5565
          %v6092 = vunpack.c.l.b16 %v5566
          %v6093 = vunpack.c.h.b16 %v5566
          %v6094 = vunpack.c.l.b16 %v5567
          %v6095 = vunpack.c.h.b16 %v5567
          %v6096 = vunpack.c.l.b16 %v5568
          %v6097 = vunpack.c.h.b16 %v5568
          %v6098 = vunpack.c.l.b16 %v5569
          %v6099 = vunpack.c.h.b16 %v5569
          %v6100 = vunpack.c.l.b16 %v5570
          %v6101 = vunpack.c.h.b16 %v5570
          %v6102 = vunpack.c.l.b16 %v5571
          %v6103 = vunpack.c.h.b16 %v5571
          %v6104 = vunpack.c.l.b16 %v5572
          %v6105 = vunpack.c.h.b16 %v5572
          %v6106 = vunpack.c.l.b16 %v5573
          %v6107 = vunpack.c.h.b16 %v5573
          %v6108 = vunpack.c.l.b16 %v5574
          %v6109 = vunpack.c.h.b16 %v5574
          %v6110 = vunpack.c.l.b16 %v5575
          %v6111 = vunpack.c.h.b16 %v5575
          %v6112 = vunpack.c.l.b16 %v5576
          %v6113 = vunpack.c.h.b16 %v5576
          %v6114 = vunpack.c.l.b16 %v5577
          %v6115 = vunpack.c.h.b16 %v5577
          %v6116 = vunpack.c.l.b16 %v5578
          %v6117 = vunpack.c.h.b16 %v5578
          %v6118 = vunpack.c.l.b16 %v5579
          %v6119 = vunpack.c.h.b16 %v5579
          %v6120 = vunpack.c.l.b16 %v5580
          %v6121 = vunpack.c.h.b16 %v5580
          %v6122 = vunpack.c.l.b16 %v5581
          %v6123 = vunpack.c.h.b16 %v5581
          %v6124 = vunpack.c.l.b16 %v5582
          %v6125 = vunpack.c.h.b16 %v5582
          %v6126 = vunpack.c.l.b16 %v5583
          %v6127 = vunpack.c.h.b16 %v5583
          %v6128 = vunpack.c.l.b16 %v5584
          %v6129 = vunpack.c.h.b16 %v5584
          %v6130 = vunpack.c.l.b16 %v5585
          %v6131 = vunpack.c.h.b16 %v5585
          %v6132 = vunpack.c.l.b16 %v5586
          %v6133 = vunpack.c.h.b16 %v5586
          %v6134 = vunpack.c.l.b16 %v5587
          %v6135 = vunpack.c.h.b16 %v5587
          %v6136 = vunpack.c.l.b16 %v5588
          %v6137 = vunpack.c.h.b16 %v5588
          %v6138 = vunpack.c.l.b16 %v5589
          %v6139 = vunpack.c.h.b16 %v5589
          %v6140 = vunpack.c.l.b16 %v5590
          %v6141 = vunpack.c.h.b16 %v5590
          %v6142 = vunpack.c.l.b16 %v5591
          %v6143 = vunpack.c.h.b16 %v5591
          %v6144 = vunpack.c.l.b16 %v5592
          %v6145 = vunpack.c.h.b16 %v5592
          %v6146 = vunpack.c.l.b16 %v5593
          %v6147 = vunpack.c.h.b16 %v5593
          %v6148 = vunpack.c.l.b16 %v5594
          %v6149 = vunpack.c.h.b16 %v5594
          %v6150 = vunpack.c.l.b16 %v5595
          %v6151 = vunpack.c.h.b16 %v5595
          %v6152 = vunpack.c.l.b16 %v5596
          %v6153 = vunpack.c.h.b16 %v5596
          %v6154 = vunpack.c.l.b16 %v5597
          %v6155 = vunpack.c.h.b16 %v5597
          %v6156 = vunpack.c.l.b16 %v5598
          %v6157 = vunpack.c.h.b16 %v5598
          %v6158 = vunpack.c.l.b16 %v5599
          %v6159 = vunpack.c.h.b16 %v5599
          %v6160 = vunpack.c.l.b16 %v5600
          %v6161 = vunpack.c.h.b16 %v5600
          %v6162 = vunpack.c.l.b16 %v5601
          %v6163 = vunpack.c.h.b16 %v5601
          %v6164 = vunpack.c.l.b16 %v5602
          %v6165 = vunpack.c.h.b16 %v5602
          %v6166 = vunpack.c.l.b16 %v5603
          %v6167 = vunpack.c.h.b16 %v5603
          %v6168 = vunpack.c.l.b16 %v5604
          %v6169 = vunpack.c.h.b16 %v5604
          %v6170 = vunpack.c.l.b16 %v5605
          %v6171 = vunpack.c.h.b16 %v5605
          %v6172 = vunpack.c.l.b16 %v5606
          %v6173 = vunpack.c.h.b16 %v5606
          %v6174 = vunpack.c.l.b16 %v5607
          %v6175 = vunpack.c.h.b16 %v5607
          %v6176 = vunpack.c.l.b16 %v5608
          %v6177 = vunpack.c.h.b16 %v5608
          %v6178 = vunpack.c.l.b16 %v5609
          %v6179 = vunpack.c.h.b16 %v5609
          %v6180 = vunpack.c.l.b16 %v5610
          %v6181 = vunpack.c.h.b16 %v5610
          %v6182 = vunpack.c.l.b16 %v5611
          %v6183 = vunpack.c.h.b16 %v5611
          %v6184 = vunpack.c.l.b16 %v5612
          %v6185 = vunpack.c.h.b16 %v5612
          %v6186 = vunpack.c.l.b16 %v5613
          %v6187 = vunpack.c.h.b16 %v5613
          %v6188 = vunpack.c.l.b16 %v5614
          %v6189 = vunpack.c.h.b16 %v5614
          %v6190 = vunpack.c.l.b16 %v5615
          %v6191 = vunpack.c.h.b16 %v5615
          %v6192 = vunpack.c.l.b16 %v5616
          %v6193 = vunpack.c.h.b16 %v5616
          %v6194 = vunpack.c.l.b16 %v5617
          %v6195 = vunpack.c.h.b16 %v5617
          %v6196 = vunpack.c.l.b16 %v5618
          %v6197 = vunpack.c.h.b16 %v5618
          %v6198 = vunpack.c.l.b16 %v5619
          %v6199 = vunpack.c.h.b16 %v5619
          %v6200 = vunpack.c.l.b16 %v5620
          %v6201 = vunpack.c.h.b16 %v5620
          %v6202 = vunpack.c.l.b16 %v5621
          %v6203 = vunpack.c.h.b16 %v5621
          %v6204 = vunpack.c.l.b16 %v5622
          %v6205 = vunpack.c.h.b16 %v5622
          %v6206 = vunpack.c.l.b16 %v5623
          %v6207 = vunpack.c.h.b16 %v5623
          %v6208 = vunpack.c.l.b16 %v5624
          %v6209 = vunpack.c.h.b16 %v5624
          %v6210 = vunpack.c.l.b16 %v5625
          %v6211 = vunpack.c.h.b16 %v5625
          %v6212 = vunpack.c.l.b16 %v5626
          %v6213 = vunpack.c.h.b16 %v5626
          %v6214 = vunpack.c.l.b16 %v5627
          %v6215 = vunpack.c.h.b16 %v5627
          %v6216 = vunpack.c.l.b16 %v5628
          %v6217 = vunpack.c.h.b16 %v5628
          %v6218 = vunpack.c.l.b16 %v5629
          %v6219 = vunpack.c.h.b16 %v5629
          %v6220 = vunpack.c.l.b16 %v5630
          %v6221 = vunpack.c.h.b16 %v5630
          %v6222 = vunpack.c.l.b16 %v5631
          %v6223 = vunpack.c.h.b16 %v5631
          %v6224 = vunpack.c.l.b16 %v5632
          %v6225 = vunpack.c.h.b16 %v5632
          %v6226 = vunpack.c.l.b16 %v5633
          %v6227 = vunpack.c.h.b16 %v5633
          %v6228 = vunpack.c.l.b16 %v5634
          %v6229 = vunpack.c.h.b16 %v5634
          %v6230 = vunpack.c.l.b16 %v5635
          %v6231 = vunpack.c.h.b16 %v5635
          %v6232 = vunpack.c.l.b16 %v5636
          %v6233 = vunpack.c.h.b16 %v5636
          %v6234 = vunpack.c.l.b16 %v5637
          %v6235 = vunpack.c.h.b16 %v5637
          %v6236 = vunpack.c.l.b16 %v5638
          %v6237 = vunpack.c.h.b16 %v5638
          %v6238 = vunpack.c.l.b16 %v5639
          %v6239 = vunpack.c.h.b16 %v5639
          %v6240 = vunpack.c.l.b16 %v5640
          %v6241 = vunpack.c.h.b16 %v5640
          %v6242 = vunpack.c.l.b16 %v5641
          %v6243 = vunpack.c.h.b16 %v5641
          %v6244 = vunpack.c.l.b16 %v5642
          %v6245 = vunpack.c.h.b16 %v5642
          %v6246 = vunpack.c.l.b16 %v5643
          %v6247 = vunpack.c.h.b16 %v5643
          %v6248 = vunpack.c.l.b16 %v5644
          %v6249 = vunpack.c.h.b16 %v5644
          %v6250 = vunpack.c.l.b16 %v5645
          %v6251 = vunpack.c.h.b16 %v5645
          %v6252 = vunpack.c.l.b16 %v5646
          %v6253 = vunpack.c.h.b16 %v5646
          %v6254 = vunpack.c.l.b16 %v5647
          %v6255 = vunpack.c.h.b16 %v5647
          %v6256 = vunpack.c.l.b16 %v5648
          %v6257 = vunpack.c.h.b16 %v5648
          %v6258 = vunpack.c.l.b16 %v5649
          %v6259 = vunpack.c.h.b16 %v5649
          %v6260 = vunpack.c.l.b16 %v5650
          %v6261 = vunpack.c.h.b16 %v5650
          %v6262 = vunpack.c.l.b16 %v5651
          %v6263 = vunpack.c.h.b16 %v5651
          %v6264 = vunpack.c.l.b16 %v5652
          %v6265 = vunpack.c.h.b16 %v5652
          %v6266 = vunpack.c.l.b16 %v5653
          %v6267 = vunpack.c.h.b16 %v5653
          %v6268 = vunpack.c.l.b16 %v5654
          %v6269 = vunpack.c.h.b16 %v5654
          %v6270 = vunpack.c.l.b16 %v5655
          %v6271 = vunpack.c.h.b16 %v5655
          %v6272 = vunpack.c.l.b16 %v5656
          %v6273 = vunpack.c.h.b16 %v5656
          %v6274 = vunpack.c.l.b16 %v5657
          %v6275 = vunpack.c.h.b16 %v5657
          %v6276 = vunpack.c.l.b16 %v5658
          %v6277 = vunpack.c.h.b16 %v5658
          %v6278 = vunpack.c.l.b16 %v5659
          %v6279 = vunpack.c.h.b16 %v5659
          %v6280 = vunpack.c.l.b16 %v5660
          %v6281 = vunpack.c.h.b16 %v5660
          %v6282 = vunpack.c.l.b16 %v5661
          %v6283 = vunpack.c.h.b16 %v5661
          %v6284 = vunpack.c.l.b16 %v5662
          %v6285 = vunpack.c.h.b16 %v5662
          %v6286 = vunpack.c.l.b16 %v5663
          %v6287 = vunpack.c.h.b16 %v5663
          %v6288 = vunpack.c.l.b16 %v5664
          %v6289 = vunpack.c.h.b16 %v5664
          %v6290 = vunpack.c.l.b16 %v5665
          %v6291 = vunpack.c.h.b16 %v5665
          %v6292 = vunpack.c.l.b16 %v5666
          %v6293 = vunpack.c.h.b16 %v5666
          %v6294 = vunpack.c.l.b16 %v5667
          %v6295 = vunpack.c.h.b16 %v5667
          %v6296 = vunpack.c.l.b16 %v5668
          %v6297 = vunpack.c.h.b16 %v5668
          %v6298 = vunpack.c.l.b16 %v5669
          %v6299 = vunpack.c.h.b16 %v5669
          %v6300 = vunpack.c.l.b16 %v5670
          %v6301 = vunpack.c.h.b16 %v5670
          %v6302 = vunpack.c.l.b16 %v5671
          %v6303 = vunpack.c.h.b16 %v5671
          %v6304 = vunpack.c.l.b16 %v5672
          %v6305 = vunpack.c.h.b16 %v5672
          %v6306 = vunpack.c.l.b16 %v5673
          %v6307 = vunpack.c.h.b16 %v5673
          %v6308 = vunpack.c.l.b16 %v5674
          %v6309 = vunpack.c.h.b16 %v5674
          %v6310 = vunpack.c.l.b16 %v5675
          %v6311 = vunpack.c.h.b16 %v5675
          %v6312 = vunpack.c.l.b16 %v5676
          %v6313 = vunpack.c.h.b16 %v5676
          %v6314 = vunpack.c.l.b16 %v5677
          %v6315 = vunpack.c.h.b16 %v5677
          %v6316 = vunpack.c.l.b16 %v5678
          %v6317 = vunpack.c.h.b16 %v5678
          %v6318 = vunpack.c.l.b16 %v5679
          %v6319 = vunpack.c.h.b16 %v5679
          %v6320 = vunpack.c.l.b16 %v5680
          %v6321 = vunpack.c.h.b16 %v5680
          %v6322 = vunpack.c.l.b16 %v5681
          %v6323 = vunpack.c.h.b16 %v5681
          %v6324 = vunpack.c.l.b16 %v5682
          %v6325 = vunpack.c.h.b16 %v5682
          %v6326 = vunpack.c.l.b16 %v5683
          %v6327 = vunpack.c.h.b16 %v5683
          %v6328 = vunpack.c.l.b16 %v5684
          %v6329 = vunpack.c.h.b16 %v5684
          %v6330 = vunpack.c.l.b16 %v5685
          %v6331 = vunpack.c.h.b16 %v5685
          %v6332 = vunpack.c.l.b16 %v5686
          %v6333 = vunpack.c.h.b16 %v5686
          %v6334 = vunpack.c.l.b16 %v5687
          %v6335 = vunpack.c.h.b16 %v5687
          %v6336 = vunpack.c.l.b16 %v5688
          %v6337 = vunpack.c.h.b16 %v5688
          %v6338 = vunpack.c.l.b16 %v5689
          %v6339 = vunpack.c.h.b16 %v5689
          %v6340 = vunpack.c.l.b16 %v5690
          %v6341 = vunpack.c.h.b16 %v5690
          %v6342 = vunpack.c.l.b16 %v5691
          %v6343 = vunpack.c.h.b16 %v5691
          %v6344 = vunpack.c.l.b16 %v5692
          %v6345 = vunpack.c.h.b16 %v5692
          %v6346 = vunpack.c.l.b16 %v5693
          %v6347 = vunpack.c.h.b16 %v5693
          %v6348 = vunpack.c.l.b16 %v5694
          %v6349 = vunpack.c.h.b16 %v5694
          %v6350 = vunpack.c.l.b16 %v5695
          %v6351 = vunpack.c.h.b16 %v5695
          %v6352 = vunpack.c.l.b16 %v5696
          %v6353 = vunpack.c.h.b16 %v5696
          %v6354 = vunpack.c.l.b16 %v5697
          %v6355 = vunpack.c.h.b16 %v5697
          %v6356 = vunpack.c.l.b16 %v5698
          %v6357 = vunpack.c.h.b16 %v5698
          %v6358 = vunpack.c.l.b16 %v5699
          %v6359 = vunpack.c.h.b16 %v5699
          %v6360 = vunpack.c.l.b16 %v5700
          %v6361 = vunpack.c.h.b16 %v5700
          %v6362 = vunpack.c.l.b16 %v5701
          %v6363 = vunpack.c.h.b16 %v5701
          %v6364 = vunpack.c.l.b16 %v5702
          %v6365 = vunpack.c.h.b16 %v5702
          %v6366 = vunpack.c.l.b16 %v5703
          %v6367 = vunpack.c.h.b16 %v5703
          %v6368 = vunpack.c.l.b16 %v5704
          %v6369 = vunpack.c.h.b16 %v5704
          %v6370 = vunpack.c.l.b16 %v5705
          %v6371 = vunpack.c.h.b16 %v5705
          %v6372 = vunpack.c.l.b16 %v5706
          %v6373 = vunpack.c.h.b16 %v5706
          %v6374 = vunpack.c.l.b16 %v5707
          %v6375 = vunpack.c.h.b16 %v5707
          %v6376 = vunpack.c.l.b16 %v5708
          %v6377 = vunpack.c.h.b16 %v5708
          %v6378 = vunpack.c.l.b16 %v5709
          %v6379 = vunpack.c.h.b16 %v5709
          %v6380 = vunpack.c.l.b16 %v5710
          %v6381 = vunpack.c.h.b16 %v5710
          %v6382 = vunpack.c.l.b16 %v5711
          %v6383 = vunpack.c.h.b16 %v5711
          %v6384 = vunpack.c.l.b16 %v5712
          %v6385 = vunpack.c.h.b16 %v5712
          %v6386 = vunpack.c.l.b16 %v5713
          %v6387 = vunpack.c.h.b16 %v5713
          %v6388 = vunpack.c.l.b16 %v5714
          %v6389 = vunpack.c.h.b16 %v5714
          %v6390 = vunpack.c.l.b16 %v5715
          %v6391 = vunpack.c.h.b16 %v5715
          %v6392 = vunpack.c.l.b16 %v5716
          %v6393 = vunpack.c.h.b16 %v5716
          %v6394 = vunpack.c.l.b16 %v5717
          %v6395 = vunpack.c.h.b16 %v5717
          %v6396 = vunpack.c.l.b16 %v5718
          %v6397 = vunpack.c.h.b16 %v5718
          %v6398 = vunpack.c.l.b16 %v5719
          %v6399 = vunpack.c.h.b16 %v5719
          %v6400 = vunpack.c.l.b16 %v5720
          %v6401 = vunpack.c.h.b16 %v5720
          %v6402 = vunpack.c.l.b16 %v5721
          %v6403 = vunpack.c.h.b16 %v5721
          %v6404 = vunpack.c.l.b16 %v5722
          %v6405 = vunpack.c.h.b16 %v5722
          %v6406 = vunpack.c.l.b16 %v5723
          %v6407 = vunpack.c.h.b16 %v5723
          %v6408 = vunpack.c.l.b16 %v5724
          %v6409 = vunpack.c.h.b16 %v5724
          %v6410 = vunpack.c.l.b16 %v5725
          %v6411 = vunpack.c.h.b16 %v5725
          %v6412 = vunpack.c.l.b16 %v5726
          %v6413 = vunpack.c.h.b16 %v5726
          %v6414 = vunpack.c.l.b16 %v5727
          %v6415 = vunpack.c.h.b16 %v5727
          %v6416 = vunpack.c.l.b16 %v5728
          %v6417 = vunpack.c.h.b16 %v5728
          %v6418 = vunpack.c.l.b16 %v5729
          %v6419 = vunpack.c.h.b16 %v5729
          %v6420 = vunpack.c.l.b16 %v5730
          %v6421 = vunpack.c.h.b16 %v5730
          %v6422 = vunpack.c.l.b16 %v5731
          %v6423 = vunpack.c.h.b16 %v5731
          %v6424 = vunpack.c.l.b16 %v5732
          %v6425 = vunpack.c.h.b16 %v5732
          %v6426 = vunpack.c.l.b16 %v5733
          %v6427 = vunpack.c.h.b16 %v5733
          %v6428 = vunpack.c.l.b16 %v5734
          %v6429 = vunpack.c.h.b16 %v5734
          %v6430 = vunpack.c.l.b16 %v5735
          %v6431 = vunpack.c.h.b16 %v5735
          %v6432 = vunpack.c.l.b16 %v5736
          %v6433 = vunpack.c.h.b16 %v5736
          %v6434 = vunpack.c.l.b16 %v5737
          %v6435 = vunpack.c.h.b16 %v5737
          %v6436 = vunpack.c.l.b16 %v5738
          %v6437 = vunpack.c.h.b16 %v5738
          %v6438 = vunpack.c.l.b16 %v5739
          %v6439 = vunpack.c.h.b16 %v5739
          %v6440 = vunpack.c.l.b16 %v5740
          %v6441 = vunpack.c.h.b16 %v5740
          %v6442 = vunpack.c.l.b16 %v5741
          %v6443 = vunpack.c.h.b16 %v5741
          %v6444 = vunpack.c.l.b16 %v5742
          %v6445 = vunpack.c.h.b16 %v5742
          %v6446 = vunpack.c.l.b16 %v5743
          %v6447 = vunpack.c.h.b16 %v5743
          %v6448 = vunpack.c.l.b16 %v5744
          %v6449 = vunpack.c.h.b16 %v5744
          %v6450 = vunpack.c.l.b16 %v5745
          %v6451 = vunpack.c.h.b16 %v5745
          %v6452 = vunpack.c.l.b16 %v5746
          %v6453 = vunpack.c.h.b16 %v5746
          %v6454 = vunpack.c.l.b16 %v5747
          %v6455 = vunpack.c.h.b16 %v5747
          %v6456 = vunpack.c.l.b16 %v5748
          %v6457 = vunpack.c.h.b16 %v5748
          %v6458 = vunpack.c.l.b16 %v5749
          %v6459 = vunpack.c.h.b16 %v5749
          %v6460 = vunpack.c.l.b16 %v5750
          %v6461 = vunpack.c.h.b16 %v5750
          %v6462 = vunpack.c.l.b16 %v5751
          %v6463 = vunpack.c.h.b16 %v5751
          %v6464 = vunpack.c.l.b16 %v5752
          %v6465 = vunpack.c.h.b16 %v5752
          %v6466 = vunpack.c.l.b16 %v5753
          %v6467 = vunpack.c.h.b16 %v5753
          %v6468 = vunpack.c.l.b16 %v5754
          %v6469 = vunpack.c.h.b16 %v5754
          %v6470 = vunpack.c.l.b16 %v5755
          %v6471 = vunpack.c.h.b16 %v5755
          %v6472 = vunpack.c.l.b16 %v5756
          %v6473 = vunpack.c.h.b16 %v5756
          %v6474 = vunpack.c.l.b16 %v5757
          %v6475 = vunpack.c.h.b16 %v5757
          %v6476 = vunpack.c.l.b16 %v5758
          %v6477 = vunpack.c.h.b16 %v5758
          %v6478 = vunpack.c.l.b16 %v5759
          %v6479 = vunpack.c.h.b16 %v5759
          %v6480 = vunpack.c.l.b16 %v5760
          %v6481 = vunpack.c.h.b16 %v5760
          %v6482 = vunpack.c.l.b16 %v5761
          %v6483 = vunpack.c.h.b16 %v5761
          %v6484 = vunpack.c.l.b16 %v5762
          %v6485 = vunpack.c.h.b16 %v5762
          %v6486 = vunpack.c.l.b16 %v5763
          %v6487 = vunpack.c.h.b16 %v5763
          %v6488 = vunpack.c.l.b16 %v5764
          %v6489 = vunpack.c.h.b16 %v5764
          %v6490 = vunpack.c.l.b16 %v5765
          %v6491 = vunpack.c.h.b16 %v5765
          %v6492 = vunpack.c.l.b16 %v5766
          %v6493 = vunpack.c.h.b16 %v5766
          %v6494 = vunpack.c.l.b16 %v5767
          %v6495 = vunpack.c.h.b16 %v5767
          %v6496 = vunpack.c.l.b16 %v5768
          %v6497 = vunpack.c.h.b16 %v5768
          %v6498 = vunpack.c.l.b16 %v5769
          %v6499 = vunpack.c.h.b16 %v5769
          %v6500 = vunpack.c.l.b16 %v5770
          %v6501 = vunpack.c.h.b16 %v5770
          %v6502 = vunpack.c.l.b16 %v5771
          %v6503 = vunpack.c.h.b16 %v5771
          %v6504 = vunpack.c.l.b16 %v5772
          %v6505 = vunpack.c.h.b16 %v5772
          %v6506 = vunpack.c.l.b16 %v5773
          %v6507 = vunpack.c.h.b16 %v5773
          %v6508 = vunpack.c.l.b16 %v5774
          %v6509 = vunpack.c.h.b16 %v5774
          %v6510 = vunpack.c.l.b16 %v5775
          %v6511 = vunpack.c.h.b16 %v5775
          %v6512 = vunpack.c.l.b16 %v5776
          %v6513 = vunpack.c.h.b16 %v5776
          %v6514 = vunpack.c.l.b16 %v5777
          %v6515 = vunpack.c.h.b16 %v5777
          %v6516 = vunpack.c.l.b16 %v5778
          %v6517 = vunpack.c.h.b16 %v5778
          %v6518 = vunpack.c.l.b16 %v5779
          %v6519 = vunpack.c.h.b16 %v5779
          %v6520 = vunpack.c.l.b16 %v5780
          %v6521 = vunpack.c.h.b16 %v5780
          %v6522 = vunpack.c.l.b16 %v5781
          %v6523 = vunpack.c.h.b16 %v5781
          %v6524 = vunpack.c.l.b16 %v5782
          %v6525 = vunpack.c.h.b16 %v5782
          %v6526 = vunpack.c.l.b16 %v5783
          %v6527 = vunpack.c.h.b16 %v5783
          %v6528 = vunpack.c.l.b16 %v5784
          %v6529 = vunpack.c.h.b16 %v5784
          %v6530 = vunpack.c.l.b16 %v5785
          %v6531 = vunpack.c.h.b16 %v5785
          %v6532 = vunpack.c.l.b16 %v5786
          %v6533 = vunpack.c.h.b16 %v5786
          %v6534 = vunpack.c.l.b16 %v5787
          %v6535 = vunpack.c.h.b16 %v5787
          %v6536 = vunpack.c.l.b16 %v5788
          %v6537 = vunpack.c.h.b16 %v5788
          %v6538 = vunpack.c.l.b16 %v5789
          %v6539 = vunpack.c.h.b16 %v5789
          %v6540 = vunpack.c.l.b16 %v5790
          %v6541 = vunpack.c.h.b16 %v5790
          %v6542 = vunpack.c.l.b16 %v5791
          %v6543 = vunpack.c.h.b16 %v5791
          %v6544 = vunpack.c.l.b16 %v5792
          %v6545 = vunpack.c.h.b16 %v5792
          %v6546 = vunpack.c.l.b16 %v5793
          %v6547 = vunpack.c.h.b16 %v5793
          %v6548 = vunpack.c.l.b16 %v5794
          %v6549 = vunpack.c.h.b16 %v5794
          %v6550 = vunpack.c.l.b16 %v5795
          %v6551 = vunpack.c.h.b16 %v5795
          %v6552 = vunpack.c.l.b16 %v5796
          %v6553 = vunpack.c.h.b16 %v5796
          %v6554 = vunpack.c.l.b16 %v5797
          %v6555 = vunpack.c.h.b16 %v5797
          %v6556 = vunpack.c.l.b16 %v5798
          %v6557 = vunpack.c.h.b16 %v5798
          %v6558 = vunpack.c.l.b16 %v5799
          %v6559 = vunpack.c.h.b16 %v5799
          %v6560 = vunpack.c.l.b16 %v5800
          %v6561 = vunpack.c.h.b16 %v5800
          %v6562 = vunpack.c.l.b16 %v5801
          %v6563 = vunpack.c.h.b16 %v5801
          %v6564 = vunpack.c.l.b16 %v5802
          %v6565 = vunpack.c.h.b16 %v5802
          %v6566 = vunpack.c.l.b16 %v5803
          %v6567 = vunpack.c.h.b16 %v5803
          %v6568 = vunpack.c.l.b16 %v5804
          %v6569 = vunpack.c.h.b16 %v5804
          %v6570 = vunpack.c.l.b16 %v5805
          %v6571 = vunpack.c.h.b16 %v5805
          %v6572 = vunpack.c.l.b16 %v5806
          %v6573 = vunpack.c.h.b16 %v5806
          %v6574 = vunpack.c.l.b16 %v5807
          %v6575 = vunpack.c.h.b16 %v5807
          %v6576 = vpack.c.b16 %v6072, %v6064
          %v6577 = vpack.c.b16 %v6073, %v6065
          %v6578 = vpack.c.b16 %v6074, %v6066
          %v6579 = vpack.c.b16 %v6075, %v6067
          %v6580 = vpack.c.b16 %v6076, %v6068
          %v6581 = vpack.c.b16 %v6077, %v6069
          %v6582 = vpack.c.b16 %v6078, %v6070
          %v6583 = vpack.c.b16 %v6079, %v6071
          %v6584 = vpack.c.b16 %v6088, %v6080
          %v6585 = vpack.c.b16 %v6089, %v6081
          %v6586 = vpack.c.b16 %v6090, %v6082
          %v6587 = vpack.c.b16 %v6091, %v6083
          %v6588 = vpack.c.b16 %v6092, %v6084
          %v6589 = vpack.c.b16 %v6093, %v6085
          %v6590 = vpack.c.b16 %v6094, %v6086
          %v6591 = vpack.c.b16 %v6095, %v6087
          %v6592 = vpack.c.b16 %v6104, %v6096
          %v6593 = vpack.c.b16 %v6105, %v6097
          %v6594 = vpack.c.b16 %v6106, %v6098
          %v6595 = vpack.c.b16 %v6107, %v6099
          %v6596 = vpack.c.b16 %v6108, %v6100
          %v6597 = vpack.c.b16 %v6109, %v6101
          %v6598 = vpack.c.b16 %v6110, %v6102
          %v6599 = vpack.c.b16 %v6111, %v6103
          %v6600 = vpack.c.b16 %v6120, %v6112
          %v6601 = vpack.c.b16 %v6121, %v6113
          %v6602 = vpack.c.b16 %v6122, %v6114
          %v6603 = vpack.c.b16 %v6123, %v6115
          %v6604 = vpack.c.b16 %v6124, %v6116
          %v6605 = vpack.c.b16 %v6125, %v6117
          %v6606 = vpack.c.b16 %v6126, %v6118
          %v6607 = vpack.c.b16 %v6127, %v6119
          %v6608 = vpack.c.b16 %v6136, %v6128
          %v6609 = vpack.c.b16 %v6137, %v6129
          %v6610 = vpack.c.b16 %v6138, %v6130
          %v6611 = vpack.c.b16 %v6139, %v6131
          %v6612 = vpack.c.b16 %v6140, %v6132
          %v6613 = vpack.c.b16 %v6141, %v6133
          %v6614 = vpack.c.b16 %v6142, %v6134
          %v6615 = vpack.c.b16 %v6143, %v6135
          %v6616 = vpack.c.b16 %v6152, %v6144
          %v6617 = vpack.c.b16 %v6153, %v6145
          %v6618 = vpack.c.b16 %v6154, %v6146
          %v6619 = vpack.c.b16 %v6155, %v6147
          %v6620 = vpack.c.b16 %v6156, %v6148
          %v6621 = vpack.c.b16 %v6157, %v6149
          %v6622 = vpack.c.b16 %v6158, %v6150
          %v6623 = vpack.c.b16 %v6159, %v6151
          %v6624 = vpack.c.b16 %v6168, %v6160
          %v6625 = vpack.c.b16 %v6169, %v6161
          %v6626 = vpack.c.b16 %v6170, %v6162
          %v6627 = vpack.c.b16 %v6171, %v6163
          %v6628 = vpack.c.b16 %v6172, %v6164
          %v6629 = vpack.c.b16 %v6173, %v6165
          %v6630 = vpack.c.b16 %v6174, %v6166
          %v6631 = vpack.c.b16 %v6175, %v6167
          %v6632 = vpack.c.b16 %v6184, %v6176
          %v6633 = vpack.c.b16 %v6185, %v6177
          %v6634 = vpack.c.b16 %v6186, %v6178
          %v6635 = vpack.c.b16 %v6187, %v6179
          %v6636 = vpack.c.b16 %v6188, %v6180
          %v6637 = vpack.c.b16 %v6189, %v6181
          %v6638 = vpack.c.b16 %v6190, %v6182
          %v6639 = vpack.c.b16 %v6191, %v6183
          %v6640 = vpack.c.b16 %v6200, %v6192
          %v6641 = vpack.c.b16 %v6201, %v6193
          %v6642 = vpack.c.b16 %v6202, %v6194
          %v6643 = vpack.c.b16 %v6203, %v6195
          %v6644 = vpack.c.b16 %v6204, %v6196
          %v6645 = vpack.c.b16 %v6205, %v6197
          %v6646 = vpack.c.b16 %v6206, %v6198
          %v6647 = vpack.c.b16 %v6207, %v6199
          %v6648 = vpack.c.b16 %v6216, %v6208
          %v6649 = vpack.c.b16 %v6217, %v6209
          %v6650 = vpack.c.b16 %v6218, %v6210
          %v6651 = vpack.c.b16 %v6219, %v6211
          %v6652 = vpack.c.b16 %v6220, %v6212
          %v6653 = vpack.c.b16 %v6221, %v6213
          %v6654 = vpack.c.b16 %v6222, %v6214
          %v6655 = vpack.c.b16 %v6223, %v6215
          %v6656 = vpack.c.b16 %v6232, %v6224
          %v6657 = vpack.c.b16 %v6233, %v6225
          %v6658 = vpack.c.b16 %v6234, %v6226
          %v6659 = vpack.c.b16 %v6235, %v6227
          %v6660 = vpack.c.b16 %v6236, %v6228
          %v6661 = vpack.c.b16 %v6237, %v6229
          %v6662 = vpack.c.b16 %v6238, %v6230
          %v6663 = vpack.c.b16 %v6239, %v6231
          %v6664 = vpack.c.b16 %v6248, %v6240
          %v6665 = vpack.c.b16 %v6249, %v6241
          %v6666 = vpack.c.b16 %v6250, %v6242
          %v6667 = vpack.c.b16 %v6251, %v6243
          %v6668 = vpack.c.b16 %v6252, %v6244
          %v6669 = vpack.c.b16 %v6253, %v6245
          %v6670 = vpack.c.b16 %v6254, %v6246
          %v6671 = vpack.c.b16 %v6255, %v6247
          %v6672 = vpack.c.b16 %v6264, %v6256
          %v6673 = vpack.c.b16 %v6265, %v6257
          %v6674 = vpack.c.b16 %v6266, %v6258
          %v6675 = vpack.c.b16 %v6267, %v6259
          %v6676 = vpack.c.b16 %v6268, %v6260
          %v6677 = vpack.c.b16 %v6269, %v6261
          %v6678 = vpack.c.b16 %v6270, %v6262
          %v6679 = vpack.c.b16 %v6271, %v6263
          %v6680 = vpack.c.b16 %v6280, %v6272
          %v6681 = vpack.c.b16 %v6281, %v6273
          %v6682 = vpack.c.b16 %v6282, %v6274
          %v6683 = vpack.c.b16 %v6283, %v6275
          %v6684 = vpack.c.b16 %v6284, %v6276
          %v6685 = vpack.c.b16 %v6285, %v6277
          %v6686 = vpack.c.b16 %v6286, %v6278
          %v6687 = vpack.c.b16 %v6287, %v6279
          %v6688 = vpack.c.b16 %v6296, %v6288
          %v6689 = vpack.c.b16 %v6297, %v6289
          %v6690 = vpack.c.b16 %v6298, %v6290
          %v6691 = vpack.c.b16 %v6299, %v6291
          %v6692 = vpack.c.b16 %v6300, %v6292
          %v6693 = vpack.c.b16 %v6301, %v6293
          %v6694 = vpack.c.b16 %v6302, %v6294
          %v6695 = vpack.c.b16 %v6303, %v6295
          %v6696 = vpack.c.b16 %v6312, %v6304
          %v6697 = vpack.c.b16 %v6313, %v6305
          %v6698 = vpack.c.b16 %v6314, %v6306
          %v6699 = vpack.c.b16 %v6315, %v6307
          %v6700 = vpack.c.b16 %v6316, %v6308
          %v6701 = vpack.c.b16 %v6317, %v6309
          %v6702 = vpack.c.b16 %v6318, %v6310
          %v6703 = vpack.c.b16 %v6319, %v6311
          %v6704 = vpack.c.b16 %v6328, %v6320
          %v6705 = vpack.c.b16 %v6329, %v6321
          %v6706 = vpack.c.b16 %v6330, %v6322
          %v6707 = vpack.c.b16 %v6331, %v6323
          %v6708 = vpack.c.b16 %v6332, %v6324
          %v6709 = vpack.c.b16 %v6333, %v6325
          %v6710 = vpack.c.b16 %v6334, %v6326
          %v6711 = vpack.c.b16 %v6335, %v6327
          %v6712 = vpack.c.b16 %v6344, %v6336
          %v6713 = vpack.c.b16 %v6345, %v6337
          %v6714 = vpack.c.b16 %v6346, %v6338
          %v6715 = vpack.c.b16 %v6347, %v6339
          %v6716 = vpack.c.b16 %v6348, %v6340
          %v6717 = vpack.c.b16 %v6349, %v6341
          %v6718 = vpack.c.b16 %v6350, %v6342
          %v6719 = vpack.c.b16 %v6351, %v6343
          %v6720 = vpack.c.b16 %v6360, %v6352
          %v6721 = vpack.c.b16 %v6361, %v6353
          %v6722 = vpack.c.b16 %v6362, %v6354
          %v6723 = vpack.c.b16 %v6363, %v6355
          %v6724 = vpack.c.b16 %v6364, %v6356
          %v6725 = vpack.c.b16 %v6365, %v6357
          %v6726 = vpack.c.b16 %v6366, %v6358
          %v6727 = vpack.c.b16 %v6367, %v6359
          %v6728 = vpack.c.b16 %v6376, %v6368
          %v6729 = vpack.c.b16 %v6377, %v6369
          %v6730 = vpack.c.b16 %v6378, %v6370
          %v6731 = vpack.c.b16 %v6379, %v6371
          %v6732 = vpack.c.b16 %v6380, %v6372
          %v6733 = vpack.c.b16 %v6381, %v6373
          %v6734 = vpack.c.b16 %v6382, %v6374
          %v6735 = vpack.c.b16 %v6383, %v6375
          %v6736 = vpack.c.b16 %v6392, %v6384
          %v6737 = vpack.c.b16 %v6393, %v6385
          %v6738 = vpack.c.b16 %v6394, %v6386
          %v6739 = vpack.c.b16 %v6395, %v6387
          %v6740 = vpack.c.b16 %v6396, %v6388
          %v6741 = vpack.c.b16 %v6397, %v6389
          %v6742 = vpack.c.b16 %v6398, %v6390
          %v6743 = vpack.c.b16 %v6399, %v6391
          %v6744 = vpack.c.b16 %v6408, %v6400
          %v6745 = vpack.c.b16 %v6409, %v6401
          %v6746 = vpack.c.b16 %v6410, %v6402
          %v6747 = vpack.c.b16 %v6411, %v6403
          %v6748 = vpack.c.b16 %v6412, %v6404
          %v6749 = vpack.c.b16 %v6413, %v6405
          %v6750 = vpack.c.b16 %v6414, %v6406
          %v6751 = vpack.c.b16 %v6415, %v6407
          %v6752 = vpack.c.b16 %v6424, %v6416
          %v6753 = vpack.c.b16 %v6425, %v6417
          %v6754 = vpack.c.b16 %v6426, %v6418
          %v6755 = vpack.c.b16 %v6427, %v6419
          %v6756 = vpack.c.b16 %v6428, %v6420
          %v6757 = vpack.c.b16 %v6429, %v6421
          %v6758 = vpack.c.b16 %v6430, %v6422
          %v6759 = vpack.c.b16 %v6431, %v6423
          %v6760 = vpack.c.b16 %v6440, %v6432
          %v6761 = vpack.c.b16 %v6441, %v6433
          %v6762 = vpack.c.b16 %v6442, %v6434
          %v6763 = vpack.c.b16 %v6443, %v6435
          %v6764 = vpack.c.b16 %v6444, %v6436
          %v6765 = vpack.c.b16 %v6445, %v6437
          %v6766 = vpack.c.b16 %v6446, %v6438
          %v6767 = vpack.c.b16 %v6447, %v6439
          %v6768 = vpack.c.b16 %v6456, %v6448
          %v6769 = vpack.c.b16 %v6457, %v6449
          %v6770 = vpack.c.b16 %v6458, %v6450
          %v6771 = vpack.c.b16 %v6459, %v6451
          %v6772 = vpack.c.b16 %v6460, %v6452
          %v6773 = vpack.c.b16 %v6461, %v6453
          %v6774 = vpack.c.b16 %v6462, %v6454
          %v6775 = vpack.c.b16 %v6463, %v6455
          %v6776 = vpack.c.b16 %v6472, %v6464
          %v6777 = vpack.c.b16 %v6473, %v6465
          %v6778 = vpack.c.b16 %v6474, %v6466
          %v6779 = vpack.c.b16 %v6475, %v6467
          %v6780 = vpack.c.b16 %v6476, %v6468
          %v6781 = vpack.c.b16 %v6477, %v6469
          %v6782 = vpack.c.b16 %v6478, %v6470
          %v6783 = vpack.c.b16 %v6479, %v6471
          %v6784 = vpack.c.b16 %v6488, %v6480
          %v6785 = vpack.c.b16 %v6489, %v6481
          %v6786 = vpack.c.b16 %v6490, %v6482
          %v6787 = vpack.c.b16 %v6491, %v6483
          %v6788 = vpack.c.b16 %v6492, %v6484
          %v6789 = vpack.c.b16 %v6493, %v6485
          %v6790 = vpack.c.b16 %v6494, %v6486
          %v6791 = vpack.c.b16 %v6495, %v6487
          %v6792 = vpack.c.b16 %v6504, %v6496
          %v6793 = vpack.c.b16 %v6505, %v6497
          %v6794 = vpack.c.b16 %v6506, %v6498
          %v6795 = vpack.c.b16 %v6507, %v6499
          %v6796 = vpack.c.b16 %v6508, %v6500
          %v6797 = vpack.c.b16 %v6509, %v6501
          %v6798 = vpack.c.b16 %v6510, %v6502
          %v6799 = vpack.c.b16 %v6511, %v6503
          %v6800 = vpack.c.b16 %v6520, %v6512
          %v6801 = vpack.c.b16 %v6521, %v6513
          %v6802 = vpack.c.b16 %v6522, %v6514
          %v6803 = vpack.c.b16 %v6523, %v6515
          %v6804 = vpack.c.b16 %v6524, %v6516
          %v6805 = vpack.c.b16 %v6525, %v6517
          %v6806 = vpack.c.b16 %v6526, %v6518
          %v6807 = vpack.c.b16 %v6527, %v6519
          %v6808 = vpack.c.b16 %v6536, %v6528
          %v6809 = vpack.c.b16 %v6537, %v6529
          %v6810 = vpack.c.b16 %v6538, %v6530
          %v6811 = vpack.c.b16 %v6539, %v6531
          %v6812 = vpack.c.b16 %v6540, %v6532
          %v6813 = vpack.c.b16 %v6541, %v6533
          %v6814 = vpack.c.b16 %v6542, %v6534
          %v6815 = vpack.c.b16 %v6543, %v6535
          %v6816 = vpack.c.b16 %v6552, %v6544
          %v6817 = vpack.c.b16 %v6553, %v6545
          %v6818 = vpack.c.b16 %v6554, %v6546
          %v6819 = vpack.c.b16 %v6555, %v6547
          %v6820 = vpack.c.b16 %v6556, %v6548
          %v6821 = vpack.c.b16 %v6557, %v6549
          %v6822 = vpack.c.b16 %v6558, %v6550
          %v6823 = vpack.c.b16 %v6559, %v6551
          %v6824 = vpack.c.b16 %v6568, %v6560
          %v6825 = vpack.c.b16 %v6569, %v6561
          %v6826 = vpack.c.b16 %v6570, %v6562
          %v6827 = vpack.c.b16 %v6571, %v6563
          %v6828 = vpack.c.b16 %v6572, %v6564
          %v6829 = vpack.c.b16 %v6573, %v6565
          %v6830 = vpack.c.b16 %v6574, %v6566
          %v6831 = vpack.c.b16 %v6575, %v6567
          %7088 = vmatprep.subr.bf16.mxu0 %v6577
          %7089 = vmatpush1.bf16.msra.mxu0 %v6576
          %7090 = vmatprep.subr.bf16.mxu0 %v6585
          %7091 = vmatpush1.bf16.msra.mxu0 %v6584
          %7092 = vmatprep.subr.bf16.mxu0 %v6593
          %7093 = vmatpush1.bf16.msra.mxu0 %v6592
          %7094 = vmatprep.subr.bf16.mxu0 %v6601
          %7095 = vmatpush1.bf16.msra.mxu0 %v6600
          %7096 = vmatprep.subr.bf16.mxu0 %v6609
          %7097 = vmatpush1.bf16.msra.mxu0 %v6608
          %7098 = vmatprep.subr.bf16.mxu0 %v6617
          %7099 = vmatpush1.bf16.msra.mxu0 %v6616
          %7100 = vmatprep.subr.bf16.mxu0 %v6625
          %7101 = vmatpush1.bf16.msra.mxu0 %v6624
          %7102 = vmatprep.subr.bf16.mxu0 %v6633
          %7103 = vmatpush1.bf16.msra.mxu0 %v6632
          %7104 = vmatprep.subr.bf16.mxu0 %v6641
          %7105 = vmatpush1.bf16.msra.mxu0 %v6640
          %7106 = vmatprep.subr.bf16.mxu0 %v6649
          %7107 = vmatpush1.bf16.msra.mxu0 %v6648
          %7108 = vmatprep.subr.bf16.mxu0 %v6657
          %7109 = vmatpush1.bf16.msra.mxu0 %v6656
          %7110 = vmatprep.subr.bf16.mxu0 %v6665
          %7111 = vmatpush1.bf16.msra.mxu0 %v6664
          %7112 = vmatprep.subr.bf16.mxu0 %v6673
          %7113 = vmatpush1.bf16.msra.mxu0 %v6672
          %7114 = vmatprep.subr.bf16.mxu0 %v6681
          %7115 = vmatpush1.bf16.msra.mxu0 %v6680
          %7116 = vmatprep.subr.bf16.mxu0 %v6689
          %7117 = vmatpush1.bf16.msra.mxu0 %v6688
          %7118 = vmatprep.subr.bf16.mxu0 %v6697
          %7119 = vmatpush1.bf16.msra.mxu0 %v6696
          %7120 = vmatprep.mubr.bf16.mxu0 %v5425
          %7121 = vmatmul.mubr.bf16.gmra.mrb[0].mxu0 %v5424
          %v7122 = vpop.f32.mrb[0].mxu0
          %v7123 = vadd.f32 0.0, %v7122
          %v7124 = vpop.f32.mrb[0].mxu0
          %v7125 = vadd.f32 0.0, %v7124
          %v7126 = vpop.f32.mrb[0].mxu0
          %v7127 = vadd.f32 0.0, %v7126
          %v7128 = vpop.f32.mrb[0].mxu0
          %v7129 = vadd.f32 0.0, %v7128
          %7130 = vmatprep.mubr.bf16.mxu0 %v5429
          %7131 = vmatmul.mubr.bf16.gmra.mrb[0].mxu0 %v5428
          %v7132 = vpop.f32.mrb[0].mxu0
          %v7133 = vadd.f32 0.0, %v7132
          %v7134 = vpop.f32.mrb[0].mxu0
          %v7135 = vadd.f32 0.0, %v7134
          %v7136 = vpop.f32.mrb[0].mxu0
          %v7137 = vadd.f32 0.0, %v7136
          %v7138 = vpop.f32.mrb[0].mxu0
          %v7139 = vadd.f32 0.0, %v7138
          %7140 = vmatprep.mubr.bf16.mxu0 %v5433
          %7141 = vmatmul.mubr.bf16.gmra.mrb[0].mxu0 %v5432
          %v7142 = vpop.f32.mrb[0].mxu0
          %v7143 = vadd.f32 0.0, %v7142
          %v7144 = vpop.f32.mrb[0].mxu0
          %v7145 = vadd.f32 0.0, %v7144
          %v7146 = vpop.f32.mrb[0].mxu0
          %v7147 = vadd.f32 0.0, %v7146
          %v7148 = vpop.f32.mrb[0].mxu0
          %v7149 = vadd.f32 0.0, %v7148
          %7150 = vmatprep.mubr.bf16.mxu0 %v5437
          %7151 = vmatmul.mubr.bf16.gmra.mrb[0].mxu0 %v5436
          %v7152 = vpop.f32.mrb[0].mxu0
          %v7153 = vadd.f32 0.0, %v7152
          %v7154 = vpop.f32.mrb[0].mxu0
          %v7155 = vadd.f32 0.0, %v7154
          %v7156 = vpop.f32.mrb[0].mxu0
          %v7157 = vadd.f32 0.0, %v7156
          %v7158 = vpop.f32.mrb[0].mxu0
          %v7159 = vadd.f32 0.0, %v7158
          %7160 = vmatprep.mubr.bf16.mxu0 %v5441
          %7161 = vmatmul.mubr.bf16.gmra.mrb[0].mxu0 %v5440
          %v7162 = vpop.f32.mrb[0].mxu0
          %v7163 = vadd.f32 0.0, %v7162
          %v7164 = vpop.f32.mrb[0].mxu0
          %v7165 = vadd.f32 0.0, %v7164
          %v7166 = vpop.f32.mrb[0].mxu0
          %v7167 = vadd.f32 0.0, %v7166
          %v7168 = vpop.f32.mrb[0].mxu0
          %v7169 = vadd.f32 0.0, %v7168
          %7170 = vmatprep.mubr.bf16.mxu0 %v5445
          %7171 = vmatmul.mubr.bf16.gmra.mrb[0].mxu0 %v5444
          %v7172 = vpop.f32.mrb[0].mxu0
          %v7173 = vadd.f32 0.0, %v7172
          %v7174 = vpop.f32.mrb[0].mxu0
          %v7175 = vadd.f32 0.0, %v7174
          %v7176 = vpop.f32.mrb[0].mxu0
          %v7177 = vadd.f32 0.0, %v7176
          %v7178 = vpop.f32.mrb[0].mxu0
          %v7179 = vadd.f32 0.0, %v7178
          %7180 = vmatprep.mubr.bf16.mxu0 %v5449
          %7181 = vmatmul.mubr.bf16.gmra.mrb[0].mxu0 %v5448
          %v7182 = vpop.f32.mrb[0].mxu0
          %v7183 = vadd.f32 0.0, %v7182
          %v7184 = vpop.f32.mrb[0].mxu0
          %v7185 = vadd.f32 0.0, %v7184
          %v7186 = vpop.f32.mrb[0].mxu0
          %v7187 = vadd.f32 0.0, %v7186
          %v7188 = vpop.f32.mrb[0].mxu0
          %v7189 = vadd.f32 0.0, %v7188
          %7190 = vmatprep.mubr.bf16.mxu0 %v5453
          %7191 = vmatmul.mubr.bf16.gmra.mrb[0].mxu0 %v5452
          %v7192 = vpop.f32.mrb[0].mxu0
          %v7193 = vadd.f32 0.0, %v7192
          %v7194 = vpop.f32.mrb[0].mxu0
          %v7195 = vadd.f32 0.0, %v7194
          %v7196 = vpop.f32.mrb[0].mxu0
          %v7197 = vadd.f32 0.0, %v7196
          %v7198 = vpop.f32.mrb[0].mxu0
          %v7199 = vadd.f32 0.0, %v7198
          %7200 = vmatprep.mubr.bf16.mxu0 %v5457
          %7201 = vmatmul.mubr.bf16.gmra.mrb[0].mxu0 %v5456
          %v7202 = vpop.f32.mrb[0].mxu0
          %v7203 = vadd.f32 0.0, %v7202
          %v7204 = vpop.f32.mrb[0].mxu0
          %v7205 = vadd.f32 0.0, %v7204
          %v7206 = vpop.f32.mrb[0].mxu0
          %v7207 = vadd.f32 0.0, %v7206
          %v7208 = vpop.f32.mrb[0].mxu0
          %v7209 = vadd.f32 0.0, %v7208
          %7210 = vmatprep.mubr.bf16.mxu0 %v5461
          %7211 = vmatmul.mubr.bf16.gmra.mrb[0].mxu0 %v5460
          %v7212 = vpop.f32.mrb[0].mxu0
          %v7213 = vadd.f32 0.0, %v7212
          %v7214 = vpop.f32.mrb[0].mxu0
          %v7215 = vadd.f32 0.0, %v7214
          %v7216 = vpop.f32.mrb[0].mxu0
          %v7217 = vadd.f32 0.0, %v7216
          %v7218 = vpop.f32.mrb[0].mxu0
          %v7219 = vadd.f32 0.0, %v7218
          %7220 = vmatprep.mubr.bf16.mxu0 %v5465
          %7221 = vmatmul.mubr.bf16.gmra.mrb[0].mxu0 %v5464
          %v7222 = vpop.f32.mrb[0].mxu0
          %v7223 = vadd.f32 0.0, %v7222
          %v7224 = vpop.f32.mrb[0].mxu0
          %v7225 = vadd.f32 0.0, %v7224
          %v7226 = vpop.f32.mrb[0].mxu0
          %v7227 = vadd.f32 0.0, %v7226
          %v7228 = vpop.f32.mrb[0].mxu0
          %v7229 = vadd.f32 0.0, %v7228
          %7230 = vmatprep.mubr.bf16.mxu0 %v5469
          %7231 = vmatmul.mubr.bf16.gmra.mrb[0].mxu0 %v5468
          %v7232 = vpop.f32.mrb[0].mxu0
          %v7233 = vadd.f32 0.0, %v7232
          %v7234 = vpop.f32.mrb[0].mxu0
          %v7235 = vadd.f32 0.0, %v7234
          %v7236 = vpop.f32.mrb[0].mxu0
          %v7237 = vadd.f32 0.0, %v7236
          %v7238 = vpop.f32.mrb[0].mxu0
          %v7239 = vadd.f32 0.0, %v7238
          %7240 = vmatprep.mubr.bf16.mxu0 %v5473
          %7241 = vmatmul.mubr.bf16.gmra.mrb[0].mxu0 %v5472
          %v7242 = vpop.f32.mrb[0].mxu0
          %v7243 = vadd.f32 0.0, %v7242
          %v7244 = vpop.f32.mrb[0].mxu0
          %v7245 = vadd.f32 0.0, %v7244
          %v7246 = vpop.f32.mrb[0].mxu0
          %v7247 = vadd.f32 0.0, %v7246
          %v7248 = vpop.f32.mrb[0].mxu0
          %v7249 = vadd.f32 0.0, %v7248
          %7250 = vmatprep.mubr.bf16.mxu0 %v5477
          %7251 = vmatmul.mubr.bf16.gmra.mrb[0].mxu0 %v5476
          %v7252 = vpop.f32.mrb[0].mxu0
          %v7253 = vadd.f32 0.0, %v7252
          %v7254 = vpop.f32.mrb[0].mxu0
          %v7255 = vadd.f32 0.0, %v7254
          %v7256 = vpop.f32.mrb[0].mxu0
          %v7257 = vadd.f32 0.0, %v7256
          %v7258 = vpop.f32.mrb[0].mxu0
          %v7259 = vadd.f32 0.0, %v7258
          %7260 = vmatprep.mubr.bf16.mxu0 %v5481
          %7261 = vmatmul.mubr.bf16.gmra.mrb[0].mxu0 %v5480
          %v7262 = vpop.f32.mrb[0].mxu0
          %v7263 = vadd.f32 0.0, %v7262
          %v7264 = vpop.f32.mrb[0].mxu0
          %v7265 = vadd.f32 0.0, %v7264
          %v7266 = vpop.f32.mrb[0].mxu0
          %v7267 = vadd.f32 0.0, %v7266
          %v7268 = vpop.f32.mrb[0].mxu0
          %v7269 = vadd.f32 0.0, %v7268
          %7270 = vmatprep.mubr.bf16.mxu0 %v5485
          %7271 = vmatmul.mubr.bf16.gmra.mrb[0].mxu0 %v5484
          %v7272 = vpop.f32.mrb[0].mxu0
          %v7273 = vadd.f32 0.0, %v7272
          %v7274 = vpop.f32.mrb[0].mxu0
          %v7275 = vadd.f32 0.0, %v7274
          %v7276 = vpop.f32.mrb[0].mxu0
          %v7277 = vadd.f32 0.0, %v7276
          %v7278 = vpop.f32.mrb[0].mxu0
          %v7279 = vadd.f32 0.0, %v7278
          %7280 = vmatprep.mubr.bf16.mxu0 %v5489
          %7281 = vmatmul.mubr.bf16.gmra.mrb[0].mxu0 %v5488
          %v7282 = vpop.f32.mrb[0].mxu0
          %v7283 = vadd.f32 0.0, %v7282
          %v7284 = vpop.f32.mrb[0].mxu0
          %v7285 = vadd.f32 0.0, %v7284
          %v7286 = vpop.f32.mrb[0].mxu0
          %v7287 = vadd.f32 0.0, %v7286
          %v7288 = vpop.f32.mrb[0].mxu0
          %v7289 = vadd.f32 0.0, %v7288
          %7290 = vmatprep.mubr.bf16.mxu0 %v5493
          %7291 = vmatmul.mubr.bf16.gmra.mrb[0].mxu0 %v5492
          %v7292 = vpop.f32.mrb[0].mxu0
          %v7293 = vadd.f32 0.0, %v7292
          %v7294 = vpop.f32.mrb[0].mxu0
          %v7295 = vadd.f32 0.0, %v7294
          %v7296 = vpop.f32.mrb[0].mxu0
          %v7297 = vadd.f32 0.0, %v7296
          %v7298 = vpop.f32.mrb[0].mxu0
          %v7299 = vadd.f32 0.0, %v7298
          %7300 = vmatprep.mubr.bf16.mxu0 %v5497
          %7301 = vmatmul.mubr.bf16.gmra.mrb[0].mxu0 %v5496
          %v7302 = vpop.f32.mrb[0].mxu0
          %v7303 = vadd.f32 0.0, %v7302
          %v7304 = vpop.f32.mrb[0].mxu0
          %v7305 = vadd.f32 0.0, %v7304
          %v7306 = vpop.f32.mrb[0].mxu0
          %v7307 = vadd.f32 0.0, %v7306
          %v7308 = vpop.f32.mrb[0].mxu0
          %v7309 = vadd.f32 0.0, %v7308
          %7310 = vmatprep.mubr.bf16.mxu0 %v5501
          %7311 = vmatmul.mubr.bf16.gmra.mrb[0].mxu0 %v5500
          %v7312 = vpop.f32.mrb[0].mxu0
          %v7313 = vadd.f32 0.0, %v7312
          %v7314 = vpop.f32.mrb[0].mxu0
          %v7315 = vadd.f32 0.0, %v7314
          %v7316 = vpop.f32.mrb[0].mxu0
          %v7317 = vadd.f32 0.0, %v7316
          %v7318 = vpop.f32.mrb[0].mxu0
          %v7319 = vadd.f32 0.0, %v7318
          %7320 = vmatprep.mubr.bf16.mxu0 %v5505
          %7321 = vmatmul.mubr.bf16.gmra.mrb[0].mxu0 %v5504
          %v7322 = vpop.f32.mrb[0].mxu0
          %v7323 = vadd.f32 0.0, %v7322
          %v7324 = vpop.f32.mrb[0].mxu0
          %v7325 = vadd.f32 0.0, %v7324
          %v7326 = vpop.f32.mrb[0].mxu0
          %v7327 = vadd.f32 0.0, %v7326
          %v7328 = vpop.f32.mrb[0].mxu0
          %v7329 = vadd.f32 0.0, %v7328
          %7330 = vmatprep.mubr.bf16.mxu0 %v5509
          %7331 = vmatmul.mubr.bf16.gmra.mrb[0].mxu0 %v5508
          %v7332 = vpop.f32.mrb[0].mxu0
          %v7333 = vadd.f32 0.0, %v7332
          %v7334 = vpop.f32.mrb[0].mxu0
          %v7335 = vadd.f32 0.0, %v7334
          %v7336 = vpop.f32.mrb[0].mxu0
          %v7337 = vadd.f32 0.0, %v7336
          %v7338 = vpop.f32.mrb[0].mxu0
          %v7339 = vadd.f32 0.0, %v7338
          %7340 = vmatprep.mubr.bf16.mxu0 %v5513
          %7341 = vmatmul.mubr.bf16.gmra.mrb[0].mxu0 %v5512
          %v7342 = vpop.f32.mrb[0].mxu0
          %v7343 = vadd.f32 0.0, %v7342
          %v7344 = vpop.f32.mrb[0].mxu0
          %v7345 = vadd.f32 0.0, %v7344
          %v7346 = vpop.f32.mrb[0].mxu0
          %v7347 = vadd.f32 0.0, %v7346
          %v7348 = vpop.f32.mrb[0].mxu0
          %v7349 = vadd.f32 0.0, %v7348
          %7350 = vmatprep.mubr.bf16.mxu0 %v5517
          %7351 = vmatmul.mubr.bf16.gmra.mrb[0].mxu0 %v5516
          %v7352 = vpop.f32.mrb[0].mxu0
          %v7353 = vadd.f32 0.0, %v7352
          %v7354 = vpop.f32.mrb[0].mxu0
          %v7355 = vadd.f32 0.0, %v7354
          %v7356 = vpop.f32.mrb[0].mxu0
          %v7357 = vadd.f32 0.0, %v7356
          %v7358 = vpop.f32.mrb[0].mxu0
          %v7359 = vadd.f32 0.0, %v7358
          %7360 = vmatprep.mubr.bf16.mxu0 %v5521
          %7361 = vmatmul.mubr.bf16.gmra.mrb[0].mxu0 %v5520
          %v7362 = vpop.f32.mrb[0].mxu0
          %v7363 = vadd.f32 0.0, %v7362
          %v7364 = vpop.f32.mrb[0].mxu0
          %v7365 = vadd.f32 0.0, %v7364
          %v7366 = vpop.f32.mrb[0].mxu0
          %v7367 = vadd.f32 0.0, %v7366
          %v7368 = vpop.f32.mrb[0].mxu0
          %v7369 = vadd.f32 0.0, %v7368
          %7370 = vmatprep.mubr.bf16.mxu0 %v5525
          %7371 = vmatmul.mubr.bf16.gmra.mrb[0].mxu0 %v5524
          %v7372 = vpop.f32.mrb[0].mxu0
          %v7373 = vadd.f32 0.0, %v7372
          %v7374 = vpop.f32.mrb[0].mxu0
          %v7375 = vadd.f32 0.0, %v7374
          %v7376 = vpop.f32.mrb[0].mxu0
          %v7377 = vadd.f32 0.0, %v7376
          %v7378 = vpop.f32.mrb[0].mxu0
          %v7379 = vadd.f32 0.0, %v7378
          %7380 = vmatprep.mubr.bf16.mxu0 %v5529
          %7381 = vmatmul.mubr.bf16.gmra.mrb[0].mxu0 %v5528
          %v7382 = vpop.f32.mrb[0].mxu0
          %v7383 = vadd.f32 0.0, %v7382
          %v7384 = vpop.f32.mrb[0].mxu0
          %v7385 = vadd.f32 0.0, %v7384
          %v7386 = vpop.f32.mrb[0].mxu0
          %v7387 = vadd.f32 0.0, %v7386
          %v7388 = vpop.f32.mrb[0].mxu0
          %v7389 = vadd.f32 0.0, %v7388
          %7390 = vmatprep.mubr.bf16.mxu0 %v5533
          %7391 = vmatmul.mubr.bf16.gmra.mrb[0].mxu0 %v5532
          %v7392 = vpop.f32.mrb[0].mxu0
          %v7393 = vadd.f32 0.0, %v7392
          %v7394 = vpop.f32.mrb[0].mxu0
          %v7395 = vadd.f32 0.0, %v7394
          %v7396 = vpop.f32.mrb[0].mxu0
          %v7397 = vadd.f32 0.0, %v7396
          %v7398 = vpop.f32.mrb[0].mxu0
          %v7399 = vadd.f32 0.0, %v7398
          %7400 = vmatprep.mubr.bf16.mxu0 %v5537
          %7401 = vmatmul.mubr.bf16.gmra.mrb[0].mxu0 %v5536
          %v7402 = vpop.f32.mrb[0].mxu0
          %v7403 = vadd.f32 0.0, %v7402
          %v7404 = vpop.f32.mrb[0].mxu0
          %v7405 = vadd.f32 0.0, %v7404
          %v7406 = vpop.f32.mrb[0].mxu0
          %v7407 = vadd.f32 0.0, %v7406
          %v7408 = vpop.f32.mrb[0].mxu0
          %v7409 = vadd.f32 0.0, %v7408
          %7410 = vmatprep.mubr.bf16.mxu0 %v5541
          %7411 = vmatmul.mubr.bf16.gmra.mrb[0].mxu0 %v5540
          %v7412 = vpop.f32.mrb[0].mxu0
          %v7413 = vadd.f32 0.0, %v7412
          %v7414 = vpop.f32.mrb[0].mxu0
          %v7415 = vadd.f32 0.0, %v7414
          %v7416 = vpop.f32.mrb[0].mxu0
          %v7417 = vadd.f32 0.0, %v7416
          %v7418 = vpop.f32.mrb[0].mxu0
          %v7419 = vadd.f32 0.0, %v7418
          %7420 = vmatprep.mubr.bf16.mxu0 %v5545
          %7421 = vmatmul.mubr.bf16.gmra.mrb[0].mxu0 %v5544
          %v7422 = vpop.f32.mrb[0].mxu0
          %v7423 = vadd.f32 0.0, %v7422
          %v7424 = vpop.f32.mrb[0].mxu0
          %v7425 = vadd.f32 0.0, %v7424
          %v7426 = vpop.f32.mrb[0].mxu0
          %v7427 = vadd.f32 0.0, %v7426
          %v7428 = vpop.f32.mrb[0].mxu0
          %v7429 = vadd.f32 0.0, %v7428
          %7430 = vmatprep.mubr.bf16.mxu0 %v5549
          %7431 = vmatmul.mubr.bf16.gmra.mrb[0].mxu0 %v5548
          %v7432 = vpop.f32.mrb[0].mxu0
          %v7433 = vadd.f32 0.0, %v7432
          %v7434 = vpop.f32.mrb[0].mxu0
          %v7435 = vadd.f32 0.0, %v7434
          %v7436 = vpop.f32.mrb[0].mxu0
          %v7437 = vadd.f32 0.0, %v7436
          %v7438 = vpop.f32.mrb[0].mxu0
          %v7439 = vadd.f32 0.0, %v7438
          %7440 = vdwg.mxu0
          %7441 = vmatprep.subr.bf16.mxu0 %v6705
          %7442 = vmatpush1.bf16.msra.mxu0 %v6704
          %7443 = vmatprep.subr.bf16.mxu0 %v6713
          %7444 = vmatpush1.bf16.msra.mxu0 %v6712
          %7445 = vmatprep.subr.bf16.mxu0 %v6721
          %7446 = vmatpush1.bf16.msra.mxu0 %v6720
          %7447 = vmatprep.subr.bf16.mxu0 %v6729
          %7448 = vmatpush1.bf16.msra.mxu0 %v6728
          %7449 = vmatprep.subr.bf16.mxu0 %v6737
          %7450 = vmatpush1.bf16.msra.mxu0 %v6736
          %7451 = vmatprep.subr.bf16.mxu0 %v6745
          %7452 = vmatpush1.bf16.msra.mxu0 %v6744
          %7453 = vmatprep.subr.bf16.mxu0 %v6753
          %7454 = vmatpush1.bf16.msra.mxu0 %v6752
          %7455 = vmatprep.subr.bf16.mxu0 %v6761
          %7456 = vmatpush1.bf16.msra.mxu0 %v6760
          %7457 = vmatprep.subr.bf16.mxu0 %v6769
          %7458 = vmatpush1.bf16.msra.mxu0 %v6768
          %7459 = vmatprep.subr.bf16.mxu0 %v6777
          %7460 = vmatpush1.bf16.msra.mxu0 %v6776
          %7461 = vmatprep.subr.bf16.mxu0 %v6785
          %7462 = vmatpush1.bf16.msra.mxu0 %v6784
          %7463 = vmatprep.subr.bf16.mxu0 %v6793
          %7464 = vmatpush1.bf16.msra.mxu0 %v6792
          %7465 = vmatprep.subr.bf16.mxu0 %v6801
          %7466 = vmatpush1.bf16.msra.mxu0 %v6800
          %7467 = vmatprep.subr.bf16.mxu0 %v6809
          %7468 = vmatpush1.bf16.msra.mxu0 %v6808
          %7469 = vmatprep.subr.bf16.mxu0 %v6817
          %7470 = vmatpush1.bf16.msra.mxu0 %v6816
          %7471 = vmatprep.subr.bf16.mxu0 %v6825
          %7472 = vmatpush1.bf16.msra.mxu0 %v6824
          %7473 = vmatprep.mubr.bf16.mxu0 %v5427
          %7474 = vmatmul.mubr.bf16.gmra.mrb[0].mxu0 %v5426
          %v7475 = vpop.f32.mrb[0].mxu0
          %v7476 = vadd.f32 %v7123, %v7475
          %v7477 = vpop.f32.mrb[0].mxu0
          %v7478 = vadd.f32 %v7125, %v7477
          %v7479 = vpop.f32.mrb[0].mxu0
          %v7480 = vadd.f32 %v7127, %v7479
          %v7481 = vpop.f32.mrb[0].mxu0
          %v7482 = vadd.f32 %v7129, %v7481
          %7483 = vmatprep.mubr.bf16.mxu0 %v5431
          %7484 = vmatmul.mubr.bf16.gmra.mrb[0].mxu0 %v5430
          %v7485 = vpop.f32.mrb[0].mxu0
          %v7486 = vadd.f32 %v7133, %v7485
          %v7487 = vpop.f32.mrb[0].mxu0
          %v7488 = vadd.f32 %v7135, %v7487
          %v7489 = vpop.f32.mrb[0].mxu0
          %v7490 = vadd.f32 %v7137, %v7489
          %v7491 = vpop.f32.mrb[0].mxu0
          %v7492 = vadd.f32 %v7139, %v7491
          %7493 = vmatprep.mubr.bf16.mxu0 %v5435
          %7494 = vmatmul.mubr.bf16.gmra.mrb[0].mxu0 %v5434
          %v7495 = vpop.f32.mrb[0].mxu0
          %v7496 = vadd.f32 %v7143, %v7495
          %v7497 = vpop.f32.mrb[0].mxu0
          %v7498 = vadd.f32 %v7145, %v7497
          %v7499 = vpop.f32.mrb[0].mxu0
          %v7500 = vadd.f32 %v7147, %v7499
          %v7501 = vpop.f32.mrb[0].mxu0
          %v7502 = vadd.f32 %v7149, %v7501
          %7503 = vmatprep.mubr.bf16.mxu0 %v5439
          %7504 = vmatmul.mubr.bf16.gmra.mrb[0].mxu0 %v5438
          %v7505 = vpop.f32.mrb[0].mxu0
          %v7506 = vadd.f32 %v7153, %v7505
          %v7507 = vpop.f32.mrb[0].mxu0
          %v7508 = vadd.f32 %v7155, %v7507
          %v7509 = vpop.f32.mrb[0].mxu0
          %v7510 = vadd.f32 %v7157, %v7509
          %v7511 = vpop.f32.mrb[0].mxu0
          %v7512 = vadd.f32 %v7159, %v7511
          %7513 = vmatprep.mubr.bf16.mxu0 %v5443
          %7514 = vmatmul.mubr.bf16.gmra.mrb[0].mxu0 %v5442
          %v7515 = vpop.f32.mrb[0].mxu0
          %v7516 = vadd.f32 %v7163, %v7515
          %v7517 = vpop.f32.mrb[0].mxu0
          %v7518 = vadd.f32 %v7165, %v7517
          %v7519 = vpop.f32.mrb[0].mxu0
          %v7520 = vadd.f32 %v7167, %v7519
          %v7521 = vpop.f32.mrb[0].mxu0
          %v7522 = vadd.f32 %v7169, %v7521
          %7523 = vmatprep.mubr.bf16.mxu0 %v5447
          %7524 = vmatmul.mubr.bf16.gmra.mrb[0].mxu0 %v5446
          %v7525 = vpop.f32.mrb[0].mxu0
          %v7526 = vadd.f32 %v7173, %v7525
          %v7527 = vpop.f32.mrb[0].mxu0
          %v7528 = vadd.f32 %v7175, %v7527
          %v7529 = vpop.f32.mrb[0].mxu0
          %v7530 = vadd.f32 %v7177, %v7529
          %v7531 = vpop.f32.mrb[0].mxu0
          %v7532 = vadd.f32 %v7179, %v7531
          %7533 = vmatprep.mubr.bf16.mxu0 %v5451
          %7534 = vmatmul.mubr.bf16.gmra.mrb[0].mxu0 %v5450
          %v7535 = vpop.f32.mrb[0].mxu0
          %v7536 = vadd.f32 %v7183, %v7535
          %v7537 = vpop.f32.mrb[0].mxu0
          %v7538 = vadd.f32 %v7185, %v7537
          %v7539 = vpop.f32.mrb[0].mxu0
          %v7540 = vadd.f32 %v7187, %v7539
          %v7541 = vpop.f32.mrb[0].mxu0
          %v7542 = vadd.f32 %v7189, %v7541
          %7543 = vmatprep.mubr.bf16.mxu0 %v5455
          %7544 = vmatmul.mubr.bf16.gmra.mrb[0].mxu0 %v5454
          %v7545 = vpop.f32.mrb[0].mxu0
          %v7546 = vadd.f32 %v7193, %v7545
          %v7547 = vpop.f32.mrb[0].mxu0
          %v7548 = vadd.f32 %v7195, %v7547
          %v7549 = vpop.f32.mrb[0].mxu0
          %v7550 = vadd.f32 %v7197, %v7549
          %v7551 = vpop.f32.mrb[0].mxu0
          %v7552 = vadd.f32 %v7199, %v7551
          %7553 = vmatprep.mubr.bf16.mxu0 %v5459
          %7554 = vmatmul.mubr.bf16.gmra.mrb[0].mxu0 %v5458
          %v7555 = vpop.f32.mrb[0].mxu0
          %v7556 = vadd.f32 %v7203, %v7555
          %v7557 = vpop.f32.mrb[0].mxu0
          %v7558 = vadd.f32 %v7205, %v7557
          %v7559 = vpop.f32.mrb[0].mxu0
          %v7560 = vadd.f32 %v7207, %v7559
          %v7561 = vpop.f32.mrb[0].mxu0
          %v7562 = vadd.f32 %v7209, %v7561
          %7563 = vmatprep.mubr.bf16.mxu0 %v5463
          %7564 = vmatmul.mubr.bf16.gmra.mrb[0].mxu0 %v5462
          %v7565 = vpop.f32.mrb[0].mxu0
          %v7566 = vadd.f32 %v7213, %v7565
          %v7567 = vpop.f32.mrb[0].mxu0
          %v7568 = vadd.f32 %v7215, %v7567
          %v7569 = vpop.f32.mrb[0].mxu0
          %v7570 = vadd.f32 %v7217, %v7569
          %v7571 = vpop.f32.mrb[0].mxu0
          %v7572 = vadd.f32 %v7219, %v7571
          %7573 = vmatprep.mubr.bf16.mxu0 %v5467
          %7574 = vmatmul.mubr.bf16.gmra.mrb[0].mxu0 %v5466
          %v7575 = vpop.f32.mrb[0].mxu0
          %v7576 = vadd.f32 %v7223, %v7575
          %v7577 = vpop.f32.mrb[0].mxu0
          %v7578 = vadd.f32 %v7225, %v7577
          %v7579 = vpop.f32.mrb[0].mxu0
          %v7580 = vadd.f32 %v7227, %v7579
          %v7581 = vpop.f32.mrb[0].mxu0
          %v7582 = vadd.f32 %v7229, %v7581
          %7583 = vmatprep.mubr.bf16.mxu0 %v5471
          %7584 = vmatmul.mubr.bf16.gmra.mrb[0].mxu0 %v5470
          %v7585 = vpop.f32.mrb[0].mxu0
          %v7586 = vadd.f32 %v7233, %v7585
          %v7587 = vpop.f32.mrb[0].mxu0
          %v7588 = vadd.f32 %v7235, %v7587
          %v7589 = vpop.f32.mrb[0].mxu0
          %v7590 = vadd.f32 %v7237, %v7589
          %v7591 = vpop.f32.mrb[0].mxu0
          %v7592 = vadd.f32 %v7239, %v7591
          %7593 = vmatprep.mubr.bf16.mxu0 %v5475
          %7594 = vmatmul.mubr.bf16.gmra.mrb[0].mxu0 %v5474
          %v7595 = vpop.f32.mrb[0].mxu0
          %v7596 = vadd.f32 %v7243, %v7595
          %v7597 = vpop.f32.mrb[0].mxu0
          %v7598 = vadd.f32 %v7245, %v7597
          %v7599 = vpop.f32.mrb[0].mxu0
          %v7600 = vadd.f32 %v7247, %v7599
          %v7601 = vpop.f32.mrb[0].mxu0
          %v7602 = vadd.f32 %v7249, %v7601
          %7603 = vmatprep.mubr.bf16.mxu0 %v5479
          %7604 = vmatmul.mubr.bf16.gmra.mrb[0].mxu0 %v5478
          %v7605 = vpop.f32.mrb[0].mxu0
          %v7606 = vadd.f32 %v7253, %v7605
          %v7607 = vpop.f32.mrb[0].mxu0
          %v7608 = vadd.f32 %v7255, %v7607
          %v7609 = vpop.f32.mrb[0].mxu0
          %v7610 = vadd.f32 %v7257, %v7609
          %v7611 = vpop.f32.mrb[0].mxu0
          %v7612 = vadd.f32 %v7259, %v7611
          %7613 = vmatprep.mubr.bf16.mxu0 %v5483
          %7614 = vmatmul.mubr.bf16.gmra.mrb[0].mxu0 %v5482
          %v7615 = vpop.f32.mrb[0].mxu0
          %v7616 = vadd.f32 %v7263, %v7615
          %v7617 = vpop.f32.mrb[0].mxu0
          %v7618 = vadd.f32 %v7265, %v7617
          %v7619 = vpop.f32.mrb[0].mxu0
          %v7620 = vadd.f32 %v7267, %v7619
          %v7621 = vpop.f32.mrb[0].mxu0
          %v7622 = vadd.f32 %v7269, %v7621
          %7623 = vmatprep.mubr.bf16.mxu0 %v5487
          %7624 = vmatmul.mubr.bf16.gmra.mrb[0].mxu0 %v5486
          %v7625 = vpop.f32.mrb[0].mxu0
          %v7626 = vadd.f32 %v7273, %v7625
          %v7627 = vpop.f32.mrb[0].mxu0
          %v7628 = vadd.f32 %v7275, %v7627
          %v7629 = vpop.f32.mrb[0].mxu0
          %v7630 = vadd.f32 %v7277, %v7629
          %v7631 = vpop.f32.mrb[0].mxu0
          %v7632 = vadd.f32 %v7279, %v7631
          %7633 = vmatprep.mubr.bf16.mxu0 %v5491
          %7634 = vmatmul.mubr.bf16.gmra.mrb[0].mxu0 %v5490
          %v7635 = vpop.f32.mrb[0].mxu0
          %v7636 = vadd.f32 %v7283, %v7635
          %v7637 = vpop.f32.mrb[0].mxu0
          %v7638 = vadd.f32 %v7285, %v7637
          %v7639 = vpop.f32.mrb[0].mxu0
          %v7640 = vadd.f32 %v7287, %v7639
          %v7641 = vpop.f32.mrb[0].mxu0
          %v7642 = vadd.f32 %v7289, %v7641
          %7643 = vmatprep.mubr.bf16.mxu0 %v5495
          %7644 = vmatmul.mubr.bf16.gmra.mrb[0].mxu0 %v5494
          %v7645 = vpop.f32.mrb[0].mxu0
          %v7646 = vadd.f32 %v7293, %v7645
          %v7647 = vpop.f32.mrb[0].mxu0
          %v7648 = vadd.f32 %v7295, %v7647
          %v7649 = vpop.f32.mrb[0].mxu0
          %v7650 = vadd.f32 %v7297, %v7649
          %v7651 = vpop.f32.mrb[0].mxu0
          %v7652 = vadd.f32 %v7299, %v7651
          %7653 = vmatprep.mubr.bf16.mxu0 %v5499
          %7654 = vmatmul.mubr.bf16.gmra.mrb[0].mxu0 %v5498
          %v7655 = vpop.f32.mrb[0].mxu0
          %v7656 = vadd.f32 %v7303, %v7655
          %v7657 = vpop.f32.mrb[0].mxu0
          %v7658 = vadd.f32 %v7305, %v7657
          %v7659 = vpop.f32.mrb[0].mxu0
          %v7660 = vadd.f32 %v7307, %v7659
          %v7661 = vpop.f32.mrb[0].mxu0
          %v7662 = vadd.f32 %v7309, %v7661
          %7663 = vmatprep.mubr.bf16.mxu0 %v5503
          %7664 = vmatmul.mubr.bf16.gmra.mrb[0].mxu0 %v5502
          %v7665 = vpop.f32.mrb[0].mxu0
          %v7666 = vadd.f32 %v7313, %v7665
          %v7667 = vpop.f32.mrb[0].mxu0
          %v7668 = vadd.f32 %v7315, %v7667
          %v7669 = vpop.f32.mrb[0].mxu0
          %v7670 = vadd.f32 %v7317, %v7669
          %v7671 = vpop.f32.mrb[0].mxu0
          %v7672 = vadd.f32 %v7319, %v7671
          %7673 = vmatprep.mubr.bf16.mxu0 %v5507
          %7674 = vmatmul.mubr.bf16.gmra.mrb[0].mxu0 %v5506
          %v7675 = vpop.f32.mrb[0].mxu0
          %v7676 = vadd.f32 %v7323, %v7675
          %v7677 = vpop.f32.mrb[0].mxu0
          %v7678 = vadd.f32 %v7325, %v7677
          %v7679 = vpop.f32.mrb[0].mxu0
          %v7680 = vadd.f32 %v7327, %v7679
          %v7681 = vpop.f32.mrb[0].mxu0
          %v7682 = vadd.f32 %v7329, %v7681
          %7683 = vmatprep.mubr.bf16.mxu0 %v5511
          %7684 = vmatmul.mubr.bf16.gmra.mrb[0].mxu0 %v5510
          %v7685 = vpop.f32.mrb[0].mxu0
          %v7686 = vadd.f32 %v7333, %v7685
          %v7687 = vpop.f32.mrb[0].mxu0
          %v7688 = vadd.f32 %v7335, %v7687
          %v7689 = vpop.f32.mrb[0].mxu0
          %v7690 = vadd.f32 %v7337, %v7689
          %v7691 = vpop.f32.mrb[0].mxu0
          %v7692 = vadd.f32 %v7339, %v7691
          %7693 = vmatprep.mubr.bf16.mxu0 %v5515
          %7694 = vmatmul.mubr.bf16.gmra.mrb[0].mxu0 %v5514
          %v7695 = vpop.f32.mrb[0].mxu0
          %v7696 = vadd.f32 %v7343, %v7695
          %v7697 = vpop.f32.mrb[0].mxu0
          %v7698 = vadd.f32 %v7345, %v7697
          %v7699 = vpop.f32.mrb[0].mxu0
          %v7700 = vadd.f32 %v7347, %v7699
          %v7701 = vpop.f32.mrb[0].mxu0
          %v7702 = vadd.f32 %v7349, %v7701
          %7703 = vmatprep.mubr.bf16.mxu0 %v5519
          %7704 = vmatmul.mubr.bf16.gmra.mrb[0].mxu0 %v5518
          %v7705 = vpop.f32.mrb[0].mxu0
          %v7706 = vadd.f32 %v7353, %v7705
          %v7707 = vpop.f32.mrb[0].mxu0
          %v7708 = vadd.f32 %v7355, %v7707
          %v7709 = vpop.f32.mrb[0].mxu0
          %v7710 = vadd.f32 %v7357, %v7709
          %v7711 = vpop.f32.mrb[0].mxu0
          %v7712 = vadd.f32 %v7359, %v7711
          %7713 = vmatprep.mubr.bf16.mxu0 %v5523
          %7714 = vmatmul.mubr.bf16.gmra.mrb[0].mxu0 %v5522
          %v7715 = vpop.f32.mrb[0].mxu0
          %v7716 = vadd.f32 %v7363, %v7715
          %v7717 = vpop.f32.mrb[0].mxu0
          %v7718 = vadd.f32 %v7365, %v7717
          %v7719 = vpop.f32.mrb[0].mxu0
          %v7720 = vadd.f32 %v7367, %v7719
          %v7721 = vpop.f32.mrb[0].mxu0
          %v7722 = vadd.f32 %v7369, %v7721
          %7723 = vmatprep.mubr.bf16.mxu0 %v5527
          %7724 = vmatmul.mubr.bf16.gmra.mrb[0].mxu0 %v5526
          %v7725 = vpop.f32.mrb[0].mxu0
          %v7726 = vadd.f32 %v7373, %v7725
          %v7727 = vpop.f32.mrb[0].mxu0
          %v7728 = vadd.f32 %v7375, %v7727
          %v7729 = vpop.f32.mrb[0].mxu0
          %v7730 = vadd.f32 %v7377, %v7729
          %v7731 = vpop.f32.mrb[0].mxu0
          %v7732 = vadd.f32 %v7379, %v7731
          %7733 = vmatprep.mubr.bf16.mxu0 %v5531
          %7734 = vmatmul.mubr.bf16.gmra.mrb[0].mxu0 %v5530
          %v7735 = vpop.f32.mrb[0].mxu0
          %v7736 = vadd.f32 %v7383, %v7735
          %v7737 = vpop.f32.mrb[0].mxu0
          %v7738 = vadd.f32 %v7385, %v7737
          %v7739 = vpop.f32.mrb[0].mxu0
          %v7740 = vadd.f32 %v7387, %v7739
          %v7741 = vpop.f32.mrb[0].mxu0
          %v7742 = vadd.f32 %v7389, %v7741
          %7743 = vmatprep.mubr.bf16.mxu0 %v5535
          %7744 = vmatmul.mubr.bf16.gmra.mrb[0].mxu0 %v5534
          %v7745 = vpop.f32.mrb[0].mxu0
          %v7746 = vadd.f32 %v7393, %v7745
          %v7747 = vpop.f32.mrb[0].mxu0
          %v7748 = vadd.f32 %v7395, %v7747
          %v7749 = vpop.f32.mrb[0].mxu0
          %v7750 = vadd.f32 %v7397, %v7749
          %v7751 = vpop.f32.mrb[0].mxu0
          %v7752 = vadd.f32 %v7399, %v7751
          %7753 = vmatprep.mubr.bf16.mxu0 %v5539
          %7754 = vmatmul.mubr.bf16.gmra.mrb[0].mxu0 %v5538
          %v7755 = vpop.f32.mrb[0].mxu0
          %v7756 = vadd.f32 %v7403, %v7755
          %v7757 = vpop.f32.mrb[0].mxu0
          %v7758 = vadd.f32 %v7405, %v7757
          %v7759 = vpop.f32.mrb[0].mxu0
          %v7760 = vadd.f32 %v7407, %v7759
          %v7761 = vpop.f32.mrb[0].mxu0
          %v7762 = vadd.f32 %v7409, %v7761
          %7763 = vmatprep.mubr.bf16.mxu0 %v5543
          %7764 = vmatmul.mubr.bf16.gmra.mrb[0].mxu0 %v5542
          %v7765 = vpop.f32.mrb[0].mxu0
          %v7766 = vadd.f32 %v7413, %v7765
          %v7767 = vpop.f32.mrb[0].mxu0
          %v7768 = vadd.f32 %v7415, %v7767
          %v7769 = vpop.f32.mrb[0].mxu0
          %v7770 = vadd.f32 %v7417, %v7769
          %v7771 = vpop.f32.mrb[0].mxu0
          %v7772 = vadd.f32 %v7419, %v7771
          %7773 = vmatprep.mubr.bf16.mxu0 %v5547
          %7774 = vmatmul.mubr.bf16.gmra.mrb[0].mxu0 %v5546
          %v7775 = vpop.f32.mrb[0].mxu0
          %v7776 = vadd.f32 %v7423, %v7775
          %v7777 = vpop.f32.mrb[0].mxu0
          %v7778 = vadd.f32 %v7425, %v7777
          %v7779 = vpop.f32.mrb[0].mxu0
          %v7780 = vadd.f32 %v7427, %v7779
          %v7781 = vpop.f32.mrb[0].mxu0
          %v7782 = vadd.f32 %v7429, %v7781
          %7783 = vmatprep.mubr.bf16.mxu0 %v5551
          %7784 = vmatmul.mubr.bf16.gmra.mrb[0].mxu0 %v5550
          %v7785 = vpop.f32.mrb[0].mxu0
          %v7786 = vadd.f32 %v7433, %v7785
          %v7787 = vpop.f32.mrb[0].mxu0
          %v7788 = vadd.f32 %v7435, %v7787
          %v7789 = vpop.f32.mrb[0].mxu0
          %v7790 = vadd.f32 %v7437, %v7789
          %v7791 = vpop.f32.mrb[0].mxu0
          %v7792 = vadd.f32 %v7439, %v7791
          %7793 = vdwg.mxu0
          %7794 = vmatprep.subr.bf16.mxu0 %v6579
          %7795 = vmatpush1.bf16.msra.mxu0 %v6578
          %7796 = vmatprep.subr.bf16.mxu0 %v6587
          %7797 = vmatpush1.bf16.msra.mxu0 %v6586
          %7798 = vmatprep.subr.bf16.mxu0 %v6595
          %7799 = vmatpush1.bf16.msra.mxu0 %v6594
          %7800 = vmatprep.subr.bf16.mxu0 %v6603
          %7801 = vmatpush1.bf16.msra.mxu0 %v6602
          %7802 = vmatprep.subr.bf16.mxu0 %v6611
          %7803 = vmatpush1.bf16.msra.mxu0 %v6610
          %7804 = vmatprep.subr.bf16.mxu0 %v6619
          %7805 = vmatpush1.bf16.msra.mxu0 %v6618
          %7806 = vmatprep.subr.bf16.mxu0 %v6627
          %7807 = vmatpush1.bf16.msra.mxu0 %v6626
          %7808 = vmatprep.subr.bf16.mxu0 %v6635
          %7809 = vmatpush1.bf16.msra.mxu0 %v6634
          %7810 = vmatprep.subr.bf16.mxu0 %v6643
          %7811 = vmatpush1.bf16.msra.mxu0 %v6642
          %7812 = vmatprep.subr.bf16.mxu0 %v6651
          %7813 = vmatpush1.bf16.msra.mxu0 %v6650
          %7814 = vmatprep.subr.bf16.mxu0 %v6659
          %7815 = vmatpush1.bf16.msra.mxu0 %v6658
          %7816 = vmatprep.subr.bf16.mxu0 %v6667
          %7817 = vmatpush1.bf16.msra.mxu0 %v6666
          %7818 = vmatprep.subr.bf16.mxu0 %v6675
          %7819 = vmatpush1.bf16.msra.mxu0 %v6674
          %7820 = vmatprep.subr.bf16.mxu0 %v6683
          %7821 = vmatpush1.bf16.msra.mxu0 %v6682
          %7822 = vmatprep.subr.bf16.mxu0 %v6691
          %7823 = vmatpush1.bf16.msra.mxu0 %v6690
          %7824 = vmatprep.subr.bf16.mxu0 %v6699
          %7825 = vmatpush1.bf16.msra.mxu0 %v6698
          %7826 = vmatprep.mubr.bf16.mxu0 %v5425
          %7827 = vmatmul.mubr.bf16.gmra.mrb[0].mxu0 %v5424
          %v7828 = vpop.f32.mrb[0].mxu0
          %v7829 = vadd.f32 0.0, %v7828
          %v7830 = vpop.f32.mrb[0].mxu0
          %v7831 = vadd.f32 0.0, %v7830
          %v7832 = vpop.f32.mrb[0].mxu0
          %v7833 = vadd.f32 0.0, %v7832
          %v7834 = vpop.f32.mrb[0].mxu0
          %v7835 = vadd.f32 0.0, %v7834
          %7836 = vmatprep.mubr.bf16.mxu0 %v5429
          %7837 = vmatmul.mubr.bf16.gmra.mrb[0].mxu0 %v5428
          %v7838 = vpop.f32.mrb[0].mxu0
          %v7839 = vadd.f32 0.0, %v7838
          %v7840 = vpop.f32.mrb[0].mxu0
          %v7841 = vadd.f32 0.0, %v7840
          %v7842 = vpop.f32.mrb[0].mxu0
          %v7843 = vadd.f32 0.0, %v7842
          %v7844 = vpop.f32.mrb[0].mxu0
          %v7845 = vadd.f32 0.0, %v7844
          %7846 = vmatprep.mubr.bf16.mxu0 %v5433
          %7847 = vmatmul.mubr.bf16.gmra.mrb[0].mxu0 %v5432
          %v7848 = vpop.f32.mrb[0].mxu0
          %v7849 = vadd.f32 0.0, %v7848
          %v7850 = vpop.f32.mrb[0].mxu0
          %v7851 = vadd.f32 0.0, %v7850
          %v7852 = vpop.f32.mrb[0].mxu0
          %v7853 = vadd.f32 0.0, %v7852
          %v7854 = vpop.f32.mrb[0].mxu0
          %v7855 = vadd.f32 0.0, %v7854
          %7856 = vmatprep.mubr.bf16.mxu0 %v5437
          %7857 = vmatmul.mubr.bf16.gmra.mrb[0].mxu0 %v5436
          %v7858 = vpop.f32.mrb[0].mxu0
          %v7859 = vadd.f32 0.0, %v7858
          %v7860 = vpop.f32.mrb[0].mxu0
          %v7861 = vadd.f32 0.0, %v7860
          %v7862 = vpop.f32.mrb[0].mxu0
          %v7863 = vadd.f32 0.0, %v7862
          %v7864 = vpop.f32.mrb[0].mxu0
          %v7865 = vadd.f32 0.0, %v7864
          %7866 = vmatprep.mubr.bf16.mxu0 %v5441
          %7867 = vmatmul.mubr.bf16.gmra.mrb[0].mxu0 %v5440
          %v7868 = vpop.f32.mrb[0].mxu0
          %v7869 = vadd.f32 0.0, %v7868
          %v7870 = vpop.f32.mrb[0].mxu0
          %v7871 = vadd.f32 0.0, %v7870
          %v7872 = vpop.f32.mrb[0].mxu0
          %v7873 = vadd.f32 0.0, %v7872
          %v7874 = vpop.f32.mrb[0].mxu0
          %v7875 = vadd.f32 0.0, %v7874
          %7876 = vmatprep.mubr.bf16.mxu0 %v5445
          %7877 = vmatmul.mubr.bf16.gmra.mrb[0].mxu0 %v5444
          %v7878 = vpop.f32.mrb[0].mxu0
          %v7879 = vadd.f32 0.0, %v7878
          %v7880 = vpop.f32.mrb[0].mxu0
          %v7881 = vadd.f32 0.0, %v7880
          %v7882 = vpop.f32.mrb[0].mxu0
          %v7883 = vadd.f32 0.0, %v7882
          %v7884 = vpop.f32.mrb[0].mxu0
          %v7885 = vadd.f32 0.0, %v7884
          %7886 = vmatprep.mubr.bf16.mxu0 %v5449
          %7887 = vmatmul.mubr.bf16.gmra.mrb[0].mxu0 %v5448
          %v7888 = vpop.f32.mrb[0].mxu0
          %v7889 = vadd.f32 0.0, %v7888
          %v7890 = vpop.f32.mrb[0].mxu0
          %v7891 = vadd.f32 0.0, %v7890
          %v7892 = vpop.f32.mrb[0].mxu0
          %v7893 = vadd.f32 0.0, %v7892
          %v7894 = vpop.f32.mrb[0].mxu0
          %v7895 = vadd.f32 0.0, %v7894
          %7896 = vmatprep.mubr.bf16.mxu0 %v5453
          %7897 = vmatmul.mubr.bf16.gmra.mrb[0].mxu0 %v5452
          %v7898 = vpop.f32.mrb[0].mxu0
          %v7899 = vadd.f32 0.0, %v7898
          %v7900 = vpop.f32.mrb[0].mxu0
          %v7901 = vadd.f32 0.0, %v7900
          %v7902 = vpop.f32.mrb[0].mxu0
          %v7903 = vadd.f32 0.0, %v7902
          %v7904 = vpop.f32.mrb[0].mxu0
          %v7905 = vadd.f32 0.0, %v7904
          %7906 = vmatprep.mubr.bf16.mxu0 %v5457
          %7907 = vmatmul.mubr.bf16.gmra.mrb[0].mxu0 %v5456
          %v7908 = vpop.f32.mrb[0].mxu0
          %v7909 = vadd.f32 0.0, %v7908
          %v7910 = vpop.f32.mrb[0].mxu0
          %v7911 = vadd.f32 0.0, %v7910
          %v7912 = vpop.f32.mrb[0].mxu0
          %v7913 = vadd.f32 0.0, %v7912
          %v7914 = vpop.f32.mrb[0].mxu0
          %v7915 = vadd.f32 0.0, %v7914
          %7916 = vmatprep.mubr.bf16.mxu0 %v5461
          %7917 = vmatmul.mubr.bf16.gmra.mrb[0].mxu0 %v5460
          %v7918 = vpop.f32.mrb[0].mxu0
          %v7919 = vadd.f32 0.0, %v7918
          %v7920 = vpop.f32.mrb[0].mxu0
          %v7921 = vadd.f32 0.0, %v7920
          %v7922 = vpop.f32.mrb[0].mxu0
          %v7923 = vadd.f32 0.0, %v7922
          %v7924 = vpop.f32.mrb[0].mxu0
          %v7925 = vadd.f32 0.0, %v7924
          %7926 = vmatprep.mubr.bf16.mxu0 %v5465
          %7927 = vmatmul.mubr.bf16.gmra.mrb[0].mxu0 %v5464
          %v7928 = vpop.f32.mrb[0].mxu0
          %v7929 = vadd.f32 0.0, %v7928
          %v7930 = vpop.f32.mrb[0].mxu0
          %v7931 = vadd.f32 0.0, %v7930
          %v7932 = vpop.f32.mrb[0].mxu0
          %v7933 = vadd.f32 0.0, %v7932
          %v7934 = vpop.f32.mrb[0].mxu0
          %v7935 = vadd.f32 0.0, %v7934
          %7936 = vmatprep.mubr.bf16.mxu0 %v5469
          %7937 = vmatmul.mubr.bf16.gmra.mrb[0].mxu0 %v5468
          %v7938 = vpop.f32.mrb[0].mxu0
          %v7939 = vadd.f32 0.0, %v7938
          %v7940 = vpop.f32.mrb[0].mxu0
          %v7941 = vadd.f32 0.0, %v7940
          %v7942 = vpop.f32.mrb[0].mxu0
          %v7943 = vadd.f32 0.0, %v7942
          %v7944 = vpop.f32.mrb[0].mxu0
          %v7945 = vadd.f32 0.0, %v7944
          %7946 = vmatprep.mubr.bf16.mxu0 %v5473
          %7947 = vmatmul.mubr.bf16.gmra.mrb[0].mxu0 %v5472
          %v7948 = vpop.f32.mrb[0].mxu0
          %v7949 = vadd.f32 0.0, %v7948
          %v7950 = vpop.f32.mrb[0].mxu0
          %v7951 = vadd.f32 0.0, %v7950
          %v7952 = vpop.f32.mrb[0].mxu0
          %v7953 = vadd.f32 0.0, %v7952
          %v7954 = vpop.f32.mrb[0].mxu0
          %v7955 = vadd.f32 0.0, %v7954
          %7956 = vmatprep.mubr.bf16.mxu0 %v5477
          %7957 = vmatmul.mubr.bf16.gmra.mrb[0].mxu0 %v5476
          %v7958 = vpop.f32.mrb[0].mxu0
          %v7959 = vadd.f32 0.0, %v7958
          %v7960 = vpop.f32.mrb[0].mxu0
          %v7961 = vadd.f32 0.0, %v7960
          %v7962 = vpop.f32.mrb[0].mxu0
          %v7963 = vadd.f32 0.0, %v7962
          %v7964 = vpop.f32.mrb[0].mxu0
          %v7965 = vadd.f32 0.0, %v7964
          %7966 = vmatprep.mubr.bf16.mxu0 %v5481
          %7967 = vmatmul.mubr.bf16.gmra.mrb[0].mxu0 %v5480
          %v7968 = vpop.f32.mrb[0].mxu0
          %v7969 = vadd.f32 0.0, %v7968
          %v7970 = vpop.f32.mrb[0].mxu0
          %v7971 = vadd.f32 0.0, %v7970
          %v7972 = vpop.f32.mrb[0].mxu0
          %v7973 = vadd.f32 0.0, %v7972
          %v7974 = vpop.f32.mrb[0].mxu0
          %v7975 = vadd.f32 0.0, %v7974
          %7976 = vmatprep.mubr.bf16.mxu0 %v5485
          %7977 = vmatmul.mubr.bf16.gmra.mrb[0].mxu0 %v5484
          %v7978 = vpop.f32.mrb[0].mxu0
          %v7979 = vadd.f32 0.0, %v7978
          %v7980 = vpop.f32.mrb[0].mxu0
          %v7981 = vadd.f32 0.0, %v7980
          %v7982 = vpop.f32.mrb[0].mxu0
          %v7983 = vadd.f32 0.0, %v7982
          %v7984 = vpop.f32.mrb[0].mxu0
          %v7985 = vadd.f32 0.0, %v7984
          %7986 = vmatprep.mubr.bf16.mxu0 %v5489
          %7987 = vmatmul.mubr.bf16.gmra.mrb[0].mxu0 %v5488
          %v7988 = vpop.f32.mrb[0].mxu0
          %v7989 = vadd.f32 0.0, %v7988
          %v7990 = vpop.f32.mrb[0].mxu0
          %v7991 = vadd.f32 0.0, %v7990
          %v7992 = vpop.f32.mrb[0].mxu0
          %v7993 = vadd.f32 0.0, %v7992
          %v7994 = vpop.f32.mrb[0].mxu0
          %v7995 = vadd.f32 0.0, %v7994
          %7996 = vmatprep.mubr.bf16.mxu0 %v5493
          %7997 = vmatmul.mubr.bf16.gmra.mrb[0].mxu0 %v5492
          %v7998 = vpop.f32.mrb[0].mxu0
          %v7999 = vadd.f32 0.0, %v7998
          %v8000 = vpop.f32.mrb[0].mxu0
          %v8001 = vadd.f32 0.0, %v8000
          %v8002 = vpop.f32.mrb[0].mxu0
          %v8003 = vadd.f32 0.0, %v8002
          %v8004 = vpop.f32.mrb[0].mxu0
          %v8005 = vadd.f32 0.0, %v8004
          %8006 = vmatprep.mubr.bf16.mxu0 %v5497
          %8007 = vmatmul.mubr.bf16.gmra.mrb[0].mxu0 %v5496
          %v8008 = vpop.f32.mrb[0].mxu0
          %v8009 = vadd.f32 0.0, %v8008
          %v8010 = vpop.f32.mrb[0].mxu0
          %v8011 = vadd.f32 0.0, %v8010
          %v8012 = vpop.f32.mrb[0].mxu0
          %v8013 = vadd.f32 0.0, %v8012
          %v8014 = vpop.f32.mrb[0].mxu0
          %v8015 = vadd.f32 0.0, %v8014
          %8016 = vmatprep.mubr.bf16.mxu0 %v5501
          %8017 = vmatmul.mubr.bf16.gmra.mrb[0].mxu0 %v5500
          %v8018 = vpop.f32.mrb[0].mxu0
          %v8019 = vadd.f32 0.0, %v8018
          %v8020 = vpop.f32.mrb[0].mxu0
          %v8021 = vadd.f32 0.0, %v8020
          %v8022 = vpop.f32.mrb[0].mxu0
          %v8023 = vadd.f32 0.0, %v8022
          %v8024 = vpop.f32.mrb[0].mxu0
          %v8025 = vadd.f32 0.0, %v8024
          %8026 = vmatprep.mubr.bf16.mxu0 %v5505
          %8027 = vmatmul.mubr.bf16.gmra.mrb[0].mxu0 %v5504
          %v8028 = vpop.f32.mrb[0].mxu0
          %v8029 = vadd.f32 0.0, %v8028
          %v8030 = vpop.f32.mrb[0].mxu0
          %v8031 = vadd.f32 0.0, %v8030
          %v8032 = vpop.f32.mrb[0].mxu0
          %v8033 = vadd.f32 0.0, %v8032
          %v8034 = vpop.f32.mrb[0].mxu0
          %v8035 = vadd.f32 0.0, %v8034
          %8036 = vmatprep.mubr.bf16.mxu0 %v5509
          %8037 = vmatmul.mubr.bf16.gmra.mrb[0].mxu0 %v5508
          %v8038 = vpop.f32.mrb[0].mxu0
          %v8039 = vadd.f32 0.0, %v8038
          %v8040 = vpop.f32.mrb[0].mxu0
          %v8041 = vadd.f32 0.0, %v8040
          %v8042 = vpop.f32.mrb[0].mxu0
          %v8043 = vadd.f32 0.0, %v8042
          %v8044 = vpop.f32.mrb[0].mxu0
          %v8045 = vadd.f32 0.0, %v8044
          %8046 = vmatprep.mubr.bf16.mxu0 %v5513
          %8047 = vmatmul.mubr.bf16.gmra.mrb[0].mxu0 %v5512
          %v8048 = vpop.f32.mrb[0].mxu0
          %v8049 = vadd.f32 0.0, %v8048
          %v8050 = vpop.f32.mrb[0].mxu0
          %v8051 = vadd.f32 0.0, %v8050
          %v8052 = vpop.f32.mrb[0].mxu0
          %v8053 = vadd.f32 0.0, %v8052
          %v8054 = vpop.f32.mrb[0].mxu0
          %v8055 = vadd.f32 0.0, %v8054
          %8056 = vmatprep.mubr.bf16.mxu0 %v5517
          %8057 = vmatmul.mubr.bf16.gmra.mrb[0].mxu0 %v5516
          %v8058 = vpop.f32.mrb[0].mxu0
          %v8059 = vadd.f32 0.0, %v8058
          %v8060 = vpop.f32.mrb[0].mxu0
          %v8061 = vadd.f32 0.0, %v8060
          %v8062 = vpop.f32.mrb[0].mxu0
          %v8063 = vadd.f32 0.0, %v8062
          %v8064 = vpop.f32.mrb[0].mxu0
          %v8065 = vadd.f32 0.0, %v8064
          %8066 = vmatprep.mubr.bf16.mxu0 %v5521
          %8067 = vmatmul.mubr.bf16.gmra.mrb[0].mxu0 %v5520
          %v8068 = vpop.f32.mrb[0].mxu0
          %v8069 = vadd.f32 0.0, %v8068
          %v8070 = vpop.f32.mrb[0].mxu0
          %v8071 = vadd.f32 0.0, %v8070
          %v8072 = vpop.f32.mrb[0].mxu0
          %v8073 = vadd.f32 0.0, %v8072
          %v8074 = vpop.f32.mrb[0].mxu0
          %v8075 = vadd.f32 0.0, %v8074
          %8076 = vmatprep.mubr.bf16.mxu0 %v5525
          %8077 = vmatmul.mubr.bf16.gmra.mrb[0].mxu0 %v5524
          %v8078 = vpop.f32.mrb[0].mxu0
          %v8079 = vadd.f32 0.0, %v8078
          %v8080 = vpop.f32.mrb[0].mxu0
          %v8081 = vadd.f32 0.0, %v8080
          %v8082 = vpop.f32.mrb[0].mxu0
          %v8083 = vadd.f32 0.0, %v8082
          %v8084 = vpop.f32.mrb[0].mxu0
          %v8085 = vadd.f32 0.0, %v8084
          %8086 = vmatprep.mubr.bf16.mxu0 %v5529
          %8087 = vmatmul.mubr.bf16.gmra.mrb[0].mxu0 %v5528
          %v8088 = vpop.f32.mrb[0].mxu0
          %v8089 = vadd.f32 0.0, %v8088
          %v8090 = vpop.f32.mrb[0].mxu0
          %v8091 = vadd.f32 0.0, %v8090
          %v8092 = vpop.f32.mrb[0].mxu0
          %v8093 = vadd.f32 0.0, %v8092
          %v8094 = vpop.f32.mrb[0].mxu0
          %v8095 = vadd.f32 0.0, %v8094
          %8096 = vmatprep.mubr.bf16.mxu0 %v5533
          %8097 = vmatmul.mubr.bf16.gmra.mrb[0].mxu0 %v5532
          %v8098 = vpop.f32.mrb[0].mxu0
          %v8099 = vadd.f32 0.0, %v8098
          %v8100 = vpop.f32.mrb[0].mxu0
          %v8101 = vadd.f32 0.0, %v8100
          %v8102 = vpop.f32.mrb[0].mxu0
          %v8103 = vadd.f32 0.0, %v8102
          %v8104 = vpop.f32.mrb[0].mxu0
          %v8105 = vadd.f32 0.0, %v8104
          %8106 = vmatprep.mubr.bf16.mxu0 %v5537
          %8107 = vmatmul.mubr.bf16.gmra.mrb[0].mxu0 %v5536
          %v8108 = vpop.f32.mrb[0].mxu0
          %v8109 = vadd.f32 0.0, %v8108
          %v8110 = vpop.f32.mrb[0].mxu0
          %v8111 = vadd.f32 0.0, %v8110
          %v8112 = vpop.f32.mrb[0].mxu0
          %v8113 = vadd.f32 0.0, %v8112
          %v8114 = vpop.f32.mrb[0].mxu0
          %v8115 = vadd.f32 0.0, %v8114
          %8116 = vmatprep.mubr.bf16.mxu0 %v5541
          %8117 = vmatmul.mubr.bf16.gmra.mrb[0].mxu0 %v5540
          %v8118 = vpop.f32.mrb[0].mxu0
          %v8119 = vadd.f32 0.0, %v8118
          %v8120 = vpop.f32.mrb[0].mxu0
          %v8121 = vadd.f32 0.0, %v8120
          %v8122 = vpop.f32.mrb[0].mxu0
          %v8123 = vadd.f32 0.0, %v8122
          %v8124 = vpop.f32.mrb[0].mxu0
          %v8125 = vadd.f32 0.0, %v8124
          %8126 = vmatprep.mubr.bf16.mxu0 %v5545
          %8127 = vmatmul.mubr.bf16.gmra.mrb[0].mxu0 %v5544
          %v8128 = vpop.f32.mrb[0].mxu0
          %v8129 = vadd.f32 0.0, %v8128
          %v8130 = vpop.f32.mrb[0].mxu0
          %v8131 = vadd.f32 0.0, %v8130
          %v8132 = vpop.f32.mrb[0].mxu0
          %v8133 = vadd.f32 0.0, %v8132
          %v8134 = vpop.f32.mrb[0].mxu0
          %v8135 = vadd.f32 0.0, %v8134
          %8136 = vmatprep.mubr.bf16.mxu0 %v5549
          %8137 = vmatmul.mubr.bf16.gmra.mrb[0].mxu0 %v5548
          %v8138 = vpop.f32.mrb[0].mxu0
          %v8139 = vadd.f32 0.0, %v8138
          %v8140 = vpop.f32.mrb[0].mxu0
          %v8141 = vadd.f32 0.0, %v8140
          %v8142 = vpop.f32.mrb[0].mxu0
          %v8143 = vadd.f32 0.0, %v8142
          %v8144 = vpop.f32.mrb[0].mxu0
          %v8145 = vadd.f32 0.0, %v8144
          %8146 = vdwg.mxu0
          %8147 = vmatprep.subr.bf16.mxu0 %v6707
          %8148 = vmatpush1.bf16.msra.mxu0 %v6706
          %8149 = vmatprep.subr.bf16.mxu0 %v6715
          %8150 = vmatpush1.bf16.msra.mxu0 %v6714
          %8151 = vmatprep.subr.bf16.mxu0 %v6723
          %8152 = vmatpush1.bf16.msra.mxu0 %v6722
          %8153 = vmatprep.subr.bf16.mxu0 %v6731
          %8154 = vmatpush1.bf16.msra.mxu0 %v6730
          %8155 = vmatprep.subr.bf16.mxu0 %v6739
          %8156 = vmatpush1.bf16.msra.mxu0 %v6738
          %8157 = vmatprep.subr.bf16.mxu0 %v6747
          %8158 = vmatpush1.bf16.msra.mxu0 %v6746
          %8159 = vmatprep.subr.bf16.mxu0 %v6755
          %8160 = vmatpush1.bf16.msra.mxu0 %v6754
          %8161 = vmatprep.subr.bf16.mxu0 %v6763
          %8162 = vmatpush1.bf16.msra.mxu0 %v6762
          %8163 = vmatprep.subr.bf16.mxu0 %v6771
          %8164 = vmatpush1.bf16.msra.mxu0 %v6770
          %8165 = vmatprep.subr.bf16.mxu0 %v6779
          %8166 = vmatpush1.bf16.msra.mxu0 %v6778
          %8167 = vmatprep.subr.bf16.mxu0 %v6787
          %8168 = vmatpush1.bf16.msra.mxu0 %v6786
          %8169 = vmatprep.subr.bf16.mxu0 %v6795
          %8170 = vmatpush1.bf16.msra.mxu0 %v6794
          %8171 = vmatprep.subr.bf16.mxu0 %v6803
          %8172 = vmatpush1.bf16.msra.mxu0 %v6802
          %8173 = vmatprep.subr.bf16.mxu0 %v6811
          %8174 = vmatpush1.bf16.msra.mxu0 %v6810
          %8175 = vmatprep.subr.bf16.mxu0 %v6819
          %8176 = vmatpush1.bf16.msra.mxu0 %v6818
          %8177 = vmatprep.subr.bf16.mxu0 %v6827
          %8178 = vmatpush1.bf16.msra.mxu0 %v6826
          %8179 = vmatprep.mubr.bf16.mxu0 %v5427
          %8180 = vmatmul.mubr.bf16.gmra.mrb[0].mxu0 %v5426
          %v8181 = vpop.f32.mrb[0].mxu0
          %v8182 = vadd.f32 %v7829, %v8181
          %v8183 = vpop.f32.mrb[0].mxu0
          %v8184 = vadd.f32 %v7831, %v8183
          %v8185 = vpop.f32.mrb[0].mxu0
          %v8186 = vadd.f32 %v7833, %v8185
          %v8187 = vpop.f32.mrb[0].mxu0
          %v8188 = vadd.f32 %v7835, %v8187
          %8189 = vmatprep.mubr.bf16.mxu0 %v5431
          %8190 = vmatmul.mubr.bf16.gmra.mrb[0].mxu0 %v5430
          %v8191 = vpop.f32.mrb[0].mxu0
          %v8192 = vadd.f32 %v7839, %v8191
          %v8193 = vpop.f32.mrb[0].mxu0
          %v8194 = vadd.f32 %v7841, %v8193
          %v8195 = vpop.f32.mrb[0].mxu0
          %v8196 = vadd.f32 %v7843, %v8195
          %v8197 = vpop.f32.mrb[0].mxu0
          %v8198 = vadd.f32 %v7845, %v8197
          %8199 = vmatprep.mubr.bf16.mxu0 %v5435
          %8200 = vmatmul.mubr.bf16.gmra.mrb[0].mxu0 %v5434
          %v8201 = vpop.f32.mrb[0].mxu0
          %v8202 = vadd.f32 %v7849, %v8201
          %v8203 = vpop.f32.mrb[0].mxu0
          %v8204 = vadd.f32 %v7851, %v8203
          %v8205 = vpop.f32.mrb[0].mxu0
          %v8206 = vadd.f32 %v7853, %v8205
          %v8207 = vpop.f32.mrb[0].mxu0
          %v8208 = vadd.f32 %v7855, %v8207
          %8209 = vmatprep.mubr.bf16.mxu0 %v5439
          %8210 = vmatmul.mubr.bf16.gmra.mrb[0].mxu0 %v5438
          %v8211 = vpop.f32.mrb[0].mxu0
          %v8212 = vadd.f32 %v7859, %v8211
          %v8213 = vpop.f32.mrb[0].mxu0
          %v8214 = vadd.f32 %v7861, %v8213
          %v8215 = vpop.f32.mrb[0].mxu0
          %v8216 = vadd.f32 %v7863, %v8215
          %v8217 = vpop.f32.mrb[0].mxu0
          %v8218 = vadd.f32 %v7865, %v8217
          %8219 = vmatprep.mubr.bf16.mxu0 %v5443
          %8220 = vmatmul.mubr.bf16.gmra.mrb[0].mxu0 %v5442
          %v8221 = vpop.f32.mrb[0].mxu0
          %v8222 = vadd.f32 %v7869, %v8221
          %v8223 = vpop.f32.mrb[0].mxu0
          %v8224 = vadd.f32 %v7871, %v8223
          %v8225 = vpop.f32.mrb[0].mxu0
          %v8226 = vadd.f32 %v7873, %v8225
          %v8227 = vpop.f32.mrb[0].mxu0
          %v8228 = vadd.f32 %v7875, %v8227
          %8229 = vmatprep.mubr.bf16.mxu0 %v5447
          %8230 = vmatmul.mubr.bf16.gmra.mrb[0].mxu0 %v5446
          %v8231 = vpop.f32.mrb[0].mxu0
          %v8232 = vadd.f32 %v7879, %v8231
          %v8233 = vpop.f32.mrb[0].mxu0
          %v8234 = vadd.f32 %v7881, %v8233
          %v8235 = vpop.f32.mrb[0].mxu0
          %v8236 = vadd.f32 %v7883, %v8235
          %v8237 = vpop.f32.mrb[0].mxu0
          %v8238 = vadd.f32 %v7885, %v8237
          %8239 = vmatprep.mubr.bf16.mxu0 %v5451
          %8240 = vmatmul.mubr.bf16.gmra.mrb[0].mxu0 %v5450
          %v8241 = vpop.f32.mrb[0].mxu0
          %v8242 = vadd.f32 %v7889, %v8241
          %v8243 = vpop.f32.mrb[0].mxu0
          %v8244 = vadd.f32 %v7891, %v8243
          %v8245 = vpop.f32.mrb[0].mxu0
          %v8246 = vadd.f32 %v7893, %v8245
          %v8247 = vpop.f32.mrb[0].mxu0
          %v8248 = vadd.f32 %v7895, %v8247
          %8249 = vmatprep.mubr.bf16.mxu0 %v5455
          %8250 = vmatmul.mubr.bf16.gmra.mrb[0].mxu0 %v5454
          %v8251 = vpop.f32.mrb[0].mxu0
          %v8252 = vadd.f32 %v7899, %v8251
          %v8253 = vpop.f32.mrb[0].mxu0
          %v8254 = vadd.f32 %v7901, %v8253
          %v8255 = vpop.f32.mrb[0].mxu0
          %v8256 = vadd.f32 %v7903, %v8255
          %v8257 = vpop.f32.mrb[0].mxu0
          %v8258 = vadd.f32 %v7905, %v8257
          %8259 = vmatprep.mubr.bf16.mxu0 %v5459
          %8260 = vmatmul.mubr.bf16.gmra.mrb[0].mxu0 %v5458
          %v8261 = vpop.f32.mrb[0].mxu0
          %v8262 = vadd.f32 %v7909, %v8261
          %v8263 = vpop.f32.mrb[0].mxu0
          %v8264 = vadd.f32 %v7911, %v8263
          %v8265 = vpop.f32.mrb[0].mxu0
          %v8266 = vadd.f32 %v7913, %v8265
          %v8267 = vpop.f32.mrb[0].mxu0
          %v8268 = vadd.f32 %v7915, %v8267
          %8269 = vmatprep.mubr.bf16.mxu0 %v5463
          %8270 = vmatmul.mubr.bf16.gmra.mrb[0].mxu0 %v5462
          %v8271 = vpop.f32.mrb[0].mxu0
          %v8272 = vadd.f32 %v7919, %v8271
          %v8273 = vpop.f32.mrb[0].mxu0
          %v8274 = vadd.f32 %v7921, %v8273
          %v8275 = vpop.f32.mrb[0].mxu0
          %v8276 = vadd.f32 %v7923, %v8275
          %v8277 = vpop.f32.mrb[0].mxu0
          %v8278 = vadd.f32 %v7925, %v8277
          %8279 = vmatprep.mubr.bf16.mxu0 %v5467
          %8280 = vmatmul.mubr.bf16.gmra.mrb[0].mxu0 %v5466
          %v8281 = vpop.f32.mrb[0].mxu0
          %v8282 = vadd.f32 %v7929, %v8281
          %v8283 = vpop.f32.mrb[0].mxu0
          %v8284 = vadd.f32 %v7931, %v8283
          %v8285 = vpop.f32.mrb[0].mxu0
          %v8286 = vadd.f32 %v7933, %v8285
          %v8287 = vpop.f32.mrb[0].mxu0
          %v8288 = vadd.f32 %v7935, %v8287
          %8289 = vmatprep.mubr.bf16.mxu0 %v5471
          %8290 = vmatmul.mubr.bf16.gmra.mrb[0].mxu0 %v5470
          %v8291 = vpop.f32.mrb[0].mxu0
          %v8292 = vadd.f32 %v7939, %v8291
          %v8293 = vpop.f32.mrb[0].mxu0
          %v8294 = vadd.f32 %v7941, %v8293
          %v8295 = vpop.f32.mrb[0].mxu0
          %v8296 = vadd.f32 %v7943, %v8295
          %v8297 = vpop.f32.mrb[0].mxu0
          %v8298 = vadd.f32 %v7945, %v8297
          %8299 = vmatprep.mubr.bf16.mxu0 %v5475
          %8300 = vmatmul.mubr.bf16.gmra.mrb[0].mxu0 %v5474
          %v8301 = vpop.f32.mrb[0].mxu0
          %v8302 = vadd.f32 %v7949, %v8301
          %v8303 = vpop.f32.mrb[0].mxu0
          %v8304 = vadd.f32 %v7951, %v8303
          %v8305 = vpop.f32.mrb[0].mxu0
          %v8306 = vadd.f32 %v7953, %v8305
          %v8307 = vpop.f32.mrb[0].mxu0
          %v8308 = vadd.f32 %v7955, %v8307
          %8309 = vmatprep.mubr.bf16.mxu0 %v5479
          %8310 = vmatmul.mubr.bf16.gmra.mrb[0].mxu0 %v5478
          %v8311 = vpop.f32.mrb[0].mxu0
          %v8312 = vadd.f32 %v7959, %v8311
          %v8313 = vpop.f32.mrb[0].mxu0
          %v8314 = vadd.f32 %v7961, %v8313
          %v8315 = vpop.f32.mrb[0].mxu0
          %v8316 = vadd.f32 %v7963, %v8315
          %v8317 = vpop.f32.mrb[0].mxu0
          %v8318 = vadd.f32 %v7965, %v8317
          %8319 = vmatprep.mubr.bf16.mxu0 %v5483
          %8320 = vmatmul.mubr.bf16.gmra.mrb[0].mxu0 %v5482
          %v8321 = vpop.f32.mrb[0].mxu0
          %v8322 = vadd.f32 %v7969, %v8321
          %v8323 = vpop.f32.mrb[0].mxu0
          %v8324 = vadd.f32 %v7971, %v8323
          %v8325 = vpop.f32.mrb[0].mxu0
          %v8326 = vadd.f32 %v7973, %v8325
          %v8327 = vpop.f32.mrb[0].mxu0
          %v8328 = vadd.f32 %v7975, %v8327
          %8329 = vmatprep.mubr.bf16.mxu0 %v5487
          %8330 = vmatmul.mubr.bf16.gmra.mrb[0].mxu0 %v5486
          %v8331 = vpop.f32.mrb[0].mxu0
          %v8332 = vadd.f32 %v7979, %v8331
          %v8333 = vpop.f32.mrb[0].mxu0
          %v8334 = vadd.f32 %v7981, %v8333
          %v8335 = vpop.f32.mrb[0].mxu0
          %v8336 = vadd.f32 %v7983, %v8335
          %v8337 = vpop.f32.mrb[0].mxu0
          %v8338 = vadd.f32 %v7985, %v8337
          %8339 = vmatprep.mubr.bf16.mxu0 %v5491
          %8340 = vmatmul.mubr.bf16.gmra.mrb[0].mxu0 %v5490
          %v8341 = vpop.f32.mrb[0].mxu0
          %v8342 = vadd.f32 %v7989, %v8341
          %v8343 = vpop.f32.mrb[0].mxu0
          %v8344 = vadd.f32 %v7991, %v8343
          %v8345 = vpop.f32.mrb[0].mxu0
          %v8346 = vadd.f32 %v7993, %v8345
          %v8347 = vpop.f32.mrb[0].mxu0
          %v8348 = vadd.f32 %v7995, %v8347
          %8349 = vmatprep.mubr.bf16.mxu0 %v5495
          %8350 = vmatmul.mubr.bf16.gmra.mrb[0].mxu0 %v5494
          %v8351 = vpop.f32.mrb[0].mxu0
          %v8352 = vadd.f32 %v7999, %v8351
          %v8353 = vpop.f32.mrb[0].mxu0
          %v8354 = vadd.f32 %v8001, %v8353
          %v8355 = vpop.f32.mrb[0].mxu0
          %v8356 = vadd.f32 %v8003, %v8355
          %v8357 = vpop.f32.mrb[0].mxu0
          %v8358 = vadd.f32 %v8005, %v8357
          %8359 = vmatprep.mubr.bf16.mxu0 %v5499
          %8360 = vmatmul.mubr.bf16.gmra.mrb[0].mxu0 %v5498
          %v8361 = vpop.f32.mrb[0].mxu0
          %v8362 = vadd.f32 %v8009, %v8361
          %v8363 = vpop.f32.mrb[0].mxu0
          %v8364 = vadd.f32 %v8011, %v8363
          %v8365 = vpop.f32.mrb[0].mxu0
          %v8366 = vadd.f32 %v8013, %v8365
          %v8367 = vpop.f32.mrb[0].mxu0
          %v8368 = vadd.f32 %v8015, %v8367
          %8369 = vmatprep.mubr.bf16.mxu0 %v5503
          %8370 = vmatmul.mubr.bf16.gmra.mrb[0].mxu0 %v5502
          %v8371 = vpop.f32.mrb[0].mxu0
          %v8372 = vadd.f32 %v8019, %v8371
          %v8373 = vpop.f32.mrb[0].mxu0
          %v8374 = vadd.f32 %v8021, %v8373
          %v8375 = vpop.f32.mrb[0].mxu0
          %v8376 = vadd.f32 %v8023, %v8375
          %v8377 = vpop.f32.mrb[0].mxu0
          %v8378 = vadd.f32 %v8025, %v8377
          %8379 = vmatprep.mubr.bf16.mxu0 %v5507
          %8380 = vmatmul.mubr.bf16.gmra.mrb[0].mxu0 %v5506
          %v8381 = vpop.f32.mrb[0].mxu0
          %v8382 = vadd.f32 %v8029, %v8381
          %v8383 = vpop.f32.mrb[0].mxu0
          %v8384 = vadd.f32 %v8031, %v8383
          %v8385 = vpop.f32.mrb[0].mxu0
          %v8386 = vadd.f32 %v8033, %v8385
          %v8387 = vpop.f32.mrb[0].mxu0
          %v8388 = vadd.f32 %v8035, %v8387
          %8389 = vmatprep.mubr.bf16.mxu0 %v5511
          %8390 = vmatmul.mubr.bf16.gmra.mrb[0].mxu0 %v5510
          %v8391 = vpop.f32.mrb[0].mxu0
          %v8392 = vadd.f32 %v8039, %v8391
          %v8393 = vpop.f32.mrb[0].mxu0
          %v8394 = vadd.f32 %v8041, %v8393
          %v8395 = vpop.f32.mrb[0].mxu0
          %v8396 = vadd.f32 %v8043, %v8395
          %v8397 = vpop.f32.mrb[0].mxu0
          %v8398 = vadd.f32 %v8045, %v8397
          %8399 = vmatprep.mubr.bf16.mxu0 %v5515
          %8400 = vmatmul.mubr.bf16.gmra.mrb[0].mxu0 %v5514
          %v8401 = vpop.f32.mrb[0].mxu0
          %v8402 = vadd.f32 %v8049, %v8401
          %v8403 = vpop.f32.mrb[0].mxu0
          %v8404 = vadd.f32 %v8051, %v8403
          %v8405 = vpop.f32.mrb[0].mxu0
          %v8406 = vadd.f32 %v8053, %v8405
          %v8407 = vpop.f32.mrb[0].mxu0
          %v8408 = vadd.f32 %v8055, %v8407
          %8409 = vmatprep.mubr.bf16.mxu0 %v5519
          %8410 = vmatmul.mubr.bf16.gmra.mrb[0].mxu0 %v5518
          %v8411 = vpop.f32.mrb[0].mxu0
          %v8412 = vadd.f32 %v8059, %v8411
          %v8413 = vpop.f32.mrb[0].mxu0
          %v8414 = vadd.f32 %v8061, %v8413
          %v8415 = vpop.f32.mrb[0].mxu0
          %v8416 = vadd.f32 %v8063, %v8415
          %v8417 = vpop.f32.mrb[0].mxu0
          %v8418 = vadd.f32 %v8065, %v8417
          %8419 = vmatprep.mubr.bf16.mxu0 %v5523
          %8420 = vmatmul.mubr.bf16.gmra.mrb[0].mxu0 %v5522
          %v8421 = vpop.f32.mrb[0].mxu0
          %v8422 = vadd.f32 %v8069, %v8421
          %v8423 = vpop.f32.mrb[0].mxu0
          %v8424 = vadd.f32 %v8071, %v8423
          %v8425 = vpop.f32.mrb[0].mxu0
          %v8426 = vadd.f32 %v8073, %v8425
          %v8427 = vpop.f32.mrb[0].mxu0
          %v8428 = vadd.f32 %v8075, %v8427
          %8429 = vmatprep.mubr.bf16.mxu0 %v5527
          %8430 = vmatmul.mubr.bf16.gmra.mrb[0].mxu0 %v5526
          %v8431 = vpop.f32.mrb[0].mxu0
          %v8432 = vadd.f32 %v8079, %v8431
          %v8433 = vpop.f32.mrb[0].mxu0
          %v8434 = vadd.f32 %v8081, %v8433
          %v8435 = vpop.f32.mrb[0].mxu0
          %v8436 = vadd.f32 %v8083, %v8435
          %v8437 = vpop.f32.mrb[0].mxu0
          %v8438 = vadd.f32 %v8085, %v8437
          %8439 = vmatprep.mubr.bf16.mxu0 %v5531
          %8440 = vmatmul.mubr.bf16.gmra.mrb[0].mxu0 %v5530
          %v8441 = vpop.f32.mrb[0].mxu0
          %v8442 = vadd.f32 %v8089, %v8441
          %v8443 = vpop.f32.mrb[0].mxu0
          %v8444 = vadd.f32 %v8091, %v8443
          %v8445 = vpop.f32.mrb[0].mxu0
          %v8446 = vadd.f32 %v8093, %v8445
          %v8447 = vpop.f32.mrb[0].mxu0
          %v8448 = vadd.f32 %v8095, %v8447
          %8449 = vmatprep.mubr.bf16.mxu0 %v5535
          %8450 = vmatmul.mubr.bf16.gmra.mrb[0].mxu0 %v5534
          %v8451 = vpop.f32.mrb[0].mxu0
          %v8452 = vadd.f32 %v8099, %v8451
          %v8453 = vpop.f32.mrb[0].mxu0
          %v8454 = vadd.f32 %v8101, %v8453
          %v8455 = vpop.f32.mrb[0].mxu0
          %v8456 = vadd.f32 %v8103, %v8455
          %v8457 = vpop.f32.mrb[0].mxu0
          %v8458 = vadd.f32 %v8105, %v8457
          %8459 = vmatprep.mubr.bf16.mxu0 %v5539
          %8460 = vmatmul.mubr.bf16.gmra.mrb[0].mxu0 %v5538
          %v8461 = vpop.f32.mrb[0].mxu0
          %v8462 = vadd.f32 %v8109, %v8461
          %v8463 = vpop.f32.mrb[0].mxu0
          %v8464 = vadd.f32 %v8111, %v8463
          %v8465 = vpop.f32.mrb[0].mxu0
          %v8466 = vadd.f32 %v8113, %v8465
          %v8467 = vpop.f32.mrb[0].mxu0
          %v8468 = vadd.f32 %v8115, %v8467
          %8469 = vmatprep.mubr.bf16.mxu0 %v5543
          %8470 = vmatmul.mubr.bf16.gmra.mrb[0].mxu0 %v5542
          %v8471 = vpop.f32.mrb[0].mxu0
          %v8472 = vadd.f32 %v8119, %v8471
          %v8473 = vpop.f32.mrb[0].mxu0
          %v8474 = vadd.f32 %v8121, %v8473
          %v8475 = vpop.f32.mrb[0].mxu0
          %v8476 = vadd.f32 %v8123, %v8475
          %v8477 = vpop.f32.mrb[0].mxu0
          %v8478 = vadd.f32 %v8125, %v8477
          %8479 = vmatprep.mubr.bf16.mxu0 %v5547
          %8480 = vmatmul.mubr.bf16.gmra.mrb[0].mxu0 %v5546
          %v8481 = vpop.f32.mrb[0].mxu0
          %v8482 = vadd.f32 %v8129, %v8481
          %v8483 = vpop.f32.mrb[0].mxu0
          %v8484 = vadd.f32 %v8131, %v8483
          %v8485 = vpop.f32.mrb[0].mxu0
          %v8486 = vadd.f32 %v8133, %v8485
          %v8487 = vpop.f32.mrb[0].mxu0
          %v8488 = vadd.f32 %v8135, %v8487
          %8489 = vmatprep.mubr.bf16.mxu0 %v5551
          %8490 = vmatmul.mubr.bf16.gmra.mrb[0].mxu0 %v5550
          %v8491 = vpop.f32.mrb[0].mxu0
          %v8492 = vadd.f32 %v8139, %v8491
          %v8493 = vpop.f32.mrb[0].mxu0
          %v8494 = vadd.f32 %v8141, %v8493
          %v8495 = vpop.f32.mrb[0].mxu0
          %v8496 = vadd.f32 %v8143, %v8495
          %v8497 = vpop.f32.mrb[0].mxu0
          %v8498 = vadd.f32 %v8145, %v8497
          %8499 = vdwg.mxu0
          %8500 = vmatprep.subr.bf16.mxu0 %v6581
          %8501 = vmatpush1.bf16.msra.mxu0 %v6580
          %8502 = vmatprep.subr.bf16.mxu0 %v6589
          %8503 = vmatpush1.bf16.msra.mxu0 %v6588
          %8504 = vmatprep.subr.bf16.mxu0 %v6597
          %8505 = vmatpush1.bf16.msra.mxu0 %v6596
          %8506 = vmatprep.subr.bf16.mxu0 %v6605
          %8507 = vmatpush1.bf16.msra.mxu0 %v6604
          %8508 = vmatprep.subr.bf16.mxu0 %v6613
          %8509 = vmatpush1.bf16.msra.mxu0 %v6612
          %8510 = vmatprep.subr.bf16.mxu0 %v6621
          %8511 = vmatpush1.bf16.msra.mxu0 %v6620
          %8512 = vmatprep.subr.bf16.mxu0 %v6629
          %8513 = vmatpush1.bf16.msra.mxu0 %v6628
          %8514 = vmatprep.subr.bf16.mxu0 %v6637
          %8515 = vmatpush1.bf16.msra.mxu0 %v6636
          %8516 = vmatprep.subr.bf16.mxu0 %v6645
          %8517 = vmatpush1.bf16.msra.mxu0 %v6644
          %8518 = vmatprep.subr.bf16.mxu0 %v6653
          %8519 = vmatpush1.bf16.msra.mxu0 %v6652
          %8520 = vmatprep.subr.bf16.mxu0 %v6661
          %8521 = vmatpush1.bf16.msra.mxu0 %v6660
          %8522 = vmatprep.subr.bf16.mxu0 %v6669
          %8523 = vmatpush1.bf16.msra.mxu0 %v6668
          %8524 = vmatprep.subr.bf16.mxu0 %v6677
          %8525 = vmatpush1.bf16.msra.mxu0 %v6676
          %8526 = vmatprep.subr.bf16.mxu0 %v6685
          %8527 = vmatpush1.bf16.msra.mxu0 %v6684
          %8528 = vmatprep.subr.bf16.mxu0 %v6693
          %8529 = vmatpush1.bf16.msra.mxu0 %v6692
          %8530 = vmatprep.subr.bf16.mxu0 %v6701
          %8531 = vmatpush1.bf16.msra.mxu0 %v6700
          %8532 = vmatprep.mubr.bf16.mxu0 %v5425
          %8533 = vmatmul.mubr.bf16.gmra.mrb[0].mxu0 %v5424
          %v8534 = vpop.f32.mrb[0].mxu0
          %v8535 = vadd.f32 0.0, %v8534
          %v8536 = vpop.f32.mrb[0].mxu0
          %v8537 = vadd.f32 0.0, %v8536
          %v8538 = vpop.f32.mrb[0].mxu0
          %v8539 = vadd.f32 0.0, %v8538
          %v8540 = vpop.f32.mrb[0].mxu0
          %v8541 = vadd.f32 0.0, %v8540
          %8542 = vmatprep.mubr.bf16.mxu0 %v5429
          %8543 = vmatmul.mubr.bf16.gmra.mrb[0].mxu0 %v5428
          %v8544 = vpop.f32.mrb[0].mxu0
          %v8545 = vadd.f32 0.0, %v8544
          %v8546 = vpop.f32.mrb[0].mxu0
          %v8547 = vadd.f32 0.0, %v8546
          %v8548 = vpop.f32.mrb[0].mxu0
          %v8549 = vadd.f32 0.0, %v8548
          %v8550 = vpop.f32.mrb[0].mxu0
          %v8551 = vadd.f32 0.0, %v8550
          %8552 = vmatprep.mubr.bf16.mxu0 %v5433
          %8553 = vmatmul.mubr.bf16.gmra.mrb[0].mxu0 %v5432
          %v8554 = vpop.f32.mrb[0].mxu0
          %v8555 = vadd.f32 0.0, %v8554
          %v8556 = vpop.f32.mrb[0].mxu0
          %v8557 = vadd.f32 0.0, %v8556
          %v8558 = vpop.f32.mrb[0].mxu0
          %v8559 = vadd.f32 0.0, %v8558
          %v8560 = vpop.f32.mrb[0].mxu0
          %v8561 = vadd.f32 0.0, %v8560
          %8562 = vmatprep.mubr.bf16.mxu0 %v5437
          %8563 = vmatmul.mubr.bf16.gmra.mrb[0].mxu0 %v5436
          %v8564 = vpop.f32.mrb[0].mxu0
          %v8565 = vadd.f32 0.0, %v8564
          %v8566 = vpop.f32.mrb[0].mxu0
          %v8567 = vadd.f32 0.0, %v8566
          %v8568 = vpop.f32.mrb[0].mxu0
          %v8569 = vadd.f32 0.0, %v8568
          %v8570 = vpop.f32.mrb[0].mxu0
          %v8571 = vadd.f32 0.0, %v8570
          %8572 = vmatprep.mubr.bf16.mxu0 %v5441
          %8573 = vmatmul.mubr.bf16.gmra.mrb[0].mxu0 %v5440
          %v8574 = vpop.f32.mrb[0].mxu0
          %v8575 = vadd.f32 0.0, %v8574
          %v8576 = vpop.f32.mrb[0].mxu0
          %v8577 = vadd.f32 0.0, %v8576
          %v8578 = vpop.f32.mrb[0].mxu0
          %v8579 = vadd.f32 0.0, %v8578
          %v8580 = vpop.f32.mrb[0].mxu0
          %v8581 = vadd.f32 0.0, %v8580
          %8582 = vmatprep.mubr.bf16.mxu0 %v5445
          %8583 = vmatmul.mubr.bf16.gmra.mrb[0].mxu0 %v5444
          %v8584 = vpop.f32.mrb[0].mxu0
          %v8585 = vadd.f32 0.0, %v8584
          %v8586 = vpop.f32.mrb[0].mxu0
          %v8587 = vadd.f32 0.0, %v8586
          %v8588 = vpop.f32.mrb[0].mxu0
          %v8589 = vadd.f32 0.0, %v8588
          %v8590 = vpop.f32.mrb[0].mxu0
          %v8591 = vadd.f32 0.0, %v8590
          %8592 = vmatprep.mubr.bf16.mxu0 %v5449
          %8593 = vmatmul.mubr.bf16.gmra.mrb[0].mxu0 %v5448
          %v8594 = vpop.f32.mrb[0].mxu0
          %v8595 = vadd.f32 0.0, %v8594
          %v8596 = vpop.f32.mrb[0].mxu0
          %v8597 = vadd.f32 0.0, %v8596
          %v8598 = vpop.f32.mrb[0].mxu0
          %v8599 = vadd.f32 0.0, %v8598
          %v8600 = vpop.f32.mrb[0].mxu0
          %v8601 = vadd.f32 0.0, %v8600
          %8602 = vmatprep.mubr.bf16.mxu0 %v5453
          %8603 = vmatmul.mubr.bf16.gmra.mrb[0].mxu0 %v5452
          %v8604 = vpop.f32.mrb[0].mxu0
          %v8605 = vadd.f32 0.0, %v8604
          %v8606 = vpop.f32.mrb[0].mxu0
          %v8607 = vadd.f32 0.0, %v8606
          %v8608 = vpop.f32.mrb[0].mxu0
          %v8609 = vadd.f32 0.0, %v8608
          %v8610 = vpop.f32.mrb[0].mxu0
          %v8611 = vadd.f32 0.0, %v8610
          %8612 = vmatprep.mubr.bf16.mxu0 %v5457
          %8613 = vmatmul.mubr.bf16.gmra.mrb[0].mxu0 %v5456
          %v8614 = vpop.f32.mrb[0].mxu0
          %v8615 = vadd.f32 0.0, %v8614
          %v8616 = vpop.f32.mrb[0].mxu0
          %v8617 = vadd.f32 0.0, %v8616
          %v8618 = vpop.f32.mrb[0].mxu0
          %v8619 = vadd.f32 0.0, %v8618
          %v8620 = vpop.f32.mrb[0].mxu0
          %v8621 = vadd.f32 0.0, %v8620
          %8622 = vmatprep.mubr.bf16.mxu0 %v5461
          %8623 = vmatmul.mubr.bf16.gmra.mrb[0].mxu0 %v5460
          %v8624 = vpop.f32.mrb[0].mxu0
          %v8625 = vadd.f32 0.0, %v8624
          %v8626 = vpop.f32.mrb[0].mxu0
          %v8627 = vadd.f32 0.0, %v8626
          %v8628 = vpop.f32.mrb[0].mxu0
          %v8629 = vadd.f32 0.0, %v8628
          %v8630 = vpop.f32.mrb[0].mxu0
          %v8631 = vadd.f32 0.0, %v8630
          %8632 = vmatprep.mubr.bf16.mxu0 %v5465
          %8633 = vmatmul.mubr.bf16.gmra.mrb[0].mxu0 %v5464
          %v8634 = vpop.f32.mrb[0].mxu0
          %v8635 = vadd.f32 0.0, %v8634
          %v8636 = vpop.f32.mrb[0].mxu0
          %v8637 = vadd.f32 0.0, %v8636
          %v8638 = vpop.f32.mrb[0].mxu0
          %v8639 = vadd.f32 0.0, %v8638
          %v8640 = vpop.f32.mrb[0].mxu0
          %v8641 = vadd.f32 0.0, %v8640
          %8642 = vmatprep.mubr.bf16.mxu0 %v5469
          %8643 = vmatmul.mubr.bf16.gmra.mrb[0].mxu0 %v5468
          %v8644 = vpop.f32.mrb[0].mxu0
          %v8645 = vadd.f32 0.0, %v8644
          %v8646 = vpop.f32.mrb[0].mxu0
          %v8647 = vadd.f32 0.0, %v8646
          %v8648 = vpop.f32.mrb[0].mxu0
          %v8649 = vadd.f32 0.0, %v8648
          %v8650 = vpop.f32.mrb[0].mxu0
          %v8651 = vadd.f32 0.0, %v8650
          %8652 = vmatprep.mubr.bf16.mxu0 %v5473
          %8653 = vmatmul.mubr.bf16.gmra.mrb[0].mxu0 %v5472
          %v8654 = vpop.f32.mrb[0].mxu0
          %v8655 = vadd.f32 0.0, %v8654
          %v8656 = vpop.f32.mrb[0].mxu0
          %v8657 = vadd.f32 0.0, %v8656
          %v8658 = vpop.f32.mrb[0].mxu0
          %v8659 = vadd.f32 0.0, %v8658
          %v8660 = vpop.f32.mrb[0].mxu0
          %v8661 = vadd.f32 0.0, %v8660
          %8662 = vmatprep.mubr.bf16.mxu0 %v5477
          %8663 = vmatmul.mubr.bf16.gmra.mrb[0].mxu0 %v5476
          %v8664 = vpop.f32.mrb[0].mxu0
          %v8665 = vadd.f32 0.0, %v8664
          %v8666 = vpop.f32.mrb[0].mxu0
          %v8667 = vadd.f32 0.0, %v8666
          %v8668 = vpop.f32.mrb[0].mxu0
          %v8669 = vadd.f32 0.0, %v8668
          %v8670 = vpop.f32.mrb[0].mxu0
          %v8671 = vadd.f32 0.0, %v8670
          %8672 = vmatprep.mubr.bf16.mxu0 %v5481
          %8673 = vmatmul.mubr.bf16.gmra.mrb[0].mxu0 %v5480
          %v8674 = vpop.f32.mrb[0].mxu0
          %v8675 = vadd.f32 0.0, %v8674
          %v8676 = vpop.f32.mrb[0].mxu0
          %v8677 = vadd.f32 0.0, %v8676
          %v8678 = vpop.f32.mrb[0].mxu0
          %v8679 = vadd.f32 0.0, %v8678
          %v8680 = vpop.f32.mrb[0].mxu0
          %v8681 = vadd.f32 0.0, %v8680
          %8682 = vmatprep.mubr.bf16.mxu0 %v5485
          %8683 = vmatmul.mubr.bf16.gmra.mrb[0].mxu0 %v5484
          %v8684 = vpop.f32.mrb[0].mxu0
          %v8685 = vadd.f32 0.0, %v8684
          %v8686 = vpop.f32.mrb[0].mxu0
          %v8687 = vadd.f32 0.0, %v8686
          %v8688 = vpop.f32.mrb[0].mxu0
          %v8689 = vadd.f32 0.0, %v8688
          %v8690 = vpop.f32.mrb[0].mxu0
          %v8691 = vadd.f32 0.0, %v8690
          %8692 = vmatprep.mubr.bf16.mxu0 %v5489
          %8693 = vmatmul.mubr.bf16.gmra.mrb[0].mxu0 %v5488
          %v8694 = vpop.f32.mrb[0].mxu0
          %v8695 = vadd.f32 0.0, %v8694
          %v8696 = vpop.f32.mrb[0].mxu0
          %v8697 = vadd.f32 0.0, %v8696
          %v8698 = vpop.f32.mrb[0].mxu0
          %v8699 = vadd.f32 0.0, %v8698
          %v8700 = vpop.f32.mrb[0].mxu0
          %v8701 = vadd.f32 0.0, %v8700
          %8702 = vmatprep.mubr.bf16.mxu0 %v5493
          %8703 = vmatmul.mubr.bf16.gmra.mrb[0].mxu0 %v5492
          %v8704 = vpop.f32.mrb[0].mxu0
          %v8705 = vadd.f32 0.0, %v8704
          %v8706 = vpop.f32.mrb[0].mxu0
          %v8707 = vadd.f32 0.0, %v8706
          %v8708 = vpop.f32.mrb[0].mxu0
          %v8709 = vadd.f32 0.0, %v8708
          %v8710 = vpop.f32.mrb[0].mxu0
          %v8711 = vadd.f32 0.0, %v8710
          %8712 = vmatprep.mubr.bf16.mxu0 %v5497
          %8713 = vmatmul.mubr.bf16.gmra.mrb[0].mxu0 %v5496
          %v8714 = vpop.f32.mrb[0].mxu0
          %v8715 = vadd.f32 0.0, %v8714
          %v8716 = vpop.f32.mrb[0].mxu0
          %v8717 = vadd.f32 0.0, %v8716
          %v8718 = vpop.f32.mrb[0].mxu0
          %v8719 = vadd.f32 0.0, %v8718
          %v8720 = vpop.f32.mrb[0].mxu0
          %v8721 = vadd.f32 0.0, %v8720
          %8722 = vmatprep.mubr.bf16.mxu0 %v5501
          %8723 = vmatmul.mubr.bf16.gmra.mrb[0].mxu0 %v5500
          %v8724 = vpop.f32.mrb[0].mxu0
          %v8725 = vadd.f32 0.0, %v8724
          %v8726 = vpop.f32.mrb[0].mxu0
          %v8727 = vadd.f32 0.0, %v8726
          %v8728 = vpop.f32.mrb[0].mxu0
          %v8729 = vadd.f32 0.0, %v8728
          %v8730 = vpop.f32.mrb[0].mxu0
          %v8731 = vadd.f32 0.0, %v8730
          %8732 = vmatprep.mubr.bf16.mxu0 %v5505
          %8733 = vmatmul.mubr.bf16.gmra.mrb[0].mxu0 %v5504
          %v8734 = vpop.f32.mrb[0].mxu0
          %v8735 = vadd.f32 0.0, %v8734
          %v8736 = vpop.f32.mrb[0].mxu0
          %v8737 = vadd.f32 0.0, %v8736
          %v8738 = vpop.f32.mrb[0].mxu0
          %v8739 = vadd.f32 0.0, %v8738
          %v8740 = vpop.f32.mrb[0].mxu0
          %v8741 = vadd.f32 0.0, %v8740
          %8742 = vmatprep.mubr.bf16.mxu0 %v5509
          %8743 = vmatmul.mubr.bf16.gmra.mrb[0].mxu0 %v5508
          %v8744 = vpop.f32.mrb[0].mxu0
          %v8745 = vadd.f32 0.0, %v8744
          %v8746 = vpop.f32.mrb[0].mxu0
          %v8747 = vadd.f32 0.0, %v8746
          %v8748 = vpop.f32.mrb[0].mxu0
          %v8749 = vadd.f32 0.0, %v8748
          %v8750 = vpop.f32.mrb[0].mxu0
          %v8751 = vadd.f32 0.0, %v8750
          %8752 = vmatprep.mubr.bf16.mxu0 %v5513
          %8753 = vmatmul.mubr.bf16.gmra.mrb[0].mxu0 %v5512
          %v8754 = vpop.f32.mrb[0].mxu0
          %v8755 = vadd.f32 0.0, %v8754
          %v8756 = vpop.f32.mrb[0].mxu0
          %v8757 = vadd.f32 0.0, %v8756
          %v8758 = vpop.f32.mrb[0].mxu0
          %v8759 = vadd.f32 0.0, %v8758
          %v8760 = vpop.f32.mrb[0].mxu0
          %v8761 = vadd.f32 0.0, %v8760
          %8762 = vmatprep.mubr.bf16.mxu0 %v5517
          %8763 = vmatmul.mubr.bf16.gmra.mrb[0].mxu0 %v5516
          %v8764 = vpop.f32.mrb[0].mxu0
          %v8765 = vadd.f32 0.0, %v8764
          %v8766 = vpop.f32.mrb[0].mxu0
          %v8767 = vadd.f32 0.0, %v8766
          %v8768 = vpop.f32.mrb[0].mxu0
          %v8769 = vadd.f32 0.0, %v8768
          %v8770 = vpop.f32.mrb[0].mxu0
          %v8771 = vadd.f32 0.0, %v8770
          %8772 = vmatprep.mubr.bf16.mxu0 %v5521
          %8773 = vmatmul.mubr.bf16.gmra.mrb[0].mxu0 %v5520
          %v8774 = vpop.f32.mrb[0].mxu0
          %v8775 = vadd.f32 0.0, %v8774
          %v8776 = vpop.f32.mrb[0].mxu0
          %v8777 = vadd.f32 0.0, %v8776
          %v8778 = vpop.f32.mrb[0].mxu0
          %v8779 = vadd.f32 0.0, %v8778
          %v8780 = vpop.f32.mrb[0].mxu0
          %v8781 = vadd.f32 0.0, %v8780
          %8782 = vmatprep.mubr.bf16.mxu0 %v5525
          %8783 = vmatmul.mubr.bf16.gmra.mrb[0].mxu0 %v5524
          %v8784 = vpop.f32.mrb[0].mxu0
          %v8785 = vadd.f32 0.0, %v8784
          %v8786 = vpop.f32.mrb[0].mxu0
          %v8787 = vadd.f32 0.0, %v8786
          %v8788 = vpop.f32.mrb[0].mxu0
          %v8789 = vadd.f32 0.0, %v8788
          %v8790 = vpop.f32.mrb[0].mxu0
          %v8791 = vadd.f32 0.0, %v8790
          %8792 = vmatprep.mubr.bf16.mxu0 %v5529
          %8793 = vmatmul.mubr.bf16.gmra.mrb[0].mxu0 %v5528
          %v8794 = vpop.f32.mrb[0].mxu0
          %v8795 = vadd.f32 0.0, %v8794
          %v8796 = vpop.f32.mrb[0].mxu0
          %v8797 = vadd.f32 0.0, %v8796
          %v8798 = vpop.f32.mrb[0].mxu0
          %v8799 = vadd.f32 0.0, %v8798
          %v8800 = vpop.f32.mrb[0].mxu0
          %v8801 = vadd.f32 0.0, %v8800
          %8802 = vmatprep.mubr.bf16.mxu0 %v5533
          %8803 = vmatmul.mubr.bf16.gmra.mrb[0].mxu0 %v5532
          %v8804 = vpop.f32.mrb[0].mxu0
          %v8805 = vadd.f32 0.0, %v8804
          %v8806 = vpop.f32.mrb[0].mxu0
          %v8807 = vadd.f32 0.0, %v8806
          %v8808 = vpop.f32.mrb[0].mxu0
          %v8809 = vadd.f32 0.0, %v8808
          %v8810 = vpop.f32.mrb[0].mxu0
          %v8811 = vadd.f32 0.0, %v8810
          %8812 = vmatprep.mubr.bf16.mxu0 %v5537
          %8813 = vmatmul.mubr.bf16.gmra.mrb[0].mxu0 %v5536
          %v8814 = vpop.f32.mrb[0].mxu0
          %v8815 = vadd.f32 0.0, %v8814
          %v8816 = vpop.f32.mrb[0].mxu0
          %v8817 = vadd.f32 0.0, %v8816
          %v8818 = vpop.f32.mrb[0].mxu0
          %v8819 = vadd.f32 0.0, %v8818
          %v8820 = vpop.f32.mrb[0].mxu0
          %v8821 = vadd.f32 0.0, %v8820
          %8822 = vmatprep.mubr.bf16.mxu0 %v5541
          %8823 = vmatmul.mubr.bf16.gmra.mrb[0].mxu0 %v5540
          %v8824 = vpop.f32.mrb[0].mxu0
          %v8825 = vadd.f32 0.0, %v8824
          %v8826 = vpop.f32.mrb[0].mxu0
          %v8827 = vadd.f32 0.0, %v8826
          %v8828 = vpop.f32.mrb[0].mxu0
          %v8829 = vadd.f32 0.0, %v8828
          %v8830 = vpop.f32.mrb[0].mxu0
          %v8831 = vadd.f32 0.0, %v8830
          %8832 = vmatprep.mubr.bf16.mxu0 %v5545
          %8833 = vmatmul.mubr.bf16.gmra.mrb[0].mxu0 %v5544
          %v8834 = vpop.f32.mrb[0].mxu0
          %v8835 = vadd.f32 0.0, %v8834
          %v8836 = vpop.f32.mrb[0].mxu0
          %v8837 = vadd.f32 0.0, %v8836
          %v8838 = vpop.f32.mrb[0].mxu0
          %v8839 = vadd.f32 0.0, %v8838
          %v8840 = vpop.f32.mrb[0].mxu0
          %v8841 = vadd.f32 0.0, %v8840
          %8842 = vmatprep.mubr.bf16.mxu0 %v5549
          %8843 = vmatmul.mubr.bf16.gmra.mrb[0].mxu0 %v5548
          %v8844 = vpop.f32.mrb[0].mxu0
          %v8845 = vadd.f32 0.0, %v8844
          %v8846 = vpop.f32.mrb[0].mxu0
          %v8847 = vadd.f32 0.0, %v8846
          %v8848 = vpop.f32.mrb[0].mxu0
          %v8849 = vadd.f32 0.0, %v8848
          %v8850 = vpop.f32.mrb[0].mxu0
          %v8851 = vadd.f32 0.0, %v8850
          %8852 = vdwg.mxu0
          %8853 = vmatprep.subr.bf16.mxu0 %v6709
          %8854 = vmatpush1.bf16.msra.mxu0 %v6708
          %8855 = vmatprep.subr.bf16.mxu0 %v6717
          %8856 = vmatpush1.bf16.msra.mxu0 %v6716
          %8857 = vmatprep.subr.bf16.mxu0 %v6725
          %8858 = vmatpush1.bf16.msra.mxu0 %v6724
          %8859 = vmatprep.subr.bf16.mxu0 %v6733
          %8860 = vmatpush1.bf16.msra.mxu0 %v6732
          %8861 = vmatprep.subr.bf16.mxu0 %v6741
          %8862 = vmatpush1.bf16.msra.mxu0 %v6740
          %8863 = vmatprep.subr.bf16.mxu0 %v6749
          %8864 = vmatpush1.bf16.msra.mxu0 %v6748
          %8865 = vmatprep.subr.bf16.mxu0 %v6757
          %8866 = vmatpush1.bf16.msra.mxu0 %v6756
          %8867 = vmatprep.subr.bf16.mxu0 %v6765
          %8868 = vmatpush1.bf16.msra.mxu0 %v6764
          %8869 = vmatprep.subr.bf16.mxu0 %v6773
          %8870 = vmatpush1.bf16.msra.mxu0 %v6772
          %8871 = vmatprep.subr.bf16.mxu0 %v6781
          %8872 = vmatpush1.bf16.msra.mxu0 %v6780
          %8873 = vmatprep.subr.bf16.mxu0 %v6789
          %8874 = vmatpush1.bf16.msra.mxu0 %v6788
          %8875 = vmatprep.subr.bf16.mxu0 %v6797
          %8876 = vmatpush1.bf16.msra.mxu0 %v6796
          %8877 = vmatprep.subr.bf16.mxu0 %v6805
          %8878 = vmatpush1.bf16.msra.mxu0 %v6804
          %8879 = vmatprep.subr.bf16.mxu0 %v6813
          %8880 = vmatpush1.bf16.msra.mxu0 %v6812
          %8881 = vmatprep.subr.bf16.mxu0 %v6821
          %8882 = vmatpush1.bf16.msra.mxu0 %v6820
          %8883 = vmatprep.subr.bf16.mxu0 %v6829
          %8884 = vmatpush1.bf16.msra.mxu0 %v6828
          %8885 = vmatprep.mubr.bf16.mxu0 %v5427
          %8886 = vmatmul.mubr.bf16.gmra.mrb[0].mxu0 %v5426
          %v8887 = vpop.f32.mrb[0].mxu0
          %v8888 = vadd.f32 %v8535, %v8887
          %v8889 = vpop.f32.mrb[0].mxu0
          %v8890 = vadd.f32 %v8537, %v8889
          %v8891 = vpop.f32.mrb[0].mxu0
          %v8892 = vadd.f32 %v8539, %v8891
          %v8893 = vpop.f32.mrb[0].mxu0
          %v8894 = vadd.f32 %v8541, %v8893
          %8895 = vmatprep.mubr.bf16.mxu0 %v5431
          %8896 = vmatmul.mubr.bf16.gmra.mrb[0].mxu0 %v5430
          %v8897 = vpop.f32.mrb[0].mxu0
          %v8898 = vadd.f32 %v8545, %v8897
          %v8899 = vpop.f32.mrb[0].mxu0
          %v8900 = vadd.f32 %v8547, %v8899
          %v8901 = vpop.f32.mrb[0].mxu0
          %v8902 = vadd.f32 %v8549, %v8901
          %v8903 = vpop.f32.mrb[0].mxu0
          %v8904 = vadd.f32 %v8551, %v8903
          %8905 = vmatprep.mubr.bf16.mxu0 %v5435
          %8906 = vmatmul.mubr.bf16.gmra.mrb[0].mxu0 %v5434
          %v8907 = vpop.f32.mrb[0].mxu0
          %v8908 = vadd.f32 %v8555, %v8907
          %v8909 = vpop.f32.mrb[0].mxu0
          %v8910 = vadd.f32 %v8557, %v8909
          %v8911 = vpop.f32.mrb[0].mxu0
          %v8912 = vadd.f32 %v8559, %v8911
          %v8913 = vpop.f32.mrb[0].mxu0
          %v8914 = vadd.f32 %v8561, %v8913
          %8915 = vmatprep.mubr.bf16.mxu0 %v5439
          %8916 = vmatmul.mubr.bf16.gmra.mrb[0].mxu0 %v5438
          %v8917 = vpop.f32.mrb[0].mxu0
          %v8918 = vadd.f32 %v8565, %v8917
          %v8919 = vpop.f32.mrb[0].mxu0
          %v8920 = vadd.f32 %v8567, %v8919
          %v8921 = vpop.f32.mrb[0].mxu0
          %v8922 = vadd.f32 %v8569, %v8921
          %v8923 = vpop.f32.mrb[0].mxu0
          %v8924 = vadd.f32 %v8571, %v8923
          %8925 = vmatprep.mubr.bf16.mxu0 %v5443
          %8926 = vmatmul.mubr.bf16.gmra.mrb[0].mxu0 %v5442
          %v8927 = vpop.f32.mrb[0].mxu0
          %v8928 = vadd.f32 %v8575, %v8927
          %v8929 = vpop.f32.mrb[0].mxu0
          %v8930 = vadd.f32 %v8577, %v8929
          %v8931 = vpop.f32.mrb[0].mxu0
          %v8932 = vadd.f32 %v8579, %v8931
          %v8933 = vpop.f32.mrb[0].mxu0
          %v8934 = vadd.f32 %v8581, %v8933
          %8935 = vmatprep.mubr.bf16.mxu0 %v5447
          %8936 = vmatmul.mubr.bf16.gmra.mrb[0].mxu0 %v5446
          %v8937 = vpop.f32.mrb[0].mxu0
          %v8938 = vadd.f32 %v8585, %v8937
          %v8939 = vpop.f32.mrb[0].mxu0
          %v8940 = vadd.f32 %v8587, %v8939
          %v8941 = vpop.f32.mrb[0].mxu0
          %v8942 = vadd.f32 %v8589, %v8941
          %v8943 = vpop.f32.mrb[0].mxu0
          %v8944 = vadd.f32 %v8591, %v8943
          %8945 = vmatprep.mubr.bf16.mxu0 %v5451
          %8946 = vmatmul.mubr.bf16.gmra.mrb[0].mxu0 %v5450
          %v8947 = vpop.f32.mrb[0].mxu0
          %v8948 = vadd.f32 %v8595, %v8947
          %v8949 = vpop.f32.mrb[0].mxu0
          %v8950 = vadd.f32 %v8597, %v8949
          %v8951 = vpop.f32.mrb[0].mxu0
          %v8952 = vadd.f32 %v8599, %v8951
          %v8953 = vpop.f32.mrb[0].mxu0
          %v8954 = vadd.f32 %v8601, %v8953
          %8955 = vmatprep.mubr.bf16.mxu0 %v5455
          %8956 = vmatmul.mubr.bf16.gmra.mrb[0].mxu0 %v5454
          %v8957 = vpop.f32.mrb[0].mxu0
          %v8958 = vadd.f32 %v8605, %v8957
          %v8959 = vpop.f32.mrb[0].mxu0
          %v8960 = vadd.f32 %v8607, %v8959
          %v8961 = vpop.f32.mrb[0].mxu0
          %v8962 = vadd.f32 %v8609, %v8961
          %v8963 = vpop.f32.mrb[0].mxu0
          %v8964 = vadd.f32 %v8611, %v8963
          %8965 = vmatprep.mubr.bf16.mxu0 %v5459
          %8966 = vmatmul.mubr.bf16.gmra.mrb[0].mxu0 %v5458
          %v8967 = vpop.f32.mrb[0].mxu0
          %v8968 = vadd.f32 %v8615, %v8967
          %v8969 = vpop.f32.mrb[0].mxu0
          %v8970 = vadd.f32 %v8617, %v8969
          %v8971 = vpop.f32.mrb[0].mxu0
          %v8972 = vadd.f32 %v8619, %v8971
          %v8973 = vpop.f32.mrb[0].mxu0
          %v8974 = vadd.f32 %v8621, %v8973
          %8975 = vmatprep.mubr.bf16.mxu0 %v5463
          %8976 = vmatmul.mubr.bf16.gmra.mrb[0].mxu0 %v5462
          %v8977 = vpop.f32.mrb[0].mxu0
          %v8978 = vadd.f32 %v8625, %v8977
          %v8979 = vpop.f32.mrb[0].mxu0
          %v8980 = vadd.f32 %v8627, %v8979
          %v8981 = vpop.f32.mrb[0].mxu0
          %v8982 = vadd.f32 %v8629, %v8981
          %v8983 = vpop.f32.mrb[0].mxu0
          %v8984 = vadd.f32 %v8631, %v8983
          %8985 = vmatprep.mubr.bf16.mxu0 %v5467
          %8986 = vmatmul.mubr.bf16.gmra.mrb[0].mxu0 %v5466
          %v8987 = vpop.f32.mrb[0].mxu0
          %v8988 = vadd.f32 %v8635, %v8987
          %v8989 = vpop.f32.mrb[0].mxu0
          %v8990 = vadd.f32 %v8637, %v8989
          %v8991 = vpop.f32.mrb[0].mxu0
          %v8992 = vadd.f32 %v8639, %v8991
          %v8993 = vpop.f32.mrb[0].mxu0
          %v8994 = vadd.f32 %v8641, %v8993
          %8995 = vmatprep.mubr.bf16.mxu0 %v5471
          %8996 = vmatmul.mubr.bf16.gmra.mrb[0].mxu0 %v5470
          %v8997 = vpop.f32.mrb[0].mxu0
          %v8998 = vadd.f32 %v8645, %v8997
          %v8999 = vpop.f32.mrb[0].mxu0
          %v9000 = vadd.f32 %v8647, %v8999
          %v9001 = vpop.f32.mrb[0].mxu0
          %v9002 = vadd.f32 %v8649, %v9001
          %v9003 = vpop.f32.mrb[0].mxu0
          %v9004 = vadd.f32 %v8651, %v9003
          %9005 = vmatprep.mubr.bf16.mxu0 %v5475
          %9006 = vmatmul.mubr.bf16.gmra.mrb[0].mxu0 %v5474
          %v9007 = vpop.f32.mrb[0].mxu0
          %v9008 = vadd.f32 %v8655, %v9007
          %v9009 = vpop.f32.mrb[0].mxu0
          %v9010 = vadd.f32 %v8657, %v9009
          %v9011 = vpop.f32.mrb[0].mxu0
          %v9012 = vadd.f32 %v8659, %v9011
          %v9013 = vpop.f32.mrb[0].mxu0
          %v9014 = vadd.f32 %v8661, %v9013
          %9015 = vmatprep.mubr.bf16.mxu0 %v5479
          %9016 = vmatmul.mubr.bf16.gmra.mrb[0].mxu0 %v5478
          %v9017 = vpop.f32.mrb[0].mxu0
          %v9018 = vadd.f32 %v8665, %v9017
          %v9019 = vpop.f32.mrb[0].mxu0
          %v9020 = vadd.f32 %v8667, %v9019
          %v9021 = vpop.f32.mrb[0].mxu0
          %v9022 = vadd.f32 %v8669, %v9021
          %v9023 = vpop.f32.mrb[0].mxu0
          %v9024 = vadd.f32 %v8671, %v9023
          %9025 = vmatprep.mubr.bf16.mxu0 %v5483
          %9026 = vmatmul.mubr.bf16.gmra.mrb[0].mxu0 %v5482
          %v9027 = vpop.f32.mrb[0].mxu0
          %v9028 = vadd.f32 %v8675, %v9027
          %v9029 = vpop.f32.mrb[0].mxu0
          %v9030 = vadd.f32 %v8677, %v9029
          %v9031 = vpop.f32.mrb[0].mxu0
          %v9032 = vadd.f32 %v8679, %v9031
          %v9033 = vpop.f32.mrb[0].mxu0
          %v9034 = vadd.f32 %v8681, %v9033
          %9035 = vmatprep.mubr.bf16.mxu0 %v5487
          %9036 = vmatmul.mubr.bf16.gmra.mrb[0].mxu0 %v5486
          %v9037 = vpop.f32.mrb[0].mxu0
          %v9038 = vadd.f32 %v8685, %v9037
          %v9039 = vpop.f32.mrb[0].mxu0
          %v9040 = vadd.f32 %v8687, %v9039
          %v9041 = vpop.f32.mrb[0].mxu0
          %v9042 = vadd.f32 %v8689, %v9041
          %v9043 = vpop.f32.mrb[0].mxu0
          %v9044 = vadd.f32 %v8691, %v9043
          %9045 = vmatprep.mubr.bf16.mxu0 %v5491
          %9046 = vmatmul.mubr.bf16.gmra.mrb[0].mxu0 %v5490
          %v9047 = vpop.f32.mrb[0].mxu0
          %v9048 = vadd.f32 %v8695, %v9047
          %v9049 = vpop.f32.mrb[0].mxu0
          %v9050 = vadd.f32 %v8697, %v9049
          %v9051 = vpop.f32.mrb[0].mxu0
          %v9052 = vadd.f32 %v8699, %v9051
          %v9053 = vpop.f32.mrb[0].mxu0
          %v9054 = vadd.f32 %v8701, %v9053
          %9055 = vmatprep.mubr.bf16.mxu0 %v5495
          %9056 = vmatmul.mubr.bf16.gmra.mrb[0].mxu0 %v5494
          %v9057 = vpop.f32.mrb[0].mxu0
          %v9058 = vadd.f32 %v8705, %v9057
          %v9059 = vpop.f32.mrb[0].mxu0
          %v9060 = vadd.f32 %v8707, %v9059
          %v9061 = vpop.f32.mrb[0].mxu0
          %v9062 = vadd.f32 %v8709, %v9061
          %v9063 = vpop.f32.mrb[0].mxu0
          %v9064 = vadd.f32 %v8711, %v9063
          %9065 = vmatprep.mubr.bf16.mxu0 %v5499
          %9066 = vmatmul.mubr.bf16.gmra.mrb[0].mxu0 %v5498
          %v9067 = vpop.f32.mrb[0].mxu0
          %v9068 = vadd.f32 %v8715, %v9067
          %v9069 = vpop.f32.mrb[0].mxu0
          %v9070 = vadd.f32 %v8717, %v9069
          %v9071 = vpop.f32.mrb[0].mxu0
          %v9072 = vadd.f32 %v8719, %v9071
          %v9073 = vpop.f32.mrb[0].mxu0
          %v9074 = vadd.f32 %v8721, %v9073
          %9075 = vmatprep.mubr.bf16.mxu0 %v5503
          %9076 = vmatmul.mubr.bf16.gmra.mrb[0].mxu0 %v5502
          %v9077 = vpop.f32.mrb[0].mxu0
          %v9078 = vadd.f32 %v8725, %v9077
          %v9079 = vpop.f32.mrb[0].mxu0
          %v9080 = vadd.f32 %v8727, %v9079
          %v9081 = vpop.f32.mrb[0].mxu0
          %v9082 = vadd.f32 %v8729, %v9081
          %v9083 = vpop.f32.mrb[0].mxu0
          %v9084 = vadd.f32 %v8731, %v9083
          %9085 = vmatprep.mubr.bf16.mxu0 %v5507
          %9086 = vmatmul.mubr.bf16.gmra.mrb[0].mxu0 %v5506
          %v9087 = vpop.f32.mrb[0].mxu0
          %v9088 = vadd.f32 %v8735, %v9087
          %v9089 = vpop.f32.mrb[0].mxu0
          %v9090 = vadd.f32 %v8737, %v9089
          %v9091 = vpop.f32.mrb[0].mxu0
          %v9092 = vadd.f32 %v8739, %v9091
          %v9093 = vpop.f32.mrb[0].mxu0
          %v9094 = vadd.f32 %v8741, %v9093
          %9095 = vmatprep.mubr.bf16.mxu0 %v5511
          %9096 = vmatmul.mubr.bf16.gmra.mrb[0].mxu0 %v5510
          %v9097 = vpop.f32.mrb[0].mxu0
          %v9098 = vadd.f32 %v8745, %v9097
          %v9099 = vpop.f32.mrb[0].mxu0
          %v9100 = vadd.f32 %v8747, %v9099
          %v9101 = vpop.f32.mrb[0].mxu0
          %v9102 = vadd.f32 %v8749, %v9101
          %v9103 = vpop.f32.mrb[0].mxu0
          %v9104 = vadd.f32 %v8751, %v9103
          %9105 = vmatprep.mubr.bf16.mxu0 %v5515
          %9106 = vmatmul.mubr.bf16.gmra.mrb[0].mxu0 %v5514
          %v9107 = vpop.f32.mrb[0].mxu0
          %v9108 = vadd.f32 %v8755, %v9107
          %v9109 = vpop.f32.mrb[0].mxu0
          %v9110 = vadd.f32 %v8757, %v9109
          %v9111 = vpop.f32.mrb[0].mxu0
          %v9112 = vadd.f32 %v8759, %v9111
          %v9113 = vpop.f32.mrb[0].mxu0
          %v9114 = vadd.f32 %v8761, %v9113
          %9115 = vmatprep.mubr.bf16.mxu0 %v5519
          %9116 = vmatmul.mubr.bf16.gmra.mrb[0].mxu0 %v5518
          %v9117 = vpop.f32.mrb[0].mxu0
          %v9118 = vadd.f32 %v8765, %v9117
          %v9119 = vpop.f32.mrb[0].mxu0
          %v9120 = vadd.f32 %v8767, %v9119
          %v9121 = vpop.f32.mrb[0].mxu0
          %v9122 = vadd.f32 %v8769, %v9121
          %v9123 = vpop.f32.mrb[0].mxu0
          %v9124 = vadd.f32 %v8771, %v9123
          %9125 = vmatprep.mubr.bf16.mxu0 %v5523
          %9126 = vmatmul.mubr.bf16.gmra.mrb[0].mxu0 %v5522
          %v9127 = vpop.f32.mrb[0].mxu0
          %v9128 = vadd.f32 %v8775, %v9127
          %v9129 = vpop.f32.mrb[0].mxu0
          %v9130 = vadd.f32 %v8777, %v9129
          %v9131 = vpop.f32.mrb[0].mxu0
          %v9132 = vadd.f32 %v8779, %v9131
          %v9133 = vpop.f32.mrb[0].mxu0
          %v9134 = vadd.f32 %v8781, %v9133
          %9135 = vmatprep.mubr.bf16.mxu0 %v5527
          %9136 = vmatmul.mubr.bf16.gmra.mrb[0].mxu0 %v5526
          %v9137 = vpop.f32.mrb[0].mxu0
          %v9138 = vadd.f32 %v8785, %v9137
          %v9139 = vpop.f32.mrb[0].mxu0
          %v9140 = vadd.f32 %v8787, %v9139
          %v9141 = vpop.f32.mrb[0].mxu0
          %v9142 = vadd.f32 %v8789, %v9141
          %v9143 = vpop.f32.mrb[0].mxu0
          %v9144 = vadd.f32 %v8791, %v9143
          %9145 = vmatprep.mubr.bf16.mxu0 %v5531
          %9146 = vmatmul.mubr.bf16.gmra.mrb[0].mxu0 %v5530
          %v9147 = vpop.f32.mrb[0].mxu0
          %v9148 = vadd.f32 %v8795, %v9147
          %v9149 = vpop.f32.mrb[0].mxu0
          %v9150 = vadd.f32 %v8797, %v9149
          %v9151 = vpop.f32.mrb[0].mxu0
          %v9152 = vadd.f32 %v8799, %v9151
          %v9153 = vpop.f32.mrb[0].mxu0
          %v9154 = vadd.f32 %v8801, %v9153
          %9155 = vmatprep.mubr.bf16.mxu0 %v5535
          %9156 = vmatmul.mubr.bf16.gmra.mrb[0].mxu0 %v5534
          %v9157 = vpop.f32.mrb[0].mxu0
          %v9158 = vadd.f32 %v8805, %v9157
          %v9159 = vpop.f32.mrb[0].mxu0
          %v9160 = vadd.f32 %v8807, %v9159
          %v9161 = vpop.f32.mrb[0].mxu0
          %v9162 = vadd.f32 %v8809, %v9161
          %v9163 = vpop.f32.mrb[0].mxu0
          %v9164 = vadd.f32 %v8811, %v9163
          %9165 = vmatprep.mubr.bf16.mxu0 %v5539
          %9166 = vmatmul.mubr.bf16.gmra.mrb[0].mxu0 %v5538
          %v9167 = vpop.f32.mrb[0].mxu0
          %v9168 = vadd.f32 %v8815, %v9167
          %v9169 = vpop.f32.mrb[0].mxu0
          %v9170 = vadd.f32 %v8817, %v9169
          %v9171 = vpop.f32.mrb[0].mxu0
          %v9172 = vadd.f32 %v8819, %v9171
          %v9173 = vpop.f32.mrb[0].mxu0
          %v9174 = vadd.f32 %v8821, %v9173
          %9175 = vmatprep.mubr.bf16.mxu0 %v5543
          %9176 = vmatmul.mubr.bf16.gmra.mrb[0].mxu0 %v5542
          %v9177 = vpop.f32.mrb[0].mxu0
          %v9178 = vadd.f32 %v8825, %v9177
          %v9179 = vpop.f32.mrb[0].mxu0
          %v9180 = vadd.f32 %v8827, %v9179
          %v9181 = vpop.f32.mrb[0].mxu0
          %v9182 = vadd.f32 %v8829, %v9181
          %v9183 = vpop.f32.mrb[0].mxu0
          %v9184 = vadd.f32 %v8831, %v9183
          %9185 = vmatprep.mubr.bf16.mxu0 %v5547
          %9186 = vmatmul.mubr.bf16.gmra.mrb[0].mxu0 %v5546
          %v9187 = vpop.f32.mrb[0].mxu0
          %v9188 = vadd.f32 %v8835, %v9187
          %v9189 = vpop.f32.mrb[0].mxu0
          %v9190 = vadd.f32 %v8837, %v9189
          %v9191 = vpop.f32.mrb[0].mxu0
          %v9192 = vadd.f32 %v8839, %v9191
          %v9193 = vpop.f32.mrb[0].mxu0
          %v9194 = vadd.f32 %v8841, %v9193
          %9195 = vmatprep.mubr.bf16.mxu0 %v5551
          %9196 = vmatmul.mubr.bf16.gmra.mrb[0].mxu0 %v5550
          %v9197 = vpop.f32.mrb[0].mxu0
          %v9198 = vadd.f32 %v8845, %v9197
          %v9199 = vpop.f32.mrb[0].mxu0
          %v9200 = vadd.f32 %v8847, %v9199
          %v9201 = vpop.f32.mrb[0].mxu0
          %v9202 = vadd.f32 %v8849, %v9201
          %v9203 = vpop.f32.mrb[0].mxu0
          %v9204 = vadd.f32 %v8851, %v9203
          %9205 = vdwg.mxu0
          %9206 = vmatprep.subr.bf16.mxu0 %v6583
          %9207 = vmatpush1.bf16.msra.mxu0 %v6582
          %9208 = vmatprep.subr.bf16.mxu0 %v6591
          %9209 = vmatpush1.bf16.msra.mxu0 %v6590
          %9210 = vmatprep.subr.bf16.mxu0 %v6599
          %9211 = vmatpush1.bf16.msra.mxu0 %v6598
          %9212 = vmatprep.subr.bf16.mxu0 %v6607
          %9213 = vmatpush1.bf16.msra.mxu0 %v6606
          %9214 = vmatprep.subr.bf16.mxu0 %v6615
          %9215 = vmatpush1.bf16.msra.mxu0 %v6614
          %9216 = vmatprep.subr.bf16.mxu0 %v6623
          %9217 = vmatpush1.bf16.msra.mxu0 %v6622
          %9218 = vmatprep.subr.bf16.mxu0 %v6631
          %9219 = vmatpush1.bf16.msra.mxu0 %v6630
          %9220 = vmatprep.subr.bf16.mxu0 %v6639
          %9221 = vmatpush1.bf16.msra.mxu0 %v6638
          %9222 = vmatprep.subr.bf16.mxu0 %v6647
          %9223 = vmatpush1.bf16.msra.mxu0 %v6646
          %9224 = vmatprep.subr.bf16.mxu0 %v6655
          %9225 = vmatpush1.bf16.msra.mxu0 %v6654
          %9226 = vmatprep.subr.bf16.mxu0 %v6663
          %9227 = vmatpush1.bf16.msra.mxu0 %v6662
          %9228 = vmatprep.subr.bf16.mxu0 %v6671
          %9229 = vmatpush1.bf16.msra.mxu0 %v6670
          %9230 = vmatprep.subr.bf16.mxu0 %v6679
          %9231 = vmatpush1.bf16.msra.mxu0 %v6678
          %9232 = vmatprep.subr.bf16.mxu0 %v6687
          %9233 = vmatpush1.bf16.msra.mxu0 %v6686
          %9234 = vmatprep.subr.bf16.mxu0 %v6695
          %9235 = vmatpush1.bf16.msra.mxu0 %v6694
          %9236 = vmatprep.subr.bf16.mxu0 %v6703
          %9237 = vmatpush1.bf16.msra.mxu0 %v6702
          %9238 = vmatprep.mubr.bf16.mxu0 %v5425
          %9239 = vmatmul.mubr.bf16.gmra.mrb[0].mxu0 %v5424
          %v9240 = vpop.f32.mrb[0].mxu0
          %v9241 = vadd.f32 0.0, %v9240
          %v9242 = vpop.f32.mrb[0].mxu0
          %v9243 = vadd.f32 0.0, %v9242
          %v9244 = vpop.f32.mrb[0].mxu0
          %v9245 = vadd.f32 0.0, %v9244
          %v9246 = vpop.f32.mrb[0].mxu0
          %v9247 = vadd.f32 0.0, %v9246
          %9248 = vmatprep.mubr.bf16.mxu0 %v5429
          %9249 = vmatmul.mubr.bf16.gmra.mrb[0].mxu0 %v5428
          %v9250 = vpop.f32.mrb[0].mxu0
          %v9251 = vadd.f32 0.0, %v9250
          %v9252 = vpop.f32.mrb[0].mxu0
          %v9253 = vadd.f32 0.0, %v9252
          %v9254 = vpop.f32.mrb[0].mxu0
          %v9255 = vadd.f32 0.0, %v9254
          %v9256 = vpop.f32.mrb[0].mxu0
          %v9257 = vadd.f32 0.0, %v9256
          %9258 = vmatprep.mubr.bf16.mxu0 %v5433
          %9259 = vmatmul.mubr.bf16.gmra.mrb[0].mxu0 %v5432
          %v9260 = vpop.f32.mrb[0].mxu0
          %v9261 = vadd.f32 0.0, %v9260
          %v9262 = vpop.f32.mrb[0].mxu0
          %v9263 = vadd.f32 0.0, %v9262
          %v9264 = vpop.f32.mrb[0].mxu0
          %v9265 = vadd.f32 0.0, %v9264
          %v9266 = vpop.f32.mrb[0].mxu0
          %v9267 = vadd.f32 0.0, %v9266
          %9268 = vmatprep.mubr.bf16.mxu0 %v5437
          %9269 = vmatmul.mubr.bf16.gmra.mrb[0].mxu0 %v5436
          %v9270 = vpop.f32.mrb[0].mxu0
          %v9271 = vadd.f32 0.0, %v9270
          %v9272 = vpop.f32.mrb[0].mxu0
          %v9273 = vadd.f32 0.0, %v9272
          %v9274 = vpop.f32.mrb[0].mxu0
          %v9275 = vadd.f32 0.0, %v9274
          %v9276 = vpop.f32.mrb[0].mxu0
          %v9277 = vadd.f32 0.0, %v9276
          %9278 = vmatprep.mubr.bf16.mxu0 %v5441
          %9279 = vmatmul.mubr.bf16.gmra.mrb[0].mxu0 %v5440
          %v9280 = vpop.f32.mrb[0].mxu0
          %v9281 = vadd.f32 0.0, %v9280
          %v9282 = vpop.f32.mrb[0].mxu0
          %v9283 = vadd.f32 0.0, %v9282
          %v9284 = vpop.f32.mrb[0].mxu0
          %v9285 = vadd.f32 0.0, %v9284
          %v9286 = vpop.f32.mrb[0].mxu0
          %v9287 = vadd.f32 0.0, %v9286
          %9288 = vmatprep.mubr.bf16.mxu0 %v5445
          %9289 = vmatmul.mubr.bf16.gmra.mrb[0].mxu0 %v5444
          %v9290 = vpop.f32.mrb[0].mxu0
          %v9291 = vadd.f32 0.0, %v9290
          %v9292 = vpop.f32.mrb[0].mxu0
          %v9293 = vadd.f32 0.0, %v9292
          %v9294 = vpop.f32.mrb[0].mxu0
          %v9295 = vadd.f32 0.0, %v9294
          %v9296 = vpop.f32.mrb[0].mxu0
          %v9297 = vadd.f32 0.0, %v9296
          %9298 = vmatprep.mubr.bf16.mxu0 %v5449
          %9299 = vmatmul.mubr.bf16.gmra.mrb[0].mxu0 %v5448
          %v9300 = vpop.f32.mrb[0].mxu0
          %v9301 = vadd.f32 0.0, %v9300
          %v9302 = vpop.f32.mrb[0].mxu0
          %v9303 = vadd.f32 0.0, %v9302
          %v9304 = vpop.f32.mrb[0].mxu0
          %v9305 = vadd.f32 0.0, %v9304
          %v9306 = vpop.f32.mrb[0].mxu0
          %v9307 = vadd.f32 0.0, %v9306
          %9308 = vmatprep.mubr.bf16.mxu0 %v5453
          %9309 = vmatmul.mubr.bf16.gmra.mrb[0].mxu0 %v5452
          %v9310 = vpop.f32.mrb[0].mxu0
          %v9311 = vadd.f32 0.0, %v9310
          %v9312 = vpop.f32.mrb[0].mxu0
          %v9313 = vadd.f32 0.0, %v9312
          %v9314 = vpop.f32.mrb[0].mxu0
          %v9315 = vadd.f32 0.0, %v9314
          %v9316 = vpop.f32.mrb[0].mxu0
          %v9317 = vadd.f32 0.0, %v9316
          %9318 = vmatprep.mubr.bf16.mxu0 %v5457
          %9319 = vmatmul.mubr.bf16.gmra.mrb[0].mxu0 %v5456
          %v9320 = vpop.f32.mrb[0].mxu0
          %v9321 = vadd.f32 0.0, %v9320
          %v9322 = vpop.f32.mrb[0].mxu0
          %v9323 = vadd.f32 0.0, %v9322
          %v9324 = vpop.f32.mrb[0].mxu0
          %v9325 = vadd.f32 0.0, %v9324
          %v9326 = vpop.f32.mrb[0].mxu0
          %v9327 = vadd.f32 0.0, %v9326
          %9328 = vmatprep.mubr.bf16.mxu0 %v5461
          %9329 = vmatmul.mubr.bf16.gmra.mrb[0].mxu0 %v5460
          %v9330 = vpop.f32.mrb[0].mxu0
          %v9331 = vadd.f32 0.0, %v9330
          %v9332 = vpop.f32.mrb[0].mxu0
          %v9333 = vadd.f32 0.0, %v9332
          %v9334 = vpop.f32.mrb[0].mxu0
          %v9335 = vadd.f32 0.0, %v9334
          %v9336 = vpop.f32.mrb[0].mxu0
          %v9337 = vadd.f32 0.0, %v9336
          %9338 = vmatprep.mubr.bf16.mxu0 %v5465
          %9339 = vmatmul.mubr.bf16.gmra.mrb[0].mxu0 %v5464
          %v9340 = vpop.f32.mrb[0].mxu0
          %v9341 = vadd.f32 0.0, %v9340
          %v9342 = vpop.f32.mrb[0].mxu0
          %v9343 = vadd.f32 0.0, %v9342
          %v9344 = vpop.f32.mrb[0].mxu0
          %v9345 = vadd.f32 0.0, %v9344
          %v9346 = vpop.f32.mrb[0].mxu0
          %v9347 = vadd.f32 0.0, %v9346
          %9348 = vmatprep.mubr.bf16.mxu0 %v5469
          %9349 = vmatmul.mubr.bf16.gmra.mrb[0].mxu0 %v5468
          %v9350 = vpop.f32.mrb[0].mxu0
          %v9351 = vadd.f32 0.0, %v9350
          %v9352 = vpop.f32.mrb[0].mxu0
          %v9353 = vadd.f32 0.0, %v9352
          %v9354 = vpop.f32.mrb[0].mxu0
          %v9355 = vadd.f32 0.0, %v9354
          %v9356 = vpop.f32.mrb[0].mxu0
          %v9357 = vadd.f32 0.0, %v9356
          %9358 = vmatprep.mubr.bf16.mxu0 %v5473
          %9359 = vmatmul.mubr.bf16.gmra.mrb[0].mxu0 %v5472
          %v9360 = vpop.f32.mrb[0].mxu0
          %v9361 = vadd.f32 0.0, %v9360
          %v9362 = vpop.f32.mrb[0].mxu0
          %v9363 = vadd.f32 0.0, %v9362
          %v9364 = vpop.f32.mrb[0].mxu0
          %v9365 = vadd.f32 0.0, %v9364
          %v9366 = vpop.f32.mrb[0].mxu0
          %v9367 = vadd.f32 0.0, %v9366
          %9368 = vmatprep.mubr.bf16.mxu0 %v5477
          %9369 = vmatmul.mubr.bf16.gmra.mrb[0].mxu0 %v5476
          %v9370 = vpop.f32.mrb[0].mxu0
          %v9371 = vadd.f32 0.0, %v9370
          %v9372 = vpop.f32.mrb[0].mxu0
          %v9373 = vadd.f32 0.0, %v9372
          %v9374 = vpop.f32.mrb[0].mxu0
          %v9375 = vadd.f32 0.0, %v9374
          %v9376 = vpop.f32.mrb[0].mxu0
          %v9377 = vadd.f32 0.0, %v9376
          %9378 = vmatprep.mubr.bf16.mxu0 %v5481
          %9379 = vmatmul.mubr.bf16.gmra.mrb[0].mxu0 %v5480
          %v9380 = vpop.f32.mrb[0].mxu0
          %v9381 = vadd.f32 0.0, %v9380
          %v9382 = vpop.f32.mrb[0].mxu0
          %v9383 = vadd.f32 0.0, %v9382
          %v9384 = vpop.f32.mrb[0].mxu0
          %v9385 = vadd.f32 0.0, %v9384
          %v9386 = vpop.f32.mrb[0].mxu0
          %v9387 = vadd.f32 0.0, %v9386
          %9388 = vmatprep.mubr.bf16.mxu0 %v5485
          %9389 = vmatmul.mubr.bf16.gmra.mrb[0].mxu0 %v5484
          %v9390 = vpop.f32.mrb[0].mxu0
          %v9391 = vadd.f32 0.0, %v9390
          %v9392 = vpop.f32.mrb[0].mxu0
          %v9393 = vadd.f32 0.0, %v9392
          %v9394 = vpop.f32.mrb[0].mxu0
          %v9395 = vadd.f32 0.0, %v9394
          %v9396 = vpop.f32.mrb[0].mxu0
          %v9397 = vadd.f32 0.0, %v9396
          %9398 = vmatprep.mubr.bf16.mxu0 %v5489
          %9399 = vmatmul.mubr.bf16.gmra.mrb[0].mxu0 %v5488
          %v9400 = vpop.f32.mrb[0].mxu0
          %v9401 = vadd.f32 0.0, %v9400
          %v9402 = vpop.f32.mrb[0].mxu0
          %v9403 = vadd.f32 0.0, %v9402
          %v9404 = vpop.f32.mrb[0].mxu0
          %v9405 = vadd.f32 0.0, %v9404
          %v9406 = vpop.f32.mrb[0].mxu0
          %v9407 = vadd.f32 0.0, %v9406
          %9408 = vmatprep.mubr.bf16.mxu0 %v5493
          %9409 = vmatmul.mubr.bf16.gmra.mrb[0].mxu0 %v5492
          %v9410 = vpop.f32.mrb[0].mxu0
          %v9411 = vadd.f32 0.0, %v9410
          %v9412 = vpop.f32.mrb[0].mxu0
          %v9413 = vadd.f32 0.0, %v9412
          %v9414 = vpop.f32.mrb[0].mxu0
          %v9415 = vadd.f32 0.0, %v9414
          %v9416 = vpop.f32.mrb[0].mxu0
          %v9417 = vadd.f32 0.0, %v9416
          %9418 = vmatprep.mubr.bf16.mxu0 %v5497
          %9419 = vmatmul.mubr.bf16.gmra.mrb[0].mxu0 %v5496
          %v9420 = vpop.f32.mrb[0].mxu0
          %v9421 = vadd.f32 0.0, %v9420
          %v9422 = vpop.f32.mrb[0].mxu0
          %v9423 = vadd.f32 0.0, %v9422
          %v9424 = vpop.f32.mrb[0].mxu0
          %v9425 = vadd.f32 0.0, %v9424
          %v9426 = vpop.f32.mrb[0].mxu0
          %v9427 = vadd.f32 0.0, %v9426
          %9428 = vmatprep.mubr.bf16.mxu0 %v5501
          %9429 = vmatmul.mubr.bf16.gmra.mrb[0].mxu0 %v5500
          %v9430 = vpop.f32.mrb[0].mxu0
          %v9431 = vadd.f32 0.0, %v9430
          %v9432 = vpop.f32.mrb[0].mxu0
          %v9433 = vadd.f32 0.0, %v9432
          %v9434 = vpop.f32.mrb[0].mxu0
          %v9435 = vadd.f32 0.0, %v9434
          %v9436 = vpop.f32.mrb[0].mxu0
          %v9437 = vadd.f32 0.0, %v9436
          %9438 = vmatprep.mubr.bf16.mxu0 %v5505
          %9439 = vmatmul.mubr.bf16.gmra.mrb[0].mxu0 %v5504
          %v9440 = vpop.f32.mrb[0].mxu0
          %v9441 = vadd.f32 0.0, %v9440
          %v9442 = vpop.f32.mrb[0].mxu0
          %v9443 = vadd.f32 0.0, %v9442
          %v9444 = vpop.f32.mrb[0].mxu0
          %v9445 = vadd.f32 0.0, %v9444
          %v9446 = vpop.f32.mrb[0].mxu0
          %v9447 = vadd.f32 0.0, %v9446
          %9448 = vmatprep.mubr.bf16.mxu0 %v5509
          %9449 = vmatmul.mubr.bf16.gmra.mrb[0].mxu0 %v5508
          %v9450 = vpop.f32.mrb[0].mxu0
          %v9451 = vadd.f32 0.0, %v9450
          %v9452 = vpop.f32.mrb[0].mxu0
          %v9453 = vadd.f32 0.0, %v9452
          %v9454 = vpop.f32.mrb[0].mxu0
          %v9455 = vadd.f32 0.0, %v9454
          %v9456 = vpop.f32.mrb[0].mxu0
          %v9457 = vadd.f32 0.0, %v9456
          %9458 = vmatprep.mubr.bf16.mxu0 %v5513
          %9459 = vmatmul.mubr.bf16.gmra.mrb[0].mxu0 %v5512
          %v9460 = vpop.f32.mrb[0].mxu0
          %v9461 = vadd.f32 0.0, %v9460
          %v9462 = vpop.f32.mrb[0].mxu0
          %v9463 = vadd.f32 0.0, %v9462
          %v9464 = vpop.f32.mrb[0].mxu0
          %v9465 = vadd.f32 0.0, %v9464
          %v9466 = vpop.f32.mrb[0].mxu0
          %v9467 = vadd.f32 0.0, %v9466
          %9468 = vmatprep.mubr.bf16.mxu0 %v5517
          %9469 = vmatmul.mubr.bf16.gmra.mrb[0].mxu0 %v5516
          %v9470 = vpop.f32.mrb[0].mxu0
          %v9471 = vadd.f32 0.0, %v9470
          %v9472 = vpop.f32.mrb[0].mxu0
          %v9473 = vadd.f32 0.0, %v9472
          %v9474 = vpop.f32.mrb[0].mxu0
          %v9475 = vadd.f32 0.0, %v9474
          %v9476 = vpop.f32.mrb[0].mxu0
          %v9477 = vadd.f32 0.0, %v9476
          %9478 = vmatprep.mubr.bf16.mxu0 %v5521
          %9479 = vmatmul.mubr.bf16.gmra.mrb[0].mxu0 %v5520
          %v9480 = vpop.f32.mrb[0].mxu0
          %v9481 = vadd.f32 0.0, %v9480
          %v9482 = vpop.f32.mrb[0].mxu0
          %v9483 = vadd.f32 0.0, %v9482
          %v9484 = vpop.f32.mrb[0].mxu0
          %v9485 = vadd.f32 0.0, %v9484
          %v9486 = vpop.f32.mrb[0].mxu0
          %v9487 = vadd.f32 0.0, %v9486
          %9488 = vmatprep.mubr.bf16.mxu0 %v5525
          %9489 = vmatmul.mubr.bf16.gmra.mrb[0].mxu0 %v5524
          %v9490 = vpop.f32.mrb[0].mxu0
          %v9491 = vadd.f32 0.0, %v9490
          %v9492 = vpop.f32.mrb[0].mxu0
          %v9493 = vadd.f32 0.0, %v9492
          %v9494 = vpop.f32.mrb[0].mxu0
          %v9495 = vadd.f32 0.0, %v9494
          %v9496 = vpop.f32.mrb[0].mxu0
          %v9497 = vadd.f32 0.0, %v9496
          %9498 = vmatprep.mubr.bf16.mxu0 %v5529
          %9499 = vmatmul.mubr.bf16.gmra.mrb[0].mxu0 %v5528
          %v9500 = vpop.f32.mrb[0].mxu0
          %v9501 = vadd.f32 0.0, %v9500
          %v9502 = vpop.f32.mrb[0].mxu0
          %v9503 = vadd.f32 0.0, %v9502
          %v9504 = vpop.f32.mrb[0].mxu0
          %v9505 = vadd.f32 0.0, %v9504
          %v9506 = vpop.f32.mrb[0].mxu0
          %v9507 = vadd.f32 0.0, %v9506
          %9508 = vmatprep.mubr.bf16.mxu0 %v5533
          %9509 = vmatmul.mubr.bf16.gmra.mrb[0].mxu0 %v5532
          %v9510 = vpop.f32.mrb[0].mxu0
          %v9511 = vadd.f32 0.0, %v9510
          %v9512 = vpop.f32.mrb[0].mxu0
          %v9513 = vadd.f32 0.0, %v9512
          %v9514 = vpop.f32.mrb[0].mxu0
          %v9515 = vadd.f32 0.0, %v9514
          %v9516 = vpop.f32.mrb[0].mxu0
          %v9517 = vadd.f32 0.0, %v9516
          %9518 = vmatprep.mubr.bf16.mxu0 %v5537
          %9519 = vmatmul.mubr.bf16.gmra.mrb[0].mxu0 %v5536
          %v9520 = vpop.f32.mrb[0].mxu0
          %v9521 = vadd.f32 0.0, %v9520
          %v9522 = vpop.f32.mrb[0].mxu0
          %v9523 = vadd.f32 0.0, %v9522
          %v9524 = vpop.f32.mrb[0].mxu0
          %v9525 = vadd.f32 0.0, %v9524
          %v9526 = vpop.f32.mrb[0].mxu0
          %v9527 = vadd.f32 0.0, %v9526
          %9528 = vmatprep.mubr.bf16.mxu0 %v5541
          %9529 = vmatmul.mubr.bf16.gmra.mrb[0].mxu0 %v5540
          %v9530 = vpop.f32.mrb[0].mxu0
          %v9531 = vadd.f32 0.0, %v9530
          %v9532 = vpop.f32.mrb[0].mxu0
          %v9533 = vadd.f32 0.0, %v9532
          %v9534 = vpop.f32.mrb[0].mxu0
          %v9535 = vadd.f32 0.0, %v9534
          %v9536 = vpop.f32.mrb[0].mxu0
          %v9537 = vadd.f32 0.0, %v9536
          %9538 = vmatprep.mubr.bf16.mxu0 %v5545
          %9539 = vmatmul.mubr.bf16.gmra.mrb[0].mxu0 %v5544
          %v9540 = vpop.f32.mrb[0].mxu0
          %v9541 = vadd.f32 0.0, %v9540
          %v9542 = vpop.f32.mrb[0].mxu0
          %v9543 = vadd.f32 0.0, %v9542
          %v9544 = vpop.f32.mrb[0].mxu0
          %v9545 = vadd.f32 0.0, %v9544
          %v9546 = vpop.f32.mrb[0].mxu0
          %v9547 = vadd.f32 0.0, %v9546
          %9548 = vmatprep.mubr.bf16.mxu0 %v5549
          %9549 = vmatmul.mubr.bf16.gmra.mrb[0].mxu0 %v5548
          %v9550 = vpop.f32.mrb[0].mxu0
          %v9551 = vadd.f32 0.0, %v9550
          %v9552 = vpop.f32.mrb[0].mxu0
          %v9553 = vadd.f32 0.0, %v9552
          %v9554 = vpop.f32.mrb[0].mxu0
          %v9555 = vadd.f32 0.0, %v9554
          %v9556 = vpop.f32.mrb[0].mxu0
          %v9557 = vadd.f32 0.0, %v9556
          %9558 = vdwg.mxu0
          %9559 = vmatprep.subr.bf16.mxu0 %v6711
          %9560 = vmatpush1.bf16.msra.mxu0 %v6710
          %9561 = vmatprep.subr.bf16.mxu0 %v6719
          %9562 = vmatpush1.bf16.msra.mxu0 %v6718
          %9563 = vmatprep.subr.bf16.mxu0 %v6727
          %9564 = vmatpush1.bf16.msra.mxu0 %v6726
          %9565 = vmatprep.subr.bf16.mxu0 %v6735
          %9566 = vmatpush1.bf16.msra.mxu0 %v6734
          %9567 = vmatprep.subr.bf16.mxu0 %v6743
          %9568 = vmatpush1.bf16.msra.mxu0 %v6742
          %9569 = vmatprep.subr.bf16.mxu0 %v6751
          %9570 = vmatpush1.bf16.msra.mxu0 %v6750
          %9571 = vmatprep.subr.bf16.mxu0 %v6759
          %9572 = vmatpush1.bf16.msra.mxu0 %v6758
          %9573 = vmatprep.subr.bf16.mxu0 %v6767
          %9574 = vmatpush1.bf16.msra.mxu0 %v6766
          %9575 = vmatprep.subr.bf16.mxu0 %v6775
          %9576 = vmatpush1.bf16.msra.mxu0 %v6774
          %9577 = vmatprep.subr.bf16.mxu0 %v6783
          %9578 = vmatpush1.bf16.msra.mxu0 %v6782
          %9579 = vmatprep.subr.bf16.mxu0 %v6791
          %9580 = vmatpush1.bf16.msra.mxu0 %v6790
          %9581 = vmatprep.subr.bf16.mxu0 %v6799
          %9582 = vmatpush1.bf16.msra.mxu0 %v6798
          %9583 = vmatprep.subr.bf16.mxu0 %v6807
          %9584 = vmatpush1.bf16.msra.mxu0 %v6806
          %9585 = vmatprep.subr.bf16.mxu0 %v6815
          %9586 = vmatpush1.bf16.msra.mxu0 %v6814
          %9587 = vmatprep.subr.bf16.mxu0 %v6823
          %9588 = vmatpush1.bf16.msra.mxu0 %v6822
          %9589 = vmatprep.subr.bf16.mxu0 %v6831
          %9590 = vmatpush1.bf16.msra.mxu0 %v6830
          %9591 = vmatprep.mubr.bf16.mxu0 %v5427
          %9592 = vmatmul.mubr.bf16.gmra.mrb[0].mxu0 %v5426
          %v9593 = vpop.f32.mrb[0].mxu0
          %v9594 = vadd.f32 %v9241, %v9593
          %v9595 = vpop.f32.mrb[0].mxu0
          %v9596 = vadd.f32 %v9243, %v9595
          %v9597 = vpop.f32.mrb[0].mxu0
          %v9598 = vadd.f32 %v9245, %v9597
          %v9599 = vpop.f32.mrb[0].mxu0
          %v9600 = vadd.f32 %v9247, %v9599
          %9601 = vmatprep.mubr.bf16.mxu0 %v5431
          %9602 = vmatmul.mubr.bf16.gmra.mrb[0].mxu0 %v5430
          %v9603 = vpop.f32.mrb[0].mxu0
          %v9604 = vadd.f32 %v9251, %v9603
          %v9605 = vpop.f32.mrb[0].mxu0
          %v9606 = vadd.f32 %v9253, %v9605
          %v9607 = vpop.f32.mrb[0].mxu0
          %v9608 = vadd.f32 %v9255, %v9607
          %v9609 = vpop.f32.mrb[0].mxu0
          %v9610 = vadd.f32 %v9257, %v9609
          %9611 = vmatprep.mubr.bf16.mxu0 %v5435
          %9612 = vmatmul.mubr.bf16.gmra.mrb[0].mxu0 %v5434
          %v9613 = vpop.f32.mrb[0].mxu0
          %v9614 = vadd.f32 %v9261, %v9613
          %v9615 = vpop.f32.mrb[0].mxu0
          %v9616 = vadd.f32 %v9263, %v9615
          %v9617 = vpop.f32.mrb[0].mxu0
          %v9618 = vadd.f32 %v9265, %v9617
          %v9619 = vpop.f32.mrb[0].mxu0
          %v9620 = vadd.f32 %v9267, %v9619
          %9621 = vmatprep.mubr.bf16.mxu0 %v5439
          %9622 = vmatmul.mubr.bf16.gmra.mrb[0].mxu0 %v5438
          %v9623 = vpop.f32.mrb[0].mxu0
          %v9624 = vadd.f32 %v9271, %v9623
          %v9625 = vpop.f32.mrb[0].mxu0
          %v9626 = vadd.f32 %v9273, %v9625
          %v9627 = vpop.f32.mrb[0].mxu0
          %v9628 = vadd.f32 %v9275, %v9627
          %v9629 = vpop.f32.mrb[0].mxu0
          %v9630 = vadd.f32 %v9277, %v9629
          %9631 = vmatprep.mubr.bf16.mxu0 %v5443
          %9632 = vmatmul.mubr.bf16.gmra.mrb[0].mxu0 %v5442
          %v9633 = vpop.f32.mrb[0].mxu0
          %v9634 = vadd.f32 %v9281, %v9633
          %v9635 = vpop.f32.mrb[0].mxu0
          %v9636 = vadd.f32 %v9283, %v9635
          %v9637 = vpop.f32.mrb[0].mxu0
          %v9638 = vadd.f32 %v9285, %v9637
          %v9639 = vpop.f32.mrb[0].mxu0
          %v9640 = vadd.f32 %v9287, %v9639
          %9641 = vmatprep.mubr.bf16.mxu0 %v5447
          %9642 = vmatmul.mubr.bf16.gmra.mrb[0].mxu0 %v5446
          %v9643 = vpop.f32.mrb[0].mxu0
          %v9644 = vadd.f32 %v9291, %v9643
          %v9645 = vpop.f32.mrb[0].mxu0
          %v9646 = vadd.f32 %v9293, %v9645
          %v9647 = vpop.f32.mrb[0].mxu0
          %v9648 = vadd.f32 %v9295, %v9647
          %v9649 = vpop.f32.mrb[0].mxu0
          %v9650 = vadd.f32 %v9297, %v9649
          %9651 = vmatprep.mubr.bf16.mxu0 %v5451
          %9652 = vmatmul.mubr.bf16.gmra.mrb[0].mxu0 %v5450
          %v9653 = vpop.f32.mrb[0].mxu0
          %v9654 = vadd.f32 %v9301, %v9653
          %v9655 = vpop.f32.mrb[0].mxu0
          %v9656 = vadd.f32 %v9303, %v9655
          %v9657 = vpop.f32.mrb[0].mxu0
          %v9658 = vadd.f32 %v9305, %v9657
          %v9659 = vpop.f32.mrb[0].mxu0
          %v9660 = vadd.f32 %v9307, %v9659
          %9661 = vmatprep.mubr.bf16.mxu0 %v5455
          %9662 = vmatmul.mubr.bf16.gmra.mrb[0].mxu0 %v5454
          %v9663 = vpop.f32.mrb[0].mxu0
          %v9664 = vadd.f32 %v9311, %v9663
          %v9665 = vpop.f32.mrb[0].mxu0
          %v9666 = vadd.f32 %v9313, %v9665
          %v9667 = vpop.f32.mrb[0].mxu0
          %v9668 = vadd.f32 %v9315, %v9667
          %v9669 = vpop.f32.mrb[0].mxu0
          %v9670 = vadd.f32 %v9317, %v9669
          %9671 = vmatprep.mubr.bf16.mxu0 %v5459
          %9672 = vmatmul.mubr.bf16.gmra.mrb[0].mxu0 %v5458
          %v9673 = vpop.f32.mrb[0].mxu0
          %v9674 = vadd.f32 %v9321, %v9673
          %v9675 = vpop.f32.mrb[0].mxu0
          %v9676 = vadd.f32 %v9323, %v9675
          %v9677 = vpop.f32.mrb[0].mxu0
          %v9678 = vadd.f32 %v9325, %v9677
          %v9679 = vpop.f32.mrb[0].mxu0
          %v9680 = vadd.f32 %v9327, %v9679
          %9681 = vmatprep.mubr.bf16.mxu0 %v5463
          %9682 = vmatmul.mubr.bf16.gmra.mrb[0].mxu0 %v5462
          %v9683 = vpop.f32.mrb[0].mxu0
          %v9684 = vadd.f32 %v9331, %v9683
          %v9685 = vpop.f32.mrb[0].mxu0
          %v9686 = vadd.f32 %v9333, %v9685
          %v9687 = vpop.f32.mrb[0].mxu0
          %v9688 = vadd.f32 %v9335, %v9687
          %v9689 = vpop.f32.mrb[0].mxu0
          %v9690 = vadd.f32 %v9337, %v9689
          %9691 = vmatprep.mubr.bf16.mxu0 %v5467
          %9692 = vmatmul.mubr.bf16.gmra.mrb[0].mxu0 %v5466
          %v9693 = vpop.f32.mrb[0].mxu0
          %v9694 = vadd.f32 %v9341, %v9693
          %v9695 = vpop.f32.mrb[0].mxu0
          %v9696 = vadd.f32 %v9343, %v9695
          %v9697 = vpop.f32.mrb[0].mxu0
          %v9698 = vadd.f32 %v9345, %v9697
          %v9699 = vpop.f32.mrb[0].mxu0
          %v9700 = vadd.f32 %v9347, %v9699
          %9701 = vmatprep.mubr.bf16.mxu0 %v5471
          %9702 = vmatmul.mubr.bf16.gmra.mrb[0].mxu0 %v5470
          %v9703 = vpop.f32.mrb[0].mxu0
          %v9704 = vadd.f32 %v9351, %v9703
          %v9705 = vpop.f32.mrb[0].mxu0
          %v9706 = vadd.f32 %v9353, %v9705
          %v9707 = vpop.f32.mrb[0].mxu0
          %v9708 = vadd.f32 %v9355, %v9707
          %v9709 = vpop.f32.mrb[0].mxu0
          %v9710 = vadd.f32 %v9357, %v9709
          %9711 = vmatprep.mubr.bf16.mxu0 %v5475
          %9712 = vmatmul.mubr.bf16.gmra.mrb[0].mxu0 %v5474
          %v9713 = vpop.f32.mrb[0].mxu0
          %v9714 = vadd.f32 %v9361, %v9713
          %v9715 = vpop.f32.mrb[0].mxu0
          %v9716 = vadd.f32 %v9363, %v9715
          %v9717 = vpop.f32.mrb[0].mxu0
          %v9718 = vadd.f32 %v9365, %v9717
          %v9719 = vpop.f32.mrb[0].mxu0
          %v9720 = vadd.f32 %v9367, %v9719
          %9721 = vmatprep.mubr.bf16.mxu0 %v5479
          %9722 = vmatmul.mubr.bf16.gmra.mrb[0].mxu0 %v5478
          %v9723 = vpop.f32.mrb[0].mxu0
          %v9724 = vadd.f32 %v9371, %v9723
          %v9725 = vpop.f32.mrb[0].mxu0
          %v9726 = vadd.f32 %v9373, %v9725
          %v9727 = vpop.f32.mrb[0].mxu0
          %v9728 = vadd.f32 %v9375, %v9727
          %v9729 = vpop.f32.mrb[0].mxu0
          %v9730 = vadd.f32 %v9377, %v9729
          %9731 = vmatprep.mubr.bf16.mxu0 %v5483
          %9732 = vmatmul.mubr.bf16.gmra.mrb[0].mxu0 %v5482
          %v9733 = vpop.f32.mrb[0].mxu0
          %v9734 = vadd.f32 %v9381, %v9733
          %v9735 = vpop.f32.mrb[0].mxu0
          %v9736 = vadd.f32 %v9383, %v9735
          %v9737 = vpop.f32.mrb[0].mxu0
          %v9738 = vadd.f32 %v9385, %v9737
          %v9739 = vpop.f32.mrb[0].mxu0
          %v9740 = vadd.f32 %v9387, %v9739
          %9741 = vmatprep.mubr.bf16.mxu0 %v5487
          %9742 = vmatmul.mubr.bf16.gmra.mrb[0].mxu0 %v5486
          %v9743 = vpop.f32.mrb[0].mxu0
          %v9744 = vadd.f32 %v9391, %v9743
          %v9745 = vpop.f32.mrb[0].mxu0
          %v9746 = vadd.f32 %v9393, %v9745
          %v9747 = vpop.f32.mrb[0].mxu0
          %v9748 = vadd.f32 %v9395, %v9747
          %v9749 = vpop.f32.mrb[0].mxu0
          %v9750 = vadd.f32 %v9397, %v9749
          %9751 = vmatprep.mubr.bf16.mxu0 %v5491
          %9752 = vmatmul.mubr.bf16.gmra.mrb[0].mxu0 %v5490
          %v9753 = vpop.f32.mrb[0].mxu0
          %v9754 = vadd.f32 %v9401, %v9753
          %v9755 = vpop.f32.mrb[0].mxu0
          %v9756 = vadd.f32 %v9403, %v9755
          %v9757 = vpop.f32.mrb[0].mxu0
          %v9758 = vadd.f32 %v9405, %v9757
          %v9759 = vpop.f32.mrb[0].mxu0
          %v9760 = vadd.f32 %v9407, %v9759
          %9761 = vmatprep.mubr.bf16.mxu0 %v5495
          %9762 = vmatmul.mubr.bf16.gmra.mrb[0].mxu0 %v5494
          %v9763 = vpop.f32.mrb[0].mxu0
          %v9764 = vadd.f32 %v9411, %v9763
          %v9765 = vpop.f32.mrb[0].mxu0
          %v9766 = vadd.f32 %v9413, %v9765
          %v9767 = vpop.f32.mrb[0].mxu0
          %v9768 = vadd.f32 %v9415, %v9767
          %v9769 = vpop.f32.mrb[0].mxu0
          %v9770 = vadd.f32 %v9417, %v9769
          %9771 = vmatprep.mubr.bf16.mxu0 %v5499
          %9772 = vmatmul.mubr.bf16.gmra.mrb[0].mxu0 %v5498
          %v9773 = vpop.f32.mrb[0].mxu0
          %v9774 = vadd.f32 %v9421, %v9773
          %v9775 = vpop.f32.mrb[0].mxu0
          %v9776 = vadd.f32 %v9423, %v9775
          %v9777 = vpop.f32.mrb[0].mxu0
          %v9778 = vadd.f32 %v9425, %v9777
          %v9779 = vpop.f32.mrb[0].mxu0
          %v9780 = vadd.f32 %v9427, %v9779
          %9781 = vmatprep.mubr.bf16.mxu0 %v5503
          %9782 = vmatmul.mubr.bf16.gmra.mrb[0].mxu0 %v5502
          %v9783 = vpop.f32.mrb[0].mxu0
          %v9784 = vadd.f32 %v9431, %v9783
          %v9785 = vpop.f32.mrb[0].mxu0
          %v9786 = vadd.f32 %v9433, %v9785
          %v9787 = vpop.f32.mrb[0].mxu0
          %v9788 = vadd.f32 %v9435, %v9787
          %v9789 = vpop.f32.mrb[0].mxu0
          %v9790 = vadd.f32 %v9437, %v9789
          %9791 = vmatprep.mubr.bf16.mxu0 %v5507
          %9792 = vmatmul.mubr.bf16.gmra.mrb[0].mxu0 %v5506
          %v9793 = vpop.f32.mrb[0].mxu0
          %v9794 = vadd.f32 %v9441, %v9793
          %v9795 = vpop.f32.mrb[0].mxu0
          %v9796 = vadd.f32 %v9443, %v9795
          %v9797 = vpop.f32.mrb[0].mxu0
          %v9798 = vadd.f32 %v9445, %v9797
          %v9799 = vpop.f32.mrb[0].mxu0
          %v9800 = vadd.f32 %v9447, %v9799
          %9801 = vmatprep.mubr.bf16.mxu0 %v5511
          %9802 = vmatmul.mubr.bf16.gmra.mrb[0].mxu0 %v5510
          %v9803 = vpop.f32.mrb[0].mxu0
          %v9804 = vadd.f32 %v9451, %v9803
          %v9805 = vpop.f32.mrb[0].mxu0
          %v9806 = vadd.f32 %v9453, %v9805
          %v9807 = vpop.f32.mrb[0].mxu0
          %v9808 = vadd.f32 %v9455, %v9807
          %v9809 = vpop.f32.mrb[0].mxu0
          %v9810 = vadd.f32 %v9457, %v9809
          %9811 = vmatprep.mubr.bf16.mxu0 %v5515
          %9812 = vmatmul.mubr.bf16.gmra.mrb[0].mxu0 %v5514
          %v9813 = vpop.f32.mrb[0].mxu0
          %v9814 = vadd.f32 %v9461, %v9813
          %v9815 = vpop.f32.mrb[0].mxu0
          %v9816 = vadd.f32 %v9463, %v9815
          %v9817 = vpop.f32.mrb[0].mxu0
          %v9818 = vadd.f32 %v9465, %v9817
          %v9819 = vpop.f32.mrb[0].mxu0
          %v9820 = vadd.f32 %v9467, %v9819
          %9821 = vmatprep.mubr.bf16.mxu0 %v5519
          %9822 = vmatmul.mubr.bf16.gmra.mrb[0].mxu0 %v5518
          %v9823 = vpop.f32.mrb[0].mxu0
          %v9824 = vadd.f32 %v9471, %v9823
          %v9825 = vpop.f32.mrb[0].mxu0
          %v9826 = vadd.f32 %v9473, %v9825
          %v9827 = vpop.f32.mrb[0].mxu0
          %v9828 = vadd.f32 %v9475, %v9827
          %v9829 = vpop.f32.mrb[0].mxu0
          %v9830 = vadd.f32 %v9477, %v9829
          %9831 = vmatprep.mubr.bf16.mxu0 %v5523
          %9832 = vmatmul.mubr.bf16.gmra.mrb[0].mxu0 %v5522
          %v9833 = vpop.f32.mrb[0].mxu0
          %v9834 = vadd.f32 %v9481, %v9833
          %v9835 = vpop.f32.mrb[0].mxu0
          %v9836 = vadd.f32 %v9483, %v9835
          %v9837 = vpop.f32.mrb[0].mxu0
          %v9838 = vadd.f32 %v9485, %v9837
          %v9839 = vpop.f32.mrb[0].mxu0
          %v9840 = vadd.f32 %v9487, %v9839
          %9841 = vmatprep.mubr.bf16.mxu0 %v5527
          %9842 = vmatmul.mubr.bf16.gmra.mrb[0].mxu0 %v5526
          %v9843 = vpop.f32.mrb[0].mxu0
          %v9844 = vadd.f32 %v9491, %v9843
          %v9845 = vpop.f32.mrb[0].mxu0
          %v9846 = vadd.f32 %v9493, %v9845
          %v9847 = vpop.f32.mrb[0].mxu0
          %v9848 = vadd.f32 %v9495, %v9847
          %v9849 = vpop.f32.mrb[0].mxu0
          %v9850 = vadd.f32 %v9497, %v9849
          %9851 = vmatprep.mubr.bf16.mxu0 %v5531
          %9852 = vmatmul.mubr.bf16.gmra.mrb[0].mxu0 %v5530
          %v9853 = vpop.f32.mrb[0].mxu0
          %v9854 = vadd.f32 %v9501, %v9853
          %v9855 = vpop.f32.mrb[0].mxu0
          %v9856 = vadd.f32 %v9503, %v9855
          %v9857 = vpop.f32.mrb[0].mxu0
          %v9858 = vadd.f32 %v9505, %v9857
          %v9859 = vpop.f32.mrb[0].mxu0
          %v9860 = vadd.f32 %v9507, %v9859
          %9861 = vmatprep.mubr.bf16.mxu0 %v5535
          %9862 = vmatmul.mubr.bf16.gmra.mrb[0].mxu0 %v5534
          %v9863 = vpop.f32.mrb[0].mxu0
          %v9864 = vadd.f32 %v9511, %v9863
          %v9865 = vpop.f32.mrb[0].mxu0
          %v9866 = vadd.f32 %v9513, %v9865
          %v9867 = vpop.f32.mrb[0].mxu0
          %v9868 = vadd.f32 %v9515, %v9867
          %v9869 = vpop.f32.mrb[0].mxu0
          %v9870 = vadd.f32 %v9517, %v9869
          %9871 = vmatprep.mubr.bf16.mxu0 %v5539
          %9872 = vmatmul.mubr.bf16.gmra.mrb[0].mxu0 %v5538
          %v9873 = vpop.f32.mrb[0].mxu0
          %v9874 = vadd.f32 %v9521, %v9873
          %v9875 = vpop.f32.mrb[0].mxu0
          %v9876 = vadd.f32 %v9523, %v9875
          %v9877 = vpop.f32.mrb[0].mxu0
          %v9878 = vadd.f32 %v9525, %v9877
          %v9879 = vpop.f32.mrb[0].mxu0
          %v9880 = vadd.f32 %v9527, %v9879
          %9881 = vmatprep.mubr.bf16.mxu0 %v5543
          %9882 = vmatmul.mubr.bf16.gmra.mrb[0].mxu0 %v5542
          %v9883 = vpop.f32.mrb[0].mxu0
          %v9884 = vadd.f32 %v9531, %v9883
          %v9885 = vpop.f32.mrb[0].mxu0
          %v9886 = vadd.f32 %v9533, %v9885
          %v9887 = vpop.f32.mrb[0].mxu0
          %v9888 = vadd.f32 %v9535, %v9887
          %v9889 = vpop.f32.mrb[0].mxu0
          %v9890 = vadd.f32 %v9537, %v9889
          %9891 = vmatprep.mubr.bf16.mxu0 %v5547
          %9892 = vmatmul.mubr.bf16.gmra.mrb[0].mxu0 %v5546
          %v9893 = vpop.f32.mrb[0].mxu0
          %v9894 = vadd.f32 %v9541, %v9893
          %v9895 = vpop.f32.mrb[0].mxu0
          %v9896 = vadd.f32 %v9543, %v9895
          %v9897 = vpop.f32.mrb[0].mxu0
          %v9898 = vadd.f32 %v9545, %v9897
          %v9899 = vpop.f32.mrb[0].mxu0
          %v9900 = vadd.f32 %v9547, %v9899
          %9901 = vmatprep.mubr.bf16.mxu0 %v5551
          %9902 = vmatmul.mubr.bf16.gmra.mrb[0].mxu0 %v5550
          %v9903 = vpop.f32.mrb[0].mxu0
          %v9904 = vadd.f32 %v9551, %v9903
          %v9905 = vpop.f32.mrb[0].mxu0
          %v9906 = vadd.f32 %v9553, %v9905
          %v9907 = vpop.f32.mrb[0].mxu0
          %v9908 = vadd.f32 %v9555, %v9907
          %v9909 = vpop.f32.mrb[0].mxu0
          %v9910 = vadd.f32 %v9557, %v9909
          %9911 = vdwg.mxu0
          %v9912 = vld [vmem:[%s9] sm:$0xff]
          %v9914 = vlaneseq
          %v9915 = vshrl.u32 %v9914, 7
          %v9916 = vsub.s32 0, %v9915
          %v9917 = vrot.slane %v9912, %v9916
          %v9918 = vlaneseq
          %v9919 = vshrl.u32 %v9918, 7
          %v9920 = vsub.s32 1, %v9919
          %v9921 = vrot.slane %v9912, %v9920
          %v9922 = vlaneseq
          %v9923 = vshrl.u32 %v9922, 7
          %v9924 = vsub.s32 2, %v9923
          %v9925 = vrot.slane %v9912, %v9924
          %v9926 = vlaneseq
          %v9927 = vshrl.u32 %v9926, 7
          %v9928 = vsub.s32 3, %v9927
          %v9929 = vrot.slane %v9912, %v9928
          %v9930 = vlaneseq
          %v9931 = vshrl.u32 %v9930, 7
          %v9932 = vsub.s32 4, %v9931
          %v9933 = vrot.slane %v9912, %v9932
          %v9934 = vlaneseq
          %v9935 = vshrl.u32 %v9934, 7
          %v9936 = vsub.s32 5, %v9935
          %v9937 = vrot.slane %v9912, %v9936
          %v9938 = vlaneseq
          %v9939 = vshrl.u32 %v9938, 7
          %v9940 = vsub.s32 6, %v9939
          %v9941 = vrot.slane %v9912, %v9940
          %v9942 = vlaneseq
          %v9943 = vshrl.u32 %v9942, 7
          %v9944 = vsub.s32 7, %v9943
          %v9945 = vrot.slane %v9912, %v9944
          %v9954 = vadd.f32 %v7476, %v9917
          %v9955 = vadd.f32 %v7478, %v9921
          %v9956 = vadd.f32 %v8182, %v9925
          %v9957 = vadd.f32 %v8184, %v9929
          %v9958 = vadd.f32 %v8888, %v9933
          %v9959 = vadd.f32 %v8890, %v9937
          %v9960 = vadd.f32 %v9594, %v9941
          %v9961 = vadd.f32 %v9596, %v9945
          %v9962 = vadd.f32 %v7480, %v9917
          %v9963 = vadd.f32 %v7482, %v9921
          %v9964 = vadd.f32 %v8186, %v9925
          %v9965 = vadd.f32 %v8188, %v9929
          %v9966 = vadd.f32 %v8892, %v9933
          %v9967 = vadd.f32 %v8894, %v9937
          %v9968 = vadd.f32 %v9598, %v9941
          %v9969 = vadd.f32 %v9600, %v9945
          %v9970 = vadd.f32 %v7486, %v9917
          %v9971 = vadd.f32 %v7488, %v9921
          %v9972 = vadd.f32 %v8192, %v9925
          %v9973 = vadd.f32 %v8194, %v9929
          %v9974 = vadd.f32 %v8898, %v9933
          %v9975 = vadd.f32 %v8900, %v9937
          %v9976 = vadd.f32 %v9604, %v9941
          %v9977 = vadd.f32 %v9606, %v9945
          %v9978 = vadd.f32 %v7490, %v9917
          %v9979 = vadd.f32 %v7492, %v9921
          %v9980 = vadd.f32 %v8196, %v9925
          %v9981 = vadd.f32 %v8198, %v9929
          %v9982 = vadd.f32 %v8902, %v9933
          %v9983 = vadd.f32 %v8904, %v9937
          %v9984 = vadd.f32 %v9608, %v9941
          %v9985 = vadd.f32 %v9610, %v9945
          %v9986 = vadd.f32 %v7496, %v9917
          %v9987 = vadd.f32 %v7498, %v9921
          %v9988 = vadd.f32 %v8202, %v9925
          %v9989 = vadd.f32 %v8204, %v9929
          %v9990 = vadd.f32 %v8908, %v9933
          %v9991 = vadd.f32 %v8910, %v9937
          %v9992 = vadd.f32 %v9614, %v9941
          %v9993 = vadd.f32 %v9616, %v9945
          %v9994 = vadd.f32 %v7500, %v9917
          %v9995 = vadd.f32 %v7502, %v9921
          %v9996 = vadd.f32 %v8206, %v9925
          %v9997 = vadd.f32 %v8208, %v9929
          %v9998 = vadd.f32 %v8912, %v9933
          %v9999 = vadd.f32 %v8914, %v9937
          %v10000 = vadd.f32 %v9618, %v9941
          %v10001 = vadd.f32 %v9620, %v9945
          %v10002 = vadd.f32 %v7506, %v9917
          %v10003 = vadd.f32 %v7508, %v9921
          %v10004 = vadd.f32 %v8212, %v9925
          %v10005 = vadd.f32 %v8214, %v9929
          %v10006 = vadd.f32 %v8918, %v9933
          %v10007 = vadd.f32 %v8920, %v9937
          %v10008 = vadd.f32 %v9624, %v9941
          %v10009 = vadd.f32 %v9626, %v9945
          %v10010 = vadd.f32 %v7510, %v9917
          %v10011 = vadd.f32 %v7512, %v9921
          %v10012 = vadd.f32 %v8216, %v9925
          %v10013 = vadd.f32 %v8218, %v9929
          %v10014 = vadd.f32 %v8922, %v9933
          %v10015 = vadd.f32 %v8924, %v9937
          %v10016 = vadd.f32 %v9628, %v9941
          %v10017 = vadd.f32 %v9630, %v9945
          %v10018 = vadd.f32 %v7516, %v9917
          %v10019 = vadd.f32 %v7518, %v9921
          %v10020 = vadd.f32 %v8222, %v9925
          %v10021 = vadd.f32 %v8224, %v9929
          %v10022 = vadd.f32 %v8928, %v9933
          %v10023 = vadd.f32 %v8930, %v9937
          %v10024 = vadd.f32 %v9634, %v9941
          %v10025 = vadd.f32 %v9636, %v9945
          %v10026 = vadd.f32 %v7520, %v9917
          %v10027 = vadd.f32 %v7522, %v9921
          %v10028 = vadd.f32 %v8226, %v9925
          %v10029 = vadd.f32 %v8228, %v9929
          %v10030 = vadd.f32 %v8932, %v9933
          %v10031 = vadd.f32 %v8934, %v9937
          %v10032 = vadd.f32 %v9638, %v9941
          %v10033 = vadd.f32 %v9640, %v9945
          %v10034 = vadd.f32 %v7526, %v9917
          %v10035 = vadd.f32 %v7528, %v9921
          %v10036 = vadd.f32 %v8232, %v9925
          %v10037 = vadd.f32 %v8234, %v9929
          %v10038 = vadd.f32 %v8938, %v9933
          %v10039 = vadd.f32 %v8940, %v9937
          %v10040 = vadd.f32 %v9644, %v9941
          %v10041 = vadd.f32 %v9646, %v9945
          %v10042 = vadd.f32 %v7530, %v9917
          %v10043 = vadd.f32 %v7532, %v9921
          %v10044 = vadd.f32 %v8236, %v9925
          %v10045 = vadd.f32 %v8238, %v9929
          %v10046 = vadd.f32 %v8942, %v9933
          %v10047 = vadd.f32 %v8944, %v9937
          %v10048 = vadd.f32 %v9648, %v9941
          %v10049 = vadd.f32 %v9650, %v9945
          %v10050 = vadd.f32 %v7536, %v9917
          %v10051 = vadd.f32 %v7538, %v9921
          %v10052 = vadd.f32 %v8242, %v9925
          %v10053 = vadd.f32 %v8244, %v9929
          %v10054 = vadd.f32 %v8948, %v9933
          %v10055 = vadd.f32 %v8950, %v9937
          %v10056 = vadd.f32 %v9654, %v9941
          %v10057 = vadd.f32 %v9656, %v9945
          %v10058 = vadd.f32 %v7540, %v9917
          %v10059 = vadd.f32 %v7542, %v9921
          %v10060 = vadd.f32 %v8246, %v9925
          %v10061 = vadd.f32 %v8248, %v9929
          %v10062 = vadd.f32 %v8952, %v9933
          %v10063 = vadd.f32 %v8954, %v9937
          %v10064 = vadd.f32 %v9658, %v9941
          %v10065 = vadd.f32 %v9660, %v9945
          %v10066 = vadd.f32 %v7546, %v9917
          %v10067 = vadd.f32 %v7548, %v9921
          %v10068 = vadd.f32 %v8252, %v9925
          %v10069 = vadd.f32 %v8254, %v9929
          %v10070 = vadd.f32 %v8958, %v9933
          %v10071 = vadd.f32 %v8960, %v9937
          %v10072 = vadd.f32 %v9664, %v9941
          %v10073 = vadd.f32 %v9666, %v9945
          %v10074 = vadd.f32 %v7550, %v9917
          %v10075 = vadd.f32 %v7552, %v9921
          %v10076 = vadd.f32 %v8256, %v9925
          %v10077 = vadd.f32 %v8258, %v9929
          %v10078 = vadd.f32 %v8962, %v9933
          %v10079 = vadd.f32 %v8964, %v9937
          %v10080 = vadd.f32 %v9668, %v9941
          %v10081 = vadd.f32 %v9670, %v9945
          %v10082 = vadd.f32 %v7556, %v9917
          %v10083 = vadd.f32 %v7558, %v9921
          %v10084 = vadd.f32 %v8262, %v9925
          %v10085 = vadd.f32 %v8264, %v9929
          %v10086 = vadd.f32 %v8968, %v9933
          %v10087 = vadd.f32 %v8970, %v9937
          %v10088 = vadd.f32 %v9674, %v9941
          %v10089 = vadd.f32 %v9676, %v9945
          %v10090 = vadd.f32 %v7560, %v9917
          %v10091 = vadd.f32 %v7562, %v9921
          %v10092 = vadd.f32 %v8266, %v9925
          %v10093 = vadd.f32 %v8268, %v9929
          %v10094 = vadd.f32 %v8972, %v9933
          %v10095 = vadd.f32 %v8974, %v9937
          %v10096 = vadd.f32 %v9678, %v9941
          %v10097 = vadd.f32 %v9680, %v9945
          %v10098 = vadd.f32 %v7566, %v9917
          %v10099 = vadd.f32 %v7568, %v9921
          %v10100 = vadd.f32 %v8272, %v9925
          %v10101 = vadd.f32 %v8274, %v9929
          %v10102 = vadd.f32 %v8978, %v9933
          %v10103 = vadd.f32 %v8980, %v9937
          %v10104 = vadd.f32 %v9684, %v9941
          %v10105 = vadd.f32 %v9686, %v9945
          %v10106 = vadd.f32 %v7570, %v9917
          %v10107 = vadd.f32 %v7572, %v9921
          %v10108 = vadd.f32 %v8276, %v9925
          %v10109 = vadd.f32 %v8278, %v9929
          %v10110 = vadd.f32 %v8982, %v9933
          %v10111 = vadd.f32 %v8984, %v9937
          %v10112 = vadd.f32 %v9688, %v9941
          %v10113 = vadd.f32 %v9690, %v9945
          %v10114 = vadd.f32 %v7576, %v9917
          %v10115 = vadd.f32 %v7578, %v9921
          %v10116 = vadd.f32 %v8282, %v9925
          %v10117 = vadd.f32 %v8284, %v9929
          %v10118 = vadd.f32 %v8988, %v9933
          %v10119 = vadd.f32 %v8990, %v9937
          %v10120 = vadd.f32 %v9694, %v9941
          %v10121 = vadd.f32 %v9696, %v9945
          %v10122 = vadd.f32 %v7580, %v9917
          %v10123 = vadd.f32 %v7582, %v9921
          %v10124 = vadd.f32 %v8286, %v9925
          %v10125 = vadd.f32 %v8288, %v9929
          %v10126 = vadd.f32 %v8992, %v9933
          %v10127 = vadd.f32 %v8994, %v9937
          %v10128 = vadd.f32 %v9698, %v9941
          %v10129 = vadd.f32 %v9700, %v9945
          %v10130 = vadd.f32 %v7586, %v9917
          %v10131 = vadd.f32 %v7588, %v9921
          %v10132 = vadd.f32 %v8292, %v9925
          %v10133 = vadd.f32 %v8294, %v9929
          %v10134 = vadd.f32 %v8998, %v9933
          %v10135 = vadd.f32 %v9000, %v9937
          %v10136 = vadd.f32 %v9704, %v9941
          %v10137 = vadd.f32 %v9706, %v9945
          %v10138 = vadd.f32 %v7590, %v9917
          %v10139 = vadd.f32 %v7592, %v9921
          %v10140 = vadd.f32 %v8296, %v9925
          %v10141 = vadd.f32 %v8298, %v9929
          %v10142 = vadd.f32 %v9002, %v9933
          %v10143 = vadd.f32 %v9004, %v9937
          %v10144 = vadd.f32 %v9708, %v9941
          %v10145 = vadd.f32 %v9710, %v9945
          %v10146 = vadd.f32 %v7596, %v9917
          %v10147 = vadd.f32 %v7598, %v9921
          %v10148 = vadd.f32 %v8302, %v9925
          %v10149 = vadd.f32 %v8304, %v9929
          %v10150 = vadd.f32 %v9008, %v9933
          %v10151 = vadd.f32 %v9010, %v9937
          %v10152 = vadd.f32 %v9714, %v9941
          %v10153 = vadd.f32 %v9716, %v9945
          %v10154 = vadd.f32 %v7600, %v9917
          %v10155 = vadd.f32 %v7602, %v9921
          %v10156 = vadd.f32 %v8306, %v9925
          %v10157 = vadd.f32 %v8308, %v9929
          %v10158 = vadd.f32 %v9012, %v9933
          %v10159 = vadd.f32 %v9014, %v9937
          %v10160 = vadd.f32 %v9718, %v9941
          %v10161 = vadd.f32 %v9720, %v9945
          %v10162 = vadd.f32 %v7606, %v9917
          %v10163 = vadd.f32 %v7608, %v9921
          %v10164 = vadd.f32 %v8312, %v9925
          %v10165 = vadd.f32 %v8314, %v9929
          %v10166 = vadd.f32 %v9018, %v9933
          %v10167 = vadd.f32 %v9020, %v9937
          %v10168 = vadd.f32 %v9724, %v9941
          %v10169 = vadd.f32 %v9726, %v9945
          %v10170 = vadd.f32 %v7610, %v9917
          %v10171 = vadd.f32 %v7612, %v9921
          %v10172 = vadd.f32 %v8316, %v9925
          %v10173 = vadd.f32 %v8318, %v9929
          %v10174 = vadd.f32 %v9022, %v9933
          %v10175 = vadd.f32 %v9024, %v9937
          %v10176 = vadd.f32 %v9728, %v9941
          %v10177 = vadd.f32 %v9730, %v9945
          %v10178 = vadd.f32 %v7616, %v9917
          %v10179 = vadd.f32 %v7618, %v9921
          %v10180 = vadd.f32 %v8322, %v9925
          %v10181 = vadd.f32 %v8324, %v9929
          %v10182 = vadd.f32 %v9028, %v9933
          %v10183 = vadd.f32 %v9030, %v9937
          %v10184 = vadd.f32 %v9734, %v9941
          %v10185 = vadd.f32 %v9736, %v9945
          %v10186 = vadd.f32 %v7620, %v9917
          %v10187 = vadd.f32 %v7622, %v9921
          %v10188 = vadd.f32 %v8326, %v9925
          %v10189 = vadd.f32 %v8328, %v9929
          %v10190 = vadd.f32 %v9032, %v9933
          %v10191 = vadd.f32 %v9034, %v9937
          %v10192 = vadd.f32 %v9738, %v9941
          %v10193 = vadd.f32 %v9740, %v9945
          %v10194 = vadd.f32 %v7626, %v9917
          %v10195 = vadd.f32 %v7628, %v9921
          %v10196 = vadd.f32 %v8332, %v9925
          %v10197 = vadd.f32 %v8334, %v9929
          %v10198 = vadd.f32 %v9038, %v9933
          %v10199 = vadd.f32 %v9040, %v9937
          %v10200 = vadd.f32 %v9744, %v9941
          %v10201 = vadd.f32 %v9746, %v9945
          %v10202 = vadd.f32 %v7630, %v9917
          %v10203 = vadd.f32 %v7632, %v9921
          %v10204 = vadd.f32 %v8336, %v9925
          %v10205 = vadd.f32 %v8338, %v9929
          %v10206 = vadd.f32 %v9042, %v9933
          %v10207 = vadd.f32 %v9044, %v9937
          %v10208 = vadd.f32 %v9748, %v9941
          %v10209 = vadd.f32 %v9750, %v9945
          %v10210 = vadd.f32 %v7636, %v9917
          %v10211 = vadd.f32 %v7638, %v9921
          %v10212 = vadd.f32 %v8342, %v9925
          %v10213 = vadd.f32 %v8344, %v9929
          %v10214 = vadd.f32 %v9048, %v9933
          %v10215 = vadd.f32 %v9050, %v9937
          %v10216 = vadd.f32 %v9754, %v9941
          %v10217 = vadd.f32 %v9756, %v9945
          %v10218 = vadd.f32 %v7640, %v9917
          %v10219 = vadd.f32 %v7642, %v9921
          %v10220 = vadd.f32 %v8346, %v9925
          %v10221 = vadd.f32 %v8348, %v9929
          %v10222 = vadd.f32 %v9052, %v9933
          %v10223 = vadd.f32 %v9054, %v9937
          %v10224 = vadd.f32 %v9758, %v9941
          %v10225 = vadd.f32 %v9760, %v9945
          %v10226 = vadd.f32 %v7646, %v9917
          %v10227 = vadd.f32 %v7648, %v9921
          %v10228 = vadd.f32 %v8352, %v9925
          %v10229 = vadd.f32 %v8354, %v9929
          %v10230 = vadd.f32 %v9058, %v9933
          %v10231 = vadd.f32 %v9060, %v9937
          %v10232 = vadd.f32 %v9764, %v9941
          %v10233 = vadd.f32 %v9766, %v9945
          %v10234 = vadd.f32 %v7650, %v9917
          %v10235 = vadd.f32 %v7652, %v9921
          %v10236 = vadd.f32 %v8356, %v9925
          %v10237 = vadd.f32 %v8358, %v9929
          %v10238 = vadd.f32 %v9062, %v9933
          %v10239 = vadd.f32 %v9064, %v9937
          %v10240 = vadd.f32 %v9768, %v9941
          %v10241 = vadd.f32 %v9770, %v9945
          %v10242 = vadd.f32 %v7656, %v9917
          %v10243 = vadd.f32 %v7658, %v9921
          %v10244 = vadd.f32 %v8362, %v9925
          %v10245 = vadd.f32 %v8364, %v9929
          %v10246 = vadd.f32 %v9068, %v9933
          %v10247 = vadd.f32 %v9070, %v9937
          %v10248 = vadd.f32 %v9774, %v9941
          %v10249 = vadd.f32 %v9776, %v9945
          %v10250 = vadd.f32 %v7660, %v9917
          %v10251 = vadd.f32 %v7662, %v9921
          %v10252 = vadd.f32 %v8366, %v9925
          %v10253 = vadd.f32 %v8368, %v9929
          %v10254 = vadd.f32 %v9072, %v9933
          %v10255 = vadd.f32 %v9074, %v9937
          %v10256 = vadd.f32 %v9778, %v9941
          %v10257 = vadd.f32 %v9780, %v9945
          %v10258 = vadd.f32 %v7666, %v9917
          %v10259 = vadd.f32 %v7668, %v9921
          %v10260 = vadd.f32 %v8372, %v9925
          %v10261 = vadd.f32 %v8374, %v9929
          %v10262 = vadd.f32 %v9078, %v9933
          %v10263 = vadd.f32 %v9080, %v9937
          %v10264 = vadd.f32 %v9784, %v9941
          %v10265 = vadd.f32 %v9786, %v9945
          %v10266 = vadd.f32 %v7670, %v9917
          %v10267 = vadd.f32 %v7672, %v9921
          %v10268 = vadd.f32 %v8376, %v9925
          %v10269 = vadd.f32 %v8378, %v9929
          %v10270 = vadd.f32 %v9082, %v9933
          %v10271 = vadd.f32 %v9084, %v9937
          %v10272 = vadd.f32 %v9788, %v9941
          %v10273 = vadd.f32 %v9790, %v9945
          %v10274 = vadd.f32 %v7676, %v9917
          %v10275 = vadd.f32 %v7678, %v9921
          %v10276 = vadd.f32 %v8382, %v9925
          %v10277 = vadd.f32 %v8384, %v9929
          %v10278 = vadd.f32 %v9088, %v9933
          %v10279 = vadd.f32 %v9090, %v9937
          %v10280 = vadd.f32 %v9794, %v9941
          %v10281 = vadd.f32 %v9796, %v9945
          %v10282 = vadd.f32 %v7680, %v9917
          %v10283 = vadd.f32 %v7682, %v9921
          %v10284 = vadd.f32 %v8386, %v9925
          %v10285 = vadd.f32 %v8388, %v9929
          %v10286 = vadd.f32 %v9092, %v9933
          %v10287 = vadd.f32 %v9094, %v9937
          %v10288 = vadd.f32 %v9798, %v9941
          %v10289 = vadd.f32 %v9800, %v9945
          %v10290 = vadd.f32 %v7686, %v9917
          %v10291 = vadd.f32 %v7688, %v9921
          %v10292 = vadd.f32 %v8392, %v9925
          %v10293 = vadd.f32 %v8394, %v9929
          %v10294 = vadd.f32 %v9098, %v9933
          %v10295 = vadd.f32 %v9100, %v9937
          %v10296 = vadd.f32 %v9804, %v9941
          %v10297 = vadd.f32 %v9806, %v9945
          %v10298 = vadd.f32 %v7690, %v9917
          %v10299 = vadd.f32 %v7692, %v9921
          %v10300 = vadd.f32 %v8396, %v9925
          %v10301 = vadd.f32 %v8398, %v9929
          %v10302 = vadd.f32 %v9102, %v9933
          %v10303 = vadd.f32 %v9104, %v9937
          %v10304 = vadd.f32 %v9808, %v9941
          %v10305 = vadd.f32 %v9810, %v9945
          %v10306 = vadd.f32 %v7696, %v9917
          %v10307 = vadd.f32 %v7698, %v9921
          %v10308 = vadd.f32 %v8402, %v9925
          %v10309 = vadd.f32 %v8404, %v9929
          %v10310 = vadd.f32 %v9108, %v9933
          %v10311 = vadd.f32 %v9110, %v9937
          %v10312 = vadd.f32 %v9814, %v9941
          %v10313 = vadd.f32 %v9816, %v9945
          %v10314 = vadd.f32 %v7700, %v9917
          %v10315 = vadd.f32 %v7702, %v9921
          %v10316 = vadd.f32 %v8406, %v9925
          %v10317 = vadd.f32 %v8408, %v9929
          %v10318 = vadd.f32 %v9112, %v9933
          %v10319 = vadd.f32 %v9114, %v9937
          %v10320 = vadd.f32 %v9818, %v9941
          %v10321 = vadd.f32 %v9820, %v9945
          %v10322 = vadd.f32 %v7706, %v9917
          %v10323 = vadd.f32 %v7708, %v9921
          %v10324 = vadd.f32 %v8412, %v9925
          %v10325 = vadd.f32 %v8414, %v9929
          %v10326 = vadd.f32 %v9118, %v9933
          %v10327 = vadd.f32 %v9120, %v9937
          %v10328 = vadd.f32 %v9824, %v9941
          %v10329 = vadd.f32 %v9826, %v9945
          %v10330 = vadd.f32 %v7710, %v9917
          %v10331 = vadd.f32 %v7712, %v9921
          %v10332 = vadd.f32 %v8416, %v9925
          %v10333 = vadd.f32 %v8418, %v9929
          %v10334 = vadd.f32 %v9122, %v9933
          %v10335 = vadd.f32 %v9124, %v9937
          %v10336 = vadd.f32 %v9828, %v9941
          %v10337 = vadd.f32 %v9830, %v9945
          %v10338 = vadd.f32 %v7716, %v9917
          %v10339 = vadd.f32 %v7718, %v9921
          %v10340 = vadd.f32 %v8422, %v9925
          %v10341 = vadd.f32 %v8424, %v9929
          %v10342 = vadd.f32 %v9128, %v9933
          %v10343 = vadd.f32 %v9130, %v9937
          %v10344 = vadd.f32 %v9834, %v9941
          %v10345 = vadd.f32 %v9836, %v9945
          %v10346 = vadd.f32 %v7720, %v9917
          %v10347 = vadd.f32 %v7722, %v9921
          %v10348 = vadd.f32 %v8426, %v9925
          %v10349 = vadd.f32 %v8428, %v9929
          %v10350 = vadd.f32 %v9132, %v9933
          %v10351 = vadd.f32 %v9134, %v9937
          %v10352 = vadd.f32 %v9838, %v9941
          %v10353 = vadd.f32 %v9840, %v9945
          %v10354 = vadd.f32 %v7726, %v9917
          %v10355 = vadd.f32 %v7728, %v9921
          %v10356 = vadd.f32 %v8432, %v9925
          %v10357 = vadd.f32 %v8434, %v9929
          %v10358 = vadd.f32 %v9138, %v9933
          %v10359 = vadd.f32 %v9140, %v9937
          %v10360 = vadd.f32 %v9844, %v9941
          %v10361 = vadd.f32 %v9846, %v9945
          %v10362 = vadd.f32 %v7730, %v9917
          %v10363 = vadd.f32 %v7732, %v9921
          %v10364 = vadd.f32 %v8436, %v9925
          %v10365 = vadd.f32 %v8438, %v9929
          %v10366 = vadd.f32 %v9142, %v9933
          %v10367 = vadd.f32 %v9144, %v9937
          %v10368 = vadd.f32 %v9848, %v9941
          %v10369 = vadd.f32 %v9850, %v9945
          %v10370 = vadd.f32 %v7736, %v9917
          %v10371 = vadd.f32 %v7738, %v9921
          %v10372 = vadd.f32 %v8442, %v9925
          %v10373 = vadd.f32 %v8444, %v9929
          %v10374 = vadd.f32 %v9148, %v9933
          %v10375 = vadd.f32 %v9150, %v9937
          %v10376 = vadd.f32 %v9854, %v9941
          %v10377 = vadd.f32 %v9856, %v9945
          %v10378 = vadd.f32 %v7740, %v9917
          %v10379 = vadd.f32 %v7742, %v9921
          %v10380 = vadd.f32 %v8446, %v9925
          %v10381 = vadd.f32 %v8448, %v9929
          %v10382 = vadd.f32 %v9152, %v9933
          %v10383 = vadd.f32 %v9154, %v9937
          %v10384 = vadd.f32 %v9858, %v9941
          %v10385 = vadd.f32 %v9860, %v9945
          %v10386 = vadd.f32 %v7746, %v9917
          %v10387 = vadd.f32 %v7748, %v9921
          %v10388 = vadd.f32 %v8452, %v9925
          %v10389 = vadd.f32 %v8454, %v9929
          %v10390 = vadd.f32 %v9158, %v9933
          %v10391 = vadd.f32 %v9160, %v9937
          %v10392 = vadd.f32 %v9864, %v9941
          %v10393 = vadd.f32 %v9866, %v9945
          %v10394 = vadd.f32 %v7750, %v9917
          %v10395 = vadd.f32 %v7752, %v9921
          %v10396 = vadd.f32 %v8456, %v9925
          %v10397 = vadd.f32 %v8458, %v9929
          %v10398 = vadd.f32 %v9162, %v9933
          %v10399 = vadd.f32 %v9164, %v9937
          %v10400 = vadd.f32 %v9868, %v9941
          %v10401 = vadd.f32 %v9870, %v9945
          %v10402 = vadd.f32 %v7756, %v9917
          %v10403 = vadd.f32 %v7758, %v9921
          %v10404 = vadd.f32 %v8462, %v9925
          %v10405 = vadd.f32 %v8464, %v9929
          %v10406 = vadd.f32 %v9168, %v9933
          %v10407 = vadd.f32 %v9170, %v9937
          %v10408 = vadd.f32 %v9874, %v9941
          %v10409 = vadd.f32 %v9876, %v9945
          %v10410 = vadd.f32 %v7760, %v9917
          %v10411 = vadd.f32 %v7762, %v9921
          %v10412 = vadd.f32 %v8466, %v9925
          %v10413 = vadd.f32 %v8468, %v9929
          %v10414 = vadd.f32 %v9172, %v9933
          %v10415 = vadd.f32 %v9174, %v9937
          %v10416 = vadd.f32 %v9878, %v9941
          %v10417 = vadd.f32 %v9880, %v9945
          %v10418 = vadd.f32 %v7766, %v9917
          %v10419 = vadd.f32 %v7768, %v9921
          %v10420 = vadd.f32 %v8472, %v9925
          %v10421 = vadd.f32 %v8474, %v9929
          %v10422 = vadd.f32 %v9178, %v9933
          %v10423 = vadd.f32 %v9180, %v9937
          %v10424 = vadd.f32 %v9884, %v9941
          %v10425 = vadd.f32 %v9886, %v9945
          %v10426 = vadd.f32 %v7770, %v9917
          %v10427 = vadd.f32 %v7772, %v9921
          %v10428 = vadd.f32 %v8476, %v9925
          %v10429 = vadd.f32 %v8478, %v9929
          %v10430 = vadd.f32 %v9182, %v9933
          %v10431 = vadd.f32 %v9184, %v9937
          %v10432 = vadd.f32 %v9888, %v9941
          %v10433 = vadd.f32 %v9890, %v9945
          %v10434 = vadd.f32 %v7776, %v9917
          %v10435 = vadd.f32 %v7778, %v9921
          %v10436 = vadd.f32 %v8482, %v9925
          %v10437 = vadd.f32 %v8484, %v9929
          %v10438 = vadd.f32 %v9188, %v9933
          %v10439 = vadd.f32 %v9190, %v9937
          %v10440 = vadd.f32 %v9894, %v9941
          %v10441 = vadd.f32 %v9896, %v9945
          %v10442 = vadd.f32 %v7780, %v9917
          %v10443 = vadd.f32 %v7782, %v9921
          %v10444 = vadd.f32 %v8486, %v9925
          %v10445 = vadd.f32 %v8488, %v9929
          %v10446 = vadd.f32 %v9192, %v9933
          %v10447 = vadd.f32 %v9194, %v9937
          %v10448 = vadd.f32 %v9898, %v9941
          %v10449 = vadd.f32 %v9900, %v9945
          %v10450 = vadd.f32 %v7786, %v9917
          %v10451 = vadd.f32 %v7788, %v9921
          %v10452 = vadd.f32 %v8492, %v9925
          %v10453 = vadd.f32 %v8494, %v9929
          %v10454 = vadd.f32 %v9198, %v9933
          %v10455 = vadd.f32 %v9200, %v9937
          %v10456 = vadd.f32 %v9904, %v9941
          %v10457 = vadd.f32 %v9906, %v9945
          %v10458 = vadd.f32 %v7790, %v9917
          %v10459 = vadd.f32 %v7792, %v9921
          %v10460 = vadd.f32 %v8496, %v9925
          %v10461 = vadd.f32 %v8498, %v9929
          %v10462 = vadd.f32 %v9202, %v9933
          %v10463 = vadd.f32 %v9204, %v9937
          %v10464 = vadd.f32 %v9908, %v9941
          %v10465 = vadd.f32 %v9910, %v9945
          %v10466 = vld [vmem:[#allocation4] sm:$0xff]
          %v10467 = vld [vmem:[#allocation4 + $0x8] sm:$0xff]
          %v10468 = vmax.f32 %v9954, %v9962
          %v10469 = vmax.f32 %v10468, %v9970
          %v10470 = vmax.f32 %v10469, %v9978
          %v10471 = vmax.f32 %v10470, %v9986
          %v10472 = vmax.f32 %v10471, %v9994
          %v10473 = vmax.f32 %v10472, %v10002
          %v10474 = vmax.f32 %v10473, %v10010
          %v10475 = vmax.f32 %v10474, %v10018
          %v10476 = vmax.f32 %v10475, %v10026
          %v10477 = vmax.f32 %v10476, %v10034
          %v10478 = vmax.f32 %v10477, %v10042
          %v10479 = vmax.f32 %v10478, %v10050
          %v10480 = vmax.f32 %v10479, %v10058
          %v10481 = vmax.f32 %v10480, %v10066
          %v10482 = vmax.f32 %v10481, %v10074
          %v10483 = vmax.f32 %v10482, %v10082
          %v10484 = vmax.f32 %v10483, %v10090
          %v10485 = vmax.f32 %v10484, %v10098
          %v10486 = vmax.f32 %v10485, %v10106
          %v10487 = vmax.f32 %v10486, %v10114
          %v10488 = vmax.f32 %v10487, %v10122
          %v10489 = vmax.f32 %v10488, %v10130
          %v10490 = vmax.f32 %v10489, %v10138
          %v10491 = vmax.f32 %v10490, %v10146
          %v10492 = vmax.f32 %v10491, %v10154
          %v10493 = vmax.f32 %v10492, %v10162
          %v10494 = vmax.f32 %v10493, %v10170
          %v10495 = vmax.f32 %v10494, %v10178
          %v10496 = vmax.f32 %v10495, %v10186
          %v10497 = vmax.f32 %v10496, %v10194
          %v10498 = vmax.f32 %v10497, %v10202
          %v10499 = vrot.slane %v10498, 4
          %v10500 = vmax.f32 %v10498, %v10499
          %v10501 = vrot.slane %v10500, 2
          %v10502 = vmax.f32 %v10500, %v10501
          %v10503 = vrot.slane %v10502, 1
          %v10504 = vmax.f32 %v10502, %v10503
          %v10505 = vmax.f32 %v9955, %v9963
          %v10506 = vmax.f32 %v10505, %v9971
          %v10507 = vmax.f32 %v10506, %v9979
          %v10508 = vmax.f32 %v10507, %v9987
          %v10509 = vmax.f32 %v10508, %v9995
          %v10510 = vmax.f32 %v10509, %v10003
          %v10511 = vmax.f32 %v10510, %v10011
          %v10512 = vmax.f32 %v10511, %v10019
          %v10513 = vmax.f32 %v10512, %v10027
          %v10514 = vmax.f32 %v10513, %v10035
          %v10515 = vmax.f32 %v10514, %v10043
          %v10516 = vmax.f32 %v10515, %v10051
          %v10517 = vmax.f32 %v10516, %v10059
          %v10518 = vmax.f32 %v10517, %v10067
          %v10519 = vmax.f32 %v10518, %v10075
          %v10520 = vmax.f32 %v10519, %v10083
          %v10521 = vmax.f32 %v10520, %v10091
          %v10522 = vmax.f32 %v10521, %v10099
          %v10523 = vmax.f32 %v10522, %v10107
          %v10524 = vmax.f32 %v10523, %v10115
          %v10525 = vmax.f32 %v10524, %v10123
          %v10526 = vmax.f32 %v10525, %v10131
          %v10527 = vmax.f32 %v10526, %v10139
          %v10528 = vmax.f32 %v10527, %v10147
          %v10529 = vmax.f32 %v10528, %v10155
          %v10530 = vmax.f32 %v10529, %v10163
          %v10531 = vmax.f32 %v10530, %v10171
          %v10532 = vmax.f32 %v10531, %v10179
          %v10533 = vmax.f32 %v10532, %v10187
          %v10534 = vmax.f32 %v10533, %v10195
          %v10535 = vmax.f32 %v10534, %v10203
          %v10536 = vrot.slane %v10535, 4
          %v10537 = vmax.f32 %v10535, %v10536
          %v10538 = vrot.slane %v10537, 2
          %v10539 = vmax.f32 %v10537, %v10538
          %v10540 = vrot.slane %v10539, 1
          %v10541 = vmax.f32 %v10539, %v10540
          %v10542 = vmax.f32 %v9956, %v9964
          %v10543 = vmax.f32 %v10542, %v9972
          %v10544 = vmax.f32 %v10543, %v9980
          %v10545 = vmax.f32 %v10544, %v9988
          %v10546 = vmax.f32 %v10545, %v9996
          %v10547 = vmax.f32 %v10546, %v10004
          %v10548 = vmax.f32 %v10547, %v10012
          %v10549 = vmax.f32 %v10548, %v10020
          %v10550 = vmax.f32 %v10549, %v10028
          %v10551 = vmax.f32 %v10550, %v10036
          %v10552 = vmax.f32 %v10551, %v10044
          %v10553 = vmax.f32 %v10552, %v10052
          %v10554 = vmax.f32 %v10553, %v10060
          %v10555 = vmax.f32 %v10554, %v10068
          %v10556 = vmax.f32 %v10555, %v10076
          %v10557 = vmax.f32 %v10556, %v10084
          %v10558 = vmax.f32 %v10557, %v10092
          %v10559 = vmax.f32 %v10558, %v10100
          %v10560 = vmax.f32 %v10559, %v10108
          %v10561 = vmax.f32 %v10560, %v10116
          %v10562 = vmax.f32 %v10561, %v10124
          %v10563 = vmax.f32 %v10562, %v10132
          %v10564 = vmax.f32 %v10563, %v10140
          %v10565 = vmax.f32 %v10564, %v10148
          %v10566 = vmax.f32 %v10565, %v10156
          %v10567 = vmax.f32 %v10566, %v10164
          %v10568 = vmax.f32 %v10567, %v10172
          %v10569 = vmax.f32 %v10568, %v10180
          %v10570 = vmax.f32 %v10569, %v10188
          %v10571 = vmax.f32 %v10570, %v10196
          %v10572 = vmax.f32 %v10571, %v10204
          %v10573 = vrot.slane %v10572, 4
          %v10574 = vmax.f32 %v10572, %v10573
          %v10575 = vrot.slane %v10574, 2
          %v10576 = vmax.f32 %v10574, %v10575
          %v10577 = vrot.slane %v10576, 1
          %v10578 = vmax.f32 %v10576, %v10577
          %v10579 = vmax.f32 %v9957, %v9965
          %v10580 = vmax.f32 %v10579, %v9973
          %v10581 = vmax.f32 %v10580, %v9981
          %v10582 = vmax.f32 %v10581, %v9989
          %v10583 = vmax.f32 %v10582, %v9997
          %v10584 = vmax.f32 %v10583, %v10005
          %v10585 = vmax.f32 %v10584, %v10013
          %v10586 = vmax.f32 %v10585, %v10021
          %v10587 = vmax.f32 %v10586, %v10029
          %v10588 = vmax.f32 %v10587, %v10037
          %v10589 = vmax.f32 %v10588, %v10045
          %v10590 = vmax.f32 %v10589, %v10053
          %v10591 = vmax.f32 %v10590, %v10061
          %v10592 = vmax.f32 %v10591, %v10069
          %v10593 = vmax.f32 %v10592, %v10077
          %v10594 = vmax.f32 %v10593, %v10085
          %v10595 = vmax.f32 %v10594, %v10093
          %v10596 = vmax.f32 %v10595, %v10101
          %v10597 = vmax.f32 %v10596, %v10109
          %v10598 = vmax.f32 %v10597, %v10117
          %v10599 = vmax.f32 %v10598, %v10125
          %v10600 = vmax.f32 %v10599, %v10133
          %v10601 = vmax.f32 %v10600, %v10141
          %v10602 = vmax.f32 %v10601, %v10149
          %v10603 = vmax.f32 %v10602, %v10157
          %v10604 = vmax.f32 %v10603, %v10165
          %v10605 = vmax.f32 %v10604, %v10173
          %v10606 = vmax.f32 %v10605, %v10181
          %v10607 = vmax.f32 %v10606, %v10189
          %v10608 = vmax.f32 %v10607, %v10197
          %v10609 = vmax.f32 %v10608, %v10205
          %v10610 = vrot.slane %v10609, 4
          %v10611 = vmax.f32 %v10609, %v10610
          %v10612 = vrot.slane %v10611, 2
          %v10613 = vmax.f32 %v10611, %v10612
          %v10614 = vrot.slane %v10613, 1
          %v10615 = vmax.f32 %v10613, %v10614
          %v10616 = vmax.f32 %v9958, %v9966
          %v10617 = vmax.f32 %v10616, %v9974
          %v10618 = vmax.f32 %v10617, %v9982
          %v10619 = vmax.f32 %v10618, %v9990
          %v10620 = vmax.f32 %v10619, %v9998
          %v10621 = vmax.f32 %v10620, %v10006
          %v10622 = vmax.f32 %v10621, %v10014
          %v10623 = vmax.f32 %v10622, %v10022
          %v10624 = vmax.f32 %v10623, %v10030
          %v10625 = vmax.f32 %v10624, %v10038
          %v10626 = vmax.f32 %v10625, %v10046
          %v10627 = vmax.f32 %v10626, %v10054
          %v10628 = vmax.f32 %v10627, %v10062
          %v10629 = vmax.f32 %v10628, %v10070
          %v10630 = vmax.f32 %v10629, %v10078
          %v10631 = vmax.f32 %v10630, %v10086
          %v10632 = vmax.f32 %v10631, %v10094
          %v10633 = vmax.f32 %v10632, %v10102
          %v10634 = vmax.f32 %v10633, %v10110
          %v10635 = vmax.f32 %v10634, %v10118
          %v10636 = vmax.f32 %v10635, %v10126
          %v10637 = vmax.f32 %v10636, %v10134
          %v10638 = vmax.f32 %v10637, %v10142
          %v10639 = vmax.f32 %v10638, %v10150
          %v10640 = vmax.f32 %v10639, %v10158
          %v10641 = vmax.f32 %v10640, %v10166
          %v10642 = vmax.f32 %v10641, %v10174
          %v10643 = vmax.f32 %v10642, %v10182
          %v10644 = vmax.f32 %v10643, %v10190
          %v10645 = vmax.f32 %v10644, %v10198
          %v10646 = vmax.f32 %v10645, %v10206
          %v10647 = vrot.slane %v10646, 4
          %v10648 = vmax.f32 %v10646, %v10647
          %v10649 = vrot.slane %v10648, 2
          %v10650 = vmax.f32 %v10648, %v10649
          %v10651 = vrot.slane %v10650, 1
          %v10652 = vmax.f32 %v10650, %v10651
          %v10653 = vmax.f32 %v9959, %v9967
          %v10654 = vmax.f32 %v10653, %v9975
          %v10655 = vmax.f32 %v10654, %v9983
          %v10656 = vmax.f32 %v10655, %v9991
          %v10657 = vmax.f32 %v10656, %v9999
          %v10658 = vmax.f32 %v10657, %v10007
          %v10659 = vmax.f32 %v10658, %v10015
          %v10660 = vmax.f32 %v10659, %v10023
          %v10661 = vmax.f32 %v10660, %v10031
          %v10662 = vmax.f32 %v10661, %v10039
          %v10663 = vmax.f32 %v10662, %v10047
          %v10664 = vmax.f32 %v10663, %v10055
          %v10665 = vmax.f32 %v10664, %v10063
          %v10666 = vmax.f32 %v10665, %v10071
          %v10667 = vmax.f32 %v10666, %v10079
          %v10668 = vmax.f32 %v10667, %v10087
          %v10669 = vmax.f32 %v10668, %v10095
          %v10670 = vmax.f32 %v10669, %v10103
          %v10671 = vmax.f32 %v10670, %v10111
          %v10672 = vmax.f32 %v10671, %v10119
          %v10673 = vmax.f32 %v10672, %v10127
          %v10674 = vmax.f32 %v10673, %v10135
          %v10675 = vmax.f32 %v10674, %v10143
          %v10676 = vmax.f32 %v10675, %v10151
          %v10677 = vmax.f32 %v10676, %v10159
          %v10678 = vmax.f32 %v10677, %v10167
          %v10679 = vmax.f32 %v10678, %v10175
          %v10680 = vmax.f32 %v10679, %v10183
          %v10681 = vmax.f32 %v10680, %v10191
          %v10682 = vmax.f32 %v10681, %v10199
          %v10683 = vmax.f32 %v10682, %v10207
          %v10684 = vrot.slane %v10683, 4
          %v10685 = vmax.f32 %v10683, %v10684
          %v10686 = vrot.slane %v10685, 2
          %v10687 = vmax.f32 %v10685, %v10686
          %v10688 = vrot.slane %v10687, 1
          %v10689 = vmax.f32 %v10687, %v10688
          %v10690 = vmax.f32 %v9960, %v9968
          %v10691 = vmax.f32 %v10690, %v9976
          %v10692 = vmax.f32 %v10691, %v9984
          %v10693 = vmax.f32 %v10692, %v9992
          %v10694 = vmax.f32 %v10693, %v10000
          %v10695 = vmax.f32 %v10694, %v10008
          %v10696 = vmax.f32 %v10695, %v10016
          %v10697 = vmax.f32 %v10696, %v10024
          %v10698 = vmax.f32 %v10697, %v10032
          %v10699 = vmax.f32 %v10698, %v10040
          %v10700 = vmax.f32 %v10699, %v10048
          %v10701 = vmax.f32 %v10700, %v10056
          %v10702 = vmax.f32 %v10701, %v10064
          %v10703 = vmax.f32 %v10702, %v10072
          %v10704 = vmax.f32 %v10703, %v10080
          %v10705 = vmax.f32 %v10704, %v10088
          %v10706 = vmax.f32 %v10705, %v10096
          %v10707 = vmax.f32 %v10706, %v10104
          %v10708 = vmax.f32 %v10707, %v10112
          %v10709 = vmax.f32 %v10708, %v10120
          %v10710 = vmax.f32 %v10709, %v10128
          %v10711 = vmax.f32 %v10710, %v10136
          %v10712 = vmax.f32 %v10711, %v10144
          %v10713 = vmax.f32 %v10712, %v10152
          %v10714 = vmax.f32 %v10713, %v10160
          %v10715 = vmax.f32 %v10714, %v10168
          %v10716 = vmax.f32 %v10715, %v10176
          %v10717 = vmax.f32 %v10716, %v10184
          %v10718 = vmax.f32 %v10717, %v10192
          %v10719 = vmax.f32 %v10718, %v10200
          %v10720 = vmax.f32 %v10719, %v10208
          %v10721 = vrot.slane %v10720, 4
          %v10722 = vmax.f32 %v10720, %v10721
          %v10723 = vrot.slane %v10722, 2
          %v10724 = vmax.f32 %v10722, %v10723
          %v10725 = vrot.slane %v10724, 1
          %v10726 = vmax.f32 %v10724, %v10725
          %v10727 = vmax.f32 %v9961, %v9969
          %v10728 = vmax.f32 %v10727, %v9977
          %v10729 = vmax.f32 %v10728, %v9985
          %v10730 = vmax.f32 %v10729, %v9993
          %v10731 = vmax.f32 %v10730, %v10001
          %v10732 = vmax.f32 %v10731, %v10009
          %v10733 = vmax.f32 %v10732, %v10017
          %v10734 = vmax.f32 %v10733, %v10025
          %v10735 = vmax.f32 %v10734, %v10033
          %v10736 = vmax.f32 %v10735, %v10041
          %v10737 = vmax.f32 %v10736, %v10049
          %v10738 = vmax.f32 %v10737, %v10057
          %v10739 = vmax.f32 %v10738, %v10065
          %v10740 = vmax.f32 %v10739, %v10073
          %v10741 = vmax.f32 %v10740, %v10081
          %v10742 = vmax.f32 %v10741, %v10089
          %v10743 = vmax.f32 %v10742, %v10097
          %v10744 = vmax.f32 %v10743, %v10105
          %v10745 = vmax.f32 %v10744, %v10113
          %v10746 = vmax.f32 %v10745, %v10121
          %v10747 = vmax.f32 %v10746, %v10129
          %v10748 = vmax.f32 %v10747, %v10137
          %v10749 = vmax.f32 %v10748, %v10145
          %v10750 = vmax.f32 %v10749, %v10153
          %v10751 = vmax.f32 %v10750, %v10161
          %v10752 = vmax.f32 %v10751, %v10169
          %v10753 = vmax.f32 %v10752, %v10177
          %v10754 = vmax.f32 %v10753, %v10185
          %v10755 = vmax.f32 %v10754, %v10193
          %v10756 = vmax.f32 %v10755, %v10201
          %v10757 = vmax.f32 %v10756, %v10209
          %v10758 = vrot.slane %v10757, 4
          %v10759 = vmax.f32 %v10757, %v10758
          %v10760 = vrot.slane %v10759, 2
          %v10761 = vmax.f32 %v10759, %v10760
          %v10762 = vrot.slane %v10761, 1
          %v10763 = vmax.f32 %v10761, %v10762
          %v10764 = vmax.f32 %v10210, %v10218
          %v10765 = vmax.f32 %v10764, %v10226
          %v10766 = vmax.f32 %v10765, %v10234
          %v10767 = vmax.f32 %v10766, %v10242
          %v10768 = vmax.f32 %v10767, %v10250
          %v10769 = vmax.f32 %v10768, %v10258
          %v10770 = vmax.f32 %v10769, %v10266
          %v10771 = vmax.f32 %v10770, %v10274
          %v10772 = vmax.f32 %v10771, %v10282
          %v10773 = vmax.f32 %v10772, %v10290
          %v10774 = vmax.f32 %v10773, %v10298
          %v10775 = vmax.f32 %v10774, %v10306
          %v10776 = vmax.f32 %v10775, %v10314
          %v10777 = vmax.f32 %v10776, %v10322
          %v10778 = vmax.f32 %v10777, %v10330
          %v10779 = vmax.f32 %v10778, %v10338
          %v10780 = vmax.f32 %v10779, %v10346
          %v10781 = vmax.f32 %v10780, %v10354
          %v10782 = vmax.f32 %v10781, %v10362
          %v10783 = vmax.f32 %v10782, %v10370
          %v10784 = vmax.f32 %v10783, %v10378
          %v10785 = vmax.f32 %v10784, %v10386
          %v10786 = vmax.f32 %v10785, %v10394
          %v10787 = vmax.f32 %v10786, %v10402
          %v10788 = vmax.f32 %v10787, %v10410
          %v10789 = vmax.f32 %v10788, %v10418
          %v10790 = vmax.f32 %v10789, %v10426
          %v10791 = vmax.f32 %v10790, %v10434
          %v10792 = vmax.f32 %v10791, %v10442
          %v10793 = vmax.f32 %v10792, %v10450
          %v10794 = vmax.f32 %v10793, %v10458
          %v10795 = vrot.slane %v10794, 4
          %v10796 = vmax.f32 %v10794, %v10795
          %v10797 = vrot.slane %v10796, 2
          %v10798 = vmax.f32 %v10796, %v10797
          %v10799 = vrot.slane %v10798, 1
          %v10800 = vmax.f32 %v10798, %v10799
          %v10801 = vmax.f32 %v10211, %v10219
          %v10802 = vmax.f32 %v10801, %v10227
          %v10803 = vmax.f32 %v10802, %v10235
          %v10804 = vmax.f32 %v10803, %v10243
          %v10805 = vmax.f32 %v10804, %v10251
          %v10806 = vmax.f32 %v10805, %v10259
          %v10807 = vmax.f32 %v10806, %v10267
          %v10808 = vmax.f32 %v10807, %v10275
          %v10809 = vmax.f32 %v10808, %v10283
          %v10810 = vmax.f32 %v10809, %v10291
          %v10811 = vmax.f32 %v10810, %v10299
          %v10812 = vmax.f32 %v10811, %v10307
          %v10813 = vmax.f32 %v10812, %v10315
          %v10814 = vmax.f32 %v10813, %v10323
          %v10815 = vmax.f32 %v10814, %v10331
          %v10816 = vmax.f32 %v10815, %v10339
          %v10817 = vmax.f32 %v10816, %v10347
          %v10818 = vmax.f32 %v10817, %v10355
          %v10819 = vmax.f32 %v10818, %v10363
          %v10820 = vmax.f32 %v10819, %v10371
          %v10821 = vmax.f32 %v10820, %v10379
          %v10822 = vmax.f32 %v10821, %v10387
          %v10823 = vmax.f32 %v10822, %v10395
          %v10824 = vmax.f32 %v10823, %v10403
          %v10825 = vmax.f32 %v10824, %v10411
          %v10826 = vmax.f32 %v10825, %v10419
          %v10827 = vmax.f32 %v10826, %v10427
          %v10828 = vmax.f32 %v10827, %v10435
          %v10829 = vmax.f32 %v10828, %v10443
          %v10830 = vmax.f32 %v10829, %v10451
          %v10831 = vmax.f32 %v10830, %v10459
          %v10832 = vrot.slane %v10831, 4
          %v10833 = vmax.f32 %v10831, %v10832
          %v10834 = vrot.slane %v10833, 2
          %v10835 = vmax.f32 %v10833, %v10834
          %v10836 = vrot.slane %v10835, 1
          %v10837 = vmax.f32 %v10835, %v10836
          %v10838 = vmax.f32 %v10212, %v10220
          %v10839 = vmax.f32 %v10838, %v10228
          %v10840 = vmax.f32 %v10839, %v10236
          %v10841 = vmax.f32 %v10840, %v10244
          %v10842 = vmax.f32 %v10841, %v10252
          %v10843 = vmax.f32 %v10842, %v10260
          %v10844 = vmax.f32 %v10843, %v10268
          %v10845 = vmax.f32 %v10844, %v10276
          %v10846 = vmax.f32 %v10845, %v10284
          %v10847 = vmax.f32 %v10846, %v10292
          %v10848 = vmax.f32 %v10847, %v10300
          %v10849 = vmax.f32 %v10848, %v10308
          %v10850 = vmax.f32 %v10849, %v10316
          %v10851 = vmax.f32 %v10850, %v10324
          %v10852 = vmax.f32 %v10851, %v10332
          %v10853 = vmax.f32 %v10852, %v10340
          %v10854 = vmax.f32 %v10853, %v10348
          %v10855 = vmax.f32 %v10854, %v10356
          %v10856 = vmax.f32 %v10855, %v10364
          %v10857 = vmax.f32 %v10856, %v10372
          %v10858 = vmax.f32 %v10857, %v10380
          %v10859 = vmax.f32 %v10858, %v10388
          %v10860 = vmax.f32 %v10859, %v10396
          %v10861 = vmax.f32 %v10860, %v10404
          %v10862 = vmax.f32 %v10861, %v10412
          %v10863 = vmax.f32 %v10862, %v10420
          %v10864 = vmax.f32 %v10863, %v10428
          %v10865 = vmax.f32 %v10864, %v10436
          %v10866 = vmax.f32 %v10865, %v10444
          %v10867 = vmax.f32 %v10866, %v10452
          %v10868 = vmax.f32 %v10867, %v10460
          %v10869 = vrot.slane %v10868, 4
          %v10870 = vmax.f32 %v10868, %v10869
          %v10871 = vrot.slane %v10870, 2
          %v10872 = vmax.f32 %v10870, %v10871
          %v10873 = vrot.slane %v10872, 1
          %v10874 = vmax.f32 %v10872, %v10873
          %v10875 = vmax.f32 %v10213, %v10221
          %v10876 = vmax.f32 %v10875, %v10229
          %v10877 = vmax.f32 %v10876, %v10237
          %v10878 = vmax.f32 %v10877, %v10245
          %v10879 = vmax.f32 %v10878, %v10253
          %v10880 = vmax.f32 %v10879, %v10261
          %v10881 = vmax.f32 %v10880, %v10269
          %v10882 = vmax.f32 %v10881, %v10277
          %v10883 = vmax.f32 %v10882, %v10285
          %v10884 = vmax.f32 %v10883, %v10293
          %v10885 = vmax.f32 %v10884, %v10301
          %v10886 = vmax.f32 %v10885, %v10309
          %v10887 = vmax.f32 %v10886, %v10317
          %v10888 = vmax.f32 %v10887, %v10325
          %v10889 = vmax.f32 %v10888, %v10333
          %v10890 = vmax.f32 %v10889, %v10341
          %v10891 = vmax.f32 %v10890, %v10349
          %v10892 = vmax.f32 %v10891, %v10357
          %v10893 = vmax.f32 %v10892, %v10365
          %v10894 = vmax.f32 %v10893, %v10373
          %v10895 = vmax.f32 %v10894, %v10381
          %v10896 = vmax.f32 %v10895, %v10389
          %v10897 = vmax.f32 %v10896, %v10397
          %v10898 = vmax.f32 %v10897, %v10405
          %v10899 = vmax.f32 %v10898, %v10413
          %v10900 = vmax.f32 %v10899, %v10421
          %v10901 = vmax.f32 %v10900, %v10429
          %v10902 = vmax.f32 %v10901, %v10437
          %v10903 = vmax.f32 %v10902, %v10445
          %v10904 = vmax.f32 %v10903, %v10453
          %v10905 = vmax.f32 %v10904, %v10461
          %v10906 = vrot.slane %v10905, 4
          %v10907 = vmax.f32 %v10905, %v10906
          %v10908 = vrot.slane %v10907, 2
          %v10909 = vmax.f32 %v10907, %v10908
          %v10910 = vrot.slane %v10909, 1
          %v10911 = vmax.f32 %v10909, %v10910
          %v10912 = vmax.f32 %v10214, %v10222
          %v10913 = vmax.f32 %v10912, %v10230
          %v10914 = vmax.f32 %v10913, %v10238
          %v10915 = vmax.f32 %v10914, %v10246
          %v10916 = vmax.f32 %v10915, %v10254
          %v10917 = vmax.f32 %v10916, %v10262
          %v10918 = vmax.f32 %v10917, %v10270
          %v10919 = vmax.f32 %v10918, %v10278
          %v10920 = vmax.f32 %v10919, %v10286
          %v10921 = vmax.f32 %v10920, %v10294
          %v10922 = vmax.f32 %v10921, %v10302
          %v10923 = vmax.f32 %v10922, %v10310
          %v10924 = vmax.f32 %v10923, %v10318
          %v10925 = vmax.f32 %v10924, %v10326
          %v10926 = vmax.f32 %v10925, %v10334
          %v10927 = vmax.f32 %v10926, %v10342
          %v10928 = vmax.f32 %v10927, %v10350
          %v10929 = vmax.f32 %v10928, %v10358
          %v10930 = vmax.f32 %v10929, %v10366
          %v10931 = vmax.f32 %v10930, %v10374
          %v10932 = vmax.f32 %v10931, %v10382
          %v10933 = vmax.f32 %v10932, %v10390
          %v10934 = vmax.f32 %v10933, %v10398
          %v10935 = vmax.f32 %v10934, %v10406
          %v10936 = vmax.f32 %v10935, %v10414
          %v10937 = vmax.f32 %v10936, %v10422
          %v10938 = vmax.f32 %v10937, %v10430
          %v10939 = vmax.f32 %v10938, %v10438
          %v10940 = vmax.f32 %v10939, %v10446
          %v10941 = vmax.f32 %v10940, %v10454
          %v10942 = vmax.f32 %v10941, %v10462
          %v10943 = vrot.slane %v10942, 4
          %v10944 = vmax.f32 %v10942, %v10943
          %v10945 = vrot.slane %v10944, 2
          %v10946 = vmax.f32 %v10944, %v10945
          %v10947 = vrot.slane %v10946, 1
          %v10948 = vmax.f32 %v10946, %v10947
          %v10949 = vmax.f32 %v10215, %v10223
          %v10950 = vmax.f32 %v10949, %v10231
          %v10951 = vmax.f32 %v10950, %v10239
          %v10952 = vmax.f32 %v10951, %v10247
          %v10953 = vmax.f32 %v10952, %v10255
          %v10954 = vmax.f32 %v10953, %v10263
          %v10955 = vmax.f32 %v10954, %v10271
          %v10956 = vmax.f32 %v10955, %v10279
          %v10957 = vmax.f32 %v10956, %v10287
          %v10958 = vmax.f32 %v10957, %v10295
          %v10959 = vmax.f32 %v10958, %v10303
          %v10960 = vmax.f32 %v10959, %v10311
          %v10961 = vmax.f32 %v10960, %v10319
          %v10962 = vmax.f32 %v10961, %v10327
          %v10963 = vmax.f32 %v10962, %v10335
          %v10964 = vmax.f32 %v10963, %v10343
          %v10965 = vmax.f32 %v10964, %v10351
          %v10966 = vmax.f32 %v10965, %v10359
          %v10967 = vmax.f32 %v10966, %v10367
          %v10968 = vmax.f32 %v10967, %v10375
          %v10969 = vmax.f32 %v10968, %v10383
          %v10970 = vmax.f32 %v10969, %v10391
          %v10971 = vmax.f32 %v10970, %v10399
          %v10972 = vmax.f32 %v10971, %v10407
          %v10973 = vmax.f32 %v10972, %v10415
          %v10974 = vmax.f32 %v10973, %v10423
          %v10975 = vmax.f32 %v10974, %v10431
          %v10976 = vmax.f32 %v10975, %v10439
          %v10977 = vmax.f32 %v10976, %v10447
          %v10978 = vmax.f32 %v10977, %v10455
          %v10979 = vmax.f32 %v10978, %v10463
          %v10980 = vrot.slane %v10979, 4
          %v10981 = vmax.f32 %v10979, %v10980
          %v10982 = vrot.slane %v10981, 2
          %v10983 = vmax.f32 %v10981, %v10982
          %v10984 = vrot.slane %v10983, 1
          %v10985 = vmax.f32 %v10983, %v10984
          %v10986 = vmax.f32 %v10216, %v10224
          %v10987 = vmax.f32 %v10986, %v10232
          %v10988 = vmax.f32 %v10987, %v10240
          %v10989 = vmax.f32 %v10988, %v10248
          %v10990 = vmax.f32 %v10989, %v10256
          %v10991 = vmax.f32 %v10990, %v10264
          %v10992 = vmax.f32 %v10991, %v10272
          %v10993 = vmax.f32 %v10992, %v10280
          %v10994 = vmax.f32 %v10993, %v10288
          %v10995 = vmax.f32 %v10994, %v10296
          %v10996 = vmax.f32 %v10995, %v10304
          %v10997 = vmax.f32 %v10996, %v10312
          %v10998 = vmax.f32 %v10997, %v10320
          %v10999 = vmax.f32 %v10998, %v10328
          %v11000 = vmax.f32 %v10999, %v10336
          %v11001 = vmax.f32 %v11000, %v10344
          %v11002 = vmax.f32 %v11001, %v10352
          %v11003 = vmax.f32 %v11002, %v10360
          %v11004 = vmax.f32 %v11003, %v10368
          %v11005 = vmax.f32 %v11004, %v10376
          %v11006 = vmax.f32 %v11005, %v10384
          %v11007 = vmax.f32 %v11006, %v10392
          %v11008 = vmax.f32 %v11007, %v10400
          %v11009 = vmax.f32 %v11008, %v10408
          %v11010 = vmax.f32 %v11009, %v10416
          %v11011 = vmax.f32 %v11010, %v10424
          %v11012 = vmax.f32 %v11011, %v10432
          %v11013 = vmax.f32 %v11012, %v10440
          %v11014 = vmax.f32 %v11013, %v10448
          %v11015 = vmax.f32 %v11014, %v10456
          %v11016 = vmax.f32 %v11015, %v10464
          %v11017 = vrot.slane %v11016, 4
          %v11018 = vmax.f32 %v11016, %v11017
          %v11019 = vrot.slane %v11018, 2
          %v11020 = vmax.f32 %v11018, %v11019
          %v11021 = vrot.slane %v11020, 1
          %v11022 = vmax.f32 %v11020, %v11021
          %v11023 = vmax.f32 %v10217, %v10225
          %v11024 = vmax.f32 %v11023, %v10233
          %v11025 = vmax.f32 %v11024, %v10241
          %v11026 = vmax.f32 %v11025, %v10249
          %v11027 = vmax.f32 %v11026, %v10257
          %v11028 = vmax.f32 %v11027, %v10265
          %v11029 = vmax.f32 %v11028, %v10273
          %v11030 = vmax.f32 %v11029, %v10281
          %v11031 = vmax.f32 %v11030, %v10289
          %v11032 = vmax.f32 %v11031, %v10297
          %v11033 = vmax.f32 %v11032, %v10305
          %v11034 = vmax.f32 %v11033, %v10313
          %v11035 = vmax.f32 %v11034, %v10321
          %v11036 = vmax.f32 %v11035, %v10329
          %v11037 = vmax.f32 %v11036, %v10337
          %v11038 = vmax.f32 %v11037, %v10345
          %v11039 = vmax.f32 %v11038, %v10353
          %v11040 = vmax.f32 %v11039, %v10361
          %v11041 = vmax.f32 %v11040, %v10369
          %v11042 = vmax.f32 %v11041, %v10377
          %v11043 = vmax.f32 %v11042, %v10385
          %v11044 = vmax.f32 %v11043, %v10393
          %v11045 = vmax.f32 %v11044, %v10401
          %v11046 = vmax.f32 %v11045, %v10409
          %v11047 = vmax.f32 %v11046, %v10417
          %v11048 = vmax.f32 %v11047, %v10425
          %v11049 = vmax.f32 %v11048, %v10433
          %v11050 = vmax.f32 %v11049, %v10441
          %v11051 = vmax.f32 %v11050, %v10449
          %v11052 = vmax.f32 %v11051, %v10457
          %v11053 = vmax.f32 %v11052, %v10465
          %v11054 = vrot.slane %v11053, 4
          %v11055 = vmax.f32 %v11053, %v11054
          %v11056 = vrot.slane %v11055, 2
          %v11057 = vmax.f32 %v11055, %v11056
          %v11058 = vrot.slane %v11057, 1
          %v11059 = vmax.f32 %v11057, %v11058
          %v11076 = vcombine.low %v10504, %v10541
          %v11077 = vcombine.low %v10578, %v10615
          %v11079 = vunpack.c.l.s4 1983009808
          %v11080 = vunpack.c.0.s8 %v11079
          %v11081 = vlaneseq
          %v11082 = vshrl.u32 %v11081, 7
          %v11083 = vsub.s32 %v11080, %v11082
          %v11084 = vrot.slane %v11076, %v11083
          %v11086 = vunpack.c.l.s4 1983009808
          %v11087 = vunpack.c.0.s8 %v11086
          %v11088 = vlaneseq
          %v11089 = vshrl.u32 %v11088, 7
          %v11090 = vsub.s32 %v11087, %v11089
          %v11091 = vrot.slane %v11077, %v11090
          %v11092 = vcombine.low %v11084, %v11091
          %v11093 = vcombine.low %v10652, %v10689
          %v11094 = vcombine.low %v10726, %v10763
          %v11096 = vunpack.c.l.s4 1983009808
          %v11097 = vunpack.c.0.s8 %v11096
          %v11098 = vlaneseq
          %v11099 = vshrl.u32 %v11098, 7
          %v11100 = vsub.s32 %v11097, %v11099
          %v11101 = vrot.slane %v11093, %v11100
          %v11103 = vunpack.c.l.s4 1983009808
          %v11104 = vunpack.c.0.s8 %v11103
          %v11105 = vlaneseq
          %v11106 = vshrl.u32 %v11105, 7
          %v11107 = vsub.s32 %v11104, %v11106
          %v11108 = vrot.slane %v11094, %v11107
          %v11109 = vcombine.low %v11101, %v11108
          %v11110 = vcombine.low %v10800, %v10837
          %v11111 = vcombine.low %v10874, %v10911
          %v11113 = vunpack.c.l.s4 1983009808
          %v11114 = vunpack.c.0.s8 %v11113
          %v11115 = vlaneseq
          %v11116 = vshrl.u32 %v11115, 7
          %v11117 = vsub.s32 %v11114, %v11116
          %v11118 = vrot.slane %v11110, %v11117
          %v11120 = vunpack.c.l.s4 1983009808
          %v11121 = vunpack.c.0.s8 %v11120
          %v11122 = vlaneseq
          %v11123 = vshrl.u32 %v11122, 7
          %v11124 = vsub.s32 %v11121, %v11123
          %v11125 = vrot.slane %v11111, %v11124
          %v11126 = vcombine.low %v11118, %v11125
          %v11127 = vcombine.low %v10948, %v10985
          %v11128 = vcombine.low %v11022, %v11059
          %v11130 = vunpack.c.l.s4 1983009808
          %v11131 = vunpack.c.0.s8 %v11130
          %v11132 = vlaneseq
          %v11133 = vshrl.u32 %v11132, 7
          %v11134 = vsub.s32 %v11131, %v11133
          %v11135 = vrot.slane %v11127, %v11134
          %v11137 = vunpack.c.l.s4 1983009808
          %v11138 = vunpack.c.0.s8 %v11137
          %v11139 = vlaneseq
          %v11140 = vshrl.u32 %v11139, 7
          %v11141 = vsub.s32 %v11138, %v11140
          %v11142 = vrot.slane %v11128, %v11141
          %v11143 = vcombine.low %v11135, %v11142
          %vm11144 = vcmask 1044484
          %v11145 = vsel %vm11144, %v11092, %v11092
          %vm11146 = vcmask 1046534
          %v11147 = vsel %vm11146, %v11092, %v11145
          %v11148 = vrot.slane %v11126, 7
          %v11149 = vsel %vm4148, %v11148, %v11147
          %vm11150 = vcmask 1043459
          %v11151 = vsel %vm11150, %v11148, %v11149
          %vm11152 = vcmask 1045509
          %v11153 = vsel %vm11152, %v11148, %v11151
          %vm11154 = vcmask 1047559
          %v11155 = vsel %vm11154, %v11148, %v11153
          %v11156 = vsel %vm11144, %v11109, %v11109
          %v11157 = vsel %vm11146, %v11109, %v11156
          %v11158 = vrot.slane %v11143, 7
          %v11159 = vsel %vm4148, %v11158, %v11157
          %v11160 = vsel %vm11150, %v11158, %v11159
          %v11161 = vsel %vm11152, %v11158, %v11160
          %v11162 = vsel %vm11154, %v11158, %v11161
          %v11165 = vmax.f32 %v10466, %v11155
          %v11166 = vmax.f32 %v10467, %v11162
          %11167 = vst [vmem:[#allocation4] sm:$0xff] %v11165
          %11168 = vst [vmem:[#allocation4 + $0x8] sm:$0xff] %v11166
        $region80: #{tpu_custom_call.1} parent=59 // pred_fallthru
          _
        %p11169 = pnand %p2758, %p430
        %p11170 = pneg %p11169
        // Predicated region
        $region81: #{tpu_custom_call.1} parent=59 // pred_check
          _
        $region82: #{tpu_custom_call.1} parent=59 // pred_check_branch
          %11172 = sbr.rel (%p11169) target = $region84
        $region83: #{tpu_custom_call.1} parent=59 // pred_region
          %v11173 = vld [vmem:[#allocation4] sm:$0xff]
          %v11174 = vld [vmem:[#allocation4 + $0x8] sm:$0xff]
          %11175 = vst [vmem:[%s415] sm:$0xff] %v11173
          %11176 = vst [vmem:[%s415 + $0x8] sm:$0xff] %v11174
        $region84: #{tpu_custom_call.1} parent=59 // pred_fallthru
          _
        %s11177 = sand.u32 %s270, 1
        %s11178 = scalar_lea.sflag [#allocation7], %s11177
        %s11179 = sand.u32 %s270, 1
        %s11180 = smul.addr %s11179, 16
        %s11181 = scalar_lea.vmem [#allocation10], %s11180
        // Predicated region
        $region85: #{tpu_custom_call.1} parent=59 // pred_check
          %p11182 = pneg %p280
        $region86: #{tpu_custom_call.1} parent=59 // pred_check_branch
          %11184 = sbr.rel (%p11182) target = $region88
        $region87: #{tpu_custom_call.1} parent=59 // pred_region
          %s11186 = ssub.s32 256, 256
          %11187 = vsyncadd %s11178, %s11186
          %s11188 = smul.addr %s31, 8
          %s11189 = smul.addr %s11188, 32
          %s11190 = scalar_lea.hbm %s10, %s11189
          %s11192 = sshll.u32 %s11181, 4
          %s11193 = int_to_ptr.vmem [resolvable:$true] %s11192
          %11195 = dma.vmem_to_hbm [thread:$0]  %s11193, 256, %s11190, %s11178
        $region88: #{tpu_custom_call.1} parent=59 // pred_fallthru
          _
      $region60: #{tpu_custom_call.1} parent=5 // pred_fallthru
        _
      %p11196 = scmp.le.s32.totalorder 2, %s21
      // Predicated region
      $region89: #{tpu_custom_call.1} parent=5 // pred_check
        %p11197 = pneg %p11196
      $region90: #{tpu_custom_call.1} parent=5 // pred_check_branch
        %11199 = sbr.rel (%p11197) target = $region92
      $region91: #{tpu_custom_call.1} parent=5 // pred_region
        %s11200 = ssub.s32 %s21, 2
        // Predicated region
        $region93: #{tpu_custom_call.1} parent=91 // pred_check
          %p11201 = pneg %p286
        $region94: #{tpu_custom_call.1} parent=91 // pred_check_branch
          %11203 = sbr.rel (%p11201) target = $region96
        $region95: #{tpu_custom_call.1} parent=91 // pred_region
          %s11204 = sand.u32 %s271, 1
          %s11205 = scalar_lea.sflag [#allocation7], %s11204
          %s11206 = sand.u32 %s271, 1
          %s11207 = smul.addr %s11206, 16
          %s11208 = scalar_lea.vmem [#allocation10], %s11207
          %11209 = dma.done %s11205, 256
        $region96: #{tpu_custom_call.1} parent=91 // pred_fallthru
          _
      $region92: #{tpu_custom_call.1} parent=5 // pred_fallthru
        _
    $region6: #{tpu_custom_call.1} parent=1 // loop_footer
      %s25 = sadd.s32 1, %s21
    $region7: #{tpu_custom_call.1} parent=1 // loop_footer_branch
      %20 = sbr.rel target = $region3
    $region8: #{tpu_custom_call.1} parent=1 // loop_exit
      _
    %11210 = vsyncpa [#allocation6], 1
    %s11211 = scalar_lea.sflag [#allocation6], 1
    %11212 = vsyncpa %s11211, 1
    %11213 = vsyncpa [#allocation9], 1
    %11214 = vsyncpa [#allocation7], 1
    %s11215 = scalar_lea.sflag [#allocation7], 1
    %11216 = vsyncpa %s11215, 1

</llo_original>
